<compile_context>
chip_gen: v5e
topology: v5e:2x2
jax: 0.10.0
libtpu: 0.0.40
codegen_flags: <defaults>
</compile_context>

<pallas_src>
import functools

import jax
import jax.numpy as jnp
from jax.experimental import pallas as pl
from jax.experimental.pallas import tpu as pltpu

# ----------------------------- model config --------------------------------
VOCAB = 64
VOCAB_PAD = 128          # lane-dense logits store (multiple of 128)
D_MODEL = 32
N_HEADS = 4
HEAD_DIM = D_MODEL // N_HEADS
D_FF = 64
N_LAYERS = 8
N_EARLY = 2              # n -> early layers [0, n)
M_LOOP = 4               # m -> loop layers  [n, m]
MAX_LOOP_COUNT = 5
RMS_EPS = 1e-6


# ----------------------------- fused kernel --------------------------------
def _fused_forward_kernel(ids_ref, bias_ref, hsel_ref, cos_ref, sin_ref,
                          embed_ref, ln1_ref, wqkv_ref, wo_ref,
                          ln2_ref, wgu_ref, wd_ref, fnorm_ref, lm_ref,
                          o_ref, *, batch, seq, num_heads,
                          early_ids, loop_ids, late_ids, k_loops):
    BS = batch * seq
    D = embed_ref.shape[1]
    vocab = embed_ref.shape[0]
    dff = wd_ref.shape[1]

    # ---- embedding lookup as a one-hot matmul (gather-free, one MXU issue) ----
    ids = ids_ref[...]                                               # (BS, 1) i32
    onehot = jnp.where(
        ids == jax.lax.broadcasted_iota(jnp.int32, (BS, vocab), 1),
        1.0, 0.0).astype(jnp.bfloat16)                               # (BS, V)
    x = jnp.dot(onehot, embed_ref[...],
                preferred_element_type=jnp.float32)                  # (BS, D) f32

    # ---- tables loaded once, reused by every layer ----
    cosf = cos_ref[...]                                              # (BS, D) f32
    sinf = sin_ref[...]                                              # (BS, D) f32
    hsel = hsel_ref[...]                                             # (H, D)  f32
    bias = bias_ref[...]                                             # (H*BS, BS) f32

    def _rms(xf, w16):
        var = jnp.mean(xf * xf, axis=-1, keepdims=True)
        return xf * jax.lax.rsqrt(var + RMS_EPS) * w16.astype(jnp.float32)

    def apply_layer(li, xf):
        # ---------------- attention block ----------------
        xn = _rms(xf, ln1_ref[li]).astype(jnp.bfloat16)              # (BS, D) bf16
        # fused [Wq*s | Wq*s@R | Wk | Wk@R | Wv]: rotate_half and score scale
        # are pre-folded into the weights -> RoPE is just two FMAs.
        qkv = jnp.dot(xn, wqkv_ref[li],
                      preferred_element_type=jnp.float32)            # (BS, 5D)
        q = qkv[:, 0 * D:1 * D] * cosf + qkv[:, 1 * D:2 * D] * sinf
        kk = qkv[:, 2 * D:3 * D] * cosf + qkv[:, 3 * D:4 * D] * sinf
        k16 = kk.astype(jnp.bfloat16)
        v16 = qkv[:, 4 * D:5 * D].astype(jnp.bfloat16)

        # block-diagonal layout: replicate q per head (masked to its own lanes)
        # along the sublane axis so all-head QK^T and PV are ONE matmul each.
        qb = jnp.concatenate(
            [q * hsel[h:h + 1, :] for h in range(num_heads)],
            axis=0).astype(jnp.bfloat16)                             # (H*BS, D)
        s = jnp.einsum('qd,kd->qk', qb, k16,
                       preferred_element_type=jnp.float32) + bias    # (H*BS, BS)
        s = s - jnp.max(s, axis=-1, keepdims=True)
        p = jnp.exp(s)
        p = p / jnp.sum(p, axis=-1, keepdims=True)
        ctx_blk = jnp.dot(p.astype(jnp.bfloat16), v16,
                          preferred_element_type=jnp.float32)        # (H*BS, D)
        # fold per-head rows back to (BS, D): head h keeps only its own lanes,
        # so the masked sum equals the per-head concatenation.
        ctx = ctx_blk[0:BS, :] * hsel[0:1, :]
        for h in range(1, num_heads):
            ctx = ctx + ctx_blk[h * BS:(h + 1) * BS, :] * hsel[h:h + 1, :]
        attn = jnp.dot(ctx.astype(jnp.bfloat16), wo_ref[li],
                       preferred_element_type=jnp.float32)
        xf = xf + attn

        # ---------------- MLP block (SwiGLU, fused gate/up) ----------------
        xn2 = _rms(xf, ln2_ref[li]).astype(jnp.bfloat16)
        gu = jnp.dot(xn2, wgu_ref[li],
                     preferred_element_type=jnp.float32)             # (BS, 2*dff)
        h16 = (jax.nn.silu(gu[:, :dff]) * gu[:, dff:]).astype(jnp.bfloat16)
        xf = xf + jnp.dot(h16, wd_ref[li], preferred_element_type=jnp.float32)
        return xf

    # ---- early layers ----
    for li in early_ids:
        x = apply_layer(li, x)

    # ---- skip connection + k loops over the middle block ----
    skip = x
    if k_loops <= 4:                       # unrolled: LLO scheduling visibility
        for _ in range(k_loops):
            for li in loop_ids:
                x = apply_layer(li, x) + skip
    else:                                  # bounded code size for large k
        def _one_pass(_, xc):
            for li in loop_ids:
                xc = apply_layer(li, xc) + skip
            return xc
        x = jax.lax.fori_loop(0, k_loops, _one_pass, x)

    # ---- late layers ----
    for li in late_ids:
        x = apply_layer(li, x)

    # ---- final RMSNorm + lm_head (lane-dense 128-wide f32 store) ----
    xn = _rms(x, fnorm_ref[...]).astype(jnp.bfloat16)
    o_ref[...] = jnp.dot(xn, lm_ref[...], preferred_element_type=jnp.float32)


# ----------------------------- parameters -----------------------------------
def _rot_matrix():
    """Full-width block-diagonal rotate_half matrix R so rotate_half(x) == x @ R."""
    half = HEAD_DIM // 2
    R = jnp.zeros((HEAD_DIM, HEAD_DIM), jnp.float32)
    R = R.at[jnp.arange(half), jnp.arange(half) + half].set(1.0)
    R = R.at[jnp.arange(half) + half, jnp.arange(half)].set(-1.0)
    return jnp.kron(jnp.eye(N_HEADS, dtype=jnp.float32), R)          # (D, D)


def _rope_tables(batch, seq_len):
    half = HEAD_DIM // 2
    inv_freq = 1.0 / (10000.0 ** (jnp.arange(half, dtype=jnp.float32) / half))
    pos = jnp.arange(seq_len, dtype=jnp.float32)
    freqs = pos[:, None] * inv_freq[None, :]                         # (S, half)
    emb = jnp.concatenate([freqs, freqs], axis=-1)                   # (S, head_dim)
    cos = jnp.tile(jnp.cos(emb), (batch, N_HEADS))                   # (B*S, D)
    sin = jnp.tile(jnp.sin(emb), (batch, N_HEADS))
    return cos, sin


def init_params(key, batch, seq_len):
    scale = 1.0 / (HEAD_DIM ** 0.5)
    rot = _rot_matrix()

    def w(k_, shape, std=0.02):
        return std * jax.random.normal(k_, shape, dtype=jnp.float32)

    keys = jax.random.split(key, 2 + 7 * N_LAYERS)
    embed = w(keys[0], (VOCAB, D_MODEL)).astype(jnp.bfloat16)
    lm = w(keys[1], (D_MODEL, VOCAB))
    lm_pad = jnp.zeros((D_MODEL, VOCAB_PAD), jnp.float32
                       ).at[:, :VOCAB].set(lm).astype(jnp.bfloat16)

    wqkv, wo, wgu, wd = [], [], [], []
    idx = 2
    for _ in range(N_LAYERS):
        lk = keys[idx:idx + 7]
        idx += 7
        wq = w(lk[0], (D_MODEL, D_MODEL)) * scale        # 1/sqrt(dh) folded in
        wk = w(lk[1], (D_MODEL, D_MODEL))
        wv = w(lk[2], (D_MODEL, D_MODEL))
        wqkv.append(jnp.concatenate(
            [wq, wq @ rot, wk, wk @ rot, wv], axis=-1).astype(jnp.bfloat16))
        wo.append(w(lk[3], (D_MODEL, D_MODEL)).astype(jnp.bfloat16))
        wgu.append(jnp.concatenate(
            [w(lk[4], (D_MODEL, D_FF)), w(lk[5], (D_MODEL, D_FF))],
            axis=-1).astype(jnp.bfloat16))
        wd.append(w(lk[6], (D_FF, D_MODEL)).astype(jnp.bfloat16))

    cos_full, sin_full = _rope_tables(batch, seq_len)
    lane_head = jnp.arange(D_MODEL, dtype=jnp.int32) // HEAD_DIM
    hsel = (lane_head[None, :] ==
            jnp.arange(N_HEADS, dtype=jnp.int32)[:, None]).astype(jnp.float32)

    return {
        "embed": embed,
        "lm_head_pad": lm_pad,
        "final_norm": jnp.ones((1, D_MODEL), jnp.bfloat16),
        "ln1": jnp.ones((N_LAYERS, 1, D_MODEL), jnp.bfloat16),
        "ln2": jnp.ones((N_LAYERS, 1, D_MODEL), jnp.bfloat16),
        "wqkv": jnp.stack(wqkv), "wo": jnp.stack(wo),
        "wgu": jnp.stack(wgu), "wd": jnp.stack(wd),
        "cos_full": cos_full, "sin_full": sin_full, "hsel": hsel,
    }


def _attn_bias(attention_mask, batch, seq):
    """Additive attention bias (0 / -1e9), causal + batch-block + key padding,
    tiled per head along rows -> (H*B*S, B*S)."""
    BS = batch * seq
    key_keep = attention_mask.reshape(1, BS).astype(jnp.float32) > 0.5
    pos = jnp.arange(BS, dtype=jnp.int32)
    same_batch = (pos[:, None] // seq) == (pos[None, :] // seq)
    causal = pos[None, :] <= pos[:, None]
    bias = jnp.where(same_batch & causal & key_keep, 0.0, -1e9
                     ).astype(jnp.float32)                           # (BS, BS)
    return jnp.tile(bias, (N_HEADS, 1))                              # (H*BS, BS)


# ----------------------------- forward pass ----------------------------------
def layer_loop_forward(params, input_ids, attention_mask, k=1):
    """LayerLoopingModel.forward: early -> k loops over middle (+ skip add
    after every looped layer) -> late -> RMSNorm + lm_head, fused into one
    Pallas kernel with all weights resident in VMEM."""
    B, S = input_ids.shape
    BS = B * S
    ids2d = input_ids.reshape(BS, 1).astype(jnp.int32)
    bias = _attn_bias(attention_mask, B, S)

    kernel = functools.partial(
        _fused_forward_kernel,
        batch=B, seq=S, num_heads=N_HEADS,
        early_ids=tuple(range(N_EARLY)),
        loop_ids=tuple(range(N_EARLY, M_LOOP + 1)),
        late_ids=tuple(range(M_LOOP + 1, N_LAYERS)),
        k_loops=int(k))

    vmem = pl.BlockSpec(memory_space=pltpu.MemorySpace.VMEM)
    out = pl.pallas_call(
        kernel,
        out_shape=jax.ShapeDtypeStruct((BS, VOCAB_PAD), jnp.float32),
        in_specs=[vmem] * 14,
        out_specs=vmem,
    )(ids2d, bias, params["hsel"], params["cos_full"], params["sin_full"],
      params["embed"], params["ln1"], params["wqkv"], params["wo"],
      params["ln2"], params["wgu"], params["wd"],
      params["final_norm"], params["lm_head_pad"])

    # TODO(synk): optional CrossEntropyLoss (labels), training-mode random k,
    # return_hidden_states history and sample_generation stay plain-JAX glue.
    return out[:, :VOCAB].reshape(B, S, VOCAB)


# ----------------------------- main ------------------------------------------
if __name__ == "__main__":
    key = jax.random.PRNGKey(0)
    pkey, ikey = jax.random.split(key)

    B, S = 2, 8
    params = init_params(pkey, B, S)
    input_ids = jax.random.randint(ikey, (B, S), 0, VOCAB, dtype=jnp.int32)
    attention_mask = jnp.ones((B, S), jnp.float32)

    fwd = jax.jit(layer_loop_forward, static_argnames=("k",))
    logits = fwd(params, input_ids, attention_mask, k=2)  # k loops of middle block
    jax.block_until_ready(logits)

    assert logits.shape == (B, S, VOCAB) and logits.dtype == jnp.float32
    print("KERNEL_OK")
</pallas_src>

<mosaic_0001>
module attributes {stable_mosaic.version = 11 : i64} {
  func.func @_fused_forward_kernel(%arg0: memref<16x1xi32, #tpu.memory_space<vmem>>, %arg1: memref<64x16xf32, #tpu.memory_space<vmem>>, %arg2: memref<4x32xf32, #tpu.memory_space<vmem>>, %arg3: memref<16x32xf32, #tpu.memory_space<vmem>>, %arg4: memref<16x32xf32, #tpu.memory_space<vmem>>, %arg5: memref<64x32xbf16, #tpu.memory_space<vmem>>, %arg6: memref<8x1x32xbf16, #tpu.memory_space<vmem>>, %arg7: memref<8x32x160xbf16, #tpu.memory_space<vmem>>, %arg8: memref<8x32x32xbf16, #tpu.memory_space<vmem>>, %arg9: memref<8x1x32xbf16, #tpu.memory_space<vmem>>, %arg10: memref<8x32x128xbf16, #tpu.memory_space<vmem>>, %arg11: memref<8x64x32xbf16, #tpu.memory_space<vmem>>, %arg12: memref<1x32xbf16, #tpu.memory_space<vmem>>, %arg13: memref<32x128xbf16, #tpu.memory_space<vmem>>, %arg14: memref<16x128xf32, #tpu.memory_space<vmem>>) attributes {dimension_semantics = [], scalar_prefetch = 0 : i64, scratch_operands = 0 : i64, tpu.core_type = #tpu.core_type<tc>} {
    %c0 = arith.constant 0 : index
    %c0_0 = arith.constant 0 : index
    %0 = vector.load %arg0[%c0, %c0_0] : memref<16x1xi32, #tpu.memory_space<vmem>>, vector<16x1xi32>
    %1 = tpu.iota {dimensions = array<i32: 1>} : vector<16x64xi32>
    %2 = vector.broadcast %0 : vector<16x1xi32> to vector<16x64xi32>
    %3 = arith.cmpi eq, %2, %1 : vector<16x64xi32>
    %cst = arith.constant 1.000000e+00 : f32
    %cst_1 = arith.constant 0.000000e+00 : f32
    %4 = vector.broadcast %cst : f32 to vector<16x64xf32>
    %5 = vector.broadcast %cst_1 : f32 to vector<16x64xf32>
    %6 = arith.select %3, %4, %5 : vector<16x64xi1>, vector<16x64xf32>
    %7 = arith.truncf %6 : vector<16x64xf32> to vector<16x64xbf16>
    %c0_2 = arith.constant 0 : index
    %c0_3 = arith.constant 0 : index
    %8 = vector.load %arg5[%c0_2, %c0_3] : memref<64x32xbf16, #tpu.memory_space<vmem>>, vector<64x32xbf16>
    %cst_4 = arith.constant dense<0.000000e+00> : vector<16x32xf32>
    %9 = tpu.matmul %7, %8, %cst_4 {dimension_numbers = #tpu.dot_dimension_numbers<[1], [0], [0], [1], [0, 0, 1, 1], [], []>} : vector<16x64xbf16>, vector<64x32xbf16>, vector<16x32xf32> -> vector<16x32xf32>
    %c0_5 = arith.constant 0 : index
    %c0_6 = arith.constant 0 : index
    %10 = vector.load %arg3[%c0_5, %c0_6] : memref<16x32xf32, #tpu.memory_space<vmem>>, vector<16x32xf32>
    %c0_7 = arith.constant 0 : index
    %c0_8 = arith.constant 0 : index
    %11 = vector.load %arg4[%c0_7, %c0_8] : memref<16x32xf32, #tpu.memory_space<vmem>>, vector<16x32xf32>
    %c0_9 = arith.constant 0 : index
    %c0_10 = arith.constant 0 : index
    %12 = vector.load %arg2[%c0_9, %c0_10] : memref<4x32xf32, #tpu.memory_space<vmem>>, vector<4x32xf32>
    %c0_11 = arith.constant 0 : index
    %c0_12 = arith.constant 0 : index
    %13 = vector.load %arg1[%c0_11, %c0_12] : memref<64x16xf32, #tpu.memory_space<vmem>>, vector<64x16xf32>
    %c0_13 = arith.constant 0 : index
    %c0_14 = arith.constant 0 : index
    %c0_15 = arith.constant 0 : index
    %14 = vector.load %arg6[%c0_13, %c0_14, %c0_15] : memref<8x1x32xbf16, #tpu.memory_space<vmem>>, vector<1x1x32xbf16>
    %15 = vector.shape_cast %14 : vector<1x1x32xbf16> to vector<1x32xbf16>
    %16 = arith.mulf %9, %9 : vector<16x32xf32>
    %cst_16 = arith.constant dense<0.000000e+00> : vector<16xf32>
    %17 = vector.multi_reduction <add>, %16, %cst_16 [1] : vector<16x32xf32> to vector<16xf32>
    %18 = vector.shape_cast %17 : vector<16xf32> to vector<16x1xf32>
    %cst_17 = arith.constant 3.200000e+01 : f32
    %19 = vector.broadcast %cst_17 : f32 to vector<16x1xf32>
    %20 = arith.divf %18, %19 : vector<16x1xf32>
    %cst_18 = arith.constant 9.99999997E-7 : f32
    %21 = vector.broadcast %cst_18 : f32 to vector<16x1xf32>
    %22 = arith.addf %20, %21 : vector<16x1xf32>
    %23 = math.rsqrt %22 : vector<16x1xf32>
    %24 = vector.broadcast %23 : vector<16x1xf32> to vector<16x32xf32>
    %25 = arith.mulf %9, %24 : vector<16x32xf32>
    %26 = arith.extf %15 : vector<1x32xbf16> to vector<1x32xf32>
    %27 = vector.broadcast %26 : vector<1x32xf32> to vector<16x32xf32>
    %28 = arith.mulf %25, %27 : vector<16x32xf32>
    %29 = arith.truncf %28 : vector<16x32xf32> to vector<16x32xbf16>
    %c0_19 = arith.constant 0 : index
    %c0_20 = arith.constant 0 : index
    %c0_21 = arith.constant 0 : index
    %30 = vector.load %arg7[%c0_19, %c0_20, %c0_21] : memref<8x32x160xbf16, #tpu.memory_space<vmem>>, vector<1x32x160xbf16>
    %31 = vector.shape_cast %30 : vector<1x32x160xbf16> to vector<32x160xbf16>
    %cst_22 = arith.constant dense<0.000000e+00> : vector<16x160xf32>
    %32 = tpu.matmul %29, %31, %cst_22 {dimension_numbers = #tpu.dot_dimension_numbers<[1], [0], [0], [1], [0, 0, 1, 1], [], []>} : vector<16x32xbf16>, vector<32x160xbf16>, vector<16x160xf32> -> vector<16x160xf32>
    %33 = vector.extract_strided_slice %32 {offsets = [0, 0], sizes = [16, 32], strides = [1, 1]} : vector<16x160xf32> to vector<16x32xf32>
    %34 = arith.mulf %33, %10 : vector<16x32xf32>
    %35 = vector.extract_strided_slice %32 {offsets = [0, 32], sizes = [16, 32], strides = [1, 1]} : vector<16x160xf32> to vector<16x32xf32>
    %36 = arith.mulf %35, %11 : vector<16x32xf32>
    %37 = arith.addf %34, %36 : vector<16x32xf32>
    %38 = vector.extract_strided_slice %32 {offsets = [0, 64], sizes = [16, 32], strides = [1, 1]} : vector<16x160xf32> to vector<16x32xf32>
    %39 = arith.mulf %38, %10 : vector<16x32xf32>
    %40 = vector.extract_strided_slice %32 {offsets = [0, 96], sizes = [16, 32], strides = [1, 1]} : vector<16x160xf32> to vector<16x32xf32>
    %41 = arith.mulf %40, %11 : vector<16x32xf32>
    %42 = arith.addf %39, %41 : vector<16x32xf32>
    %43 = arith.truncf %42 : vector<16x32xf32> to vector<16x32xbf16>
    %44 = vector.extract_strided_slice %32 {offsets = [0, 128], sizes = [16, 32], strides = [1, 1]} : vector<16x160xf32> to vector<16x32xf32>
    %45 = arith.truncf %44 : vector<16x32xf32> to vector<16x32xbf16>
    %46 = vector.extract_strided_slice %12 {offsets = [0, 0], sizes = [1, 32], strides = [1, 1]} : vector<4x32xf32> to vector<1x32xf32>
    %47 = vector.broadcast %46 : vector<1x32xf32> to vector<16x32xf32>
    %48 = arith.mulf %37, %47 : vector<16x32xf32>
    %49 = vector.extract_strided_slice %12 {offsets = [1, 0], sizes = [1, 32], strides = [1, 1]} : vector<4x32xf32> to vector<1x32xf32>
    %50 = vector.broadcast %49 : vector<1x32xf32> to vector<16x32xf32>
    %51 = arith.mulf %37, %50 : vector<16x32xf32>
    %52 = vector.extract_strided_slice %12 {offsets = [2, 0], sizes = [1, 32], strides = [1, 1]} : vector<4x32xf32> to vector<1x32xf32>
    %53 = vector.broadcast %52 : vector<1x32xf32> to vector<16x32xf32>
    %54 = arith.mulf %37, %53 : vector<16x32xf32>
    %55 = vector.extract_strided_slice %12 {offsets = [3, 0], sizes = [1, 32], strides = [1, 1]} : vector<4x32xf32> to vector<1x32xf32>
    %56 = vector.broadcast %55 : vector<1x32xf32> to vector<16x32xf32>
    %57 = arith.mulf %37, %56 : vector<16x32xf32>
    %58 = tpu.concatenate %48, %51, %54, %57 in 0 : vector<16x32xf32>, vector<16x32xf32>, vector<16x32xf32>, vector<16x32xf32> -> vector<64x32xf32>
    %59 = arith.truncf %58 : vector<64x32xf32> to vector<64x32xbf16>
    "tpu.trace_start"() <{level = 10 : i32, message = "qd,kd->qk"}> : () -> ()
    %cst_23 = arith.constant dense<0.000000e+00> : vector<64x16xf32>
    %60 = tpu.matmul %59, %43, %cst_23 {dimension_numbers = #tpu.dot_dimension_numbers<[1], [1], [0], [0], [0, 0, 1, 0], [], []>} : vector<64x32xbf16>, vector<16x32xbf16>, vector<64x16xf32> -> vector<64x16xf32>
    "tpu.trace_stop"() : () -> ()
    %61 = arith.addf %60, %13 : vector<64x16xf32>
    %cst_24 = arith.constant dense<0xFF800000> : vector<64xf32>
    %62 = vector.multi_reduction <maximumf>, %61, %cst_24 [1] : vector<64x16xf32> to vector<64xf32>
    %63 = vector.shape_cast %62 : vector<64xf32> to vector<64x1xf32>
    %64 = vector.broadcast %63 : vector<64x1xf32> to vector<64x16xf32>
    %65 = arith.subf %61, %64 : vector<64x16xf32>
    %66 = math.exp %65 : vector<64x16xf32>
    %cst_25 = arith.constant dense<0.000000e+00> : vector<64xf32>
    %67 = vector.multi_reduction <add>, %66, %cst_25 [1] : vector<64x16xf32> to vector<64xf32>
    %68 = vector.shape_cast %67 : vector<64xf32> to vector<64x1xf32>
    %69 = vector.broadcast %68 : vector<64x1xf32> to vector<64x16xf32>
    %70 = arith.divf %66, %69 : vector<64x16xf32>
    %71 = arith.truncf %70 : vector<64x16xf32> to vector<64x16xbf16>
    %cst_26 = arith.constant dense<0.000000e+00> : vector<64x32xf32>
    %72 = tpu.matmul %71, %45, %cst_26 {dimension_numbers = #tpu.dot_dimension_numbers<[1], [0], [0], [1], [0, 0, 1, 1], [], []>} : vector<64x16xbf16>, vector<16x32xbf16>, vector<64x32xf32> -> vector<64x32xf32>
    %73 = vector.extract_strided_slice %72 {offsets = [0, 0], sizes = [16, 32], strides = [1, 1]} : vector<64x32xf32> to vector<16x32xf32>
    %74 = vector.extract_strided_slice %12 {offsets = [0, 0], sizes = [1, 32], strides = [1, 1]} : vector<4x32xf32> to vector<1x32xf32>
    %75 = vector.broadcast %74 : vector<1x32xf32> to vector<16x32xf32>
    %76 = arith.mulf %73, %75 : vector<16x32xf32>
    %77 = vector.extract_strided_slice %72 {offsets = [16, 0], sizes = [16, 32], strides = [1, 1]} : vector<64x32xf32> to vector<16x32xf32>
    %78 = vector.extract_strided_slice %12 {offsets = [1, 0], sizes = [1, 32], strides = [1, 1]} : vector<4x32xf32> to vector<1x32xf32>
    %79 = vector.broadcast %78 : vector<1x32xf32> to vector<16x32xf32>
    %80 = arith.mulf %77, %79 : vector<16x32xf32>
    %81 = arith.addf %76, %80 : vector<16x32xf32>
    %82 = vector.extract_strided_slice %72 {offsets = [32, 0], sizes = [16, 32], strides = [1, 1]} : vector<64x32xf32> to vector<16x32xf32>
    %83 = vector.extract_strided_slice %12 {offsets = [2, 0], sizes = [1, 32], strides = [1, 1]} : vector<4x32xf32> to vector<1x32xf32>
    %84 = vector.broadcast %83 : vector<1x32xf32> to vector<16x32xf32>
    %85 = arith.mulf %82, %84 : vector<16x32xf32>
    %86 = arith.addf %81, %85 : vector<16x32xf32>
    %87 = vector.extract_strided_slice %72 {offsets = [48, 0], sizes = [16, 32], strides = [1, 1]} : vector<64x32xf32> to vector<16x32xf32>
    %88 = vector.extract_strided_slice %12 {offsets = [3, 0], sizes = [1, 32], strides = [1, 1]} : vector<4x32xf32> to vector<1x32xf32>
    %89 = vector.broadcast %88 : vector<1x32xf32> to vector<16x32xf32>
    %90 = arith.mulf %87, %89 : vector<16x32xf32>
    %91 = arith.addf %86, %90 : vector<16x32xf32>
    %92 = arith.truncf %91 : vector<16x32xf32> to vector<16x32xbf16>
    %c0_27 = arith.constant 0 : index
    %c0_28 = arith.constant 0 : index
    %c0_29 = arith.constant 0 : index
    %93 = vector.load %arg8[%c0_27, %c0_28, %c0_29] : memref<8x32x32xbf16, #tpu.memory_space<vmem>>, vector<1x32x32xbf16>
    %94 = vector.shape_cast %93 : vector<1x32x32xbf16> to vector<32x32xbf16>
    %cst_30 = arith.constant dense<0.000000e+00> : vector<16x32xf32>
    %95 = tpu.matmul %92, %94, %cst_30 {dimension_numbers = #tpu.dot_dimension_numbers<[1], [0], [0], [1], [0, 0, 1, 1], [], []>} : vector<16x32xbf16>, vector<32x32xbf16>, vector<16x32xf32> -> vector<16x32xf32>
    %96 = arith.addf %9, %95 : vector<16x32xf32>
    %c0_31 = arith.constant 0 : index
    %c0_32 = arith.constant 0 : index
    %c0_33 = arith.constant 0 : index
    %97 = vector.load %arg9[%c0_31, %c0_32, %c0_33] : memref<8x1x32xbf16, #tpu.memory_space<vmem>>, vector<1x1x32xbf16>
    %98 = vector.shape_cast %97 : vector<1x1x32xbf16> to vector<1x32xbf16>
    %99 = arith.mulf %96, %96 : vector<16x32xf32>
    %cst_34 = arith.constant dense<0.000000e+00> : vector<16xf32>
    %100 = vector.multi_reduction <add>, %99, %cst_34 [1] : vector<16x32xf32> to vector<16xf32>
    %101 = vector.shape_cast %100 : vector<16xf32> to vector<16x1xf32>
    %cst_35 = arith.constant 3.200000e+01 : f32
    %102 = vector.broadcast %cst_35 : f32 to vector<16x1xf32>
    %103 = arith.divf %101, %102 : vector<16x1xf32>
    %cst_36 = arith.constant 9.99999997E-7 : f32
    %104 = vector.broadcast %cst_36 : f32 to vector<16x1xf32>
    %105 = arith.addf %103, %104 : vector<16x1xf32>
    %106 = math.rsqrt %105 : vector<16x1xf32>
    %107 = vector.broadcast %106 : vector<16x1xf32> to vector<16x32xf32>
    %108 = arith.mulf %96, %107 : vector<16x32xf32>
    %109 = arith.extf %98 : vector<1x32xbf16> to vector<1x32xf32>
    %110 = vector.broadcast %109 : vector<1x32xf32> to vector<16x32xf32>
    %111 = arith.mulf %108, %110 : vector<16x32xf32>
    %112 = arith.truncf %111 : vector<16x32xf32> to vector<16x32xbf16>
    %c0_37 = arith.constant 0 : index
    %c0_38 = arith.constant 0 : index
    %c0_39 = arith.constant 0 : index
    %113 = vector.load %arg10[%c0_37, %c0_38, %c0_39] : memref<8x32x128xbf16, #tpu.memory_space<vmem>>, vector<1x32x128xbf16>
    %114 = vector.shape_cast %113 : vector<1x32x128xbf16> to vector<32x128xbf16>
    %cst_40 = arith.constant dense<0.000000e+00> : vector<16x128xf32>
    %115 = tpu.matmul %112, %114, %cst_40 {dimension_numbers = #tpu.dot_dimension_numbers<[1], [0], [0], [1], [0, 0, 1, 1], [], []>} : vector<16x32xbf16>, vector<32x128xbf16>, vector<16x128xf32> -> vector<16x128xf32>
    %116 = vector.extract_strided_slice %115 {offsets = [0, 0], sizes = [16, 64], strides = [1, 1]} : vector<16x128xf32> to vector<16x64xf32>
    %117 = arith.negf %116 : vector<16x64xf32>
    %118 = math.exp %117 : vector<16x64xf32>
    %cst_41 = arith.constant 1.000000e+00 : f32
    %119 = vector.broadcast %cst_41 : f32 to vector<16x64xf32>
    %120 = arith.addf %119, %118 : vector<16x64xf32>
    %121 = arith.divf %119, %120 : vector<16x64xf32>
    %122 = arith.mulf %116, %121 : vector<16x64xf32>
    %123 = vector.extract_strided_slice %115 {offsets = [0, 64], sizes = [16, 64], strides = [1, 1]} : vector<16x128xf32> to vector<16x64xf32>
    %124 = arith.mulf %122, %123 : vector<16x64xf32>
    %125 = arith.truncf %124 : vector<16x64xf32> to vector<16x64xbf16>
    %c0_42 = arith.constant 0 : index
    %c0_43 = arith.constant 0 : index
    %c0_44 = arith.constant 0 : index
    %126 = vector.load %arg11[%c0_42, %c0_43, %c0_44] : memref<8x64x32xbf16, #tpu.memory_space<vmem>>, vector<1x64x32xbf16>
    %127 = vector.shape_cast %126 : vector<1x64x32xbf16> to vector<64x32xbf16>
    %cst_45 = arith.constant dense<0.000000e+00> : vector<16x32xf32>
    %128 = tpu.matmul %125, %127, %cst_45 {dimension_numbers = #tpu.dot_dimension_numbers<[1], [0], [0], [1], [0, 0, 1, 1], [], []>} : vector<16x64xbf16>, vector<64x32xbf16>, vector<16x32xf32> -> vector<16x32xf32>
    %129 = arith.addf %96, %128 : vector<16x32xf32>
    %c1 = arith.constant 1 : index
    %c0_46 = arith.constant 0 : index
    %c0_47 = arith.constant 0 : index
    %130 = vector.load %arg6[%c1, %c0_46, %c0_47] : memref<8x1x32xbf16, #tpu.memory_space<vmem>>, vector<1x1x32xbf16>
    %131 = vector.shape_cast %130 : vector<1x1x32xbf16> to vector<1x32xbf16>
    %132 = arith.mulf %129, %129 : vector<16x32xf32>
    %cst_48 = arith.constant dense<0.000000e+00> : vector<16xf32>
    %133 = vector.multi_reduction <add>, %132, %cst_48 [1] : vector<16x32xf32> to vector<16xf32>
    %134 = vector.shape_cast %133 : vector<16xf32> to vector<16x1xf32>
    %cst_49 = arith.constant 3.200000e+01 : f32
    %135 = vector.broadcast %cst_49 : f32 to vector<16x1xf32>
    %136 = arith.divf %134, %135 : vector<16x1xf32>
    %cst_50 = arith.constant 9.99999997E-7 : f32
    %137 = vector.broadcast %cst_50 : f32 to vector<16x1xf32>
    %138 = arith.addf %136, %137 : vector<16x1xf32>
    %139 = math.rsqrt %138 : vector<16x1xf32>
    %140 = vector.broadcast %139 : vector<16x1xf32> to vector<16x32xf32>
    %141 = arith.mulf %129, %140 : vector<16x32xf32>
    %142 = arith.extf %131 : vector<1x32xbf16> to vector<1x32xf32>
    %143 = vector.broadcast %142 : vector<1x32xf32> to vector<16x32xf32>
    %144 = arith.mulf %141, %143 : vector<16x32xf32>
    %145 = arith.truncf %144 : vector<16x32xf32> to vector<16x32xbf16>
    %c1_51 = arith.constant 1 : index
    %c0_52 = arith.constant 0 : index
    %c0_53 = arith.constant 0 : index
    %146 = vector.load %arg7[%c1_51, %c0_52, %c0_53] : memref<8x32x160xbf16, #tpu.memory_space<vmem>>, vector<1x32x160xbf16>
    %147 = vector.shape_cast %146 : vector<1x32x160xbf16> to vector<32x160xbf16>
    %cst_54 = arith.constant dense<0.000000e+00> : vector<16x160xf32>
    %148 = tpu.matmul %145, %147, %cst_54 {dimension_numbers = #tpu.dot_dimension_numbers<[1], [0], [0], [1], [0, 0, 1, 1], [], []>} : vector<16x32xbf16>, vector<32x160xbf16>, vector<16x160xf32> -> vector<16x160xf32>
    %149 = vector.extract_strided_slice %148 {offsets = [0, 0], sizes = [16, 32], strides = [1, 1]} : vector<16x160xf32> to vector<16x32xf32>
    %150 = arith.mulf %149, %10 : vector<16x32xf32>
    %151 = vector.extract_strided_slice %148 {offsets = [0, 32], sizes = [16, 32], strides = [1, 1]} : vector<16x160xf32> to vector<16x32xf32>
    %152 = arith.mulf %151, %11 : vector<16x32xf32>
    %153 = arith.addf %150, %152 : vector<16x32xf32>
    %154 = vector.extract_strided_slice %148 {offsets = [0, 64], sizes = [16, 32], strides = [1, 1]} : vector<16x160xf32> to vector<16x32xf32>
    %155 = arith.mulf %154, %10 : vector<16x32xf32>
    %156 = vector.extract_strided_slice %148 {offsets = [0, 96], sizes = [16, 32], strides = [1, 1]} : vector<16x160xf32> to vector<16x32xf32>
    %157 = arith.mulf %156, %11 : vector<16x32xf32>
    %158 = arith.addf %155, %157 : vector<16x32xf32>
    %159 = arith.truncf %158 : vector<16x32xf32> to vector<16x32xbf16>
    %160 = vector.extract_strided_slice %148 {offsets = [0, 128], sizes = [16, 32], strides = [1, 1]} : vector<16x160xf32> to vector<16x32xf32>
    %161 = arith.truncf %160 : vector<16x32xf32> to vector<16x32xbf16>
    %162 = vector.extract_strided_slice %12 {offsets = [0, 0], sizes = [1, 32], strides = [1, 1]} : vector<4x32xf32> to vector<1x32xf32>
    %163 = vector.broadcast %162 : vector<1x32xf32> to vector<16x32xf32>
    %164 = arith.mulf %153, %163 : vector<16x32xf32>
    %165 = vector.extract_strided_slice %12 {offsets = [1, 0], sizes = [1, 32], strides = [1, 1]} : vector<4x32xf32> to vector<1x32xf32>
    %166 = vector.broadcast %165 : vector<1x32xf32> to vector<16x32xf32>
    %167 = arith.mulf %153, %166 : vector<16x32xf32>
    %168 = vector.extract_strided_slice %12 {offsets = [2, 0], sizes = [1, 32], strides = [1, 1]} : vector<4x32xf32> to vector<1x32xf32>
    %169 = vector.broadcast %168 : vector<1x32xf32> to vector<16x32xf32>
    %170 = arith.mulf %153, %169 : vector<16x32xf32>
    %171 = vector.extract_strided_slice %12 {offsets = [3, 0], sizes = [1, 32], strides = [1, 1]} : vector<4x32xf32> to vector<1x32xf32>
    %172 = vector.broadcast %171 : vector<1x32xf32> to vector<16x32xf32>
    %173 = arith.mulf %153, %172 : vector<16x32xf32>
    %174 = tpu.concatenate %164, %167, %170, %173 in 0 : vector<16x32xf32>, vector<16x32xf32>, vector<16x32xf32>, vector<16x32xf32> -> vector<64x32xf32>
    %175 = arith.truncf %174 : vector<64x32xf32> to vector<64x32xbf16>
    "tpu.trace_start"() <{level = 10 : i32, message = "qd,kd->qk"}> : () -> ()
    %cst_55 = arith.constant dense<0.000000e+00> : vector<64x16xf32>
    %176 = tpu.matmul %175, %159, %cst_55 {dimension_numbers = #tpu.dot_dimension_numbers<[1], [1], [0], [0], [0, 0, 1, 0], [], []>} : vector<64x32xbf16>, vector<16x32xbf16>, vector<64x16xf32> -> vector<64x16xf32>
    "tpu.trace_stop"() : () -> ()
    %177 = arith.addf %176, %13 : vector<64x16xf32>
    %cst_56 = arith.constant dense<0xFF800000> : vector<64xf32>
    %178 = vector.multi_reduction <maximumf>, %177, %cst_56 [1] : vector<64x16xf32> to vector<64xf32>
    %179 = vector.shape_cast %178 : vector<64xf32> to vector<64x1xf32>
    %180 = vector.broadcast %179 : vector<64x1xf32> to vector<64x16xf32>
    %181 = arith.subf %177, %180 : vector<64x16xf32>
    %182 = math.exp %181 : vector<64x16xf32>
    %cst_57 = arith.constant dense<0.000000e+00> : vector<64xf32>
    %183 = vector.multi_reduction <add>, %182, %cst_57 [1] : vector<64x16xf32> to vector<64xf32>
    %184 = vector.shape_cast %183 : vector<64xf32> to vector<64x1xf32>
    %185 = vector.broadcast %184 : vector<64x1xf32> to vector<64x16xf32>
    %186 = arith.divf %182, %185 : vector<64x16xf32>
    %187 = arith.truncf %186 : vector<64x16xf32> to vector<64x16xbf16>
    %cst_58 = arith.constant dense<0.000000e+00> : vector<64x32xf32>
    %188 = tpu.matmul %187, %161, %cst_58 {dimension_numbers = #tpu.dot_dimension_numbers<[1], [0], [0], [1], [0, 0, 1, 1], [], []>} : vector<64x16xbf16>, vector<16x32xbf16>, vector<64x32xf32> -> vector<64x32xf32>
    %189 = vector.extract_strided_slice %188 {offsets = [0, 0], sizes = [16, 32], strides = [1, 1]} : vector<64x32xf32> to vector<16x32xf32>
    %190 = vector.extract_strided_slice %12 {offsets = [0, 0], sizes = [1, 32], strides = [1, 1]} : vector<4x32xf32> to vector<1x32xf32>
    %191 = vector.broadcast %190 : vector<1x32xf32> to vector<16x32xf32>
    %192 = arith.mulf %189, %191 : vector<16x32xf32>
    %193 = vector.extract_strided_slice %188 {offsets = [16, 0], sizes = [16, 32], strides = [1, 1]} : vector<64x32xf32> to vector<16x32xf32>
    %194 = vector.extract_strided_slice %12 {offsets = [1, 0], sizes = [1, 32], strides = [1, 1]} : vector<4x32xf32> to vector<1x32xf32>
    %195 = vector.broadcast %194 : vector<1x32xf32> to vector<16x32xf32>
    %196 = arith.mulf %193, %195 : vector<16x32xf32>
    %197 = arith.addf %192, %196 : vector<16x32xf32>
    %198 = vector.extract_strided_slice %188 {offsets = [32, 0], sizes = [16, 32], strides = [1, 1]} : vector<64x32xf32> to vector<16x32xf32>
    %199 = vector.extract_strided_slice %12 {offsets = [2, 0], sizes = [1, 32], strides = [1, 1]} : vector<4x32xf32> to vector<1x32xf32>
    %200 = vector.broadcast %199 : vector<1x32xf32> to vector<16x32xf32>
    %201 = arith.mulf %198, %200 : vector<16x32xf32>
    %202 = arith.addf %197, %201 : vector<16x32xf32>
    %203 = vector.extract_strided_slice %188 {offsets = [48, 0], sizes = [16, 32], strides = [1, 1]} : vector<64x32xf32> to vector<16x32xf32>
    %204 = vector.extract_strided_slice %12 {offsets = [3, 0], sizes = [1, 32], strides = [1, 1]} : vector<4x32xf32> to vector<1x32xf32>
    %205 = vector.broadcast %204 : vector<1x32xf32> to vector<16x32xf32>
    %206 = arith.mulf %203, %205 : vector<16x32xf32>
    %207 = arith.addf %202, %206 : vector<16x32xf32>
    %208 = arith.truncf %207 : vector<16x32xf32> to vector<16x32xbf16>
    %c1_59 = arith.constant 1 : index
    %c0_60 = arith.constant 0 : index
    %c0_61 = arith.constant 0 : index
    %209 = vector.load %arg8[%c1_59, %c0_60, %c0_61] : memref<8x32x32xbf16, #tpu.memory_space<vmem>>, vector<1x32x32xbf16>
    %210 = vector.shape_cast %209 : vector<1x32x32xbf16> to vector<32x32xbf16>
    %cst_62 = arith.constant dense<0.000000e+00> : vector<16x32xf32>
    %211 = tpu.matmul %208, %210, %cst_62 {dimension_numbers = #tpu.dot_dimension_numbers<[1], [0], [0], [1], [0, 0, 1, 1], [], []>} : vector<16x32xbf16>, vector<32x32xbf16>, vector<16x32xf32> -> vector<16x32xf32>
    %212 = arith.addf %129, %211 : vector<16x32xf32>
    %c1_63 = arith.constant 1 : index
    %c0_64 = arith.constant 0 : index
    %c0_65 = arith.constant 0 : index
    %213 = vector.load %arg9[%c1_63, %c0_64, %c0_65] : memref<8x1x32xbf16, #tpu.memory_space<vmem>>, vector<1x1x32xbf16>
    %214 = vector.shape_cast %213 : vector<1x1x32xbf16> to vector<1x32xbf16>
    %215 = arith.mulf %212, %212 : vector<16x32xf32>
    %cst_66 = arith.constant dense<0.000000e+00> : vector<16xf32>
    %216 = vector.multi_reduction <add>, %215, %cst_66 [1] : vector<16x32xf32> to vector<16xf32>
    %217 = vector.shape_cast %216 : vector<16xf32> to vector<16x1xf32>
    %cst_67 = arith.constant 3.200000e+01 : f32
    %218 = vector.broadcast %cst_67 : f32 to vector<16x1xf32>
    %219 = arith.divf %217, %218 : vector<16x1xf32>
    %cst_68 = arith.constant 9.99999997E-7 : f32
    %220 = vector.broadcast %cst_68 : f32 to vector<16x1xf32>
    %221 = arith.addf %219, %220 : vector<16x1xf32>
    %222 = math.rsqrt %221 : vector<16x1xf32>
    %223 = vector.broadcast %222 : vector<16x1xf32> to vector<16x32xf32>
    %224 = arith.mulf %212, %223 : vector<16x32xf32>
    %225 = arith.extf %214 : vector<1x32xbf16> to vector<1x32xf32>
    %226 = vector.broadcast %225 : vector<1x32xf32> to vector<16x32xf32>
    %227 = arith.mulf %224, %226 : vector<16x32xf32>
    %228 = arith.truncf %227 : vector<16x32xf32> to vector<16x32xbf16>
    %c1_69 = arith.constant 1 : index
    %c0_70 = arith.constant 0 : index
    %c0_71 = arith.constant 0 : index
    %229 = vector.load %arg10[%c1_69, %c0_70, %c0_71] : memref<8x32x128xbf16, #tpu.memory_space<vmem>>, vector<1x32x128xbf16>
    %230 = vector.shape_cast %229 : vector<1x32x128xbf16> to vector<32x128xbf16>
    %cst_72 = arith.constant dense<0.000000e+00> : vector<16x128xf32>
    %231 = tpu.matmul %228, %230, %cst_72 {dimension_numbers = #tpu.dot_dimension_numbers<[1], [0], [0], [1], [0, 0, 1, 1], [], []>} : vector<16x32xbf16>, vector<32x128xbf16>, vector<16x128xf32> -> vector<16x128xf32>
    %232 = vector.extract_strided_slice %231 {offsets = [0, 0], sizes = [16, 64], strides = [1, 1]} : vector<16x128xf32> to vector<16x64xf32>
    %233 = arith.negf %232 : vector<16x64xf32>
    %234 = math.exp %233 : vector<16x64xf32>
    %cst_73 = arith.constant 1.000000e+00 : f32
    %235 = vector.broadcast %cst_73 : f32 to vector<16x64xf32>
    %236 = arith.addf %235, %234 : vector<16x64xf32>
    %237 = arith.divf %235, %236 : vector<16x64xf32>
    %238 = arith.mulf %232, %237 : vector<16x64xf32>
    %239 = vector.extract_strided_slice %231 {offsets = [0, 64], sizes = [16, 64], strides = [1, 1]} : vector<16x128xf32> to vector<16x64xf32>
    %240 = arith.mulf %238, %239 : vector<16x64xf32>
    %241 = arith.truncf %240 : vector<16x64xf32> to vector<16x64xbf16>
    %c1_74 = arith.constant 1 : index
    %c0_75 = arith.constant 0 : index
    %c0_76 = arith.constant 0 : index
    %242 = vector.load %arg11[%c1_74, %c0_75, %c0_76] : memref<8x64x32xbf16, #tpu.memory_space<vmem>>, vector<1x64x32xbf16>
    %243 = vector.shape_cast %242 : vector<1x64x32xbf16> to vector<64x32xbf16>
    %cst_77 = arith.constant dense<0.000000e+00> : vector<16x32xf32>
    %244 = tpu.matmul %241, %243, %cst_77 {dimension_numbers = #tpu.dot_dimension_numbers<[1], [0], [0], [1], [0, 0, 1, 1], [], []>} : vector<16x64xbf16>, vector<64x32xbf16>, vector<16x32xf32> -> vector<16x32xf32>
    %245 = arith.addf %212, %244 : vector<16x32xf32>
    %c2 = arith.constant 2 : index
    %c0_78 = arith.constant 0 : index
    %c0_79 = arith.constant 0 : index
    %246 = vector.load %arg6[%c2, %c0_78, %c0_79] : memref<8x1x32xbf16, #tpu.memory_space<vmem>>, vector<1x1x32xbf16>
    %247 = vector.shape_cast %246 : vector<1x1x32xbf16> to vector<1x32xbf16>
    %248 = arith.mulf %245, %245 : vector<16x32xf32>
    %cst_80 = arith.constant dense<0.000000e+00> : vector<16xf32>
    %249 = vector.multi_reduction <add>, %248, %cst_80 [1] : vector<16x32xf32> to vector<16xf32>
    %250 = vector.shape_cast %249 : vector<16xf32> to vector<16x1xf32>
    %cst_81 = arith.constant 3.200000e+01 : f32
    %251 = vector.broadcast %cst_81 : f32 to vector<16x1xf32>
    %252 = arith.divf %250, %251 : vector<16x1xf32>
    %cst_82 = arith.constant 9.99999997E-7 : f32
    %253 = vector.broadcast %cst_82 : f32 to vector<16x1xf32>
    %254 = arith.addf %252, %253 : vector<16x1xf32>
    %255 = math.rsqrt %254 : vector<16x1xf32>
    %256 = vector.broadcast %255 : vector<16x1xf32> to vector<16x32xf32>
    %257 = arith.mulf %245, %256 : vector<16x32xf32>
    %258 = arith.extf %247 : vector<1x32xbf16> to vector<1x32xf32>
    %259 = vector.broadcast %258 : vector<1x32xf32> to vector<16x32xf32>
    %260 = arith.mulf %257, %259 : vector<16x32xf32>
    %261 = arith.truncf %260 : vector<16x32xf32> to vector<16x32xbf16>
    %c2_83 = arith.constant 2 : index
    %c0_84 = arith.constant 0 : index
    %c0_85 = arith.constant 0 : index
    %262 = vector.load %arg7[%c2_83, %c0_84, %c0_85] : memref<8x32x160xbf16, #tpu.memory_space<vmem>>, vector<1x32x160xbf16>
    %263 = vector.shape_cast %262 : vector<1x32x160xbf16> to vector<32x160xbf16>
    %cst_86 = arith.constant dense<0.000000e+00> : vector<16x160xf32>
    %264 = tpu.matmul %261, %263, %cst_86 {dimension_numbers = #tpu.dot_dimension_numbers<[1], [0], [0], [1], [0, 0, 1, 1], [], []>} : vector<16x32xbf16>, vector<32x160xbf16>, vector<16x160xf32> -> vector<16x160xf32>
    %265 = vector.extract_strided_slice %264 {offsets = [0, 0], sizes = [16, 32], strides = [1, 1]} : vector<16x160xf32> to vector<16x32xf32>
    %266 = arith.mulf %265, %10 : vector<16x32xf32>
    %267 = vector.extract_strided_slice %264 {offsets = [0, 32], sizes = [16, 32], strides = [1, 1]} : vector<16x160xf32> to vector<16x32xf32>
    %268 = arith.mulf %267, %11 : vector<16x32xf32>
    %269 = arith.addf %266, %268 : vector<16x32xf32>
    %270 = vector.extract_strided_slice %264 {offsets = [0, 64], sizes = [16, 32], strides = [1, 1]} : vector<16x160xf32> to vector<16x32xf32>
    %271 = arith.mulf %270, %10 : vector<16x32xf32>
    %272 = vector.extract_strided_slice %264 {offsets = [0, 96], sizes = [16, 32], strides = [1, 1]} : vector<16x160xf32> to vector<16x32xf32>
    %273 = arith.mulf %272, %11 : vector<16x32xf32>
    %274 = arith.addf %271, %273 : vector<16x32xf32>
    %275 = arith.truncf %274 : vector<16x32xf32> to vector<16x32xbf16>
    %276 = vector.extract_strided_slice %264 {offsets = [0, 128], sizes = [16, 32], strides = [1, 1]} : vector<16x160xf32> to vector<16x32xf32>
    %277 = arith.truncf %276 : vector<16x32xf32> to vector<16x32xbf16>
    %278 = vector.extract_strided_slice %12 {offsets = [0, 0], sizes = [1, 32], strides = [1, 1]} : vector<4x32xf32> to vector<1x32xf32>
    %279 = vector.broadcast %278 : vector<1x32xf32> to vector<16x32xf32>
    %280 = arith.mulf %269, %279 : vector<16x32xf32>
    %281 = vector.extract_strided_slice %12 {offsets = [1, 0], sizes = [1, 32], strides = [1, 1]} : vector<4x32xf32> to vector<1x32xf32>
    %282 = vector.broadcast %281 : vector<1x32xf32> to vector<16x32xf32>
    %283 = arith.mulf %269, %282 : vector<16x32xf32>
    %284 = vector.extract_strided_slice %12 {offsets = [2, 0], sizes = [1, 32], strides = [1, 1]} : vector<4x32xf32> to vector<1x32xf32>
    %285 = vector.broadcast %284 : vector<1x32xf32> to vector<16x32xf32>
    %286 = arith.mulf %269, %285 : vector<16x32xf32>
    %287 = vector.extract_strided_slice %12 {offsets = [3, 0], sizes = [1, 32], strides = [1, 1]} : vector<4x32xf32> to vector<1x32xf32>
    %288 = vector.broadcast %287 : vector<1x32xf32> to vector<16x32xf32>
    %289 = arith.mulf %269, %288 : vector<16x32xf32>
    %290 = tpu.concatenate %280, %283, %286, %289 in 0 : vector<16x32xf32>, vector<16x32xf32>, vector<16x32xf32>, vector<16x32xf32> -> vector<64x32xf32>
    %291 = arith.truncf %290 : vector<64x32xf32> to vector<64x32xbf16>
    "tpu.trace_start"() <{level = 10 : i32, message = "qd,kd->qk"}> : () -> ()
    %cst_87 = arith.constant dense<0.000000e+00> : vector<64x16xf32>
    %292 = tpu.matmul %291, %275, %cst_87 {dimension_numbers = #tpu.dot_dimension_numbers<[1], [1], [0], [0], [0, 0, 1, 0], [], []>} : vector<64x32xbf16>, vector<16x32xbf16>, vector<64x16xf32> -> vector<64x16xf32>
    "tpu.trace_stop"() : () -> ()
    %293 = arith.addf %292, %13 : vector<64x16xf32>
    %cst_88 = arith.constant dense<0xFF800000> : vector<64xf32>
    %294 = vector.multi_reduction <maximumf>, %293, %cst_88 [1] : vector<64x16xf32> to vector<64xf32>
    %295 = vector.shape_cast %294 : vector<64xf32> to vector<64x1xf32>
    %296 = vector.broadcast %295 : vector<64x1xf32> to vector<64x16xf32>
    %297 = arith.subf %293, %296 : vector<64x16xf32>
    %298 = math.exp %297 : vector<64x16xf32>
    %cst_89 = arith.constant dense<0.000000e+00> : vector<64xf32>
    %299 = vector.multi_reduction <add>, %298, %cst_89 [1] : vector<64x16xf32> to vector<64xf32>
    %300 = vector.shape_cast %299 : vector<64xf32> to vector<64x1xf32>
    %301 = vector.broadcast %300 : vector<64x1xf32> to vector<64x16xf32>
    %302 = arith.divf %298, %301 : vector<64x16xf32>
    %303 = arith.truncf %302 : vector<64x16xf32> to vector<64x16xbf16>
    %cst_90 = arith.constant dense<0.000000e+00> : vector<64x32xf32>
    %304 = tpu.matmul %303, %277, %cst_90 {dimension_numbers = #tpu.dot_dimension_numbers<[1], [0], [0], [1], [0, 0, 1, 1], [], []>} : vector<64x16xbf16>, vector<16x32xbf16>, vector<64x32xf32> -> vector<64x32xf32>
    %305 = vector.extract_strided_slice %304 {offsets = [0, 0], sizes = [16, 32], strides = [1, 1]} : vector<64x32xf32> to vector<16x32xf32>
    %306 = vector.extract_strided_slice %12 {offsets = [0, 0], sizes = [1, 32], strides = [1, 1]} : vector<4x32xf32> to vector<1x32xf32>
    %307 = vector.broadcast %306 : vector<1x32xf32> to vector<16x32xf32>
    %308 = arith.mulf %305, %307 : vector<16x32xf32>
    %309 = vector.extract_strided_slice %304 {offsets = [16, 0], sizes = [16, 32], strides = [1, 1]} : vector<64x32xf32> to vector<16x32xf32>
    %310 = vector.extract_strided_slice %12 {offsets = [1, 0], sizes = [1, 32], strides = [1, 1]} : vector<4x32xf32> to vector<1x32xf32>
    %311 = vector.broadcast %310 : vector<1x32xf32> to vector<16x32xf32>
    %312 = arith.mulf %309, %311 : vector<16x32xf32>
    %313 = arith.addf %308, %312 : vector<16x32xf32>
    %314 = vector.extract_strided_slice %304 {offsets = [32, 0], sizes = [16, 32], strides = [1, 1]} : vector<64x32xf32> to vector<16x32xf32>
    %315 = vector.extract_strided_slice %12 {offsets = [2, 0], sizes = [1, 32], strides = [1, 1]} : vector<4x32xf32> to vector<1x32xf32>
    %316 = vector.broadcast %315 : vector<1x32xf32> to vector<16x32xf32>
    %317 = arith.mulf %314, %316 : vector<16x32xf32>
    %318 = arith.addf %313, %317 : vector<16x32xf32>
    %319 = vector.extract_strided_slice %304 {offsets = [48, 0], sizes = [16, 32], strides = [1, 1]} : vector<64x32xf32> to vector<16x32xf32>
    %320 = vector.extract_strided_slice %12 {offsets = [3, 0], sizes = [1, 32], strides = [1, 1]} : vector<4x32xf32> to vector<1x32xf32>
    %321 = vector.broadcast %320 : vector<1x32xf32> to vector<16x32xf32>
    %322 = arith.mulf %319, %321 : vector<16x32xf32>
    %323 = arith.addf %318, %322 : vector<16x32xf32>
    %324 = arith.truncf %323 : vector<16x32xf32> to vector<16x32xbf16>
    %c2_91 = arith.constant 2 : index
    %c0_92 = arith.constant 0 : index
    %c0_93 = arith.constant 0 : index
    %325 = vector.load %arg8[%c2_91, %c0_92, %c0_93] : memref<8x32x32xbf16, #tpu.memory_space<vmem>>, vector<1x32x32xbf16>
    %326 = vector.shape_cast %325 : vector<1x32x32xbf16> to vector<32x32xbf16>
    %cst_94 = arith.constant dense<0.000000e+00> : vector<16x32xf32>
    %327 = tpu.matmul %324, %326, %cst_94 {dimension_numbers = #tpu.dot_dimension_numbers<[1], [0], [0], [1], [0, 0, 1, 1], [], []>} : vector<16x32xbf16>, vector<32x32xbf16>, vector<16x32xf32> -> vector<16x32xf32>
    %328 = arith.addf %245, %327 : vector<16x32xf32>
    %c2_95 = arith.constant 2 : index
    %c0_96 = arith.constant 0 : index
    %c0_97 = arith.constant 0 : index
    %329 = vector.load %arg9[%c2_95, %c0_96, %c0_97] : memref<8x1x32xbf16, #tpu.memory_space<vmem>>, vector<1x1x32xbf16>
    %330 = vector.shape_cast %329 : vector<1x1x32xbf16> to vector<1x32xbf16>
    %331 = arith.mulf %328, %328 : vector<16x32xf32>
    %cst_98 = arith.constant dense<0.000000e+00> : vector<16xf32>
    %332 = vector.multi_reduction <add>, %331, %cst_98 [1] : vector<16x32xf32> to vector<16xf32>
    %333 = vector.shape_cast %332 : vector<16xf32> to vector<16x1xf32>
    %cst_99 = arith.constant 3.200000e+01 : f32
    %334 = vector.broadcast %cst_99 : f32 to vector<16x1xf32>
    %335 = arith.divf %333, %334 : vector<16x1xf32>
    %cst_100 = arith.constant 9.99999997E-7 : f32
    %336 = vector.broadcast %cst_100 : f32 to vector<16x1xf32>
    %337 = arith.addf %335, %336 : vector<16x1xf32>
    %338 = math.rsqrt %337 : vector<16x1xf32>
    %339 = vector.broadcast %338 : vector<16x1xf32> to vector<16x32xf32>
    %340 = arith.mulf %328, %339 : vector<16x32xf32>
    %341 = arith.extf %330 : vector<1x32xbf16> to vector<1x32xf32>
    %342 = vector.broadcast %341 : vector<1x32xf32> to vector<16x32xf32>
    %343 = arith.mulf %340, %342 : vector<16x32xf32>
    %344 = arith.truncf %343 : vector<16x32xf32> to vector<16x32xbf16>
    %c2_101 = arith.constant 2 : index
    %c0_102 = arith.constant 0 : index
    %c0_103 = arith.constant 0 : index
    %345 = vector.load %arg10[%c2_101, %c0_102, %c0_103] : memref<8x32x128xbf16, #tpu.memory_space<vmem>>, vector<1x32x128xbf16>
    %346 = vector.shape_cast %345 : vector<1x32x128xbf16> to vector<32x128xbf16>
    %cst_104 = arith.constant dense<0.000000e+00> : vector<16x128xf32>
    %347 = tpu.matmul %344, %346, %cst_104 {dimension_numbers = #tpu.dot_dimension_numbers<[1], [0], [0], [1], [0, 0, 1, 1], [], []>} : vector<16x32xbf16>, vector<32x128xbf16>, vector<16x128xf32> -> vector<16x128xf32>
    %348 = vector.extract_strided_slice %347 {offsets = [0, 0], sizes = [16, 64], strides = [1, 1]} : vector<16x128xf32> to vector<16x64xf32>
    %349 = arith.negf %348 : vector<16x64xf32>
    %350 = math.exp %349 : vector<16x64xf32>
    %cst_105 = arith.constant 1.000000e+00 : f32
    %351 = vector.broadcast %cst_105 : f32 to vector<16x64xf32>
    %352 = arith.addf %351, %350 : vector<16x64xf32>
    %353 = arith.divf %351, %352 : vector<16x64xf32>
    %354 = arith.mulf %348, %353 : vector<16x64xf32>
    %355 = vector.extract_strided_slice %347 {offsets = [0, 64], sizes = [16, 64], strides = [1, 1]} : vector<16x128xf32> to vector<16x64xf32>
    %356 = arith.mulf %354, %355 : vector<16x64xf32>
    %357 = arith.truncf %356 : vector<16x64xf32> to vector<16x64xbf16>
    %c2_106 = arith.constant 2 : index
    %c0_107 = arith.constant 0 : index
    %c0_108 = arith.constant 0 : index
    %358 = vector.load %arg11[%c2_106, %c0_107, %c0_108] : memref<8x64x32xbf16, #tpu.memory_space<vmem>>, vector<1x64x32xbf16>
    %359 = vector.shape_cast %358 : vector<1x64x32xbf16> to vector<64x32xbf16>
    %cst_109 = arith.constant dense<0.000000e+00> : vector<16x32xf32>
    %360 = tpu.matmul %357, %359, %cst_109 {dimension_numbers = #tpu.dot_dimension_numbers<[1], [0], [0], [1], [0, 0, 1, 1], [], []>} : vector<16x64xbf16>, vector<64x32xbf16>, vector<16x32xf32> -> vector<16x32xf32>
    %361 = arith.addf %328, %360 : vector<16x32xf32>
    %362 = arith.addf %361, %245 : vector<16x32xf32>
    %c3 = arith.constant 3 : index
    %c0_110 = arith.constant 0 : index
    %c0_111 = arith.constant 0 : index
    %363 = vector.load %arg6[%c3, %c0_110, %c0_111] : memref<8x1x32xbf16, #tpu.memory_space<vmem>>, vector<1x1x32xbf16>
    %364 = vector.shape_cast %363 : vector<1x1x32xbf16> to vector<1x32xbf16>
    %365 = arith.mulf %362, %362 : vector<16x32xf32>
    %cst_112 = arith.constant dense<0.000000e+00> : vector<16xf32>
    %366 = vector.multi_reduction <add>, %365, %cst_112 [1] : vector<16x32xf32> to vector<16xf32>
    %367 = vector.shape_cast %366 : vector<16xf32> to vector<16x1xf32>
    %cst_113 = arith.constant 3.200000e+01 : f32
    %368 = vector.broadcast %cst_113 : f32 to vector<16x1xf32>
    %369 = arith.divf %367, %368 : vector<16x1xf32>
    %cst_114 = arith.constant 9.99999997E-7 : f32
    %370 = vector.broadcast %cst_114 : f32 to vector<16x1xf32>
    %371 = arith.addf %369, %370 : vector<16x1xf32>
    %372 = math.rsqrt %371 : vector<16x1xf32>
    %373 = vector.broadcast %372 : vector<16x1xf32> to vector<16x32xf32>
    %374 = arith.mulf %362, %373 : vector<16x32xf32>
    %375 = arith.extf %364 : vector<1x32xbf16> to vector<1x32xf32>
    %376 = vector.broadcast %375 : vector<1x32xf32> to vector<16x32xf32>
    %377 = arith.mulf %374, %376 : vector<16x32xf32>
    %378 = arith.truncf %377 : vector<16x32xf32> to vector<16x32xbf16>
    %c3_115 = arith.constant 3 : index
    %c0_116 = arith.constant 0 : index
    %c0_117 = arith.constant 0 : index
    %379 = vector.load %arg7[%c3_115, %c0_116, %c0_117] : memref<8x32x160xbf16, #tpu.memory_space<vmem>>, vector<1x32x160xbf16>
    %380 = vector.shape_cast %379 : vector<1x32x160xbf16> to vector<32x160xbf16>
    %cst_118 = arith.constant dense<0.000000e+00> : vector<16x160xf32>
    %381 = tpu.matmul %378, %380, %cst_118 {dimension_numbers = #tpu.dot_dimension_numbers<[1], [0], [0], [1], [0, 0, 1, 1], [], []>} : vector<16x32xbf16>, vector<32x160xbf16>, vector<16x160xf32> -> vector<16x160xf32>
    %382 = vector.extract_strided_slice %381 {offsets = [0, 0], sizes = [16, 32], strides = [1, 1]} : vector<16x160xf32> to vector<16x32xf32>
    %383 = arith.mulf %382, %10 : vector<16x32xf32>
    %384 = vector.extract_strided_slice %381 {offsets = [0, 32], sizes = [16, 32], strides = [1, 1]} : vector<16x160xf32> to vector<16x32xf32>
    %385 = arith.mulf %384, %11 : vector<16x32xf32>
    %386 = arith.addf %383, %385 : vector<16x32xf32>
    %387 = vector.extract_strided_slice %381 {offsets = [0, 64], sizes = [16, 32], strides = [1, 1]} : vector<16x160xf32> to vector<16x32xf32>
    %388 = arith.mulf %387, %10 : vector<16x32xf32>
    %389 = vector.extract_strided_slice %381 {offsets = [0, 96], sizes = [16, 32], strides = [1, 1]} : vector<16x160xf32> to vector<16x32xf32>
    %390 = arith.mulf %389, %11 : vector<16x32xf32>
    %391 = arith.addf %388, %390 : vector<16x32xf32>
    %392 = arith.truncf %391 : vector<16x32xf32> to vector<16x32xbf16>
    %393 = vector.extract_strided_slice %381 {offsets = [0, 128], sizes = [16, 32], strides = [1, 1]} : vector<16x160xf32> to vector<16x32xf32>
    %394 = arith.truncf %393 : vector<16x32xf32> to vector<16x32xbf16>
    %395 = vector.extract_strided_slice %12 {offsets = [0, 0], sizes = [1, 32], strides = [1, 1]} : vector<4x32xf32> to vector<1x32xf32>
    %396 = vector.broadcast %395 : vector<1x32xf32> to vector<16x32xf32>
    %397 = arith.mulf %386, %396 : vector<16x32xf32>
    %398 = vector.extract_strided_slice %12 {offsets = [1, 0], sizes = [1, 32], strides = [1, 1]} : vector<4x32xf32> to vector<1x32xf32>
    %399 = vector.broadcast %398 : vector<1x32xf32> to vector<16x32xf32>
    %400 = arith.mulf %386, %399 : vector<16x32xf32>
    %401 = vector.extract_strided_slice %12 {offsets = [2, 0], sizes = [1, 32], strides = [1, 1]} : vector<4x32xf32> to vector<1x32xf32>
    %402 = vector.broadcast %401 : vector<1x32xf32> to vector<16x32xf32>
    %403 = arith.mulf %386, %402 : vector<16x32xf32>
    %404 = vector.extract_strided_slice %12 {offsets = [3, 0], sizes = [1, 32], strides = [1, 1]} : vector<4x32xf32> to vector<1x32xf32>
    %405 = vector.broadcast %404 : vector<1x32xf32> to vector<16x32xf32>
    %406 = arith.mulf %386, %405 : vector<16x32xf32>
    %407 = tpu.concatenate %397, %400, %403, %406 in 0 : vector<16x32xf32>, vector<16x32xf32>, vector<16x32xf32>, vector<16x32xf32> -> vector<64x32xf32>
    %408 = arith.truncf %407 : vector<64x32xf32> to vector<64x32xbf16>
    "tpu.trace_start"() <{level = 10 : i32, message = "qd,kd->qk"}> : () -> ()
    %cst_119 = arith.constant dense<0.000000e+00> : vector<64x16xf32>
    %409 = tpu.matmul %408, %392, %cst_119 {dimension_numbers = #tpu.dot_dimension_numbers<[1], [1], [0], [0], [0, 0, 1, 0], [], []>} : vector<64x32xbf16>, vector<16x32xbf16>, vector<64x16xf32> -> vector<64x16xf32>
    "tpu.trace_stop"() : () -> ()
    %410 = arith.addf %409, %13 : vector<64x16xf32>
    %cst_120 = arith.constant dense<0xFF800000> : vector<64xf32>
    %411 = vector.multi_reduction <maximumf>, %410, %cst_120 [1] : vector<64x16xf32> to vector<64xf32>
    %412 = vector.shape_cast %411 : vector<64xf32> to vector<64x1xf32>
    %413 = vector.broadcast %412 : vector<64x1xf32> to vector<64x16xf32>
    %414 = arith.subf %410, %413 : vector<64x16xf32>
    %415 = math.exp %414 : vector<64x16xf32>
    %cst_121 = arith.constant dense<0.000000e+00> : vector<64xf32>
    %416 = vector.multi_reduction <add>, %415, %cst_121 [1] : vector<64x16xf32> to vector<64xf32>
    %417 = vector.shape_cast %416 : vector<64xf32> to vector<64x1xf32>
    %418 = vector.broadcast %417 : vector<64x1xf32> to vector<64x16xf32>
    %419 = arith.divf %415, %418 : vector<64x16xf32>
    %420 = arith.truncf %419 : vector<64x16xf32> to vector<64x16xbf16>
    %cst_122 = arith.constant dense<0.000000e+00> : vector<64x32xf32>
    %421 = tpu.matmul %420, %394, %cst_122 {dimension_numbers = #tpu.dot_dimension_numbers<[1], [0], [0], [1], [0, 0, 1, 1], [], []>} : vector<64x16xbf16>, vector<16x32xbf16>, vector<64x32xf32> -> vector<64x32xf32>
    %422 = vector.extract_strided_slice %421 {offsets = [0, 0], sizes = [16, 32], strides = [1, 1]} : vector<64x32xf32> to vector<16x32xf32>
    %423 = vector.extract_strided_slice %12 {offsets = [0, 0], sizes = [1, 32], strides = [1, 1]} : vector<4x32xf32> to vector<1x32xf32>
    %424 = vector.broadcast %423 : vector<1x32xf32> to vector<16x32xf32>
    %425 = arith.mulf %422, %424 : vector<16x32xf32>
    %426 = vector.extract_strided_slice %421 {offsets = [16, 0], sizes = [16, 32], strides = [1, 1]} : vector<64x32xf32> to vector<16x32xf32>
    %427 = vector.extract_strided_slice %12 {offsets = [1, 0], sizes = [1, 32], strides = [1, 1]} : vector<4x32xf32> to vector<1x32xf32>
    %428 = vector.broadcast %427 : vector<1x32xf32> to vector<16x32xf32>
    %429 = arith.mulf %426, %428 : vector<16x32xf32>
    %430 = arith.addf %425, %429 : vector<16x32xf32>
    %431 = vector.extract_strided_slice %421 {offsets = [32, 0], sizes = [16, 32], strides = [1, 1]} : vector<64x32xf32> to vector<16x32xf32>
    %432 = vector.extract_strided_slice %12 {offsets = [2, 0], sizes = [1, 32], strides = [1, 1]} : vector<4x32xf32> to vector<1x32xf32>
    %433 = vector.broadcast %432 : vector<1x32xf32> to vector<16x32xf32>
    %434 = arith.mulf %431, %433 : vector<16x32xf32>
    %435 = arith.addf %430, %434 : vector<16x32xf32>
    %436 = vector.extract_strided_slice %421 {offsets = [48, 0], sizes = [16, 32], strides = [1, 1]} : vector<64x32xf32> to vector<16x32xf32>
    %437 = vector.extract_strided_slice %12 {offsets = [3, 0], sizes = [1, 32], strides = [1, 1]} : vector<4x32xf32> to vector<1x32xf32>
    %438 = vector.broadcast %437 : vector<1x32xf32> to vector<16x32xf32>
    %439 = arith.mulf %436, %438 : vector<16x32xf32>
    %440 = arith.addf %435, %439 : vector<16x32xf32>
    %441 = arith.truncf %440 : vector<16x32xf32> to vector<16x32xbf16>
    %c3_123 = arith.constant 3 : index
    %c0_124 = arith.constant 0 : index
    %c0_125 = arith.constant 0 : index
    %442 = vector.load %arg8[%c3_123, %c0_124, %c0_125] : memref<8x32x32xbf16, #tpu.memory_space<vmem>>, vector<1x32x32xbf16>
    %443 = vector.shape_cast %442 : vector<1x32x32xbf16> to vector<32x32xbf16>
    %cst_126 = arith.constant dense<0.000000e+00> : vector<16x32xf32>
    %444 = tpu.matmul %441, %443, %cst_126 {dimension_numbers = #tpu.dot_dimension_numbers<[1], [0], [0], [1], [0, 0, 1, 1], [], []>} : vector<16x32xbf16>, vector<32x32xbf16>, vector<16x32xf32> -> vector<16x32xf32>
    %445 = arith.addf %362, %444 : vector<16x32xf32>
    %c3_127 = arith.constant 3 : index
    %c0_128 = arith.constant 0 : index
    %c0_129 = arith.constant 0 : index
    %446 = vector.load %arg9[%c3_127, %c0_128, %c0_129] : memref<8x1x32xbf16, #tpu.memory_space<vmem>>, vector<1x1x32xbf16>
    %447 = vector.shape_cast %446 : vector<1x1x32xbf16> to vector<1x32xbf16>
    %448 = arith.mulf %445, %445 : vector<16x32xf32>
    %cst_130 = arith.constant dense<0.000000e+00> : vector<16xf32>
    %449 = vector.multi_reduction <add>, %448, %cst_130 [1] : vector<16x32xf32> to vector<16xf32>
    %450 = vector.shape_cast %449 : vector<16xf32> to vector<16x1xf32>
    %cst_131 = arith.constant 3.200000e+01 : f32
    %451 = vector.broadcast %cst_131 : f32 to vector<16x1xf32>
    %452 = arith.divf %450, %451 : vector<16x1xf32>
    %cst_132 = arith.constant 9.99999997E-7 : f32
    %453 = vector.broadcast %cst_132 : f32 to vector<16x1xf32>
    %454 = arith.addf %452, %453 : vector<16x1xf32>
    %455 = math.rsqrt %454 : vector<16x1xf32>
    %456 = vector.broadcast %455 : vector<16x1xf32> to vector<16x32xf32>
    %457 = arith.mulf %445, %456 : vector<16x32xf32>
    %458 = arith.extf %447 : vector<1x32xbf16> to vector<1x32xf32>
    %459 = vector.broadcast %458 : vector<1x32xf32> to vector<16x32xf32>
    %460 = arith.mulf %457, %459 : vector<16x32xf32>
    %461 = arith.truncf %460 : vector<16x32xf32> to vector<16x32xbf16>
    %c3_133 = arith.constant 3 : index
    %c0_134 = arith.constant 0 : index
    %c0_135 = arith.constant 0 : index
    %462 = vector.load %arg10[%c3_133, %c0_134, %c0_135] : memref<8x32x128xbf16, #tpu.memory_space<vmem>>, vector<1x32x128xbf16>
    %463 = vector.shape_cast %462 : vector<1x32x128xbf16> to vector<32x128xbf16>
    %cst_136 = arith.constant dense<0.000000e+00> : vector<16x128xf32>
    %464 = tpu.matmul %461, %463, %cst_136 {dimension_numbers = #tpu.dot_dimension_numbers<[1], [0], [0], [1], [0, 0, 1, 1], [], []>} : vector<16x32xbf16>, vector<32x128xbf16>, vector<16x128xf32> -> vector<16x128xf32>
    %465 = vector.extract_strided_slice %464 {offsets = [0, 0], sizes = [16, 64], strides = [1, 1]} : vector<16x128xf32> to vector<16x64xf32>
    %466 = arith.negf %465 : vector<16x64xf32>
    %467 = math.exp %466 : vector<16x64xf32>
    %cst_137 = arith.constant 1.000000e+00 : f32
    %468 = vector.broadcast %cst_137 : f32 to vector<16x64xf32>
    %469 = arith.addf %468, %467 : vector<16x64xf32>
    %470 = arith.divf %468, %469 : vector<16x64xf32>
    %471 = arith.mulf %465, %470 : vector<16x64xf32>
    %472 = vector.extract_strided_slice %464 {offsets = [0, 64], sizes = [16, 64], strides = [1, 1]} : vector<16x128xf32> to vector<16x64xf32>
    %473 = arith.mulf %471, %472 : vector<16x64xf32>
    %474 = arith.truncf %473 : vector<16x64xf32> to vector<16x64xbf16>
    %c3_138 = arith.constant 3 : index
    %c0_139 = arith.constant 0 : index
    %c0_140 = arith.constant 0 : index
    %475 = vector.load %arg11[%c3_138, %c0_139, %c0_140] : memref<8x64x32xbf16, #tpu.memory_space<vmem>>, vector<1x64x32xbf16>
    %476 = vector.shape_cast %475 : vector<1x64x32xbf16> to vector<64x32xbf16>
    %cst_141 = arith.constant dense<0.000000e+00> : vector<16x32xf32>
    %477 = tpu.matmul %474, %476, %cst_141 {dimension_numbers = #tpu.dot_dimension_numbers<[1], [0], [0], [1], [0, 0, 1, 1], [], []>} : vector<16x64xbf16>, vector<64x32xbf16>, vector<16x32xf32> -> vector<16x32xf32>
    %478 = arith.addf %445, %477 : vector<16x32xf32>
    %479 = arith.addf %478, %245 : vector<16x32xf32>
    %c4 = arith.constant 4 : index
    %c0_142 = arith.constant 0 : index
    %c0_143 = arith.constant 0 : index
    %480 = vector.load %arg6[%c4, %c0_142, %c0_143] : memref<8x1x32xbf16, #tpu.memory_space<vmem>>, vector<1x1x32xbf16>
    %481 = vector.shape_cast %480 : vector<1x1x32xbf16> to vector<1x32xbf16>
    %482 = arith.mulf %479, %479 : vector<16x32xf32>
    %cst_144 = arith.constant dense<0.000000e+00> : vector<16xf32>
    %483 = vector.multi_reduction <add>, %482, %cst_144 [1] : vector<16x32xf32> to vector<16xf32>
    %484 = vector.shape_cast %483 : vector<16xf32> to vector<16x1xf32>
    %cst_145 = arith.constant 3.200000e+01 : f32
    %485 = vector.broadcast %cst_145 : f32 to vector<16x1xf32>
    %486 = arith.divf %484, %485 : vector<16x1xf32>
    %cst_146 = arith.constant 9.99999997E-7 : f32
    %487 = vector.broadcast %cst_146 : f32 to vector<16x1xf32>
    %488 = arith.addf %486, %487 : vector<16x1xf32>
    %489 = math.rsqrt %488 : vector<16x1xf32>
    %490 = vector.broadcast %489 : vector<16x1xf32> to vector<16x32xf32>
    %491 = arith.mulf %479, %490 : vector<16x32xf32>
    %492 = arith.extf %481 : vector<1x32xbf16> to vector<1x32xf32>
    %493 = vector.broadcast %492 : vector<1x32xf32> to vector<16x32xf32>
    %494 = arith.mulf %491, %493 : vector<16x32xf32>
    %495 = arith.truncf %494 : vector<16x32xf32> to vector<16x32xbf16>
    %c4_147 = arith.constant 4 : index
    %c0_148 = arith.constant 0 : index
    %c0_149 = arith.constant 0 : index
    %496 = vector.load %arg7[%c4_147, %c0_148, %c0_149] : memref<8x32x160xbf16, #tpu.memory_space<vmem>>, vector<1x32x160xbf16>
    %497 = vector.shape_cast %496 : vector<1x32x160xbf16> to vector<32x160xbf16>
    %cst_150 = arith.constant dense<0.000000e+00> : vector<16x160xf32>
    %498 = tpu.matmul %495, %497, %cst_150 {dimension_numbers = #tpu.dot_dimension_numbers<[1], [0], [0], [1], [0, 0, 1, 1], [], []>} : vector<16x32xbf16>, vector<32x160xbf16>, vector<16x160xf32> -> vector<16x160xf32>
    %499 = vector.extract_strided_slice %498 {offsets = [0, 0], sizes = [16, 32], strides = [1, 1]} : vector<16x160xf32> to vector<16x32xf32>
    %500 = arith.mulf %499, %10 : vector<16x32xf32>
    %501 = vector.extract_strided_slice %498 {offsets = [0, 32], sizes = [16, 32], strides = [1, 1]} : vector<16x160xf32> to vector<16x32xf32>
    %502 = arith.mulf %501, %11 : vector<16x32xf32>
    %503 = arith.addf %500, %502 : vector<16x32xf32>
    %504 = vector.extract_strided_slice %498 {offsets = [0, 64], sizes = [16, 32], strides = [1, 1]} : vector<16x160xf32> to vector<16x32xf32>
    %505 = arith.mulf %504, %10 : vector<16x32xf32>
    %506 = vector.extract_strided_slice %498 {offsets = [0, 96], sizes = [16, 32], strides = [1, 1]} : vector<16x160xf32> to vector<16x32xf32>
    %507 = arith.mulf %506, %11 : vector<16x32xf32>
    %508 = arith.addf %505, %507 : vector<16x32xf32>
    %509 = arith.truncf %508 : vector<16x32xf32> to vector<16x32xbf16>
    %510 = vector.extract_strided_slice %498 {offsets = [0, 128], sizes = [16, 32], strides = [1, 1]} : vector<16x160xf32> to vector<16x32xf32>
    %511 = arith.truncf %510 : vector<16x32xf32> to vector<16x32xbf16>
    %512 = vector.extract_strided_slice %12 {offsets = [0, 0], sizes = [1, 32], strides = [1, 1]} : vector<4x32xf32> to vector<1x32xf32>
    %513 = vector.broadcast %512 : vector<1x32xf32> to vector<16x32xf32>
    %514 = arith.mulf %503, %513 : vector<16x32xf32>
    %515 = vector.extract_strided_slice %12 {offsets = [1, 0], sizes = [1, 32], strides = [1, 1]} : vector<4x32xf32> to vector<1x32xf32>
    %516 = vector.broadcast %515 : vector<1x32xf32> to vector<16x32xf32>
    %517 = arith.mulf %503, %516 : vector<16x32xf32>
    %518 = vector.extract_strided_slice %12 {offsets = [2, 0], sizes = [1, 32], strides = [1, 1]} : vector<4x32xf32> to vector<1x32xf32>
    %519 = vector.broadcast %518 : vector<1x32xf32> to vector<16x32xf32>
    %520 = arith.mulf %503, %519 : vector<16x32xf32>
    %521 = vector.extract_strided_slice %12 {offsets = [3, 0], sizes = [1, 32], strides = [1, 1]} : vector<4x32xf32> to vector<1x32xf32>
    %522 = vector.broadcast %521 : vector<1x32xf32> to vector<16x32xf32>
    %523 = arith.mulf %503, %522 : vector<16x32xf32>
    %524 = tpu.concatenate %514, %517, %520, %523 in 0 : vector<16x32xf32>, vector<16x32xf32>, vector<16x32xf32>, vector<16x32xf32> -> vector<64x32xf32>
    %525 = arith.truncf %524 : vector<64x32xf32> to vector<64x32xbf16>
    "tpu.trace_start"() <{level = 10 : i32, message = "qd,kd->qk"}> : () -> ()
    %cst_151 = arith.constant dense<0.000000e+00> : vector<64x16xf32>
    %526 = tpu.matmul %525, %509, %cst_151 {dimension_numbers = #tpu.dot_dimension_numbers<[1], [1], [0], [0], [0, 0, 1, 0], [], []>} : vector<64x32xbf16>, vector<16x32xbf16>, vector<64x16xf32> -> vector<64x16xf32>
    "tpu.trace_stop"() : () -> ()
    %527 = arith.addf %526, %13 : vector<64x16xf32>
    %cst_152 = arith.constant dense<0xFF800000> : vector<64xf32>
    %528 = vector.multi_reduction <maximumf>, %527, %cst_152 [1] : vector<64x16xf32> to vector<64xf32>
    %529 = vector.shape_cast %528 : vector<64xf32> to vector<64x1xf32>
    %530 = vector.broadcast %529 : vector<64x1xf32> to vector<64x16xf32>
    %531 = arith.subf %527, %530 : vector<64x16xf32>
    %532 = math.exp %531 : vector<64x16xf32>
    %cst_153 = arith.constant dense<0.000000e+00> : vector<64xf32>
    %533 = vector.multi_reduction <add>, %532, %cst_153 [1] : vector<64x16xf32> to vector<64xf32>
    %534 = vector.shape_cast %533 : vector<64xf32> to vector<64x1xf32>
    %535 = vector.broadcast %534 : vector<64x1xf32> to vector<64x16xf32>
    %536 = arith.divf %532, %535 : vector<64x16xf32>
    %537 = arith.truncf %536 : vector<64x16xf32> to vector<64x16xbf16>
    %cst_154 = arith.constant dense<0.000000e+00> : vector<64x32xf32>
    %538 = tpu.matmul %537, %511, %cst_154 {dimension_numbers = #tpu.dot_dimension_numbers<[1], [0], [0], [1], [0, 0, 1, 1], [], []>} : vector<64x16xbf16>, vector<16x32xbf16>, vector<64x32xf32> -> vector<64x32xf32>
    %539 = vector.extract_strided_slice %538 {offsets = [0, 0], sizes = [16, 32], strides = [1, 1]} : vector<64x32xf32> to vector<16x32xf32>
    %540 = vector.extract_strided_slice %12 {offsets = [0, 0], sizes = [1, 32], strides = [1, 1]} : vector<4x32xf32> to vector<1x32xf32>
    %541 = vector.broadcast %540 : vector<1x32xf32> to vector<16x32xf32>
    %542 = arith.mulf %539, %541 : vector<16x32xf32>
    %543 = vector.extract_strided_slice %538 {offsets = [16, 0], sizes = [16, 32], strides = [1, 1]} : vector<64x32xf32> to vector<16x32xf32>
    %544 = vector.extract_strided_slice %12 {offsets = [1, 0], sizes = [1, 32], strides = [1, 1]} : vector<4x32xf32> to vector<1x32xf32>
    %545 = vector.broadcast %544 : vector<1x32xf32> to vector<16x32xf32>
    %546 = arith.mulf %543, %545 : vector<16x32xf32>
    %547 = arith.addf %542, %546 : vector<16x32xf32>
    %548 = vector.extract_strided_slice %538 {offsets = [32, 0], sizes = [16, 32], strides = [1, 1]} : vector<64x32xf32> to vector<16x32xf32>
    %549 = vector.extract_strided_slice %12 {offsets = [2, 0], sizes = [1, 32], strides = [1, 1]} : vector<4x32xf32> to vector<1x32xf32>
    %550 = vector.broadcast %549 : vector<1x32xf32> to vector<16x32xf32>
    %551 = arith.mulf %548, %550 : vector<16x32xf32>
    %552 = arith.addf %547, %551 : vector<16x32xf32>
    %553 = vector.extract_strided_slice %538 {offsets = [48, 0], sizes = [16, 32], strides = [1, 1]} : vector<64x32xf32> to vector<16x32xf32>
    %554 = vector.extract_strided_slice %12 {offsets = [3, 0], sizes = [1, 32], strides = [1, 1]} : vector<4x32xf32> to vector<1x32xf32>
    %555 = vector.broadcast %554 : vector<1x32xf32> to vector<16x32xf32>
    %556 = arith.mulf %553, %555 : vector<16x32xf32>
    %557 = arith.addf %552, %556 : vector<16x32xf32>
    %558 = arith.truncf %557 : vector<16x32xf32> to vector<16x32xbf16>
    %c4_155 = arith.constant 4 : index
    %c0_156 = arith.constant 0 : index
    %c0_157 = arith.constant 0 : index
    %559 = vector.load %arg8[%c4_155, %c0_156, %c0_157] : memref<8x32x32xbf16, #tpu.memory_space<vmem>>, vector<1x32x32xbf16>
    %560 = vector.shape_cast %559 : vector<1x32x32xbf16> to vector<32x32xbf16>
    %cst_158 = arith.constant dense<0.000000e+00> : vector<16x32xf32>
    %561 = tpu.matmul %558, %560, %cst_158 {dimension_numbers = #tpu.dot_dimension_numbers<[1], [0], [0], [1], [0, 0, 1, 1], [], []>} : vector<16x32xbf16>, vector<32x32xbf16>, vector<16x32xf32> -> vector<16x32xf32>
    %562 = arith.addf %479, %561 : vector<16x32xf32>
    %c4_159 = arith.constant 4 : index
    %c0_160 = arith.constant 0 : index
    %c0_161 = arith.constant 0 : index
    %563 = vector.load %arg9[%c4_159, %c0_160, %c0_161] : memref<8x1x32xbf16, #tpu.memory_space<vmem>>, vector<1x1x32xbf16>
    %564 = vector.shape_cast %563 : vector<1x1x32xbf16> to vector<1x32xbf16>
    %565 = arith.mulf %562, %562 : vector<16x32xf32>
    %cst_162 = arith.constant dense<0.000000e+00> : vector<16xf32>
    %566 = vector.multi_reduction <add>, %565, %cst_162 [1] : vector<16x32xf32> to vector<16xf32>
    %567 = vector.shape_cast %566 : vector<16xf32> to vector<16x1xf32>
    %cst_163 = arith.constant 3.200000e+01 : f32
    %568 = vector.broadcast %cst_163 : f32 to vector<16x1xf32>
    %569 = arith.divf %567, %568 : vector<16x1xf32>
    %cst_164 = arith.constant 9.99999997E-7 : f32
    %570 = vector.broadcast %cst_164 : f32 to vector<16x1xf32>
    %571 = arith.addf %569, %570 : vector<16x1xf32>
    %572 = math.rsqrt %571 : vector<16x1xf32>
    %573 = vector.broadcast %572 : vector<16x1xf32> to vector<16x32xf32>
    %574 = arith.mulf %562, %573 : vector<16x32xf32>
    %575 = arith.extf %564 : vector<1x32xbf16> to vector<1x32xf32>
    %576 = vector.broadcast %575 : vector<1x32xf32> to vector<16x32xf32>
    %577 = arith.mulf %574, %576 : vector<16x32xf32>
    %578 = arith.truncf %577 : vector<16x32xf32> to vector<16x32xbf16>
    %c4_165 = arith.constant 4 : index
    %c0_166 = arith.constant 0 : index
    %c0_167 = arith.constant 0 : index
    %579 = vector.load %arg10[%c4_165, %c0_166, %c0_167] : memref<8x32x128xbf16, #tpu.memory_space<vmem>>, vector<1x32x128xbf16>
    %580 = vector.shape_cast %579 : vector<1x32x128xbf16> to vector<32x128xbf16>
    %cst_168 = arith.constant dense<0.000000e+00> : vector<16x128xf32>
    %581 = tpu.matmul %578, %580, %cst_168 {dimension_numbers = #tpu.dot_dimension_numbers<[1], [0], [0], [1], [0, 0, 1, 1], [], []>} : vector<16x32xbf16>, vector<32x128xbf16>, vector<16x128xf32> -> vector<16x128xf32>
    %582 = vector.extract_strided_slice %581 {offsets = [0, 0], sizes = [16, 64], strides = [1, 1]} : vector<16x128xf32> to vector<16x64xf32>
    %583 = arith.negf %582 : vector<16x64xf32>
    %584 = math.exp %583 : vector<16x64xf32>
    %cst_169 = arith.constant 1.000000e+00 : f32
    %585 = vector.broadcast %cst_169 : f32 to vector<16x64xf32>
    %586 = arith.addf %585, %584 : vector<16x64xf32>
    %587 = arith.divf %585, %586 : vector<16x64xf32>
    %588 = arith.mulf %582, %587 : vector<16x64xf32>
    %589 = vector.extract_strided_slice %581 {offsets = [0, 64], sizes = [16, 64], strides = [1, 1]} : vector<16x128xf32> to vector<16x64xf32>
    %590 = arith.mulf %588, %589 : vector<16x64xf32>
    %591 = arith.truncf %590 : vector<16x64xf32> to vector<16x64xbf16>
    %c4_170 = arith.constant 4 : index
    %c0_171 = arith.constant 0 : index
    %c0_172 = arith.constant 0 : index
    %592 = vector.load %arg11[%c4_170, %c0_171, %c0_172] : memref<8x64x32xbf16, #tpu.memory_space<vmem>>, vector<1x64x32xbf16>
    %593 = vector.shape_cast %592 : vector<1x64x32xbf16> to vector<64x32xbf16>
    %cst_173 = arith.constant dense<0.000000e+00> : vector<16x32xf32>
    %594 = tpu.matmul %591, %593, %cst_173 {dimension_numbers = #tpu.dot_dimension_numbers<[1], [0], [0], [1], [0, 0, 1, 1], [], []>} : vector<16x64xbf16>, vector<64x32xbf16>, vector<16x32xf32> -> vector<16x32xf32>
    %595 = arith.addf %562, %594 : vector<16x32xf32>
    %596 = arith.addf %595, %245 : vector<16x32xf32>
    %c2_174 = arith.constant 2 : index
    %c0_175 = arith.constant 0 : index
    %c0_176 = arith.constant 0 : index
    %597 = vector.load %arg6[%c2_174, %c0_175, %c0_176] : memref<8x1x32xbf16, #tpu.memory_space<vmem>>, vector<1x1x32xbf16>
    %598 = vector.shape_cast %597 : vector<1x1x32xbf16> to vector<1x32xbf16>
    %599 = arith.mulf %596, %596 : vector<16x32xf32>
    %cst_177 = arith.constant dense<0.000000e+00> : vector<16xf32>
    %600 = vector.multi_reduction <add>, %599, %cst_177 [1] : vector<16x32xf32> to vector<16xf32>
    %601 = vector.shape_cast %600 : vector<16xf32> to vector<16x1xf32>
    %cst_178 = arith.constant 3.200000e+01 : f32
    %602 = vector.broadcast %cst_178 : f32 to vector<16x1xf32>
    %603 = arith.divf %601, %602 : vector<16x1xf32>
    %cst_179 = arith.constant 9.99999997E-7 : f32
    %604 = vector.broadcast %cst_179 : f32 to vector<16x1xf32>
    %605 = arith.addf %603, %604 : vector<16x1xf32>
    %606 = math.rsqrt %605 : vector<16x1xf32>
    %607 = vector.broadcast %606 : vector<16x1xf32> to vector<16x32xf32>
    %608 = arith.mulf %596, %607 : vector<16x32xf32>
    %609 = arith.extf %598 : vector<1x32xbf16> to vector<1x32xf32>
    %610 = vector.broadcast %609 : vector<1x32xf32> to vector<16x32xf32>
    %611 = arith.mulf %608, %610 : vector<16x32xf32>
    %612 = arith.truncf %611 : vector<16x32xf32> to vector<16x32xbf16>
    %c2_180 = arith.constant 2 : index
    %c0_181 = arith.constant 0 : index
    %c0_182 = arith.constant 0 : index
    %613 = vector.load %arg7[%c2_180, %c0_181, %c0_182] : memref<8x32x160xbf16, #tpu.memory_space<vmem>>, vector<1x32x160xbf16>
    %614 = vector.shape_cast %613 : vector<1x32x160xbf16> to vector<32x160xbf16>
    %cst_183 = arith.constant dense<0.000000e+00> : vector<16x160xf32>
    %615 = tpu.matmul %612, %614, %cst_183 {dimension_numbers = #tpu.dot_dimension_numbers<[1], [0], [0], [1], [0, 0, 1, 1], [], []>} : vector<16x32xbf16>, vector<32x160xbf16>, vector<16x160xf32> -> vector<16x160xf32>
    %616 = vector.extract_strided_slice %615 {offsets = [0, 0], sizes = [16, 32], strides = [1, 1]} : vector<16x160xf32> to vector<16x32xf32>
    %617 = arith.mulf %616, %10 : vector<16x32xf32>
    %618 = vector.extract_strided_slice %615 {offsets = [0, 32], sizes = [16, 32], strides = [1, 1]} : vector<16x160xf32> to vector<16x32xf32>
    %619 = arith.mulf %618, %11 : vector<16x32xf32>
    %620 = arith.addf %617, %619 : vector<16x32xf32>
    %621 = vector.extract_strided_slice %615 {offsets = [0, 64], sizes = [16, 32], strides = [1, 1]} : vector<16x160xf32> to vector<16x32xf32>
    %622 = arith.mulf %621, %10 : vector<16x32xf32>
    %623 = vector.extract_strided_slice %615 {offsets = [0, 96], sizes = [16, 32], strides = [1, 1]} : vector<16x160xf32> to vector<16x32xf32>
    %624 = arith.mulf %623, %11 : vector<16x32xf32>
    %625 = arith.addf %622, %624 : vector<16x32xf32>
    %626 = arith.truncf %625 : vector<16x32xf32> to vector<16x32xbf16>
    %627 = vector.extract_strided_slice %615 {offsets = [0, 128], sizes = [16, 32], strides = [1, 1]} : vector<16x160xf32> to vector<16x32xf32>
    %628 = arith.truncf %627 : vector<16x32xf32> to vector<16x32xbf16>
    %629 = vector.extract_strided_slice %12 {offsets = [0, 0], sizes = [1, 32], strides = [1, 1]} : vector<4x32xf32> to vector<1x32xf32>
    %630 = vector.broadcast %629 : vector<1x32xf32> to vector<16x32xf32>
    %631 = arith.mulf %620, %630 : vector<16x32xf32>
    %632 = vector.extract_strided_slice %12 {offsets = [1, 0], sizes = [1, 32], strides = [1, 1]} : vector<4x32xf32> to vector<1x32xf32>
    %633 = vector.broadcast %632 : vector<1x32xf32> to vector<16x32xf32>
    %634 = arith.mulf %620, %633 : vector<16x32xf32>
    %635 = vector.extract_strided_slice %12 {offsets = [2, 0], sizes = [1, 32], strides = [1, 1]} : vector<4x32xf32> to vector<1x32xf32>
    %636 = vector.broadcast %635 : vector<1x32xf32> to vector<16x32xf32>
    %637 = arith.mulf %620, %636 : vector<16x32xf32>
    %638 = vector.extract_strided_slice %12 {offsets = [3, 0], sizes = [1, 32], strides = [1, 1]} : vector<4x32xf32> to vector<1x32xf32>
    %639 = vector.broadcast %638 : vector<1x32xf32> to vector<16x32xf32>
    %640 = arith.mulf %620, %639 : vector<16x32xf32>
    %641 = tpu.concatenate %631, %634, %637, %640 in 0 : vector<16x32xf32>, vector<16x32xf32>, vector<16x32xf32>, vector<16x32xf32> -> vector<64x32xf32>
    %642 = arith.truncf %641 : vector<64x32xf32> to vector<64x32xbf16>
    "tpu.trace_start"() <{level = 10 : i32, message = "qd,kd->qk"}> : () -> ()
    %cst_184 = arith.constant dense<0.000000e+00> : vector<64x16xf32>
    %643 = tpu.matmul %642, %626, %cst_184 {dimension_numbers = #tpu.dot_dimension_numbers<[1], [1], [0], [0], [0, 0, 1, 0], [], []>} : vector<64x32xbf16>, vector<16x32xbf16>, vector<64x16xf32> -> vector<64x16xf32>
    "tpu.trace_stop"() : () -> ()
    %644 = arith.addf %643, %13 : vector<64x16xf32>
    %cst_185 = arith.constant dense<0xFF800000> : vector<64xf32>
    %645 = vector.multi_reduction <maximumf>, %644, %cst_185 [1] : vector<64x16xf32> to vector<64xf32>
    %646 = vector.shape_cast %645 : vector<64xf32> to vector<64x1xf32>
    %647 = vector.broadcast %646 : vector<64x1xf32> to vector<64x16xf32>
    %648 = arith.subf %644, %647 : vector<64x16xf32>
    %649 = math.exp %648 : vector<64x16xf32>
    %cst_186 = arith.constant dense<0.000000e+00> : vector<64xf32>
    %650 = vector.multi_reduction <add>, %649, %cst_186 [1] : vector<64x16xf32> to vector<64xf32>
    %651 = vector.shape_cast %650 : vector<64xf32> to vector<64x1xf32>
    %652 = vector.broadcast %651 : vector<64x1xf32> to vector<64x16xf32>
    %653 = arith.divf %649, %652 : vector<64x16xf32>
    %654 = arith.truncf %653 : vector<64x16xf32> to vector<64x16xbf16>
    %cst_187 = arith.constant dense<0.000000e+00> : vector<64x32xf32>
    %655 = tpu.matmul %654, %628, %cst_187 {dimension_numbers = #tpu.dot_dimension_numbers<[1], [0], [0], [1], [0, 0, 1, 1], [], []>} : vector<64x16xbf16>, vector<16x32xbf16>, vector<64x32xf32> -> vector<64x32xf32>
    %656 = vector.extract_strided_slice %655 {offsets = [0, 0], sizes = [16, 32], strides = [1, 1]} : vector<64x32xf32> to vector<16x32xf32>
    %657 = vector.extract_strided_slice %12 {offsets = [0, 0], sizes = [1, 32], strides = [1, 1]} : vector<4x32xf32> to vector<1x32xf32>
    %658 = vector.broadcast %657 : vector<1x32xf32> to vector<16x32xf32>
    %659 = arith.mulf %656, %658 : vector<16x32xf32>
    %660 = vector.extract_strided_slice %655 {offsets = [16, 0], sizes = [16, 32], strides = [1, 1]} : vector<64x32xf32> to vector<16x32xf32>
    %661 = vector.extract_strided_slice %12 {offsets = [1, 0], sizes = [1, 32], strides = [1, 1]} : vector<4x32xf32> to vector<1x32xf32>
    %662 = vector.broadcast %661 : vector<1x32xf32> to vector<16x32xf32>
    %663 = arith.mulf %660, %662 : vector<16x32xf32>
    %664 = arith.addf %659, %663 : vector<16x32xf32>
    %665 = vector.extract_strided_slice %655 {offsets = [32, 0], sizes = [16, 32], strides = [1, 1]} : vector<64x32xf32> to vector<16x32xf32>
    %666 = vector.extract_strided_slice %12 {offsets = [2, 0], sizes = [1, 32], strides = [1, 1]} : vector<4x32xf32> to vector<1x32xf32>
    %667 = vector.broadcast %666 : vector<1x32xf32> to vector<16x32xf32>
    %668 = arith.mulf %665, %667 : vector<16x32xf32>
    %669 = arith.addf %664, %668 : vector<16x32xf32>
    %670 = vector.extract_strided_slice %655 {offsets = [48, 0], sizes = [16, 32], strides = [1, 1]} : vector<64x32xf32> to vector<16x32xf32>
    %671 = vector.extract_strided_slice %12 {offsets = [3, 0], sizes = [1, 32], strides = [1, 1]} : vector<4x32xf32> to vector<1x32xf32>
    %672 = vector.broadcast %671 : vector<1x32xf32> to vector<16x32xf32>
    %673 = arith.mulf %670, %672 : vector<16x32xf32>
    %674 = arith.addf %669, %673 : vector<16x32xf32>
    %675 = arith.truncf %674 : vector<16x32xf32> to vector<16x32xbf16>
    %c2_188 = arith.constant 2 : index
    %c0_189 = arith.constant 0 : index
    %c0_190 = arith.constant 0 : index
    %676 = vector.load %arg8[%c2_188, %c0_189, %c0_190] : memref<8x32x32xbf16, #tpu.memory_space<vmem>>, vector<1x32x32xbf16>
    %677 = vector.shape_cast %676 : vector<1x32x32xbf16> to vector<32x32xbf16>
    %cst_191 = arith.constant dense<0.000000e+00> : vector<16x32xf32>
    %678 = tpu.matmul %675, %677, %cst_191 {dimension_numbers = #tpu.dot_dimension_numbers<[1], [0], [0], [1], [0, 0, 1, 1], [], []>} : vector<16x32xbf16>, vector<32x32xbf16>, vector<16x32xf32> -> vector<16x32xf32>
    %679 = arith.addf %596, %678 : vector<16x32xf32>
    %c2_192 = arith.constant 2 : index
    %c0_193 = arith.constant 0 : index
    %c0_194 = arith.constant 0 : index
    %680 = vector.load %arg9[%c2_192, %c0_193, %c0_194] : memref<8x1x32xbf16, #tpu.memory_space<vmem>>, vector<1x1x32xbf16>
    %681 = vector.shape_cast %680 : vector<1x1x32xbf16> to vector<1x32xbf16>
    %682 = arith.mulf %679, %679 : vector<16x32xf32>
    %cst_195 = arith.constant dense<0.000000e+00> : vector<16xf32>
    %683 = vector.multi_reduction <add>, %682, %cst_195 [1] : vector<16x32xf32> to vector<16xf32>
    %684 = vector.shape_cast %683 : vector<16xf32> to vector<16x1xf32>
    %cst_196 = arith.constant 3.200000e+01 : f32
    %685 = vector.broadcast %cst_196 : f32 to vector<16x1xf32>
    %686 = arith.divf %684, %685 : vector<16x1xf32>
    %cst_197 = arith.constant 9.99999997E-7 : f32
    %687 = vector.broadcast %cst_197 : f32 to vector<16x1xf32>
    %688 = arith.addf %686, %687 : vector<16x1xf32>
    %689 = math.rsqrt %688 : vector<16x1xf32>
    %690 = vector.broadcast %689 : vector<16x1xf32> to vector<16x32xf32>
    %691 = arith.mulf %679, %690 : vector<16x32xf32>
    %692 = arith.extf %681 : vector<1x32xbf16> to vector<1x32xf32>
    %693 = vector.broadcast %692 : vector<1x32xf32> to vector<16x32xf32>
    %694 = arith.mulf %691, %693 : vector<16x32xf32>
    %695 = arith.truncf %694 : vector<16x32xf32> to vector<16x32xbf16>
    %c2_198 = arith.constant 2 : index
    %c0_199 = arith.constant 0 : index
    %c0_200 = arith.constant 0 : index
    %696 = vector.load %arg10[%c2_198, %c0_199, %c0_200] : memref<8x32x128xbf16, #tpu.memory_space<vmem>>, vector<1x32x128xbf16>
    %697 = vector.shape_cast %696 : vector<1x32x128xbf16> to vector<32x128xbf16>
    %cst_201 = arith.constant dense<0.000000e+00> : vector<16x128xf32>
    %698 = tpu.matmul %695, %697, %cst_201 {dimension_numbers = #tpu.dot_dimension_numbers<[1], [0], [0], [1], [0, 0, 1, 1], [], []>} : vector<16x32xbf16>, vector<32x128xbf16>, vector<16x128xf32> -> vector<16x128xf32>
    %699 = vector.extract_strided_slice %698 {offsets = [0, 0], sizes = [16, 64], strides = [1, 1]} : vector<16x128xf32> to vector<16x64xf32>
    %700 = arith.negf %699 : vector<16x64xf32>
    %701 = math.exp %700 : vector<16x64xf32>
    %cst_202 = arith.constant 1.000000e+00 : f32
    %702 = vector.broadcast %cst_202 : f32 to vector<16x64xf32>
    %703 = arith.addf %702, %701 : vector<16x64xf32>
    %704 = arith.divf %702, %703 : vector<16x64xf32>
    %705 = arith.mulf %699, %704 : vector<16x64xf32>
    %706 = vector.extract_strided_slice %698 {offsets = [0, 64], sizes = [16, 64], strides = [1, 1]} : vector<16x128xf32> to vector<16x64xf32>
    %707 = arith.mulf %705, %706 : vector<16x64xf32>
    %708 = arith.truncf %707 : vector<16x64xf32> to vector<16x64xbf16>
    %c2_203 = arith.constant 2 : index
    %c0_204 = arith.constant 0 : index
    %c0_205 = arith.constant 0 : index
    %709 = vector.load %arg11[%c2_203, %c0_204, %c0_205] : memref<8x64x32xbf16, #tpu.memory_space<vmem>>, vector<1x64x32xbf16>
    %710 = vector.shape_cast %709 : vector<1x64x32xbf16> to vector<64x32xbf16>
    %cst_206 = arith.constant dense<0.000000e+00> : vector<16x32xf32>
    %711 = tpu.matmul %708, %710, %cst_206 {dimension_numbers = #tpu.dot_dimension_numbers<[1], [0], [0], [1], [0, 0, 1, 1], [], []>} : vector<16x64xbf16>, vector<64x32xbf16>, vector<16x32xf32> -> vector<16x32xf32>
    %712 = arith.addf %679, %711 : vector<16x32xf32>
    %713 = arith.addf %712, %245 : vector<16x32xf32>
    %c3_207 = arith.constant 3 : index
    %c0_208 = arith.constant 0 : index
    %c0_209 = arith.constant 0 : index
    %714 = vector.load %arg6[%c3_207, %c0_208, %c0_209] : memref<8x1x32xbf16, #tpu.memory_space<vmem>>, vector<1x1x32xbf16>
    %715 = vector.shape_cast %714 : vector<1x1x32xbf16> to vector<1x32xbf16>
    %716 = arith.mulf %713, %713 : vector<16x32xf32>
    %cst_210 = arith.constant dense<0.000000e+00> : vector<16xf32>
    %717 = vector.multi_reduction <add>, %716, %cst_210 [1] : vector<16x32xf32> to vector<16xf32>
    %718 = vector.shape_cast %717 : vector<16xf32> to vector<16x1xf32>
    %cst_211 = arith.constant 3.200000e+01 : f32
    %719 = vector.broadcast %cst_211 : f32 to vector<16x1xf32>
    %720 = arith.divf %718, %719 : vector<16x1xf32>
    %cst_212 = arith.constant 9.99999997E-7 : f32
    %721 = vector.broadcast %cst_212 : f32 to vector<16x1xf32>
    %722 = arith.addf %720, %721 : vector<16x1xf32>
    %723 = math.rsqrt %722 : vector<16x1xf32>
    %724 = vector.broadcast %723 : vector<16x1xf32> to vector<16x32xf32>
    %725 = arith.mulf %713, %724 : vector<16x32xf32>
    %726 = arith.extf %715 : vector<1x32xbf16> to vector<1x32xf32>
    %727 = vector.broadcast %726 : vector<1x32xf32> to vector<16x32xf32>
    %728 = arith.mulf %725, %727 : vector<16x32xf32>
    %729 = arith.truncf %728 : vector<16x32xf32> to vector<16x32xbf16>
    %c3_213 = arith.constant 3 : index
    %c0_214 = arith.constant 0 : index
    %c0_215 = arith.constant 0 : index
    %730 = vector.load %arg7[%c3_213, %c0_214, %c0_215] : memref<8x32x160xbf16, #tpu.memory_space<vmem>>, vector<1x32x160xbf16>
    %731 = vector.shape_cast %730 : vector<1x32x160xbf16> to vector<32x160xbf16>
    %cst_216 = arith.constant dense<0.000000e+00> : vector<16x160xf32>
    %732 = tpu.matmul %729, %731, %cst_216 {dimension_numbers = #tpu.dot_dimension_numbers<[1], [0], [0], [1], [0, 0, 1, 1], [], []>} : vector<16x32xbf16>, vector<32x160xbf16>, vector<16x160xf32> -> vector<16x160xf32>
    %733 = vector.extract_strided_slice %732 {offsets = [0, 0], sizes = [16, 32], strides = [1, 1]} : vector<16x160xf32> to vector<16x32xf32>
    %734 = arith.mulf %733, %10 : vector<16x32xf32>
    %735 = vector.extract_strided_slice %732 {offsets = [0, 32], sizes = [16, 32], strides = [1, 1]} : vector<16x160xf32> to vector<16x32xf32>
    %736 = arith.mulf %735, %11 : vector<16x32xf32>
    %737 = arith.addf %734, %736 : vector<16x32xf32>
    %738 = vector.extract_strided_slice %732 {offsets = [0, 64], sizes = [16, 32], strides = [1, 1]} : vector<16x160xf32> to vector<16x32xf32>
    %739 = arith.mulf %738, %10 : vector<16x32xf32>
    %740 = vector.extract_strided_slice %732 {offsets = [0, 96], sizes = [16, 32], strides = [1, 1]} : vector<16x160xf32> to vector<16x32xf32>
    %741 = arith.mulf %740, %11 : vector<16x32xf32>
    %742 = arith.addf %739, %741 : vector<16x32xf32>
    %743 = arith.truncf %742 : vector<16x32xf32> to vector<16x32xbf16>
    %744 = vector.extract_strided_slice %732 {offsets = [0, 128], sizes = [16, 32], strides = [1, 1]} : vector<16x160xf32> to vector<16x32xf32>
    %745 = arith.truncf %744 : vector<16x32xf32> to vector<16x32xbf16>
    %746 = vector.extract_strided_slice %12 {offsets = [0, 0], sizes = [1, 32], strides = [1, 1]} : vector<4x32xf32> to vector<1x32xf32>
    %747 = vector.broadcast %746 : vector<1x32xf32> to vector<16x32xf32>
    %748 = arith.mulf %737, %747 : vector<16x32xf32>
    %749 = vector.extract_strided_slice %12 {offsets = [1, 0], sizes = [1, 32], strides = [1, 1]} : vector<4x32xf32> to vector<1x32xf32>
    %750 = vector.broadcast %749 : vector<1x32xf32> to vector<16x32xf32>
    %751 = arith.mulf %737, %750 : vector<16x32xf32>
    %752 = vector.extract_strided_slice %12 {offsets = [2, 0], sizes = [1, 32], strides = [1, 1]} : vector<4x32xf32> to vector<1x32xf32>
    %753 = vector.broadcast %752 : vector<1x32xf32> to vector<16x32xf32>
    %754 = arith.mulf %737, %753 : vector<16x32xf32>
    %755 = vector.extract_strided_slice %12 {offsets = [3, 0], sizes = [1, 32], strides = [1, 1]} : vector<4x32xf32> to vector<1x32xf32>
    %756 = vector.broadcast %755 : vector<1x32xf32> to vector<16x32xf32>
    %757 = arith.mulf %737, %756 : vector<16x32xf32>
    %758 = tpu.concatenate %748, %751, %754, %757 in 0 : vector<16x32xf32>, vector<16x32xf32>, vector<16x32xf32>, vector<16x32xf32> -> vector<64x32xf32>
    %759 = arith.truncf %758 : vector<64x32xf32> to vector<64x32xbf16>
    "tpu.trace_start"() <{level = 10 : i32, message = "qd,kd->qk"}> : () -> ()
    %cst_217 = arith.constant dense<0.000000e+00> : vector<64x16xf32>
    %760 = tpu.matmul %759, %743, %cst_217 {dimension_numbers = #tpu.dot_dimension_numbers<[1], [1], [0], [0], [0, 0, 1, 0], [], []>} : vector<64x32xbf16>, vector<16x32xbf16>, vector<64x16xf32> -> vector<64x16xf32>
    "tpu.trace_stop"() : () -> ()
    %761 = arith.addf %760, %13 : vector<64x16xf32>
    %cst_218 = arith.constant dense<0xFF800000> : vector<64xf32>
    %762 = vector.multi_reduction <maximumf>, %761, %cst_218 [1] : vector<64x16xf32> to vector<64xf32>
    %763 = vector.shape_cast %762 : vector<64xf32> to vector<64x1xf32>
    %764 = vector.broadcast %763 : vector<64x1xf32> to vector<64x16xf32>
    %765 = arith.subf %761, %764 : vector<64x16xf32>
    %766 = math.exp %765 : vector<64x16xf32>
    %cst_219 = arith.constant dense<0.000000e+00> : vector<64xf32>
    %767 = vector.multi_reduction <add>, %766, %cst_219 [1] : vector<64x16xf32> to vector<64xf32>
    %768 = vector.shape_cast %767 : vector<64xf32> to vector<64x1xf32>
    %769 = vector.broadcast %768 : vector<64x1xf32> to vector<64x16xf32>
    %770 = arith.divf %766, %769 : vector<64x16xf32>
    %771 = arith.truncf %770 : vector<64x16xf32> to vector<64x16xbf16>
    %cst_220 = arith.constant dense<0.000000e+00> : vector<64x32xf32>
    %772 = tpu.matmul %771, %745, %cst_220 {dimension_numbers = #tpu.dot_dimension_numbers<[1], [0], [0], [1], [0, 0, 1, 1], [], []>} : vector<64x16xbf16>, vector<16x32xbf16>, vector<64x32xf32> -> vector<64x32xf32>
    %773 = vector.extract_strided_slice %772 {offsets = [0, 0], sizes = [16, 32], strides = [1, 1]} : vector<64x32xf32> to vector<16x32xf32>
    %774 = vector.extract_strided_slice %12 {offsets = [0, 0], sizes = [1, 32], strides = [1, 1]} : vector<4x32xf32> to vector<1x32xf32>
    %775 = vector.broadcast %774 : vector<1x32xf32> to vector<16x32xf32>
    %776 = arith.mulf %773, %775 : vector<16x32xf32>
    %777 = vector.extract_strided_slice %772 {offsets = [16, 0], sizes = [16, 32], strides = [1, 1]} : vector<64x32xf32> to vector<16x32xf32>
    %778 = vector.extract_strided_slice %12 {offsets = [1, 0], sizes = [1, 32], strides = [1, 1]} : vector<4x32xf32> to vector<1x32xf32>
    %779 = vector.broadcast %778 : vector<1x32xf32> to vector<16x32xf32>
    %780 = arith.mulf %777, %779 : vector<16x32xf32>
    %781 = arith.addf %776, %780 : vector<16x32xf32>
    %782 = vector.extract_strided_slice %772 {offsets = [32, 0], sizes = [16, 32], strides = [1, 1]} : vector<64x32xf32> to vector<16x32xf32>
    %783 = vector.extract_strided_slice %12 {offsets = [2, 0], sizes = [1, 32], strides = [1, 1]} : vector<4x32xf32> to vector<1x32xf32>
    %784 = vector.broadcast %783 : vector<1x32xf32> to vector<16x32xf32>
    %785 = arith.mulf %782, %784 : vector<16x32xf32>
    %786 = arith.addf %781, %785 : vector<16x32xf32>
    %787 = vector.extract_strided_slice %772 {offsets = [48, 0], sizes = [16, 32], strides = [1, 1]} : vector<64x32xf32> to vector<16x32xf32>
    %788 = vector.extract_strided_slice %12 {offsets = [3, 0], sizes = [1, 32], strides = [1, 1]} : vector<4x32xf32> to vector<1x32xf32>
    %789 = vector.broadcast %788 : vector<1x32xf32> to vector<16x32xf32>
    %790 = arith.mulf %787, %789 : vector<16x32xf32>
    %791 = arith.addf %786, %790 : vector<16x32xf32>
    %792 = arith.truncf %791 : vector<16x32xf32> to vector<16x32xbf16>
    %c3_221 = arith.constant 3 : index
    %c0_222 = arith.constant 0 : index
    %c0_223 = arith.constant 0 : index
    %793 = vector.load %arg8[%c3_221, %c0_222, %c0_223] : memref<8x32x32xbf16, #tpu.memory_space<vmem>>, vector<1x32x32xbf16>
    %794 = vector.shape_cast %793 : vector<1x32x32xbf16> to vector<32x32xbf16>
    %cst_224 = arith.constant dense<0.000000e+00> : vector<16x32xf32>
    %795 = tpu.matmul %792, %794, %cst_224 {dimension_numbers = #tpu.dot_dimension_numbers<[1], [0], [0], [1], [0, 0, 1, 1], [], []>} : vector<16x32xbf16>, vector<32x32xbf16>, vector<16x32xf32> -> vector<16x32xf32>
    %796 = arith.addf %713, %795 : vector<16x32xf32>
    %c3_225 = arith.constant 3 : index
    %c0_226 = arith.constant 0 : index
    %c0_227 = arith.constant 0 : index
    %797 = vector.load %arg9[%c3_225, %c0_226, %c0_227] : memref<8x1x32xbf16, #tpu.memory_space<vmem>>, vector<1x1x32xbf16>
    %798 = vector.shape_cast %797 : vector<1x1x32xbf16> to vector<1x32xbf16>
    %799 = arith.mulf %796, %796 : vector<16x32xf32>
    %cst_228 = arith.constant dense<0.000000e+00> : vector<16xf32>
    %800 = vector.multi_reduction <add>, %799, %cst_228 [1] : vector<16x32xf32> to vector<16xf32>
    %801 = vector.shape_cast %800 : vector<16xf32> to vector<16x1xf32>
    %cst_229 = arith.constant 3.200000e+01 : f32
    %802 = vector.broadcast %cst_229 : f32 to vector<16x1xf32>
    %803 = arith.divf %801, %802 : vector<16x1xf32>
    %cst_230 = arith.constant 9.99999997E-7 : f32
    %804 = vector.broadcast %cst_230 : f32 to vector<16x1xf32>
    %805 = arith.addf %803, %804 : vector<16x1xf32>
    %806 = math.rsqrt %805 : vector<16x1xf32>
    %807 = vector.broadcast %806 : vector<16x1xf32> to vector<16x32xf32>
    %808 = arith.mulf %796, %807 : vector<16x32xf32>
    %809 = arith.extf %798 : vector<1x32xbf16> to vector<1x32xf32>
    %810 = vector.broadcast %809 : vector<1x32xf32> to vector<16x32xf32>
    %811 = arith.mulf %808, %810 : vector<16x32xf32>
    %812 = arith.truncf %811 : vector<16x32xf32> to vector<16x32xbf16>
    %c3_231 = arith.constant 3 : index
    %c0_232 = arith.constant 0 : index
    %c0_233 = arith.constant 0 : index
    %813 = vector.load %arg10[%c3_231, %c0_232, %c0_233] : memref<8x32x128xbf16, #tpu.memory_space<vmem>>, vector<1x32x128xbf16>
    %814 = vector.shape_cast %813 : vector<1x32x128xbf16> to vector<32x128xbf16>
    %cst_234 = arith.constant dense<0.000000e+00> : vector<16x128xf32>
    %815 = tpu.matmul %812, %814, %cst_234 {dimension_numbers = #tpu.dot_dimension_numbers<[1], [0], [0], [1], [0, 0, 1, 1], [], []>} : vector<16x32xbf16>, vector<32x128xbf16>, vector<16x128xf32> -> vector<16x128xf32>
    %816 = vector.extract_strided_slice %815 {offsets = [0, 0], sizes = [16, 64], strides = [1, 1]} : vector<16x128xf32> to vector<16x64xf32>
    %817 = arith.negf %816 : vector<16x64xf32>
    %818 = math.exp %817 : vector<16x64xf32>
    %cst_235 = arith.constant 1.000000e+00 : f32
    %819 = vector.broadcast %cst_235 : f32 to vector<16x64xf32>
    %820 = arith.addf %819, %818 : vector<16x64xf32>
    %821 = arith.divf %819, %820 : vector<16x64xf32>
    %822 = arith.mulf %816, %821 : vector<16x64xf32>
    %823 = vector.extract_strided_slice %815 {offsets = [0, 64], sizes = [16, 64], strides = [1, 1]} : vector<16x128xf32> to vector<16x64xf32>
    %824 = arith.mulf %822, %823 : vector<16x64xf32>
    %825 = arith.truncf %824 : vector<16x64xf32> to vector<16x64xbf16>
    %c3_236 = arith.constant 3 : index
    %c0_237 = arith.constant 0 : index
    %c0_238 = arith.constant 0 : index
    %826 = vector.load %arg11[%c3_236, %c0_237, %c0_238] : memref<8x64x32xbf16, #tpu.memory_space<vmem>>, vector<1x64x32xbf16>
    %827 = vector.shape_cast %826 : vector<1x64x32xbf16> to vector<64x32xbf16>
    %cst_239 = arith.constant dense<0.000000e+00> : vector<16x32xf32>
    %828 = tpu.matmul %825, %827, %cst_239 {dimension_numbers = #tpu.dot_dimension_numbers<[1], [0], [0], [1], [0, 0, 1, 1], [], []>} : vector<16x64xbf16>, vector<64x32xbf16>, vector<16x32xf32> -> vector<16x32xf32>
    %829 = arith.addf %796, %828 : vector<16x32xf32>
    %830 = arith.addf %829, %245 : vector<16x32xf32>
    %c4_240 = arith.constant 4 : index
    %c0_241 = arith.constant 0 : index
    %c0_242 = arith.constant 0 : index
    %831 = vector.load %arg6[%c4_240, %c0_241, %c0_242] : memref<8x1x32xbf16, #tpu.memory_space<vmem>>, vector<1x1x32xbf16>
    %832 = vector.shape_cast %831 : vector<1x1x32xbf16> to vector<1x32xbf16>
    %833 = arith.mulf %830, %830 : vector<16x32xf32>
    %cst_243 = arith.constant dense<0.000000e+00> : vector<16xf32>
    %834 = vector.multi_reduction <add>, %833, %cst_243 [1] : vector<16x32xf32> to vector<16xf32>
    %835 = vector.shape_cast %834 : vector<16xf32> to vector<16x1xf32>
    %cst_244 = arith.constant 3.200000e+01 : f32
    %836 = vector.broadcast %cst_244 : f32 to vector<16x1xf32>
    %837 = arith.divf %835, %836 : vector<16x1xf32>
    %cst_245 = arith.constant 9.99999997E-7 : f32
    %838 = vector.broadcast %cst_245 : f32 to vector<16x1xf32>
    %839 = arith.addf %837, %838 : vector<16x1xf32>
    %840 = math.rsqrt %839 : vector<16x1xf32>
    %841 = vector.broadcast %840 : vector<16x1xf32> to vector<16x32xf32>
    %842 = arith.mulf %830, %841 : vector<16x32xf32>
    %843 = arith.extf %832 : vector<1x32xbf16> to vector<1x32xf32>
    %844 = vector.broadcast %843 : vector<1x32xf32> to vector<16x32xf32>
    %845 = arith.mulf %842, %844 : vector<16x32xf32>
    %846 = arith.truncf %845 : vector<16x32xf32> to vector<16x32xbf16>
    %c4_246 = arith.constant 4 : index
    %c0_247 = arith.constant 0 : index
    %c0_248 = arith.constant 0 : index
    %847 = vector.load %arg7[%c4_246, %c0_247, %c0_248] : memref<8x32x160xbf16, #tpu.memory_space<vmem>>, vector<1x32x160xbf16>
    %848 = vector.shape_cast %847 : vector<1x32x160xbf16> to vector<32x160xbf16>
    %cst_249 = arith.constant dense<0.000000e+00> : vector<16x160xf32>
    %849 = tpu.matmul %846, %848, %cst_249 {dimension_numbers = #tpu.dot_dimension_numbers<[1], [0], [0], [1], [0, 0, 1, 1], [], []>} : vector<16x32xbf16>, vector<32x160xbf16>, vector<16x160xf32> -> vector<16x160xf32>
    %850 = vector.extract_strided_slice %849 {offsets = [0, 0], sizes = [16, 32], strides = [1, 1]} : vector<16x160xf32> to vector<16x32xf32>
    %851 = arith.mulf %850, %10 : vector<16x32xf32>
    %852 = vector.extract_strided_slice %849 {offsets = [0, 32], sizes = [16, 32], strides = [1, 1]} : vector<16x160xf32> to vector<16x32xf32>
    %853 = arith.mulf %852, %11 : vector<16x32xf32>
    %854 = arith.addf %851, %853 : vector<16x32xf32>
    %855 = vector.extract_strided_slice %849 {offsets = [0, 64], sizes = [16, 32], strides = [1, 1]} : vector<16x160xf32> to vector<16x32xf32>
    %856 = arith.mulf %855, %10 : vector<16x32xf32>
    %857 = vector.extract_strided_slice %849 {offsets = [0, 96], sizes = [16, 32], strides = [1, 1]} : vector<16x160xf32> to vector<16x32xf32>
    %858 = arith.mulf %857, %11 : vector<16x32xf32>
    %859 = arith.addf %856, %858 : vector<16x32xf32>
    %860 = arith.truncf %859 : vector<16x32xf32> to vector<16x32xbf16>
    %861 = vector.extract_strided_slice %849 {offsets = [0, 128], sizes = [16, 32], strides = [1, 1]} : vector<16x160xf32> to vector<16x32xf32>
    %862 = arith.truncf %861 : vector<16x32xf32> to vector<16x32xbf16>
    %863 = vector.extract_strided_slice %12 {offsets = [0, 0], sizes = [1, 32], strides = [1, 1]} : vector<4x32xf32> to vector<1x32xf32>
    %864 = vector.broadcast %863 : vector<1x32xf32> to vector<16x32xf32>
    %865 = arith.mulf %854, %864 : vector<16x32xf32>
    %866 = vector.extract_strided_slice %12 {offsets = [1, 0], sizes = [1, 32], strides = [1, 1]} : vector<4x32xf32> to vector<1x32xf32>
    %867 = vector.broadcast %866 : vector<1x32xf32> to vector<16x32xf32>
    %868 = arith.mulf %854, %867 : vector<16x32xf32>
    %869 = vector.extract_strided_slice %12 {offsets = [2, 0], sizes = [1, 32], strides = [1, 1]} : vector<4x32xf32> to vector<1x32xf32>
    %870 = vector.broadcast %869 : vector<1x32xf32> to vector<16x32xf32>
    %871 = arith.mulf %854, %870 : vector<16x32xf32>
    %872 = vector.extract_strided_slice %12 {offsets = [3, 0], sizes = [1, 32], strides = [1, 1]} : vector<4x32xf32> to vector<1x32xf32>
    %873 = vector.broadcast %872 : vector<1x32xf32> to vector<16x32xf32>
    %874 = arith.mulf %854, %873 : vector<16x32xf32>
    %875 = tpu.concatenate %865, %868, %871, %874 in 0 : vector<16x32xf32>, vector<16x32xf32>, vector<16x32xf32>, vector<16x32xf32> -> vector<64x32xf32>
    %876 = arith.truncf %875 : vector<64x32xf32> to vector<64x32xbf16>
    "tpu.trace_start"() <{level = 10 : i32, message = "qd,kd->qk"}> : () -> ()
    %cst_250 = arith.constant dense<0.000000e+00> : vector<64x16xf32>
    %877 = tpu.matmul %876, %860, %cst_250 {dimension_numbers = #tpu.dot_dimension_numbers<[1], [1], [0], [0], [0, 0, 1, 0], [], []>} : vector<64x32xbf16>, vector<16x32xbf16>, vector<64x16xf32> -> vector<64x16xf32>
    "tpu.trace_stop"() : () -> ()
    %878 = arith.addf %877, %13 : vector<64x16xf32>
    %cst_251 = arith.constant dense<0xFF800000> : vector<64xf32>
    %879 = vector.multi_reduction <maximumf>, %878, %cst_251 [1] : vector<64x16xf32> to vector<64xf32>
    %880 = vector.shape_cast %879 : vector<64xf32> to vector<64x1xf32>
    %881 = vector.broadcast %880 : vector<64x1xf32> to vector<64x16xf32>
    %882 = arith.subf %878, %881 : vector<64x16xf32>
    %883 = math.exp %882 : vector<64x16xf32>
    %cst_252 = arith.constant dense<0.000000e+00> : vector<64xf32>
    %884 = vector.multi_reduction <add>, %883, %cst_252 [1] : vector<64x16xf32> to vector<64xf32>
    %885 = vector.shape_cast %884 : vector<64xf32> to vector<64x1xf32>
    %886 = vector.broadcast %885 : vector<64x1xf32> to vector<64x16xf32>
    %887 = arith.divf %883, %886 : vector<64x16xf32>
    %888 = arith.truncf %887 : vector<64x16xf32> to vector<64x16xbf16>
    %cst_253 = arith.constant dense<0.000000e+00> : vector<64x32xf32>
    %889 = tpu.matmul %888, %862, %cst_253 {dimension_numbers = #tpu.dot_dimension_numbers<[1], [0], [0], [1], [0, 0, 1, 1], [], []>} : vector<64x16xbf16>, vector<16x32xbf16>, vector<64x32xf32> -> vector<64x32xf32>
    %890 = vector.extract_strided_slice %889 {offsets = [0, 0], sizes = [16, 32], strides = [1, 1]} : vector<64x32xf32> to vector<16x32xf32>
    %891 = vector.extract_strided_slice %12 {offsets = [0, 0], sizes = [1, 32], strides = [1, 1]} : vector<4x32xf32> to vector<1x32xf32>
    %892 = vector.broadcast %891 : vector<1x32xf32> to vector<16x32xf32>
    %893 = arith.mulf %890, %892 : vector<16x32xf32>
    %894 = vector.extract_strided_slice %889 {offsets = [16, 0], sizes = [16, 32], strides = [1, 1]} : vector<64x32xf32> to vector<16x32xf32>
    %895 = vector.extract_strided_slice %12 {offsets = [1, 0], sizes = [1, 32], strides = [1, 1]} : vector<4x32xf32> to vector<1x32xf32>
    %896 = vector.broadcast %895 : vector<1x32xf32> to vector<16x32xf32>
    %897 = arith.mulf %894, %896 : vector<16x32xf32>
    %898 = arith.addf %893, %897 : vector<16x32xf32>
    %899 = vector.extract_strided_slice %889 {offsets = [32, 0], sizes = [16, 32], strides = [1, 1]} : vector<64x32xf32> to vector<16x32xf32>
    %900 = vector.extract_strided_slice %12 {offsets = [2, 0], sizes = [1, 32], strides = [1, 1]} : vector<4x32xf32> to vector<1x32xf32>
    %901 = vector.broadcast %900 : vector<1x32xf32> to vector<16x32xf32>
    %902 = arith.mulf %899, %901 : vector<16x32xf32>
    %903 = arith.addf %898, %902 : vector<16x32xf32>
    %904 = vector.extract_strided_slice %889 {offsets = [48, 0], sizes = [16, 32], strides = [1, 1]} : vector<64x32xf32> to vector<16x32xf32>
    %905 = vector.extract_strided_slice %12 {offsets = [3, 0], sizes = [1, 32], strides = [1, 1]} : vector<4x32xf32> to vector<1x32xf32>
    %906 = vector.broadcast %905 : vector<1x32xf32> to vector<16x32xf32>
    %907 = arith.mulf %904, %906 : vector<16x32xf32>
    %908 = arith.addf %903, %907 : vector<16x32xf32>
    %909 = arith.truncf %908 : vector<16x32xf32> to vector<16x32xbf16>
    %c4_254 = arith.constant 4 : index
    %c0_255 = arith.constant 0 : index
    %c0_256 = arith.constant 0 : index
    %910 = vector.load %arg8[%c4_254, %c0_255, %c0_256] : memref<8x32x32xbf16, #tpu.memory_space<vmem>>, vector<1x32x32xbf16>
    %911 = vector.shape_cast %910 : vector<1x32x32xbf16> to vector<32x32xbf16>
    %cst_257 = arith.constant dense<0.000000e+00> : vector<16x32xf32>
    %912 = tpu.matmul %909, %911, %cst_257 {dimension_numbers = #tpu.dot_dimension_numbers<[1], [0], [0], [1], [0, 0, 1, 1], [], []>} : vector<16x32xbf16>, vector<32x32xbf16>, vector<16x32xf32> -> vector<16x32xf32>
    %913 = arith.addf %830, %912 : vector<16x32xf32>
    %c4_258 = arith.constant 4 : index
    %c0_259 = arith.constant 0 : index
    %c0_260 = arith.constant 0 : index
    %914 = vector.load %arg9[%c4_258, %c0_259, %c0_260] : memref<8x1x32xbf16, #tpu.memory_space<vmem>>, vector<1x1x32xbf16>
    %915 = vector.shape_cast %914 : vector<1x1x32xbf16> to vector<1x32xbf16>
    %916 = arith.mulf %913, %913 : vector<16x32xf32>
    %cst_261 = arith.constant dense<0.000000e+00> : vector<16xf32>
    %917 = vector.multi_reduction <add>, %916, %cst_261 [1] : vector<16x32xf32> to vector<16xf32>
    %918 = vector.shape_cast %917 : vector<16xf32> to vector<16x1xf32>
    %cst_262 = arith.constant 3.200000e+01 : f32
    %919 = vector.broadcast %cst_262 : f32 to vector<16x1xf32>
    %920 = arith.divf %918, %919 : vector<16x1xf32>
    %cst_263 = arith.constant 9.99999997E-7 : f32
    %921 = vector.broadcast %cst_263 : f32 to vector<16x1xf32>
    %922 = arith.addf %920, %921 : vector<16x1xf32>
    %923 = math.rsqrt %922 : vector<16x1xf32>
    %924 = vector.broadcast %923 : vector<16x1xf32> to vector<16x32xf32>
    %925 = arith.mulf %913, %924 : vector<16x32xf32>
    %926 = arith.extf %915 : vector<1x32xbf16> to vector<1x32xf32>
    %927 = vector.broadcast %926 : vector<1x32xf32> to vector<16x32xf32>
    %928 = arith.mulf %925, %927 : vector<16x32xf32>
    %929 = arith.truncf %928 : vector<16x32xf32> to vector<16x32xbf16>
    %c4_264 = arith.constant 4 : index
    %c0_265 = arith.constant 0 : index
    %c0_266 = arith.constant 0 : index
    %930 = vector.load %arg10[%c4_264, %c0_265, %c0_266] : memref<8x32x128xbf16, #tpu.memory_space<vmem>>, vector<1x32x128xbf16>
    %931 = vector.shape_cast %930 : vector<1x32x128xbf16> to vector<32x128xbf16>
    %cst_267 = arith.constant dense<0.000000e+00> : vector<16x128xf32>
    %932 = tpu.matmul %929, %931, %cst_267 {dimension_numbers = #tpu.dot_dimension_numbers<[1], [0], [0], [1], [0, 0, 1, 1], [], []>} : vector<16x32xbf16>, vector<32x128xbf16>, vector<16x128xf32> -> vector<16x128xf32>
    %933 = vector.extract_strided_slice %932 {offsets = [0, 0], sizes = [16, 64], strides = [1, 1]} : vector<16x128xf32> to vector<16x64xf32>
    %934 = arith.negf %933 : vector<16x64xf32>
    %935 = math.exp %934 : vector<16x64xf32>
    %cst_268 = arith.constant 1.000000e+00 : f32
    %936 = vector.broadcast %cst_268 : f32 to vector<16x64xf32>
    %937 = arith.addf %936, %935 : vector<16x64xf32>
    %938 = arith.divf %936, %937 : vector<16x64xf32>
    %939 = arith.mulf %933, %938 : vector<16x64xf32>
    %940 = vector.extract_strided_slice %932 {offsets = [0, 64], sizes = [16, 64], strides = [1, 1]} : vector<16x128xf32> to vector<16x64xf32>
    %941 = arith.mulf %939, %940 : vector<16x64xf32>
    %942 = arith.truncf %941 : vector<16x64xf32> to vector<16x64xbf16>
    %c4_269 = arith.constant 4 : index
    %c0_270 = arith.constant 0 : index
    %c0_271 = arith.constant 0 : index
    %943 = vector.load %arg11[%c4_269, %c0_270, %c0_271] : memref<8x64x32xbf16, #tpu.memory_space<vmem>>, vector<1x64x32xbf16>
    %944 = vector.shape_cast %943 : vector<1x64x32xbf16> to vector<64x32xbf16>
    %cst_272 = arith.constant dense<0.000000e+00> : vector<16x32xf32>
    %945 = tpu.matmul %942, %944, %cst_272 {dimension_numbers = #tpu.dot_dimension_numbers<[1], [0], [0], [1], [0, 0, 1, 1], [], []>} : vector<16x64xbf16>, vector<64x32xbf16>, vector<16x32xf32> -> vector<16x32xf32>
    %946 = arith.addf %913, %945 : vector<16x32xf32>
    %947 = arith.addf %946, %245 : vector<16x32xf32>
    %c5 = arith.constant 5 : index
    %c0_273 = arith.constant 0 : index
    %c0_274 = arith.constant 0 : index
    %948 = vector.load %arg6[%c5, %c0_273, %c0_274] : memref<8x1x32xbf16, #tpu.memory_space<vmem>>, vector<1x1x32xbf16>
    %949 = vector.shape_cast %948 : vector<1x1x32xbf16> to vector<1x32xbf16>
    %950 = arith.mulf %947, %947 : vector<16x32xf32>
    %cst_275 = arith.constant dense<0.000000e+00> : vector<16xf32>
    %951 = vector.multi_reduction <add>, %950, %cst_275 [1] : vector<16x32xf32> to vector<16xf32>
    %952 = vector.shape_cast %951 : vector<16xf32> to vector<16x1xf32>
    %cst_276 = arith.constant 3.200000e+01 : f32
    %953 = vector.broadcast %cst_276 : f32 to vector<16x1xf32>
    %954 = arith.divf %952, %953 : vector<16x1xf32>
    %cst_277 = arith.constant 9.99999997E-7 : f32
    %955 = vector.broadcast %cst_277 : f32 to vector<16x1xf32>
    %956 = arith.addf %954, %955 : vector<16x1xf32>
    %957 = math.rsqrt %956 : vector<16x1xf32>
    %958 = vector.broadcast %957 : vector<16x1xf32> to vector<16x32xf32>
    %959 = arith.mulf %947, %958 : vector<16x32xf32>
    %960 = arith.extf %949 : vector<1x32xbf16> to vector<1x32xf32>
    %961 = vector.broadcast %960 : vector<1x32xf32> to vector<16x32xf32>
    %962 = arith.mulf %959, %961 : vector<16x32xf32>
    %963 = arith.truncf %962 : vector<16x32xf32> to vector<16x32xbf16>
    %c5_278 = arith.constant 5 : index
    %c0_279 = arith.constant 0 : index
    %c0_280 = arith.constant 0 : index
    %964 = vector.load %arg7[%c5_278, %c0_279, %c0_280] : memref<8x32x160xbf16, #tpu.memory_space<vmem>>, vector<1x32x160xbf16>
    %965 = vector.shape_cast %964 : vector<1x32x160xbf16> to vector<32x160xbf16>
    %cst_281 = arith.constant dense<0.000000e+00> : vector<16x160xf32>
    %966 = tpu.matmul %963, %965, %cst_281 {dimension_numbers = #tpu.dot_dimension_numbers<[1], [0], [0], [1], [0, 0, 1, 1], [], []>} : vector<16x32xbf16>, vector<32x160xbf16>, vector<16x160xf32> -> vector<16x160xf32>
    %967 = vector.extract_strided_slice %966 {offsets = [0, 0], sizes = [16, 32], strides = [1, 1]} : vector<16x160xf32> to vector<16x32xf32>
    %968 = arith.mulf %967, %10 : vector<16x32xf32>
    %969 = vector.extract_strided_slice %966 {offsets = [0, 32], sizes = [16, 32], strides = [1, 1]} : vector<16x160xf32> to vector<16x32xf32>
    %970 = arith.mulf %969, %11 : vector<16x32xf32>
    %971 = arith.addf %968, %970 : vector<16x32xf32>
    %972 = vector.extract_strided_slice %966 {offsets = [0, 64], sizes = [16, 32], strides = [1, 1]} : vector<16x160xf32> to vector<16x32xf32>
    %973 = arith.mulf %972, %10 : vector<16x32xf32>
    %974 = vector.extract_strided_slice %966 {offsets = [0, 96], sizes = [16, 32], strides = [1, 1]} : vector<16x160xf32> to vector<16x32xf32>
    %975 = arith.mulf %974, %11 : vector<16x32xf32>
    %976 = arith.addf %973, %975 : vector<16x32xf32>
    %977 = arith.truncf %976 : vector<16x32xf32> to vector<16x32xbf16>
    %978 = vector.extract_strided_slice %966 {offsets = [0, 128], sizes = [16, 32], strides = [1, 1]} : vector<16x160xf32> to vector<16x32xf32>
    %979 = arith.truncf %978 : vector<16x32xf32> to vector<16x32xbf16>
    %980 = vector.extract_strided_slice %12 {offsets = [0, 0], sizes = [1, 32], strides = [1, 1]} : vector<4x32xf32> to vector<1x32xf32>
    %981 = vector.broadcast %980 : vector<1x32xf32> to vector<16x32xf32>
    %982 = arith.mulf %971, %981 : vector<16x32xf32>
    %983 = vector.extract_strided_slice %12 {offsets = [1, 0], sizes = [1, 32], strides = [1, 1]} : vector<4x32xf32> to vector<1x32xf32>
    %984 = vector.broadcast %983 : vector<1x32xf32> to vector<16x32xf32>
    %985 = arith.mulf %971, %984 : vector<16x32xf32>
    %986 = vector.extract_strided_slice %12 {offsets = [2, 0], sizes = [1, 32], strides = [1, 1]} : vector<4x32xf32> to vector<1x32xf32>
    %987 = vector.broadcast %986 : vector<1x32xf32> to vector<16x32xf32>
    %988 = arith.mulf %971, %987 : vector<16x32xf32>
    %989 = vector.extract_strided_slice %12 {offsets = [3, 0], sizes = [1, 32], strides = [1, 1]} : vector<4x32xf32> to vector<1x32xf32>
    %990 = vector.broadcast %989 : vector<1x32xf32> to vector<16x32xf32>
    %991 = arith.mulf %971, %990 : vector<16x32xf32>
    %992 = tpu.concatenate %982, %985, %988, %991 in 0 : vector<16x32xf32>, vector<16x32xf32>, vector<16x32xf32>, vector<16x32xf32> -> vector<64x32xf32>
    %993 = arith.truncf %992 : vector<64x32xf32> to vector<64x32xbf16>
    "tpu.trace_start"() <{level = 10 : i32, message = "qd,kd->qk"}> : () -> ()
    %cst_282 = arith.constant dense<0.000000e+00> : vector<64x16xf32>
    %994 = tpu.matmul %993, %977, %cst_282 {dimension_numbers = #tpu.dot_dimension_numbers<[1], [1], [0], [0], [0, 0, 1, 0], [], []>} : vector<64x32xbf16>, vector<16x32xbf16>, vector<64x16xf32> -> vector<64x16xf32>
    "tpu.trace_stop"() : () -> ()
    %995 = arith.addf %994, %13 : vector<64x16xf32>
    %cst_283 = arith.constant dense<0xFF800000> : vector<64xf32>
    %996 = vector.multi_reduction <maximumf>, %995, %cst_283 [1] : vector<64x16xf32> to vector<64xf32>
    %997 = vector.shape_cast %996 : vector<64xf32> to vector<64x1xf32>
    %998 = vector.broadcast %997 : vector<64x1xf32> to vector<64x16xf32>
    %999 = arith.subf %995, %998 : vector<64x16xf32>
    %1000 = math.exp %999 : vector<64x16xf32>
    %cst_284 = arith.constant dense<0.000000e+00> : vector<64xf32>
    %1001 = vector.multi_reduction <add>, %1000, %cst_284 [1] : vector<64x16xf32> to vector<64xf32>
    %1002 = vector.shape_cast %1001 : vector<64xf32> to vector<64x1xf32>
    %1003 = vector.broadcast %1002 : vector<64x1xf32> to vector<64x16xf32>
    %1004 = arith.divf %1000, %1003 : vector<64x16xf32>
    %1005 = arith.truncf %1004 : vector<64x16xf32> to vector<64x16xbf16>
    %cst_285 = arith.constant dense<0.000000e+00> : vector<64x32xf32>
    %1006 = tpu.matmul %1005, %979, %cst_285 {dimension_numbers = #tpu.dot_dimension_numbers<[1], [0], [0], [1], [0, 0, 1, 1], [], []>} : vector<64x16xbf16>, vector<16x32xbf16>, vector<64x32xf32> -> vector<64x32xf32>
    %1007 = vector.extract_strided_slice %1006 {offsets = [0, 0], sizes = [16, 32], strides = [1, 1]} : vector<64x32xf32> to vector<16x32xf32>
    %1008 = vector.extract_strided_slice %12 {offsets = [0, 0], sizes = [1, 32], strides = [1, 1]} : vector<4x32xf32> to vector<1x32xf32>
    %1009 = vector.broadcast %1008 : vector<1x32xf32> to vector<16x32xf32>
    %1010 = arith.mulf %1007, %1009 : vector<16x32xf32>
    %1011 = vector.extract_strided_slice %1006 {offsets = [16, 0], sizes = [16, 32], strides = [1, 1]} : vector<64x32xf32> to vector<16x32xf32>
    %1012 = vector.extract_strided_slice %12 {offsets = [1, 0], sizes = [1, 32], strides = [1, 1]} : vector<4x32xf32> to vector<1x32xf32>
    %1013 = vector.broadcast %1012 : vector<1x32xf32> to vector<16x32xf32>
    %1014 = arith.mulf %1011, %1013 : vector<16x32xf32>
    %1015 = arith.addf %1010, %1014 : vector<16x32xf32>
    %1016 = vector.extract_strided_slice %1006 {offsets = [32, 0], sizes = [16, 32], strides = [1, 1]} : vector<64x32xf32> to vector<16x32xf32>
    %1017 = vector.extract_strided_slice %12 {offsets = [2, 0], sizes = [1, 32], strides = [1, 1]} : vector<4x32xf32> to vector<1x32xf32>
    %1018 = vector.broadcast %1017 : vector<1x32xf32> to vector<16x32xf32>
    %1019 = arith.mulf %1016, %1018 : vector<16x32xf32>
    %1020 = arith.addf %1015, %1019 : vector<16x32xf32>
    %1021 = vector.extract_strided_slice %1006 {offsets = [48, 0], sizes = [16, 32], strides = [1, 1]} : vector<64x32xf32> to vector<16x32xf32>
    %1022 = vector.extract_strided_slice %12 {offsets = [3, 0], sizes = [1, 32], strides = [1, 1]} : vector<4x32xf32> to vector<1x32xf32>
    %1023 = vector.broadcast %1022 : vector<1x32xf32> to vector<16x32xf32>
    %1024 = arith.mulf %1021, %1023 : vector<16x32xf32>
    %1025 = arith.addf %1020, %1024 : vector<16x32xf32>
    %1026 = arith.truncf %1025 : vector<16x32xf32> to vector<16x32xbf16>
    %c5_286 = arith.constant 5 : index
    %c0_287 = arith.constant 0 : index
    %c0_288 = arith.constant 0 : index
    %1027 = vector.load %arg8[%c5_286, %c0_287, %c0_288] : memref<8x32x32xbf16, #tpu.memory_space<vmem>>, vector<1x32x32xbf16>
    %1028 = vector.shape_cast %1027 : vector<1x32x32xbf16> to vector<32x32xbf16>
    %cst_289 = arith.constant dense<0.000000e+00> : vector<16x32xf32>
    %1029 = tpu.matmul %1026, %1028, %cst_289 {dimension_numbers = #tpu.dot_dimension_numbers<[1], [0], [0], [1], [0, 0, 1, 1], [], []>} : vector<16x32xbf16>, vector<32x32xbf16>, vector<16x32xf32> -> vector<16x32xf32>
    %1030 = arith.addf %947, %1029 : vector<16x32xf32>
    %c5_290 = arith.constant 5 : index
    %c0_291 = arith.constant 0 : index
    %c0_292 = arith.constant 0 : index
    %1031 = vector.load %arg9[%c5_290, %c0_291, %c0_292] : memref<8x1x32xbf16, #tpu.memory_space<vmem>>, vector<1x1x32xbf16>
    %1032 = vector.shape_cast %1031 : vector<1x1x32xbf16> to vector<1x32xbf16>
    %1033 = arith.mulf %1030, %1030 : vector<16x32xf32>
    %cst_293 = arith.constant dense<0.000000e+00> : vector<16xf32>
    %1034 = vector.multi_reduction <add>, %1033, %cst_293 [1] : vector<16x32xf32> to vector<16xf32>
    %1035 = vector.shape_cast %1034 : vector<16xf32> to vector<16x1xf32>
    %cst_294 = arith.constant 3.200000e+01 : f32
    %1036 = vector.broadcast %cst_294 : f32 to vector<16x1xf32>
    %1037 = arith.divf %1035, %1036 : vector<16x1xf32>
    %cst_295 = arith.constant 9.99999997E-7 : f32
    %1038 = vector.broadcast %cst_295 : f32 to vector<16x1xf32>
    %1039 = arith.addf %1037, %1038 : vector<16x1xf32>
    %1040 = math.rsqrt %1039 : vector<16x1xf32>
    %1041 = vector.broadcast %1040 : vector<16x1xf32> to vector<16x32xf32>
    %1042 = arith.mulf %1030, %1041 : vector<16x32xf32>
    %1043 = arith.extf %1032 : vector<1x32xbf16> to vector<1x32xf32>
    %1044 = vector.broadcast %1043 : vector<1x32xf32> to vector<16x32xf32>
    %1045 = arith.mulf %1042, %1044 : vector<16x32xf32>
    %1046 = arith.truncf %1045 : vector<16x32xf32> to vector<16x32xbf16>
    %c5_296 = arith.constant 5 : index
    %c0_297 = arith.constant 0 : index
    %c0_298 = arith.constant 0 : index
    %1047 = vector.load %arg10[%c5_296, %c0_297, %c0_298] : memref<8x32x128xbf16, #tpu.memory_space<vmem>>, vector<1x32x128xbf16>
    %1048 = vector.shape_cast %1047 : vector<1x32x128xbf16> to vector<32x128xbf16>
    %cst_299 = arith.constant dense<0.000000e+00> : vector<16x128xf32>
    %1049 = tpu.matmul %1046, %1048, %cst_299 {dimension_numbers = #tpu.dot_dimension_numbers<[1], [0], [0], [1], [0, 0, 1, 1], [], []>} : vector<16x32xbf16>, vector<32x128xbf16>, vector<16x128xf32> -> vector<16x128xf32>
    %1050 = vector.extract_strided_slice %1049 {offsets = [0, 0], sizes = [16, 64], strides = [1, 1]} : vector<16x128xf32> to vector<16x64xf32>
    %1051 = arith.negf %1050 : vector<16x64xf32>
    %1052 = math.exp %1051 : vector<16x64xf32>
    %cst_300 = arith.constant 1.000000e+00 : f32
    %1053 = vector.broadcast %cst_300 : f32 to vector<16x64xf32>
    %1054 = arith.addf %1053, %1052 : vector<16x64xf32>
    %1055 = arith.divf %1053, %1054 : vector<16x64xf32>
    %1056 = arith.mulf %1050, %1055 : vector<16x64xf32>
    %1057 = vector.extract_strided_slice %1049 {offsets = [0, 64], sizes = [16, 64], strides = [1, 1]} : vector<16x128xf32> to vector<16x64xf32>
    %1058 = arith.mulf %1056, %1057 : vector<16x64xf32>
    %1059 = arith.truncf %1058 : vector<16x64xf32> to vector<16x64xbf16>
    %c5_301 = arith.constant 5 : index
    %c0_302 = arith.constant 0 : index
    %c0_303 = arith.constant 0 : index
    %1060 = vector.load %arg11[%c5_301, %c0_302, %c0_303] : memref<8x64x32xbf16, #tpu.memory_space<vmem>>, vector<1x64x32xbf16>
    %1061 = vector.shape_cast %1060 : vector<1x64x32xbf16> to vector<64x32xbf16>
    %cst_304 = arith.constant dense<0.000000e+00> : vector<16x32xf32>
    %1062 = tpu.matmul %1059, %1061, %cst_304 {dimension_numbers = #tpu.dot_dimension_numbers<[1], [0], [0], [1], [0, 0, 1, 1], [], []>} : vector<16x64xbf16>, vector<64x32xbf16>, vector<16x32xf32> -> vector<16x32xf32>
    %1063 = arith.addf %1030, %1062 : vector<16x32xf32>
    %c6 = arith.constant 6 : index
    %c0_305 = arith.constant 0 : index
    %c0_306 = arith.constant 0 : index
    %1064 = vector.load %arg6[%c6, %c0_305, %c0_306] : memref<8x1x32xbf16, #tpu.memory_space<vmem>>, vector<1x1x32xbf16>
    %1065 = vector.shape_cast %1064 : vector<1x1x32xbf16> to vector<1x32xbf16>
    %1066 = arith.mulf %1063, %1063 : vector<16x32xf32>
    %cst_307 = arith.constant dense<0.000000e+00> : vector<16xf32>
    %1067 = vector.multi_reduction <add>, %1066, %cst_307 [1] : vector<16x32xf32> to vector<16xf32>
    %1068 = vector.shape_cast %1067 : vector<16xf32> to vector<16x1xf32>
    %cst_308 = arith.constant 3.200000e+01 : f32
    %1069 = vector.broadcast %cst_308 : f32 to vector<16x1xf32>
    %1070 = arith.divf %1068, %1069 : vector<16x1xf32>
    %cst_309 = arith.constant 9.99999997E-7 : f32
    %1071 = vector.broadcast %cst_309 : f32 to vector<16x1xf32>
    %1072 = arith.addf %1070, %1071 : vector<16x1xf32>
    %1073 = math.rsqrt %1072 : vector<16x1xf32>
    %1074 = vector.broadcast %1073 : vector<16x1xf32> to vector<16x32xf32>
    %1075 = arith.mulf %1063, %1074 : vector<16x32xf32>
    %1076 = arith.extf %1065 : vector<1x32xbf16> to vector<1x32xf32>
    %1077 = vector.broadcast %1076 : vector<1x32xf32> to vector<16x32xf32>
    %1078 = arith.mulf %1075, %1077 : vector<16x32xf32>
    %1079 = arith.truncf %1078 : vector<16x32xf32> to vector<16x32xbf16>
    %c6_310 = arith.constant 6 : index
    %c0_311 = arith.constant 0 : index
    %c0_312 = arith.constant 0 : index
    %1080 = vector.load %arg7[%c6_310, %c0_311, %c0_312] : memref<8x32x160xbf16, #tpu.memory_space<vmem>>, vector<1x32x160xbf16>
    %1081 = vector.shape_cast %1080 : vector<1x32x160xbf16> to vector<32x160xbf16>
    %cst_313 = arith.constant dense<0.000000e+00> : vector<16x160xf32>
    %1082 = tpu.matmul %1079, %1081, %cst_313 {dimension_numbers = #tpu.dot_dimension_numbers<[1], [0], [0], [1], [0, 0, 1, 1], [], []>} : vector<16x32xbf16>, vector<32x160xbf16>, vector<16x160xf32> -> vector<16x160xf32>
    %1083 = vector.extract_strided_slice %1082 {offsets = [0, 0], sizes = [16, 32], strides = [1, 1]} : vector<16x160xf32> to vector<16x32xf32>
    %1084 = arith.mulf %1083, %10 : vector<16x32xf32>
    %1085 = vector.extract_strided_slice %1082 {offsets = [0, 32], sizes = [16, 32], strides = [1, 1]} : vector<16x160xf32> to vector<16x32xf32>
    %1086 = arith.mulf %1085, %11 : vector<16x32xf32>
    %1087 = arith.addf %1084, %1086 : vector<16x32xf32>
    %1088 = vector.extract_strided_slice %1082 {offsets = [0, 64], sizes = [16, 32], strides = [1, 1]} : vector<16x160xf32> to vector<16x32xf32>
    %1089 = arith.mulf %1088, %10 : vector<16x32xf32>
    %1090 = vector.extract_strided_slice %1082 {offsets = [0, 96], sizes = [16, 32], strides = [1, 1]} : vector<16x160xf32> to vector<16x32xf32>
    %1091 = arith.mulf %1090, %11 : vector<16x32xf32>
    %1092 = arith.addf %1089, %1091 : vector<16x32xf32>
    %1093 = arith.truncf %1092 : vector<16x32xf32> to vector<16x32xbf16>
    %1094 = vector.extract_strided_slice %1082 {offsets = [0, 128], sizes = [16, 32], strides = [1, 1]} : vector<16x160xf32> to vector<16x32xf32>
    %1095 = arith.truncf %1094 : vector<16x32xf32> to vector<16x32xbf16>
    %1096 = vector.extract_strided_slice %12 {offsets = [0, 0], sizes = [1, 32], strides = [1, 1]} : vector<4x32xf32> to vector<1x32xf32>
    %1097 = vector.broadcast %1096 : vector<1x32xf32> to vector<16x32xf32>
    %1098 = arith.mulf %1087, %1097 : vector<16x32xf32>
    %1099 = vector.extract_strided_slice %12 {offsets = [1, 0], sizes = [1, 32], strides = [1, 1]} : vector<4x32xf32> to vector<1x32xf32>
    %1100 = vector.broadcast %1099 : vector<1x32xf32> to vector<16x32xf32>
    %1101 = arith.mulf %1087, %1100 : vector<16x32xf32>
    %1102 = vector.extract_strided_slice %12 {offsets = [2, 0], sizes = [1, 32], strides = [1, 1]} : vector<4x32xf32> to vector<1x32xf32>
    %1103 = vector.broadcast %1102 : vector<1x32xf32> to vector<16x32xf32>
    %1104 = arith.mulf %1087, %1103 : vector<16x32xf32>
    %1105 = vector.extract_strided_slice %12 {offsets = [3, 0], sizes = [1, 32], strides = [1, 1]} : vector<4x32xf32> to vector<1x32xf32>
    %1106 = vector.broadcast %1105 : vector<1x32xf32> to vector<16x32xf32>
    %1107 = arith.mulf %1087, %1106 : vector<16x32xf32>
    %1108 = tpu.concatenate %1098, %1101, %1104, %1107 in 0 : vector<16x32xf32>, vector<16x32xf32>, vector<16x32xf32>, vector<16x32xf32> -> vector<64x32xf32>
    %1109 = arith.truncf %1108 : vector<64x32xf32> to vector<64x32xbf16>
    "tpu.trace_start"() <{level = 10 : i32, message = "qd,kd->qk"}> : () -> ()
    %cst_314 = arith.constant dense<0.000000e+00> : vector<64x16xf32>
    %1110 = tpu.matmul %1109, %1093, %cst_314 {dimension_numbers = #tpu.dot_dimension_numbers<[1], [1], [0], [0], [0, 0, 1, 0], [], []>} : vector<64x32xbf16>, vector<16x32xbf16>, vector<64x16xf32> -> vector<64x16xf32>
    "tpu.trace_stop"() : () -> ()
    %1111 = arith.addf %1110, %13 : vector<64x16xf32>
    %cst_315 = arith.constant dense<0xFF800000> : vector<64xf32>
    %1112 = vector.multi_reduction <maximumf>, %1111, %cst_315 [1] : vector<64x16xf32> to vector<64xf32>
    %1113 = vector.shape_cast %1112 : vector<64xf32> to vector<64x1xf32>
    %1114 = vector.broadcast %1113 : vector<64x1xf32> to vector<64x16xf32>
    %1115 = arith.subf %1111, %1114 : vector<64x16xf32>
    %1116 = math.exp %1115 : vector<64x16xf32>
    %cst_316 = arith.constant dense<0.000000e+00> : vector<64xf32>
    %1117 = vector.multi_reduction <add>, %1116, %cst_316 [1] : vector<64x16xf32> to vector<64xf32>
    %1118 = vector.shape_cast %1117 : vector<64xf32> to vector<64x1xf32>
    %1119 = vector.broadcast %1118 : vector<64x1xf32> to vector<64x16xf32>
    %1120 = arith.divf %1116, %1119 : vector<64x16xf32>
    %1121 = arith.truncf %1120 : vector<64x16xf32> to vector<64x16xbf16>
    %cst_317 = arith.constant dense<0.000000e+00> : vector<64x32xf32>
    %1122 = tpu.matmul %1121, %1095, %cst_317 {dimension_numbers = #tpu.dot_dimension_numbers<[1], [0], [0], [1], [0, 0, 1, 1], [], []>} : vector<64x16xbf16>, vector<16x32xbf16>, vector<64x32xf32> -> vector<64x32xf32>
    %1123 = vector.extract_strided_slice %1122 {offsets = [0, 0], sizes = [16, 32], strides = [1, 1]} : vector<64x32xf32> to vector<16x32xf32>
    %1124 = vector.extract_strided_slice %12 {offsets = [0, 0], sizes = [1, 32], strides = [1, 1]} : vector<4x32xf32> to vector<1x32xf32>
    %1125 = vector.broadcast %1124 : vector<1x32xf32> to vector<16x32xf32>
    %1126 = arith.mulf %1123, %1125 : vector<16x32xf32>
    %1127 = vector.extract_strided_slice %1122 {offsets = [16, 0], sizes = [16, 32], strides = [1, 1]} : vector<64x32xf32> to vector<16x32xf32>
    %1128 = vector.extract_strided_slice %12 {offsets = [1, 0], sizes = [1, 32], strides = [1, 1]} : vector<4x32xf32> to vector<1x32xf32>
    %1129 = vector.broadcast %1128 : vector<1x32xf32> to vector<16x32xf32>
    %1130 = arith.mulf %1127, %1129 : vector<16x32xf32>
    %1131 = arith.addf %1126, %1130 : vector<16x32xf32>
    %1132 = vector.extract_strided_slice %1122 {offsets = [32, 0], sizes = [16, 32], strides = [1, 1]} : vector<64x32xf32> to vector<16x32xf32>
    %1133 = vector.extract_strided_slice %12 {offsets = [2, 0], sizes = [1, 32], strides = [1, 1]} : vector<4x32xf32> to vector<1x32xf32>
    %1134 = vector.broadcast %1133 : vector<1x32xf32> to vector<16x32xf32>
    %1135 = arith.mulf %1132, %1134 : vector<16x32xf32>
    %1136 = arith.addf %1131, %1135 : vector<16x32xf32>
    %1137 = vector.extract_strided_slice %1122 {offsets = [48, 0], sizes = [16, 32], strides = [1, 1]} : vector<64x32xf32> to vector<16x32xf32>
    %1138 = vector.extract_strided_slice %12 {offsets = [3, 0], sizes = [1, 32], strides = [1, 1]} : vector<4x32xf32> to vector<1x32xf32>
    %1139 = vector.broadcast %1138 : vector<1x32xf32> to vector<16x32xf32>
    %1140 = arith.mulf %1137, %1139 : vector<16x32xf32>
    %1141 = arith.addf %1136, %1140 : vector<16x32xf32>
    %1142 = arith.truncf %1141 : vector<16x32xf32> to vector<16x32xbf16>
    %c6_318 = arith.constant 6 : index
    %c0_319 = arith.constant 0 : index
    %c0_320 = arith.constant 0 : index
    %1143 = vector.load %arg8[%c6_318, %c0_319, %c0_320] : memref<8x32x32xbf16, #tpu.memory_space<vmem>>, vector<1x32x32xbf16>
    %1144 = vector.shape_cast %1143 : vector<1x32x32xbf16> to vector<32x32xbf16>
    %cst_321 = arith.constant dense<0.000000e+00> : vector<16x32xf32>
    %1145 = tpu.matmul %1142, %1144, %cst_321 {dimension_numbers = #tpu.dot_dimension_numbers<[1], [0], [0], [1], [0, 0, 1, 1], [], []>} : vector<16x32xbf16>, vector<32x32xbf16>, vector<16x32xf32> -> vector<16x32xf32>
    %1146 = arith.addf %1063, %1145 : vector<16x32xf32>
    %c6_322 = arith.constant 6 : index
    %c0_323 = arith.constant 0 : index
    %c0_324 = arith.constant 0 : index
    %1147 = vector.load %arg9[%c6_322, %c0_323, %c0_324] : memref<8x1x32xbf16, #tpu.memory_space<vmem>>, vector<1x1x32xbf16>
    %1148 = vector.shape_cast %1147 : vector<1x1x32xbf16> to vector<1x32xbf16>
    %1149 = arith.mulf %1146, %1146 : vector<16x32xf32>
    %cst_325 = arith.constant dense<0.000000e+00> : vector<16xf32>
    %1150 = vector.multi_reduction <add>, %1149, %cst_325 [1] : vector<16x32xf32> to vector<16xf32>
    %1151 = vector.shape_cast %1150 : vector<16xf32> to vector<16x1xf32>
    %cst_326 = arith.constant 3.200000e+01 : f32
    %1152 = vector.broadcast %cst_326 : f32 to vector<16x1xf32>
    %1153 = arith.divf %1151, %1152 : vector<16x1xf32>
    %cst_327 = arith.constant 9.99999997E-7 : f32
    %1154 = vector.broadcast %cst_327 : f32 to vector<16x1xf32>
    %1155 = arith.addf %1153, %1154 : vector<16x1xf32>
    %1156 = math.rsqrt %1155 : vector<16x1xf32>
    %1157 = vector.broadcast %1156 : vector<16x1xf32> to vector<16x32xf32>
    %1158 = arith.mulf %1146, %1157 : vector<16x32xf32>
    %1159 = arith.extf %1148 : vector<1x32xbf16> to vector<1x32xf32>
    %1160 = vector.broadcast %1159 : vector<1x32xf32> to vector<16x32xf32>
    %1161 = arith.mulf %1158, %1160 : vector<16x32xf32>
    %1162 = arith.truncf %1161 : vector<16x32xf32> to vector<16x32xbf16>
    %c6_328 = arith.constant 6 : index
    %c0_329 = arith.constant 0 : index
    %c0_330 = arith.constant 0 : index
    %1163 = vector.load %arg10[%c6_328, %c0_329, %c0_330] : memref<8x32x128xbf16, #tpu.memory_space<vmem>>, vector<1x32x128xbf16>
    %1164 = vector.shape_cast %1163 : vector<1x32x128xbf16> to vector<32x128xbf16>
    %cst_331 = arith.constant dense<0.000000e+00> : vector<16x128xf32>
    %1165 = tpu.matmul %1162, %1164, %cst_331 {dimension_numbers = #tpu.dot_dimension_numbers<[1], [0], [0], [1], [0, 0, 1, 1], [], []>} : vector<16x32xbf16>, vector<32x128xbf16>, vector<16x128xf32> -> vector<16x128xf32>
    %1166 = vector.extract_strided_slice %1165 {offsets = [0, 0], sizes = [16, 64], strides = [1, 1]} : vector<16x128xf32> to vector<16x64xf32>
    %1167 = arith.negf %1166 : vector<16x64xf32>
    %1168 = math.exp %1167 : vector<16x64xf32>
    %cst_332 = arith.constant 1.000000e+00 : f32
    %1169 = vector.broadcast %cst_332 : f32 to vector<16x64xf32>
    %1170 = arith.addf %1169, %1168 : vector<16x64xf32>
    %1171 = arith.divf %1169, %1170 : vector<16x64xf32>
    %1172 = arith.mulf %1166, %1171 : vector<16x64xf32>
    %1173 = vector.extract_strided_slice %1165 {offsets = [0, 64], sizes = [16, 64], strides = [1, 1]} : vector<16x128xf32> to vector<16x64xf32>
    %1174 = arith.mulf %1172, %1173 : vector<16x64xf32>
    %1175 = arith.truncf %1174 : vector<16x64xf32> to vector<16x64xbf16>
    %c6_333 = arith.constant 6 : index
    %c0_334 = arith.constant 0 : index
    %c0_335 = arith.constant 0 : index
    %1176 = vector.load %arg11[%c6_333, %c0_334, %c0_335] : memref<8x64x32xbf16, #tpu.memory_space<vmem>>, vector<1x64x32xbf16>
    %1177 = vector.shape_cast %1176 : vector<1x64x32xbf16> to vector<64x32xbf16>
    %cst_336 = arith.constant dense<0.000000e+00> : vector<16x32xf32>
    %1178 = tpu.matmul %1175, %1177, %cst_336 {dimension_numbers = #tpu.dot_dimension_numbers<[1], [0], [0], [1], [0, 0, 1, 1], [], []>} : vector<16x64xbf16>, vector<64x32xbf16>, vector<16x32xf32> -> vector<16x32xf32>
    %1179 = arith.addf %1146, %1178 : vector<16x32xf32>
    %c7 = arith.constant 7 : index
    %c0_337 = arith.constant 0 : index
    %c0_338 = arith.constant 0 : index
    %1180 = vector.load %arg6[%c7, %c0_337, %c0_338] : memref<8x1x32xbf16, #tpu.memory_space<vmem>>, vector<1x1x32xbf16>
    %1181 = vector.shape_cast %1180 : vector<1x1x32xbf16> to vector<1x32xbf16>
    %1182 = arith.mulf %1179, %1179 : vector<16x32xf32>
    %cst_339 = arith.constant dense<0.000000e+00> : vector<16xf32>
    %1183 = vector.multi_reduction <add>, %1182, %cst_339 [1] : vector<16x32xf32> to vector<16xf32>
    %1184 = vector.shape_cast %1183 : vector<16xf32> to vector<16x1xf32>
    %cst_340 = arith.constant 3.200000e+01 : f32
    %1185 = vector.broadcast %cst_340 : f32 to vector<16x1xf32>
    %1186 = arith.divf %1184, %1185 : vector<16x1xf32>
    %cst_341 = arith.constant 9.99999997E-7 : f32
    %1187 = vector.broadcast %cst_341 : f32 to vector<16x1xf32>
    %1188 = arith.addf %1186, %1187 : vector<16x1xf32>
    %1189 = math.rsqrt %1188 : vector<16x1xf32>
    %1190 = vector.broadcast %1189 : vector<16x1xf32> to vector<16x32xf32>
    %1191 = arith.mulf %1179, %1190 : vector<16x32xf32>
    %1192 = arith.extf %1181 : vector<1x32xbf16> to vector<1x32xf32>
    %1193 = vector.broadcast %1192 : vector<1x32xf32> to vector<16x32xf32>
    %1194 = arith.mulf %1191, %1193 : vector<16x32xf32>
    %1195 = arith.truncf %1194 : vector<16x32xf32> to vector<16x32xbf16>
    %c7_342 = arith.constant 7 : index
    %c0_343 = arith.constant 0 : index
    %c0_344 = arith.constant 0 : index
    %1196 = vector.load %arg7[%c7_342, %c0_343, %c0_344] : memref<8x32x160xbf16, #tpu.memory_space<vmem>>, vector<1x32x160xbf16>
    %1197 = vector.shape_cast %1196 : vector<1x32x160xbf16> to vector<32x160xbf16>
    %cst_345 = arith.constant dense<0.000000e+00> : vector<16x160xf32>
    %1198 = tpu.matmul %1195, %1197, %cst_345 {dimension_numbers = #tpu.dot_dimension_numbers<[1], [0], [0], [1], [0, 0, 1, 1], [], []>} : vector<16x32xbf16>, vector<32x160xbf16>, vector<16x160xf32> -> vector<16x160xf32>
    %1199 = vector.extract_strided_slice %1198 {offsets = [0, 0], sizes = [16, 32], strides = [1, 1]} : vector<16x160xf32> to vector<16x32xf32>
    %1200 = arith.mulf %1199, %10 : vector<16x32xf32>
    %1201 = vector.extract_strided_slice %1198 {offsets = [0, 32], sizes = [16, 32], strides = [1, 1]} : vector<16x160xf32> to vector<16x32xf32>
    %1202 = arith.mulf %1201, %11 : vector<16x32xf32>
    %1203 = arith.addf %1200, %1202 : vector<16x32xf32>
    %1204 = vector.extract_strided_slice %1198 {offsets = [0, 64], sizes = [16, 32], strides = [1, 1]} : vector<16x160xf32> to vector<16x32xf32>
    %1205 = arith.mulf %1204, %10 : vector<16x32xf32>
    %1206 = vector.extract_strided_slice %1198 {offsets = [0, 96], sizes = [16, 32], strides = [1, 1]} : vector<16x160xf32> to vector<16x32xf32>
    %1207 = arith.mulf %1206, %11 : vector<16x32xf32>
    %1208 = arith.addf %1205, %1207 : vector<16x32xf32>
    %1209 = arith.truncf %1208 : vector<16x32xf32> to vector<16x32xbf16>
    %1210 = vector.extract_strided_slice %1198 {offsets = [0, 128], sizes = [16, 32], strides = [1, 1]} : vector<16x160xf32> to vector<16x32xf32>
    %1211 = arith.truncf %1210 : vector<16x32xf32> to vector<16x32xbf16>
    %1212 = vector.extract_strided_slice %12 {offsets = [0, 0], sizes = [1, 32], strides = [1, 1]} : vector<4x32xf32> to vector<1x32xf32>
    %1213 = vector.broadcast %1212 : vector<1x32xf32> to vector<16x32xf32>
    %1214 = arith.mulf %1203, %1213 : vector<16x32xf32>
    %1215 = vector.extract_strided_slice %12 {offsets = [1, 0], sizes = [1, 32], strides = [1, 1]} : vector<4x32xf32> to vector<1x32xf32>
    %1216 = vector.broadcast %1215 : vector<1x32xf32> to vector<16x32xf32>
    %1217 = arith.mulf %1203, %1216 : vector<16x32xf32>
    %1218 = vector.extract_strided_slice %12 {offsets = [2, 0], sizes = [1, 32], strides = [1, 1]} : vector<4x32xf32> to vector<1x32xf32>
    %1219 = vector.broadcast %1218 : vector<1x32xf32> to vector<16x32xf32>
    %1220 = arith.mulf %1203, %1219 : vector<16x32xf32>
    %1221 = vector.extract_strided_slice %12 {offsets = [3, 0], sizes = [1, 32], strides = [1, 1]} : vector<4x32xf32> to vector<1x32xf32>
    %1222 = vector.broadcast %1221 : vector<1x32xf32> to vector<16x32xf32>
    %1223 = arith.mulf %1203, %1222 : vector<16x32xf32>
    %1224 = tpu.concatenate %1214, %1217, %1220, %1223 in 0 : vector<16x32xf32>, vector<16x32xf32>, vector<16x32xf32>, vector<16x32xf32> -> vector<64x32xf32>
    %1225 = arith.truncf %1224 : vector<64x32xf32> to vector<64x32xbf16>
    "tpu.trace_start"() <{level = 10 : i32, message = "qd,kd->qk"}> : () -> ()
    %cst_346 = arith.constant dense<0.000000e+00> : vector<64x16xf32>
    %1226 = tpu.matmul %1225, %1209, %cst_346 {dimension_numbers = #tpu.dot_dimension_numbers<[1], [1], [0], [0], [0, 0, 1, 0], [], []>} : vector<64x32xbf16>, vector<16x32xbf16>, vector<64x16xf32> -> vector<64x16xf32>
    "tpu.trace_stop"() : () -> ()
    %1227 = arith.addf %1226, %13 : vector<64x16xf32>
    %cst_347 = arith.constant dense<0xFF800000> : vector<64xf32>
    %1228 = vector.multi_reduction <maximumf>, %1227, %cst_347 [1] : vector<64x16xf32> to vector<64xf32>
    %1229 = vector.shape_cast %1228 : vector<64xf32> to vector<64x1xf32>
    %1230 = vector.broadcast %1229 : vector<64x1xf32> to vector<64x16xf32>
    %1231 = arith.subf %1227, %1230 : vector<64x16xf32>
    %1232 = math.exp %1231 : vector<64x16xf32>
    %cst_348 = arith.constant dense<0.000000e+00> : vector<64xf32>
    %1233 = vector.multi_reduction <add>, %1232, %cst_348 [1] : vector<64x16xf32> to vector<64xf32>
    %1234 = vector.shape_cast %1233 : vector<64xf32> to vector<64x1xf32>
    %1235 = vector.broadcast %1234 : vector<64x1xf32> to vector<64x16xf32>
    %1236 = arith.divf %1232, %1235 : vector<64x16xf32>
    %1237 = arith.truncf %1236 : vector<64x16xf32> to vector<64x16xbf16>
    %cst_349 = arith.constant dense<0.000000e+00> : vector<64x32xf32>
    %1238 = tpu.matmul %1237, %1211, %cst_349 {dimension_numbers = #tpu.dot_dimension_numbers<[1], [0], [0], [1], [0, 0, 1, 1], [], []>} : vector<64x16xbf16>, vector<16x32xbf16>, vector<64x32xf32> -> vector<64x32xf32>
    %1239 = vector.extract_strided_slice %1238 {offsets = [0, 0], sizes = [16, 32], strides = [1, 1]} : vector<64x32xf32> to vector<16x32xf32>
    %1240 = vector.extract_strided_slice %12 {offsets = [0, 0], sizes = [1, 32], strides = [1, 1]} : vector<4x32xf32> to vector<1x32xf32>
    %1241 = vector.broadcast %1240 : vector<1x32xf32> to vector<16x32xf32>
    %1242 = arith.mulf %1239, %1241 : vector<16x32xf32>
    %1243 = vector.extract_strided_slice %1238 {offsets = [16, 0], sizes = [16, 32], strides = [1, 1]} : vector<64x32xf32> to vector<16x32xf32>
    %1244 = vector.extract_strided_slice %12 {offsets = [1, 0], sizes = [1, 32], strides = [1, 1]} : vector<4x32xf32> to vector<1x32xf32>
    %1245 = vector.broadcast %1244 : vector<1x32xf32> to vector<16x32xf32>
    %1246 = arith.mulf %1243, %1245 : vector<16x32xf32>
    %1247 = arith.addf %1242, %1246 : vector<16x32xf32>
    %1248 = vector.extract_strided_slice %1238 {offsets = [32, 0], sizes = [16, 32], strides = [1, 1]} : vector<64x32xf32> to vector<16x32xf32>
    %1249 = vector.extract_strided_slice %12 {offsets = [2, 0], sizes = [1, 32], strides = [1, 1]} : vector<4x32xf32> to vector<1x32xf32>
    %1250 = vector.broadcast %1249 : vector<1x32xf32> to vector<16x32xf32>
    %1251 = arith.mulf %1248, %1250 : vector<16x32xf32>
    %1252 = arith.addf %1247, %1251 : vector<16x32xf32>
    %1253 = vector.extract_strided_slice %1238 {offsets = [48, 0], sizes = [16, 32], strides = [1, 1]} : vector<64x32xf32> to vector<16x32xf32>
    %1254 = vector.extract_strided_slice %12 {offsets = [3, 0], sizes = [1, 32], strides = [1, 1]} : vector<4x32xf32> to vector<1x32xf32>
    %1255 = vector.broadcast %1254 : vector<1x32xf32> to vector<16x32xf32>
    %1256 = arith.mulf %1253, %1255 : vector<16x32xf32>
    %1257 = arith.addf %1252, %1256 : vector<16x32xf32>
    %1258 = arith.truncf %1257 : vector<16x32xf32> to vector<16x32xbf16>
    %c7_350 = arith.constant 7 : index
    %c0_351 = arith.constant 0 : index
    %c0_352 = arith.constant 0 : index
    %1259 = vector.load %arg8[%c7_350, %c0_351, %c0_352] : memref<8x32x32xbf16, #tpu.memory_space<vmem>>, vector<1x32x32xbf16>
    %1260 = vector.shape_cast %1259 : vector<1x32x32xbf16> to vector<32x32xbf16>
    %cst_353 = arith.constant dense<0.000000e+00> : vector<16x32xf32>
    %1261 = tpu.matmul %1258, %1260, %cst_353 {dimension_numbers = #tpu.dot_dimension_numbers<[1], [0], [0], [1], [0, 0, 1, 1], [], []>} : vector<16x32xbf16>, vector<32x32xbf16>, vector<16x32xf32> -> vector<16x32xf32>
    %1262 = arith.addf %1179, %1261 : vector<16x32xf32>
    %c7_354 = arith.constant 7 : index
    %c0_355 = arith.constant 0 : index
    %c0_356 = arith.constant 0 : index
    %1263 = vector.load %arg9[%c7_354, %c0_355, %c0_356] : memref<8x1x32xbf16, #tpu.memory_space<vmem>>, vector<1x1x32xbf16>
    %1264 = vector.shape_cast %1263 : vector<1x1x32xbf16> to vector<1x32xbf16>
    %1265 = arith.mulf %1262, %1262 : vector<16x32xf32>
    %cst_357 = arith.constant dense<0.000000e+00> : vector<16xf32>
    %1266 = vector.multi_reduction <add>, %1265, %cst_357 [1] : vector<16x32xf32> to vector<16xf32>
    %1267 = vector.shape_cast %1266 : vector<16xf32> to vector<16x1xf32>
    %cst_358 = arith.constant 3.200000e+01 : f32
    %1268 = vector.broadcast %cst_358 : f32 to vector<16x1xf32>
    %1269 = arith.divf %1267, %1268 : vector<16x1xf32>
    %cst_359 = arith.constant 9.99999997E-7 : f32
    %1270 = vector.broadcast %cst_359 : f32 to vector<16x1xf32>
    %1271 = arith.addf %1269, %1270 : vector<16x1xf32>
    %1272 = math.rsqrt %1271 : vector<16x1xf32>
    %1273 = vector.broadcast %1272 : vector<16x1xf32> to vector<16x32xf32>
    %1274 = arith.mulf %1262, %1273 : vector<16x32xf32>
    %1275 = arith.extf %1264 : vector<1x32xbf16> to vector<1x32xf32>
    %1276 = vector.broadcast %1275 : vector<1x32xf32> to vector<16x32xf32>
    %1277 = arith.mulf %1274, %1276 : vector<16x32xf32>
    %1278 = arith.truncf %1277 : vector<16x32xf32> to vector<16x32xbf16>
    %c7_360 = arith.constant 7 : index
    %c0_361 = arith.constant 0 : index
    %c0_362 = arith.constant 0 : index
    %1279 = vector.load %arg10[%c7_360, %c0_361, %c0_362] : memref<8x32x128xbf16, #tpu.memory_space<vmem>>, vector<1x32x128xbf16>
    %1280 = vector.shape_cast %1279 : vector<1x32x128xbf16> to vector<32x128xbf16>
    %cst_363 = arith.constant dense<0.000000e+00> : vector<16x128xf32>
    %1281 = tpu.matmul %1278, %1280, %cst_363 {dimension_numbers = #tpu.dot_dimension_numbers<[1], [0], [0], [1], [0, 0, 1, 1], [], []>} : vector<16x32xbf16>, vector<32x128xbf16>, vector<16x128xf32> -> vector<16x128xf32>
    %1282 = vector.extract_strided_slice %1281 {offsets = [0, 0], sizes = [16, 64], strides = [1, 1]} : vector<16x128xf32> to vector<16x64xf32>
    %1283 = arith.negf %1282 : vector<16x64xf32>
    %1284 = math.exp %1283 : vector<16x64xf32>
    %cst_364 = arith.constant 1.000000e+00 : f32
    %1285 = vector.broadcast %cst_364 : f32 to vector<16x64xf32>
    %1286 = arith.addf %1285, %1284 : vector<16x64xf32>
    %1287 = arith.divf %1285, %1286 : vector<16x64xf32>
    %1288 = arith.mulf %1282, %1287 : vector<16x64xf32>
    %1289 = vector.extract_strided_slice %1281 {offsets = [0, 64], sizes = [16, 64], strides = [1, 1]} : vector<16x128xf32> to vector<16x64xf32>
    %1290 = arith.mulf %1288, %1289 : vector<16x64xf32>
    %1291 = arith.truncf %1290 : vector<16x64xf32> to vector<16x64xbf16>
    %c7_365 = arith.constant 7 : index
    %c0_366 = arith.constant 0 : index
    %c0_367 = arith.constant 0 : index
    %1292 = vector.load %arg11[%c7_365, %c0_366, %c0_367] : memref<8x64x32xbf16, #tpu.memory_space<vmem>>, vector<1x64x32xbf16>
    %1293 = vector.shape_cast %1292 : vector<1x64x32xbf16> to vector<64x32xbf16>
    %cst_368 = arith.constant dense<0.000000e+00> : vector<16x32xf32>
    %1294 = tpu.matmul %1291, %1293, %cst_368 {dimension_numbers = #tpu.dot_dimension_numbers<[1], [0], [0], [1], [0, 0, 1, 1], [], []>} : vector<16x64xbf16>, vector<64x32xbf16>, vector<16x32xf32> -> vector<16x32xf32>
    %1295 = arith.addf %1262, %1294 : vector<16x32xf32>
    %c0_369 = arith.constant 0 : index
    %c0_370 = arith.constant 0 : index
    %1296 = vector.load %arg12[%c0_369, %c0_370] : memref<1x32xbf16, #tpu.memory_space<vmem>>, vector<1x32xbf16>
    %1297 = arith.mulf %1295, %1295 : vector<16x32xf32>
    %cst_371 = arith.constant dense<0.000000e+00> : vector<16xf32>
    %1298 = vector.multi_reduction <add>, %1297, %cst_371 [1] : vector<16x32xf32> to vector<16xf32>
    %1299 = vector.shape_cast %1298 : vector<16xf32> to vector<16x1xf32>
    %cst_372 = arith.constant 3.200000e+01 : f32
    %1300 = vector.broadcast %cst_372 : f32 to vector<16x1xf32>
    %1301 = arith.divf %1299, %1300 : vector<16x1xf32>
    %cst_373 = arith.constant 9.99999997E-7 : f32
    %1302 = vector.broadcast %cst_373 : f32 to vector<16x1xf32>
    %1303 = arith.addf %1301, %1302 : vector<16x1xf32>
    %1304 = math.rsqrt %1303 : vector<16x1xf32>
    %1305 = vector.broadcast %1304 : vector<16x1xf32> to vector<16x32xf32>
    %1306 = arith.mulf %1295, %1305 : vector<16x32xf32>
    %1307 = arith.extf %1296 : vector<1x32xbf16> to vector<1x32xf32>
    %1308 = vector.broadcast %1307 : vector<1x32xf32> to vector<16x32xf32>
    %1309 = arith.mulf %1306, %1308 : vector<16x32xf32>
    %1310 = arith.truncf %1309 : vector<16x32xf32> to vector<16x32xbf16>
    %c0_374 = arith.constant 0 : index
    %c0_375 = arith.constant 0 : index
    %1311 = vector.load %arg13[%c0_374, %c0_375] : memref<32x128xbf16, #tpu.memory_space<vmem>>, vector<32x128xbf16>
    %cst_376 = arith.constant dense<0.000000e+00> : vector<16x128xf32>
    %1312 = tpu.matmul %1310, %1311, %cst_376 {dimension_numbers = #tpu.dot_dimension_numbers<[1], [0], [0], [1], [0, 0, 1, 1], [], []>} : vector<16x32xbf16>, vector<32x128xbf16>, vector<16x128xf32> -> vector<16x128xf32>
    %c0_377 = arith.constant 0 : index
    %c0_378 = arith.constant 0 : index
    %1313 = vector.load %arg14[%c0_377, %c0_378] : memref<16x128xf32, #tpu.memory_space<vmem>>, vector<16x128xf32>
    tpu.vector_store %arg14[%c0_377, %c0_378], %1312 {strides = array<i32>} : memref<16x128xf32, #tpu.memory_space<vmem>>, vector<16x128xf32>,
    return
  }
}

</mosaic_0001>

<llo_original>
// kernel: layer_loop_forward.1
$region0: #{layer_loop_forward.1}
  #allocation0 [shape = 'u32[]', space=smem, size = 0x4, offset = 0x4, fixed_abs, tag = 'smem constant byte address 0x4 - core index']
  #allocation1 [shape = 'u32[72,128]{1,0:T(1,128)}', space=vmem, size = 0x9000, scoped, tag = 'internal scratch']
  %s0 = inlined_call_operand.vmem [shape: s32[16,1], index: 0, kind: input, shape index: {}]
  %s1 = inlined_call_operand.vmem [shape: f32[64,16], index: 1, kind: input, shape index: {}]
  %s2 = inlined_call_operand.vmem [shape: f32[4,32], index: 2, kind: input, shape index: {}]
  %s3 = inlined_call_operand.vmem [shape: f32[16,32], index: 3, kind: input, shape index: {}]
  %s4 = inlined_call_operand.vmem [shape: f32[16,32], index: 4, kind: input, shape index: {}]
  %s5 = inlined_call_operand.vmem [shape: bf16[64,32], index: 5, kind: input, shape index: {}]
  %s6 = inlined_call_operand.vmem [shape: bf16[8,1,32], index: 6, kind: input, shape index: {}]
  %s7 = inlined_call_operand.vmem [shape: bf16[8,32,160], index: 7, kind: input, shape index: {}]
  %s8 = inlined_call_operand.vmem [shape: bf16[8,32,32], index: 8, kind: input, shape index: {}]
  %s9 = inlined_call_operand.vmem [shape: bf16[8,1,32], index: 9, kind: input, shape index: {}]
  %s10 = inlined_call_operand.hbm [shape: bf16[8,32,128], index: 10, kind: input, shape index: {}]
  %s11 = inlined_call_operand.vmem [shape: bf16[8,64,32], index: 11, kind: input, shape index: {}]
  %s12 = inlined_call_operand.vmem [shape: bf16[1,32], index: 12, kind: input, shape index: {}]
  %s13 = inlined_call_operand.vmem [shape: bf16[32,128], index: 13, kind: input, shape index: {}]
  %s14 = inlined_call_operand.vmem [shape: f32[16,128], index: 14, kind: output, shape index: {}]
  %s15 = sld [smem:[#allocation0]]
  $region70: #{layer_loop_forward.1} parent=0
    _
  %s17 = ssub.s32 1, %s15
  %s18 = scalar_select 0, %s17, %s15
  $region1: #{layer_loop_forward.1} parent=0
    #allocation2 [shape = 'u8[65536]{0}', space=vmem, size = 0x10000, scoped, tag = 'input window, operand 10, single buffered']
    #allocation3 [shape = 's32[1]{0}', space=sflag, size = 0x4, scoped, tag = 'scoped memory for layer_loop_forward.1']
    %19 = vsyncpa [#allocation3], 0
    // Predicated region
    $region2: #{layer_loop_forward.1} parent=1 // pred_check
      _
    $region3: #{layer_loop_forward.1} parent=1 // pred_check_branch
      %21 = sbr.rel (0) target = $region5
    $region4: #{layer_loop_forward.1} parent=1 // pred_region
      _
    $region5: #{layer_loop_forward.1} parent=1 // pred_fallthru
      _
    // Predicated region
    $region6: #{layer_loop_forward.1} parent=1 // pred_check
      _
    $region7: #{layer_loop_forward.1} parent=1 // pred_check_branch
      %23 = sbr.rel (0) target = $region9
    $region8: #{layer_loop_forward.1} parent=1 // pred_region
      _
    $region9: #{layer_loop_forward.1} parent=1 // pred_fallthru
      _
    // Predicated region
    $region10: #{layer_loop_forward.1} parent=1 // pred_check
      _
    $region11: #{layer_loop_forward.1} parent=1 // pred_check_branch
      %25 = sbr.rel (0) target = $region13
    $region12: #{layer_loop_forward.1} parent=1 // pred_region
      _
    $region13: #{layer_loop_forward.1} parent=1 // pred_fallthru
      _
    // Predicated region
    $region14: #{layer_loop_forward.1} parent=1 // pred_check
      _
    $region15: #{layer_loop_forward.1} parent=1 // pred_check_branch
      %27 = sbr.rel (0) target = $region17
    $region16: #{layer_loop_forward.1} parent=1 // pred_region
      _
    $region17: #{layer_loop_forward.1} parent=1 // pred_fallthru
      _
    // Predicated region
    $region18: #{layer_loop_forward.1} parent=1 // pred_check
      _
    $region19: #{layer_loop_forward.1} parent=1 // pred_check_branch
      %29 = sbr.rel (0) target = $region21
    $region20: #{layer_loop_forward.1} parent=1 // pred_region
      _
    $region21: #{layer_loop_forward.1} parent=1 // pred_fallthru
      _
    // Predicated region
    $region22: #{layer_loop_forward.1} parent=1 // pred_check
      _
    $region23: #{layer_loop_forward.1} parent=1 // pred_check_branch
      %31 = sbr.rel (0) target = $region25
    $region24: #{layer_loop_forward.1} parent=1 // pred_region
      _
    $region25: #{layer_loop_forward.1} parent=1 // pred_fallthru
      _
    // Predicated region
    $region26: #{layer_loop_forward.1} parent=1 // pred_check
      _
    $region27: #{layer_loop_forward.1} parent=1 // pred_check_branch
      %33 = sbr.rel (0) target = $region29
    $region28: #{layer_loop_forward.1} parent=1 // pred_region
      _
    $region29: #{layer_loop_forward.1} parent=1 // pred_fallthru
      _
    // Predicated region
    $region30: #{layer_loop_forward.1} parent=1 // pred_check
      _
    $region31: #{layer_loop_forward.1} parent=1 // pred_check_branch
      %35 = sbr.rel (0) target = $region33
    $region32: #{layer_loop_forward.1} parent=1 // pred_region
      _
    $region33: #{layer_loop_forward.1} parent=1 // pred_fallthru
      _
    // Predicated region
    $region34: #{layer_loop_forward.1} parent=1 // pred_check
      _
    $region35: #{layer_loop_forward.1} parent=1 // pred_check_branch
      %37 = sbr.rel (0) target = $region37
    $region36: #{layer_loop_forward.1} parent=1 // pred_region
      _
    $region37: #{layer_loop_forward.1} parent=1 // pred_fallthru
      _
    // Predicated region
    $region38: #{layer_loop_forward.1} parent=1 // pred_check
      _
    $region39: #{layer_loop_forward.1} parent=1 // pred_check_branch
      %39 = sbr.rel (0) target = $region41
    $region40: #{layer_loop_forward.1} parent=1 // pred_region
      _
    $region41: #{layer_loop_forward.1} parent=1 // pred_fallthru
      _
    // Predicated region
    $region42: #{layer_loop_forward.1} parent=1 // pred_check
      _
    $region43: #{layer_loop_forward.1} parent=1 // pred_check_branch
      %41 = sbr.rel (0) target = $region45
    $region44: #{layer_loop_forward.1} parent=1 // pred_region
      %43 = vsyncadd [#allocation3], 0
      %s44 = sshll.u32 %s10, 4
      %s45 = int_to_ptr.hbm [resolvable:$true] %s44
      %s46 = sshll.u32 [#allocation2], 4
      %s47 = int_to_ptr.vmem [resolvable:$true] %s46
      %52 = dma.hbm_to_vmem [thread:$0]  %s45, 2048, %s47, [#allocation3], 64, 64, 4
    $region45: #{layer_loop_forward.1} parent=1 // pred_fallthru
      _
    // Predicated region
    $region46: #{layer_loop_forward.1} parent=1 // pred_check
      _
    $region47: #{layer_loop_forward.1} parent=1 // pred_check_branch
      %54 = sbr.rel (0) target = $region49
    $region48: #{layer_loop_forward.1} parent=1 // pred_region
      _
    $region49: #{layer_loop_forward.1} parent=1 // pred_fallthru
      _
    // Predicated region
    $region50: #{layer_loop_forward.1} parent=1 // pred_check
      _
    $region51: #{layer_loop_forward.1} parent=1 // pred_check_branch
      %56 = sbr.rel (0) target = $region53
    $region52: #{layer_loop_forward.1} parent=1 // pred_region
      _
    $region53: #{layer_loop_forward.1} parent=1 // pred_fallthru
      _
    // Predicated region
    $region54: #{layer_loop_forward.1} parent=1 // pred_check
      _
    $region55: #{layer_loop_forward.1} parent=1 // pred_check_branch
      %58 = sbr.rel (0) target = $region57
    $region56: #{layer_loop_forward.1} parent=1 // pred_region
      _
    $region57: #{layer_loop_forward.1} parent=1 // pred_fallthru
      _
    // Predicated region
    $region58: #{layer_loop_forward.1} parent=1 // pred_check
      _
    $region59: #{layer_loop_forward.1} parent=1 // pred_check_branch
      %60 = sbr.rel (0) target = $region61
    $region60: #{layer_loop_forward.1} parent=1 // pred_region
      %62 = dma.done [#allocation3], 2048
    $region61: #{layer_loop_forward.1} parent=1 // pred_fallthru
      _
    %v64 = vld [vmem:[%s0] sm:$0xff]
    %v65 = vld [vmem:[%s0 + $0x8] sm:$0xff]
    %v66 = vlaneseq
    %v67 = vand.u32 %v66, 127
    %68 = vset.pattern.permute.xlu0 0
    %69 = vperm.xlu0 %68, %v64
    %v70 = vpop.permute.xlu0 %69
    %71 = vset.pattern.permute.xlu0 0
    %72 = vperm.xlu0 %71, %v65
    %v73 = vpop.permute.xlu0 %72
    %vm74 = vcmp.eq.s32.totalorder %v70, %v67
    %vm75 = vcmp.eq.s32.totalorder %v73, %v67
    %v76 = vsel %vm74, 1.0, 0.0
    %v77 = vsel %vm75, 1.0, 0.0
    %v78 = vpack.c.bf16 %v77, %v76
    %v79 = vld [vmem:[%s5] sm:$0xf]
    %v80 = vld [vmem:[%s5 + $0x4] sm:$0xf]
    %v81 = vld [vmem:[%s5 + $0x8] sm:$0xf]
    %v82 = vld [vmem:[%s5 + $0xc] sm:$0xf]
    %v83 = vld [vmem:[%s5 + $0x10] sm:$0xf]
    %v84 = vld [vmem:[%s5 + $0x14] sm:$0xf]
    %v85 = vld [vmem:[%s5 + $0x18] sm:$0xf]
    %v86 = vld [vmem:[%s5 + $0x1c] sm:$0xf]
    %v95 = vunpack.c.l.b16 %v79
    %v96 = vunpack.c.l.b16 %v80
    %v97 = vunpack.c.l.b16 %v81
    %v98 = vunpack.c.l.b16 %v82
    %v99 = vunpack.c.l.b16 %v83
    %v100 = vunpack.c.l.b16 %v84
    %v101 = vunpack.c.l.b16 %v85
    %v102 = vunpack.c.l.b16 %v86
    %v103 = vpack.c.b16 %v96, %v95
    %v104 = vpack.c.b16 %v98, %v97
    %v105 = vpack.c.b16 %v100, %v99
    %v106 = vpack.c.b16 %v102, %v101
    %vm111 = vcmask 523264
    %v113 = vsel %vm111, %v78, 0
    %115 = vmatpush.bf16.msra.mxu0 0
    %116 = vmatpush.bf16.msra.mxu0 0
    %117 = vmatpush.bf16.msra.mxu0 0
    %118 = vmatpush.bf16.msra.mxu0 0
    %119 = vmatpush.bf16.msra.mxu0 %v106
    %120 = vmatpush.bf16.msra.mxu0 %v105
    %121 = vmatpush.bf16.msra.mxu0 %v104
    %122 = vmatpush.bf16.msra.mxu0 %v103
    %123 = vmatmul.bf16.gmra.mxu0 %v113
    %v124 = vpop.f32.mrf.mxu0
    %v125 = vadd.f32 0.0, %v124
    %v126 = vpop.f32.mrf.mxu0
    %v127 = vadd.f32 0.0, %v126
    %128 = vdwg.mxu0
    %v129 = vld [vmem:[%s3] sm:$0xff]
    %v130 = vld [vmem:[%s3 + $0x8] sm:$0xff]
    %v131 = vld [vmem:[%s4] sm:$0xff]
    %v132 = vld [vmem:[%s4 + $0x8] sm:$0xff]
    %v133 = vld [vmem:[%s2] sm:$0xf]
    %v134 = vld [vmem:[%s1] sm:$0xff]
    %v135 = vld [vmem:[%s1 + $0x8] sm:$0xff]
    %v136 = vld [vmem:[%s1 + $0x10] sm:$0xff]
    %v137 = vld [vmem:[%s1 + $0x18] sm:$0xff]
    %v138 = vld [vmem:[%s1 + $0x20] sm:$0xff]
    %v139 = vld [vmem:[%s1 + $0x28] sm:$0xff]
    %v140 = vld [vmem:[%s1 + $0x30] sm:$0xff]
    %v141 = vld [vmem:[%s1 + $0x38] sm:$0xff]
    %v142 = vld [vmem:[%s6] sm:$0x1]
    %v143 = vmul.f32 %v125, %v125
    %v144 = vmul.f32 %v127, %v127
    %vm145 = vcmask 261120
    %v146 = vsel %vm145, %v143, 0.0
    %147 = vadd.xlane.f32.xlu0 %v146
    %v148 = vpop.xlane.xlu0 %147
    %v149 = vsel %vm145, %v144, 0.0
    %150 = vadd.xlane.f32.xlu0 %v149
    %v151 = vpop.xlane.xlu0 %150
    %v152 = vrcp.pop 32.0
    %v153 = vmul.f32 32.0, %v152
    %v154 = vsub.f32 1.0, %v153
    %v155 = vmul.f32 %v152, %v154
    %v156 = vadd.f32 %v152, %v155
    %vm157 = vweird.f32 %v152
    %v158 = vsel %vm157, %v152, %v156
    %v159 = vmul.f32 %v148, %v158
    %v160 = vmul.f32 %v151, %v158
    %v161 = vadd.f32 %v159, 1e-06
    %v162 = vadd.f32 %v160, 1e-06
    %v163 = vrsqrt.pop %v161
    %v164 = vmul.f32 %v163, %v161
    %v165 = vmul.f32 %v164, %v163
    %v166 = vmul.f32 0.5, %v165
    %v167 = vsub.f32 1.5, %v166
    %v168 = vmul.f32 %v163, %v167
    %vm169 = vweird.f32 %v161
    %vm170 = vweird.f32 %v163
    %vm171 = vmor %vm169, %vm170
    %v172 = vsel %vm171, %v163, %v168
    %v173 = vrsqrt.pop %v162
    %v174 = vmul.f32 %v173, %v162
    %v175 = vmul.f32 %v174, %v173
    %v176 = vmul.f32 0.5, %v175
    %v177 = vsub.f32 1.5, %v176
    %v178 = vmul.f32 %v173, %v177
    %vm179 = vweird.f32 %v162
    %vm180 = vweird.f32 %v173
    %vm181 = vmor %vm179, %vm180
    %v182 = vsel %vm181, %v173, %v178
    %v183 = vmul.f32 %v125, %v172
    %v184 = vmul.f32 %v127, %v182
    %v185 = vunpack.c.l.bf16 %v142
    %v186 = vperm.slane %v185, 0
    %v187 = vmul.f32 %v183, %v186
    %v188 = vmul.f32 %v184, %v186
    %v189 = vpack.c.bf16 %v188, %v187
    %v190 = vld [vmem:[%s7] sm:$0xff]
    %v191 = vld [vmem:[%s7 + $0x8] sm:$0xff]
    %v192 = vld [vmem:[%s7 + $0x10] sm:$0xff]
    %v193 = vld [vmem:[%s7 + $0x18] sm:$0xff]
    %v198 = vunpack.c.l.b16 %v190
    %v199 = vunpack.c.h.b16 %v190
    %v200 = vunpack.c.l.b16 %v191
    %v201 = vunpack.c.h.b16 %v191
    %v202 = vunpack.c.l.b16 %v192
    %v203 = vunpack.c.h.b16 %v192
    %v204 = vunpack.c.l.b16 %v193
    %v205 = vunpack.c.h.b16 %v193
    %v206 = vpack.c.b16 %v200, %v198
    %v207 = vpack.c.b16 %v201, %v199
    %v208 = vpack.c.b16 %v204, %v202
    %v209 = vpack.c.b16 %v205, %v203
    %v215 = vsel %vm145, %v189, 0
    %217 = vmatpush.bf16.msra.mxu0 0
    %218 = vmatpush.bf16.msra.mxu0 0
    %219 = vmatpush.bf16.msra.mxu0 0
    %220 = vmatpush.bf16.msra.mxu0 0
    %221 = vmatpush.bf16.msra.mxu0 0
    %222 = vmatpush.bf16.msra.mxu0 0
    %223 = vmatpush.bf16.msra.mxu0 %v208
    %224 = vmatpush.bf16.msra.mxu0 %v206
    %225 = vmatmul.bf16.gmra.mxu0 %v215
    %v226 = vpop.f32.mrf.mxu0
    %v227 = vadd.f32 0.0, %v226
    %v228 = vpop.f32.mrf.mxu0
    %v229 = vadd.f32 0.0, %v228
    %230 = vdwg.mxu0
    %231 = vmatpush.bf16.msra.mxu0 0
    %232 = vmatpush.bf16.msra.mxu0 0
    %233 = vmatpush.bf16.msra.mxu0 0
    %234 = vmatpush.bf16.msra.mxu0 0
    %235 = vmatpush.bf16.msra.mxu0 0
    %236 = vmatpush.bf16.msra.mxu0 0
    %237 = vmatpush.bf16.msra.mxu0 %v209
    %238 = vmatpush.bf16.msra.mxu0 %v207
    %239 = vmatmul.bf16.gmra.mxu0 %v215
    %v240 = vpop.f32.mrf.mxu0
    %v241 = vadd.f32 0.0, %v240
    %v242 = vpop.f32.mrf.mxu0
    %v243 = vadd.f32 0.0, %v242
    %244 = vdwg.mxu0
    %v245 = vmul.f32 %v227, %v129
    %v246 = vmul.f32 %v229, %v130
    %249 = vrot.lane.b32.xlu0 %v131, 32
    %v250 = vpop.permute.xlu0 %249
    %251 = vrot.lane.b32.xlu0 %v132, 32
    %v252 = vpop.permute.xlu0 %251
    %v255 = vmul.f32 %v227, %v250
    %v256 = vmul.f32 %v229, %v252
    %259 = vrot.lane.b32.xlu0 %v255, 96
    %v260 = vpop.permute.xlu0 %259
    %261 = vrot.lane.b32.xlu0 %v256, 96
    %v262 = vpop.permute.xlu0 %261
    %v265 = vadd.f32 %v245, %v260
    %v266 = vadd.f32 %v246, %v262
    %269 = vrot.lane.b32.xlu0 %v129, 64
    %v270 = vpop.permute.xlu0 %269
    %271 = vrot.lane.b32.xlu0 %v130, 64
    %v272 = vpop.permute.xlu0 %271
    %v275 = vmul.f32 %v227, %v270
    %v276 = vmul.f32 %v229, %v272
    %277 = vrot.lane.b32.xlu0 %v131, 96
    %v278 = vpop.permute.xlu0 %277
    %279 = vrot.lane.b32.xlu0 %v132, 96
    %v280 = vpop.permute.xlu0 %279
    %v283 = vmul.f32 %v227, %v278
    %v284 = vmul.f32 %v229, %v280
    %287 = vrot.lane.b32.xlu0 %v283, 96
    %v288 = vpop.permute.xlu0 %287
    %289 = vrot.lane.b32.xlu0 %v284, 96
    %v290 = vpop.permute.xlu0 %289
    %v293 = vadd.f32 %v275, %v288
    %v294 = vadd.f32 %v276, %v290
    %v295 = vpack.c.bf16 %v294, %v293
    %v296 = vpack.c.bf16 %v243, %v241
    %v297 = vperm.slane %v133, 0
    %v298 = vmul.f32 %v265, %v297
    %v299 = vmul.f32 %v266, %v297
    %v300 = vperm.slane %v133, 1
    %v301 = vmul.f32 %v265, %v300
    %v302 = vmul.f32 %v266, %v300
    %v303 = vperm.slane %v133, 2
    %v304 = vmul.f32 %v265, %v303
    %v305 = vmul.f32 %v266, %v303
    %v306 = vperm.slane %v133, 3
    %v307 = vmul.f32 %v265, %v306
    %v308 = vmul.f32 %v266, %v306
    %v309 = vpack.c.bf16 %v299, %v298
    %v310 = vpack.c.bf16 %v302, %v301
    %v311 = vpack.c.bf16 %v305, %v304
    %v312 = vpack.c.bf16 %v308, %v307
    %314 = vrot.lane.b32.xlu0 %v295, 64
    %v315 = vpop.permute.xlu0 %314
    %v317 = vsel %vm145, %v309, 0
    %v320 = vsel %vm145, %v310, 0
    %v323 = vsel %vm145, %v311, 0
    %v326 = vsel %vm145, %v312, 0
    %v329 = vsel %vm145, %v315, 0
    %331 = vmatpush.bf16.xpose.msra.mxu0 0
    %332 = vmatpush.bf16.xpose.msra.mxu0 0
    %333 = vmatpush.bf16.xpose.msra.mxu0 0
    %334 = vmatpush.bf16.xpose.msra.mxu0 0
    %335 = vmatpush.bf16.xpose.msra.mxu0 0
    %336 = vmatpush.bf16.xpose.msra.mxu0 0
    %337 = vmatpush.bf16.xpose.msra.mxu0 0
    %338 = vmatpush.bf16.xpose.msra.mxu0 %v329
    %339 = vmatmul.bf16.gmra.mxu0 %v317
    %v340 = vpop.f32.mrf.mxu0
    %v341 = vadd.f32 %v134, %v340
    %v342 = vpop.f32.mrf.mxu0
    %v343 = vadd.f32 %v135, %v342
    %344 = vmatmul.bf16.gmra.mxu0 %v320
    %v345 = vpop.f32.mrf.mxu0
    %v346 = vadd.f32 %v136, %v345
    %v347 = vpop.f32.mrf.mxu0
    %v348 = vadd.f32 %v137, %v347
    %349 = vmatmul.bf16.gmra.mxu0 %v323
    %v350 = vpop.f32.mrf.mxu0
    %v351 = vadd.f32 %v138, %v350
    %v352 = vpop.f32.mrf.mxu0
    %v353 = vadd.f32 %v139, %v352
    %354 = vmatmul.bf16.gmra.mxu0 %v326
    %v355 = vpop.f32.mrf.mxu0
    %v356 = vadd.f32 %v140, %v355
    %v357 = vpop.f32.mrf.mxu0
    %v358 = vadd.f32 %v141, %v357
    %359 = vdwg.mxu0
    %vm360 = vcmask 130048
    %v361 = vsel %vm360, %v341, -inf
    %362 = vmax.xlane.f32.xlu0 %v361
    %v363 = vpop.xlane.xlu0 %362
    %v364 = vsel %vm360, %v343, -inf
    %365 = vmax.xlane.f32.xlu0 %v364
    %v366 = vpop.xlane.xlu0 %365
    %v367 = vsel %vm360, %v346, -inf
    %368 = vmax.xlane.f32.xlu0 %v367
    %v369 = vpop.xlane.xlu0 %368
    %v370 = vsel %vm360, %v348, -inf
    %371 = vmax.xlane.f32.xlu0 %v370
    %v372 = vpop.xlane.xlu0 %371
    %v373 = vsel %vm360, %v351, -inf
    %374 = vmax.xlane.f32.xlu0 %v373
    %v375 = vpop.xlane.xlu0 %374
    %v376 = vsel %vm360, %v353, -inf
    %377 = vmax.xlane.f32.xlu0 %v376
    %v378 = vpop.xlane.xlu0 %377
    %v379 = vsel %vm360, %v356, -inf
    %380 = vmax.xlane.f32.xlu0 %v379
    %v381 = vpop.xlane.xlu0 %380
    %v382 = vsel %vm360, %v358, -inf
    %383 = vmax.xlane.f32.xlu0 %v382
    %v384 = vpop.xlane.xlu0 %383
    %v385 = vsub.f32 %v341, %v363
    %v386 = vsub.f32 %v343, %v366
    %v387 = vsub.f32 %v346, %v369
    %v388 = vsub.f32 %v348, %v372
    %v389 = vsub.f32 %v351, %v375
    %v390 = vsub.f32 %v353, %v378
    %v391 = vsub.f32 %v356, %v381
    %v392 = vsub.f32 %v358, %v384
    %v393 = vmul.f32 %v385, 1.442695
    %v394 = vpow.pop %v393
    %v395 = vmul.f32 %v386, 1.442695
    %v396 = vpow.pop %v395
    %v397 = vmul.f32 %v387, 1.442695
    %v398 = vpow.pop %v397
    %v399 = vmul.f32 %v388, 1.442695
    %v400 = vpow.pop %v399
    %v401 = vmul.f32 %v389, 1.442695
    %v402 = vpow.pop %v401
    %v403 = vmul.f32 %v390, 1.442695
    %v404 = vpow.pop %v403
    %v405 = vmul.f32 %v391, 1.442695
    %v406 = vpow.pop %v405
    %v407 = vmul.f32 %v392, 1.442695
    %v408 = vpow.pop %v407
    %v409 = vsel %vm360, %v394, 0.0
    %410 = vadd.xlane.f32.xlu0 %v409
    %v411 = vpop.xlane.xlu0 %410
    %v412 = vsel %vm360, %v396, 0.0
    %413 = vadd.xlane.f32.xlu0 %v412
    %v414 = vpop.xlane.xlu0 %413
    %v415 = vsel %vm360, %v398, 0.0
    %416 = vadd.xlane.f32.xlu0 %v415
    %v417 = vpop.xlane.xlu0 %416
    %v418 = vsel %vm360, %v400, 0.0
    %419 = vadd.xlane.f32.xlu0 %v418
    %v420 = vpop.xlane.xlu0 %419
    %v421 = vsel %vm360, %v402, 0.0
    %422 = vadd.xlane.f32.xlu0 %v421
    %v423 = vpop.xlane.xlu0 %422
    %v424 = vsel %vm360, %v404, 0.0
    %425 = vadd.xlane.f32.xlu0 %v424
    %v426 = vpop.xlane.xlu0 %425
    %v427 = vsel %vm360, %v406, 0.0
    %428 = vadd.xlane.f32.xlu0 %v427
    %v429 = vpop.xlane.xlu0 %428
    %v430 = vsel %vm360, %v408, 0.0
    %431 = vadd.xlane.f32.xlu0 %v430
    %v432 = vpop.xlane.xlu0 %431
    %v433 = vrcp.pop %v411
    %v434 = vmul.f32 %v411, %v433
    %v435 = vsub.f32 1.0, %v434
    %v436 = vmul.f32 %v433, %v435
    %v437 = vadd.f32 %v433, %v436
    %vm438 = vweird.f32 %v411
    %vm439 = vweird.f32 %v433
    %vm440 = vmor %vm438, %vm439
    %v441 = vsel %vm440, %v433, %v437
    %v442 = vand.u32 2147483647, %v411
    %vm443 = vcmp.eq.f32.partialorder %v442, 8.507059e+37
    %v444 = vand.u32 %v411, 2147483648
    %v445 = vor.u32 1.1754944e-38, %v444
    %v446 = vsel %vm443, %v445, %v441
    %v447 = vmul.f32 %v394, %v446
    %v448 = vrcp.pop %v414
    %v449 = vmul.f32 %v414, %v448
    %v450 = vsub.f32 1.0, %v449
    %v451 = vmul.f32 %v448, %v450
    %v452 = vadd.f32 %v448, %v451
    %vm453 = vweird.f32 %v414
    %vm454 = vweird.f32 %v448
    %vm455 = vmor %vm453, %vm454
    %v456 = vsel %vm455, %v448, %v452
    %v457 = vand.u32 2147483647, %v414
    %vm458 = vcmp.eq.f32.partialorder %v457, 8.507059e+37
    %v459 = vand.u32 %v414, 2147483648
    %v460 = vor.u32 1.1754944e-38, %v459
    %v461 = vsel %vm458, %v460, %v456
    %v462 = vmul.f32 %v396, %v461
    %v463 = vrcp.pop %v417
    %v464 = vmul.f32 %v417, %v463
    %v465 = vsub.f32 1.0, %v464
    %v466 = vmul.f32 %v463, %v465
    %v467 = vadd.f32 %v463, %v466
    %vm468 = vweird.f32 %v417
    %vm469 = vweird.f32 %v463
    %vm470 = vmor %vm468, %vm469
    %v471 = vsel %vm470, %v463, %v467
    %v472 = vand.u32 2147483647, %v417
    %vm473 = vcmp.eq.f32.partialorder %v472, 8.507059e+37
    %v474 = vand.u32 %v417, 2147483648
    %v475 = vor.u32 1.1754944e-38, %v474
    %v476 = vsel %vm473, %v475, %v471
    %v477 = vmul.f32 %v398, %v476
    %v478 = vrcp.pop %v420
    %v479 = vmul.f32 %v420, %v478
    %v480 = vsub.f32 1.0, %v479
    %v481 = vmul.f32 %v478, %v480
    %v482 = vadd.f32 %v478, %v481
    %vm483 = vweird.f32 %v420
    %vm484 = vweird.f32 %v478
    %vm485 = vmor %vm483, %vm484
    %v486 = vsel %vm485, %v478, %v482
    %v487 = vand.u32 2147483647, %v420
    %vm488 = vcmp.eq.f32.partialorder %v487, 8.507059e+37
    %v489 = vand.u32 %v420, 2147483648
    %v490 = vor.u32 1.1754944e-38, %v489
    %v491 = vsel %vm488, %v490, %v486
    %v492 = vmul.f32 %v400, %v491
    %v493 = vrcp.pop %v423
    %v494 = vmul.f32 %v423, %v493
    %v495 = vsub.f32 1.0, %v494
    %v496 = vmul.f32 %v493, %v495
    %v497 = vadd.f32 %v493, %v496
    %vm498 = vweird.f32 %v423
    %vm499 = vweird.f32 %v493
    %vm500 = vmor %vm498, %vm499
    %v501 = vsel %vm500, %v493, %v497
    %v502 = vand.u32 2147483647, %v423
    %vm503 = vcmp.eq.f32.partialorder %v502, 8.507059e+37
    %v504 = vand.u32 %v423, 2147483648
    %v505 = vor.u32 1.1754944e-38, %v504
    %v506 = vsel %vm503, %v505, %v501
    %v507 = vmul.f32 %v402, %v506
    %v508 = vrcp.pop %v426
    %v509 = vmul.f32 %v426, %v508
    %v510 = vsub.f32 1.0, %v509
    %v511 = vmul.f32 %v508, %v510
    %v512 = vadd.f32 %v508, %v511
    %vm513 = vweird.f32 %v426
    %vm514 = vweird.f32 %v508
    %vm515 = vmor %vm513, %vm514
    %v516 = vsel %vm515, %v508, %v512
    %v517 = vand.u32 2147483647, %v426
    %vm518 = vcmp.eq.f32.partialorder %v517, 8.507059e+37
    %v519 = vand.u32 %v426, 2147483648
    %v520 = vor.u32 1.1754944e-38, %v519
    %v521 = vsel %vm518, %v520, %v516
    %v522 = vmul.f32 %v404, %v521
    %v523 = vrcp.pop %v429
    %v524 = vmul.f32 %v429, %v523
    %v525 = vsub.f32 1.0, %v524
    %v526 = vmul.f32 %v523, %v525
    %v527 = vadd.f32 %v523, %v526
    %vm528 = vweird.f32 %v429
    %vm529 = vweird.f32 %v523
    %vm530 = vmor %vm528, %vm529
    %v531 = vsel %vm530, %v523, %v527
    %v532 = vand.u32 2147483647, %v429
    %vm533 = vcmp.eq.f32.partialorder %v532, 8.507059e+37
    %v534 = vand.u32 %v429, 2147483648
    %v535 = vor.u32 1.1754944e-38, %v534
    %v536 = vsel %vm533, %v535, %v531
    %v537 = vmul.f32 %v406, %v536
    %v538 = vrcp.pop %v432
    %v539 = vmul.f32 %v432, %v538
    %v540 = vsub.f32 1.0, %v539
    %v541 = vmul.f32 %v538, %v540
    %v542 = vadd.f32 %v538, %v541
    %vm543 = vweird.f32 %v432
    %vm544 = vweird.f32 %v538
    %vm545 = vmor %vm543, %vm544
    %v546 = vsel %vm545, %v538, %v542
    %v547 = vand.u32 2147483647, %v432
    %vm548 = vcmp.eq.f32.partialorder %v547, 8.507059e+37
    %v549 = vand.u32 %v432, 2147483648
    %v550 = vor.u32 1.1754944e-38, %v549
    %v551 = vsel %vm548, %v550, %v546
    %v552 = vmul.f32 %v408, %v551
    %v553 = vpack.c.bf16 %v462, %v447
    %v554 = vpack.c.bf16 %v492, %v477
    %v555 = vpack.c.bf16 %v522, %v507
    %v556 = vpack.c.bf16 %v552, %v537
    %v558 = vsel %vm360, %v553, 0
    %v561 = vsel %vm360, %v554, 0
    %v564 = vsel %vm360, %v555, 0
    %v567 = vsel %vm360, %v556, 0
    %569 = vmatpush.bf16.msra.mxu0 0
    %570 = vmatpush.bf16.msra.mxu0 0
    %571 = vmatpush.bf16.msra.mxu0 0
    %572 = vmatpush.bf16.msra.mxu0 0
    %573 = vmatpush.bf16.msra.mxu0 0
    %574 = vmatpush.bf16.msra.mxu0 0
    %575 = vmatpush.bf16.msra.mxu0 0
    %576 = vmatpush.bf16.msra.mxu0 %v296
    %577 = vmatmul.bf16.gmra.mxu0 %v558
    %v578 = vpop.f32.mrf.mxu0
    %v579 = vadd.f32 0.0, %v578
    %v580 = vpop.f32.mrf.mxu0
    %v581 = vadd.f32 0.0, %v580
    %582 = vmatmul.bf16.gmra.mxu0 %v561
    %v583 = vpop.f32.mrf.mxu0
    %v584 = vadd.f32 0.0, %v583
    %v585 = vpop.f32.mrf.mxu0
    %v586 = vadd.f32 0.0, %v585
    %587 = vmatmul.bf16.gmra.mxu0 %v564
    %v588 = vpop.f32.mrf.mxu0
    %v589 = vadd.f32 0.0, %v588
    %v590 = vpop.f32.mrf.mxu0
    %v591 = vadd.f32 0.0, %v590
    %592 = vmatmul.bf16.gmra.mxu0 %v567
    %v593 = vpop.f32.mrf.mxu0
    %v594 = vadd.f32 0.0, %v593
    %v595 = vpop.f32.mrf.mxu0
    %v596 = vadd.f32 0.0, %v595
    %597 = vdwg.mxu0
    %v598 = vmul.f32 %v579, %v297
    %v599 = vmul.f32 %v581, %v297
    %v600 = vmul.f32 %v584, %v300
    %v601 = vmul.f32 %v586, %v300
    %v602 = vadd.f32 %v598, %v600
    %v603 = vadd.f32 %v599, %v601
    %v604 = vmul.f32 %v589, %v303
    %v605 = vmul.f32 %v591, %v303
    %v606 = vadd.f32 %v602, %v604
    %v607 = vadd.f32 %v603, %v605
    %v608 = vmul.f32 %v594, %v306
    %v609 = vmul.f32 %v596, %v306
    %v610 = vadd.f32 %v606, %v608
    %v611 = vadd.f32 %v607, %v609
    %v612 = vpack.c.bf16 %v611, %v610
    %v613 = vld [vmem:[%s8] sm:$0xf]
    %v614 = vld [vmem:[%s8 + $0x4] sm:$0xf]
    %v615 = vld [vmem:[%s8 + $0x8] sm:$0xf]
    %v616 = vld [vmem:[%s8 + $0xc] sm:$0xf]
    %v621 = vunpack.c.l.b16 %v613
    %v622 = vunpack.c.l.b16 %v614
    %v623 = vunpack.c.l.b16 %v615
    %v624 = vunpack.c.l.b16 %v616
    %v625 = vpack.c.b16 %v622, %v621
    %v626 = vpack.c.b16 %v624, %v623
    %v630 = vsel %vm145, %v612, 0
    %632 = vmatpush.bf16.msra.mxu0 0
    %633 = vmatpush.bf16.msra.mxu0 0
    %634 = vmatpush.bf16.msra.mxu0 0
    %635 = vmatpush.bf16.msra.mxu0 0
    %636 = vmatpush.bf16.msra.mxu0 0
    %637 = vmatpush.bf16.msra.mxu0 0
    %638 = vmatpush.bf16.msra.mxu0 %v626
    %639 = vmatpush.bf16.msra.mxu0 %v625
    %640 = vmatmul.bf16.gmra.mxu0 %v630
    %v641 = vpop.f32.mrf.mxu0
    %v642 = vadd.f32 0.0, %v641
    %v643 = vpop.f32.mrf.mxu0
    %v644 = vadd.f32 0.0, %v643
    %645 = vdwg.mxu0
    %v646 = vadd.f32 %v125, %v642
    %v647 = vadd.f32 %v127, %v644
    %v648 = vld [vmem:[%s9] sm:$0x1]
    %v649 = vmul.f32 %v646, %v646
    %v650 = vmul.f32 %v647, %v647
    %v651 = vsel %vm145, %v649, 0.0
    %652 = vadd.xlane.f32.xlu0 %v651
    %v653 = vpop.xlane.xlu0 %652
    %v654 = vsel %vm145, %v650, 0.0
    %655 = vadd.xlane.f32.xlu0 %v654
    %v656 = vpop.xlane.xlu0 %655
    %v657 = vmul.f32 %v653, %v158
    %v658 = vmul.f32 %v656, %v158
    %v659 = vadd.f32 %v657, 1e-06
    %v660 = vadd.f32 %v658, 1e-06
    %v661 = vrsqrt.pop %v659
    %v662 = vmul.f32 %v661, %v659
    %v663 = vmul.f32 %v662, %v661
    %v664 = vmul.f32 0.5, %v663
    %v665 = vsub.f32 1.5, %v664
    %v666 = vmul.f32 %v661, %v665
    %vm667 = vweird.f32 %v659
    %vm668 = vweird.f32 %v661
    %vm669 = vmor %vm667, %vm668
    %v670 = vsel %vm669, %v661, %v666
    %v671 = vrsqrt.pop %v660
    %v672 = vmul.f32 %v671, %v660
    %v673 = vmul.f32 %v672, %v671
    %v674 = vmul.f32 0.5, %v673
    %v675 = vsub.f32 1.5, %v674
    %v676 = vmul.f32 %v671, %v675
    %vm677 = vweird.f32 %v660
    %vm678 = vweird.f32 %v671
    %vm679 = vmor %vm677, %vm678
    %v680 = vsel %vm679, %v671, %v676
    %v681 = vmul.f32 %v646, %v670
    %v682 = vmul.f32 %v647, %v680
    %v683 = vunpack.c.l.bf16 %v648
    %v684 = vperm.slane %v683, 0
    %v685 = vmul.f32 %v681, %v684
    %v686 = vmul.f32 %v682, %v684
    %v687 = vpack.c.bf16 %v686, %v685
    %v688 = vld [vmem:[#allocation2] sm:$0xf]
    %v689 = vld [vmem:[#allocation2 + $0x4] sm:$0xf]
    %v690 = vld [vmem:[#allocation2 + $0x8] sm:$0xf]
    %v691 = vld [vmem:[#allocation2 + $0xc] sm:$0xf]
    %v696 = vunpack.c.l.b16 %v688
    %v697 = vunpack.c.l.b16 %v689
    %v698 = vunpack.c.l.b16 %v690
    %v699 = vunpack.c.l.b16 %v691
    %v700 = vpack.c.b16 %v697, %v696
    %v701 = vpack.c.b16 %v699, %v698
    %v705 = vsel %vm145, %v687, 0
    %707 = vmatpush.bf16.msra.mxu0 0
    %708 = vmatpush.bf16.msra.mxu0 0
    %709 = vmatpush.bf16.msra.mxu0 0
    %710 = vmatpush.bf16.msra.mxu0 0
    %711 = vmatpush.bf16.msra.mxu0 0
    %712 = vmatpush.bf16.msra.mxu0 0
    %713 = vmatpush.bf16.msra.mxu0 %v701
    %714 = vmatpush.bf16.msra.mxu0 %v700
    %715 = vmatmul.bf16.gmra.mxu0 %v705
    %v716 = vpop.f32.mrf.mxu0
    %v717 = vadd.f32 0.0, %v716
    %v718 = vpop.f32.mrf.mxu0
    %v719 = vadd.f32 0.0, %v718
    %720 = vdwg.mxu0
    %v721 = vxor.u32 %v717, 2147483648
    %v722 = vxor.u32 %v719, 2147483648
    %v723 = vmul.f32 %v721, 1.442695
    %v724 = vpow.pop %v723
    %v725 = vmul.f32 %v722, 1.442695
    %v726 = vpow.pop %v725
    %v727 = vadd.f32 %v724, 1.0
    %v728 = vadd.f32 %v726, 1.0
    %v729 = vrcp.pop %v727
    %v730 = vmul.f32 %v727, %v729
    %v731 = vsub.f32 1.0, %v730
    %v732 = vmul.f32 %v729, %v731
    %v733 = vadd.f32 %v729, %v732
    %vm734 = vweird.f32 %v727
    %vm735 = vweird.f32 %v729
    %vm736 = vmor %vm734, %vm735
    %v737 = vsel %vm736, %v729, %v733
    %v738 = vand.u32 2147483647, %v727
    %vm739 = vcmp.eq.f32.partialorder %v738, 8.507059e+37
    %v740 = vand.u32 %v727, 2147483648
    %v741 = vor.u32 1.1754944e-38, %v740
    %v742 = vsel %vm739, %v741, %v737
    %v743 = vmul.f32 1.0, %v742
    %v744 = vrcp.pop %v728
    %v745 = vmul.f32 %v728, %v744
    %v746 = vsub.f32 1.0, %v745
    %v747 = vmul.f32 %v744, %v746
    %v748 = vadd.f32 %v744, %v747
    %vm749 = vweird.f32 %v728
    %vm750 = vweird.f32 %v744
    %vm751 = vmor %vm749, %vm750
    %v752 = vsel %vm751, %v744, %v748
    %v753 = vand.u32 2147483647, %v728
    %vm754 = vcmp.eq.f32.partialorder %v753, 8.507059e+37
    %v755 = vand.u32 %v728, 2147483648
    %v756 = vor.u32 1.1754944e-38, %v755
    %v757 = vsel %vm754, %v756, %v752
    %v758 = vmul.f32 1.0, %v757
    %v759 = vmul.f32 %v717, %v743
    %v760 = vmul.f32 %v719, %v758
    %763 = vrot.lane.b32.xlu0 %v717, 64
    %v764 = vpop.permute.xlu0 %763
    %765 = vrot.lane.b32.xlu0 %v719, 64
    %v766 = vpop.permute.xlu0 %765
    %v769 = vmul.f32 %v759, %v764
    %v770 = vmul.f32 %v760, %v766
    %v771 = vpack.c.bf16 %v770, %v769
    %v772 = vld [vmem:[%s11] sm:$0xf]
    %v773 = vld [vmem:[%s11 + $0x4] sm:$0xf]
    %v774 = vld [vmem:[%s11 + $0x8] sm:$0xf]
    %v775 = vld [vmem:[%s11 + $0xc] sm:$0xf]
    %v776 = vld [vmem:[%s11 + $0x10] sm:$0xf]
    %v777 = vld [vmem:[%s11 + $0x14] sm:$0xf]
    %v778 = vld [vmem:[%s11 + $0x18] sm:$0xf]
    %v779 = vld [vmem:[%s11 + $0x1c] sm:$0xf]
    %v788 = vunpack.c.l.b16 %v772
    %v789 = vunpack.c.l.b16 %v773
    %v790 = vunpack.c.l.b16 %v774
    %v791 = vunpack.c.l.b16 %v775
    %v792 = vunpack.c.l.b16 %v776
    %v793 = vunpack.c.l.b16 %v777
    %v794 = vunpack.c.l.b16 %v778
    %v795 = vunpack.c.l.b16 %v779
    %v796 = vpack.c.b16 %v789, %v788
    %v797 = vpack.c.b16 %v791, %v790
    %v798 = vpack.c.b16 %v793, %v792
    %v799 = vpack.c.b16 %v795, %v794
    %v805 = vsel %vm111, %v771, 0
    %807 = vmatpush.bf16.msra.mxu0 0
    %808 = vmatpush.bf16.msra.mxu0 0
    %809 = vmatpush.bf16.msra.mxu0 0
    %810 = vmatpush.bf16.msra.mxu0 0
    %811 = vmatpush.bf16.msra.mxu0 %v799
    %812 = vmatpush.bf16.msra.mxu0 %v798
    %813 = vmatpush.bf16.msra.mxu0 %v797
    %814 = vmatpush.bf16.msra.mxu0 %v796
    %815 = vmatmul.bf16.gmra.mxu0 %v805
    %v816 = vpop.f32.mrf.mxu0
    %v817 = vadd.f32 0.0, %v816
    %v818 = vpop.f32.mrf.mxu0
    %v819 = vadd.f32 0.0, %v818
    %820 = vdwg.mxu0
    %v821 = vadd.f32 %v646, %v817
    %v822 = vadd.f32 %v647, %v819
    %s823 = scalar_lea.vmem %s6, 1
    %v824 = vld [vmem:[%s823] sm:$0x1]
    %v825 = vmul.f32 %v821, %v821
    %v826 = vmul.f32 %v822, %v822
    %v827 = vsel %vm145, %v825, 0.0
    %828 = vadd.xlane.f32.xlu0 %v827
    %v829 = vpop.xlane.xlu0 %828
    %v830 = vsel %vm145, %v826, 0.0
    %831 = vadd.xlane.f32.xlu0 %v830
    %v832 = vpop.xlane.xlu0 %831
    %v833 = vmul.f32 %v829, %v158
    %v834 = vmul.f32 %v832, %v158
    %v835 = vadd.f32 %v833, 1e-06
    %v836 = vadd.f32 %v834, 1e-06
    %v837 = vrsqrt.pop %v835
    %v838 = vmul.f32 %v837, %v835
    %v839 = vmul.f32 %v838, %v837
    %v840 = vmul.f32 0.5, %v839
    %v841 = vsub.f32 1.5, %v840
    %v842 = vmul.f32 %v837, %v841
    %vm843 = vweird.f32 %v835
    %vm844 = vweird.f32 %v837
    %vm845 = vmor %vm843, %vm844
    %v846 = vsel %vm845, %v837, %v842
    %v847 = vrsqrt.pop %v836
    %v848 = vmul.f32 %v847, %v836
    %v849 = vmul.f32 %v848, %v847
    %v850 = vmul.f32 0.5, %v849
    %v851 = vsub.f32 1.5, %v850
    %v852 = vmul.f32 %v847, %v851
    %vm853 = vweird.f32 %v836
    %vm854 = vweird.f32 %v847
    %vm855 = vmor %vm853, %vm854
    %v856 = vsel %vm855, %v847, %v852
    %v857 = vmul.f32 %v821, %v846
    %v858 = vmul.f32 %v822, %v856
    %v859 = vunpack.c.l.bf16 %v824
    %v860 = vperm.slane %v859, 0
    %v861 = vmul.f32 %v857, %v860
    %v862 = vmul.f32 %v858, %v860
    %v863 = vpack.c.bf16 %v862, %v861
    %s864 = scalar_lea.vmem %s7, 32
    %v865 = vld [vmem:[%s864] sm:$0xff]
    %v866 = vld [vmem:[%s864 + $0x8] sm:$0xff]
    %v867 = vld [vmem:[%s864 + $0x10] sm:$0xff]
    %v868 = vld [vmem:[%s864 + $0x18] sm:$0xff]
    %v873 = vunpack.c.l.b16 %v865
    %v874 = vunpack.c.h.b16 %v865
    %v875 = vunpack.c.l.b16 %v866
    %v876 = vunpack.c.h.b16 %v866
    %v877 = vunpack.c.l.b16 %v867
    %v878 = vunpack.c.h.b16 %v867
    %v879 = vunpack.c.l.b16 %v868
    %v880 = vunpack.c.h.b16 %v868
    %v881 = vpack.c.b16 %v875, %v873
    %v882 = vpack.c.b16 %v876, %v874
    %v883 = vpack.c.b16 %v879, %v877
    %v884 = vpack.c.b16 %v880, %v878
    %v890 = vsel %vm145, %v863, 0
    %892 = vmatpush.bf16.msra.mxu0 0
    %893 = vmatpush.bf16.msra.mxu0 0
    %894 = vmatpush.bf16.msra.mxu0 0
    %895 = vmatpush.bf16.msra.mxu0 0
    %896 = vmatpush.bf16.msra.mxu0 0
    %897 = vmatpush.bf16.msra.mxu0 0
    %898 = vmatpush.bf16.msra.mxu0 %v883
    %899 = vmatpush.bf16.msra.mxu0 %v881
    %900 = vmatmul.bf16.gmra.mxu0 %v890
    %v901 = vpop.f32.mrf.mxu0
    %v902 = vadd.f32 0.0, %v901
    %v903 = vpop.f32.mrf.mxu0
    %v904 = vadd.f32 0.0, %v903
    %905 = vdwg.mxu0
    %906 = vmatpush.bf16.msra.mxu0 0
    %907 = vmatpush.bf16.msra.mxu0 0
    %908 = vmatpush.bf16.msra.mxu0 0
    %909 = vmatpush.bf16.msra.mxu0 0
    %910 = vmatpush.bf16.msra.mxu0 0
    %911 = vmatpush.bf16.msra.mxu0 0
    %912 = vmatpush.bf16.msra.mxu0 %v884
    %913 = vmatpush.bf16.msra.mxu0 %v882
    %914 = vmatmul.bf16.gmra.mxu0 %v890
    %v915 = vpop.f32.mrf.mxu0
    %v916 = vadd.f32 0.0, %v915
    %v917 = vpop.f32.mrf.mxu0
    %v918 = vadd.f32 0.0, %v917
    %919 = vdwg.mxu0
    %v920 = vmul.f32 %v902, %v129
    %v921 = vmul.f32 %v904, %v130
    %v922 = vmul.f32 %v902, %v250
    %v923 = vmul.f32 %v904, %v252
    %926 = vrot.lane.b32.xlu0 %v922, 96
    %v927 = vpop.permute.xlu0 %926
    %928 = vrot.lane.b32.xlu0 %v923, 96
    %v929 = vpop.permute.xlu0 %928
    %v932 = vadd.f32 %v920, %v927
    %v933 = vadd.f32 %v921, %v929
    %v934 = vmul.f32 %v902, %v270
    %v935 = vmul.f32 %v904, %v272
    %v936 = vmul.f32 %v902, %v278
    %v937 = vmul.f32 %v904, %v280
    %940 = vrot.lane.b32.xlu0 %v936, 96
    %v941 = vpop.permute.xlu0 %940
    %942 = vrot.lane.b32.xlu0 %v937, 96
    %v943 = vpop.permute.xlu0 %942
    %v946 = vadd.f32 %v934, %v941
    %v947 = vadd.f32 %v935, %v943
    %v948 = vpack.c.bf16 %v947, %v946
    %v949 = vpack.c.bf16 %v918, %v916
    %v950 = vmul.f32 %v932, %v297
    %v951 = vmul.f32 %v933, %v297
    %v952 = vmul.f32 %v932, %v300
    %v953 = vmul.f32 %v933, %v300
    %v954 = vmul.f32 %v932, %v303
    %v955 = vmul.f32 %v933, %v303
    %v956 = vmul.f32 %v932, %v306
    %v957 = vmul.f32 %v933, %v306
    %v958 = vpack.c.bf16 %v951, %v950
    %v959 = vpack.c.bf16 %v953, %v952
    %v960 = vpack.c.bf16 %v955, %v954
    %v961 = vpack.c.bf16 %v957, %v956
    %963 = vrot.lane.b32.xlu0 %v948, 64
    %v964 = vpop.permute.xlu0 %963
    %v966 = vsel %vm145, %v958, 0
    %v969 = vsel %vm145, %v959, 0
    %v972 = vsel %vm145, %v960, 0
    %v975 = vsel %vm145, %v961, 0
    %v978 = vsel %vm145, %v964, 0
    %980 = vmatpush.bf16.xpose.msra.mxu0 0
    %981 = vmatpush.bf16.xpose.msra.mxu0 0
    %982 = vmatpush.bf16.xpose.msra.mxu0 0
    %983 = vmatpush.bf16.xpose.msra.mxu0 0
    %984 = vmatpush.bf16.xpose.msra.mxu0 0
    %985 = vmatpush.bf16.xpose.msra.mxu0 0
    %986 = vmatpush.bf16.xpose.msra.mxu0 0
    %987 = vmatpush.bf16.xpose.msra.mxu0 %v978
    %988 = vmatmul.bf16.gmra.mxu0 %v966
    %v989 = vpop.f32.mrf.mxu0
    %v990 = vadd.f32 %v134, %v989
    %v991 = vpop.f32.mrf.mxu0
    %v992 = vadd.f32 %v135, %v991
    %993 = vmatmul.bf16.gmra.mxu0 %v969
    %v994 = vpop.f32.mrf.mxu0
    %v995 = vadd.f32 %v136, %v994
    %v996 = vpop.f32.mrf.mxu0
    %v997 = vadd.f32 %v137, %v996
    %998 = vmatmul.bf16.gmra.mxu0 %v972
    %v999 = vpop.f32.mrf.mxu0
    %v1000 = vadd.f32 %v138, %v999
    %v1001 = vpop.f32.mrf.mxu0
    %v1002 = vadd.f32 %v139, %v1001
    %1003 = vmatmul.bf16.gmra.mxu0 %v975
    %v1004 = vpop.f32.mrf.mxu0
    %v1005 = vadd.f32 %v140, %v1004
    %v1006 = vpop.f32.mrf.mxu0
    %v1007 = vadd.f32 %v141, %v1006
    %1008 = vdwg.mxu0
    %v1009 = vsel %vm360, %v990, -inf
    %1010 = vmax.xlane.f32.xlu0 %v1009
    %v1011 = vpop.xlane.xlu0 %1010
    %v1012 = vsel %vm360, %v992, -inf
    %1013 = vmax.xlane.f32.xlu0 %v1012
    %v1014 = vpop.xlane.xlu0 %1013
    %v1015 = vsel %vm360, %v995, -inf
    %1016 = vmax.xlane.f32.xlu0 %v1015
    %v1017 = vpop.xlane.xlu0 %1016
    %v1018 = vsel %vm360, %v997, -inf
    %1019 = vmax.xlane.f32.xlu0 %v1018
    %v1020 = vpop.xlane.xlu0 %1019
    %v1021 = vsel %vm360, %v1000, -inf
    %1022 = vmax.xlane.f32.xlu0 %v1021
    %v1023 = vpop.xlane.xlu0 %1022
    %v1024 = vsel %vm360, %v1002, -inf
    %1025 = vmax.xlane.f32.xlu0 %v1024
    %v1026 = vpop.xlane.xlu0 %1025
    %v1027 = vsel %vm360, %v1005, -inf
    %1028 = vmax.xlane.f32.xlu0 %v1027
    %v1029 = vpop.xlane.xlu0 %1028
    %v1030 = vsel %vm360, %v1007, -inf
    %1031 = vmax.xlane.f32.xlu0 %v1030
    %v1032 = vpop.xlane.xlu0 %1031
    %v1033 = vsub.f32 %v990, %v1011
    %v1034 = vsub.f32 %v992, %v1014
    %v1035 = vsub.f32 %v995, %v1017
    %v1036 = vsub.f32 %v997, %v1020
    %v1037 = vsub.f32 %v1000, %v1023
    %v1038 = vsub.f32 %v1002, %v1026
    %v1039 = vsub.f32 %v1005, %v1029
    %v1040 = vsub.f32 %v1007, %v1032
    %v1041 = vmul.f32 %v1033, 1.442695
    %v1042 = vpow.pop %v1041
    %v1043 = vmul.f32 %v1034, 1.442695
    %v1044 = vpow.pop %v1043
    %v1045 = vmul.f32 %v1035, 1.442695
    %v1046 = vpow.pop %v1045
    %v1047 = vmul.f32 %v1036, 1.442695
    %v1048 = vpow.pop %v1047
    %v1049 = vmul.f32 %v1037, 1.442695
    %v1050 = vpow.pop %v1049
    %v1051 = vmul.f32 %v1038, 1.442695
    %v1052 = vpow.pop %v1051
    %v1053 = vmul.f32 %v1039, 1.442695
    %v1054 = vpow.pop %v1053
    %v1055 = vmul.f32 %v1040, 1.442695
    %v1056 = vpow.pop %v1055
    %v1057 = vsel %vm360, %v1042, 0.0
    %1058 = vadd.xlane.f32.xlu0 %v1057
    %v1059 = vpop.xlane.xlu0 %1058
    %v1060 = vsel %vm360, %v1044, 0.0
    %1061 = vadd.xlane.f32.xlu0 %v1060
    %v1062 = vpop.xlane.xlu0 %1061
    %v1063 = vsel %vm360, %v1046, 0.0
    %1064 = vadd.xlane.f32.xlu0 %v1063
    %v1065 = vpop.xlane.xlu0 %1064
    %v1066 = vsel %vm360, %v1048, 0.0
    %1067 = vadd.xlane.f32.xlu0 %v1066
    %v1068 = vpop.xlane.xlu0 %1067
    %v1069 = vsel %vm360, %v1050, 0.0
    %1070 = vadd.xlane.f32.xlu0 %v1069
    %v1071 = vpop.xlane.xlu0 %1070
    %v1072 = vsel %vm360, %v1052, 0.0
    %1073 = vadd.xlane.f32.xlu0 %v1072
    %v1074 = vpop.xlane.xlu0 %1073
    %v1075 = vsel %vm360, %v1054, 0.0
    %1076 = vadd.xlane.f32.xlu0 %v1075
    %v1077 = vpop.xlane.xlu0 %1076
    %v1078 = vsel %vm360, %v1056, 0.0
    %1079 = vadd.xlane.f32.xlu0 %v1078
    %v1080 = vpop.xlane.xlu0 %1079
    %v1081 = vrcp.pop %v1059
    %v1082 = vmul.f32 %v1059, %v1081
    %v1083 = vsub.f32 1.0, %v1082
    %v1084 = vmul.f32 %v1081, %v1083
    %v1085 = vadd.f32 %v1081, %v1084
    %vm1086 = vweird.f32 %v1059
    %vm1087 = vweird.f32 %v1081
    %vm1088 = vmor %vm1086, %vm1087
    %v1089 = vsel %vm1088, %v1081, %v1085
    %v1090 = vand.u32 2147483647, %v1059
    %vm1091 = vcmp.eq.f32.partialorder %v1090, 8.507059e+37
    %v1092 = vand.u32 %v1059, 2147483648
    %v1093 = vor.u32 1.1754944e-38, %v1092
    %v1094 = vsel %vm1091, %v1093, %v1089
    %v1095 = vmul.f32 %v1042, %v1094
    %v1096 = vrcp.pop %v1062
    %v1097 = vmul.f32 %v1062, %v1096
    %v1098 = vsub.f32 1.0, %v1097
    %v1099 = vmul.f32 %v1096, %v1098
    %v1100 = vadd.f32 %v1096, %v1099
    %vm1101 = vweird.f32 %v1062
    %vm1102 = vweird.f32 %v1096
    %vm1103 = vmor %vm1101, %vm1102
    %v1104 = vsel %vm1103, %v1096, %v1100
    %v1105 = vand.u32 2147483647, %v1062
    %vm1106 = vcmp.eq.f32.partialorder %v1105, 8.507059e+37
    %v1107 = vand.u32 %v1062, 2147483648
    %v1108 = vor.u32 1.1754944e-38, %v1107
    %v1109 = vsel %vm1106, %v1108, %v1104
    %v1110 = vmul.f32 %v1044, %v1109
    %v1111 = vrcp.pop %v1065
    %v1112 = vmul.f32 %v1065, %v1111
    %v1113 = vsub.f32 1.0, %v1112
    %v1114 = vmul.f32 %v1111, %v1113
    %v1115 = vadd.f32 %v1111, %v1114
    %vm1116 = vweird.f32 %v1065
    %vm1117 = vweird.f32 %v1111
    %vm1118 = vmor %vm1116, %vm1117
    %v1119 = vsel %vm1118, %v1111, %v1115
    %v1120 = vand.u32 2147483647, %v1065
    %vm1121 = vcmp.eq.f32.partialorder %v1120, 8.507059e+37
    %v1122 = vand.u32 %v1065, 2147483648
    %v1123 = vor.u32 1.1754944e-38, %v1122
    %v1124 = vsel %vm1121, %v1123, %v1119
    %v1125 = vmul.f32 %v1046, %v1124
    %v1126 = vrcp.pop %v1068
    %v1127 = vmul.f32 %v1068, %v1126
    %v1128 = vsub.f32 1.0, %v1127
    %v1129 = vmul.f32 %v1126, %v1128
    %v1130 = vadd.f32 %v1126, %v1129
    %vm1131 = vweird.f32 %v1068
    %vm1132 = vweird.f32 %v1126
    %vm1133 = vmor %vm1131, %vm1132
    %v1134 = vsel %vm1133, %v1126, %v1130
    %v1135 = vand.u32 2147483647, %v1068
    %vm1136 = vcmp.eq.f32.partialorder %v1135, 8.507059e+37
    %v1137 = vand.u32 %v1068, 2147483648
    %v1138 = vor.u32 1.1754944e-38, %v1137
    %v1139 = vsel %vm1136, %v1138, %v1134
    %v1140 = vmul.f32 %v1048, %v1139
    %v1141 = vrcp.pop %v1071
    %v1142 = vmul.f32 %v1071, %v1141
    %v1143 = vsub.f32 1.0, %v1142
    %v1144 = vmul.f32 %v1141, %v1143
    %v1145 = vadd.f32 %v1141, %v1144
    %vm1146 = vweird.f32 %v1071
    %vm1147 = vweird.f32 %v1141
    %vm1148 = vmor %vm1146, %vm1147
    %v1149 = vsel %vm1148, %v1141, %v1145
    %v1150 = vand.u32 2147483647, %v1071
    %vm1151 = vcmp.eq.f32.partialorder %v1150, 8.507059e+37
    %v1152 = vand.u32 %v1071, 2147483648
    %v1153 = vor.u32 1.1754944e-38, %v1152
    %v1154 = vsel %vm1151, %v1153, %v1149
    %v1155 = vmul.f32 %v1050, %v1154
    %v1156 = vrcp.pop %v1074
    %v1157 = vmul.f32 %v1074, %v1156
    %v1158 = vsub.f32 1.0, %v1157
    %v1159 = vmul.f32 %v1156, %v1158
    %v1160 = vadd.f32 %v1156, %v1159
    %vm1161 = vweird.f32 %v1074
    %vm1162 = vweird.f32 %v1156
    %vm1163 = vmor %vm1161, %vm1162
    %v1164 = vsel %vm1163, %v1156, %v1160
    %v1165 = vand.u32 2147483647, %v1074
    %vm1166 = vcmp.eq.f32.partialorder %v1165, 8.507059e+37
    %v1167 = vand.u32 %v1074, 2147483648
    %v1168 = vor.u32 1.1754944e-38, %v1167
    %v1169 = vsel %vm1166, %v1168, %v1164
    %v1170 = vmul.f32 %v1052, %v1169
    %v1171 = vrcp.pop %v1077
    %v1172 = vmul.f32 %v1077, %v1171
    %v1173 = vsub.f32 1.0, %v1172
    %v1174 = vmul.f32 %v1171, %v1173
    %v1175 = vadd.f32 %v1171, %v1174
    %vm1176 = vweird.f32 %v1077
    %vm1177 = vweird.f32 %v1171
    %vm1178 = vmor %vm1176, %vm1177
    %v1179 = vsel %vm1178, %v1171, %v1175
    %v1180 = vand.u32 2147483647, %v1077
    %vm1181 = vcmp.eq.f32.partialorder %v1180, 8.507059e+37
    %v1182 = vand.u32 %v1077, 2147483648
    %v1183 = vor.u32 1.1754944e-38, %v1182
    %v1184 = vsel %vm1181, %v1183, %v1179
    %v1185 = vmul.f32 %v1054, %v1184
    %v1186 = vrcp.pop %v1080
    %v1187 = vmul.f32 %v1080, %v1186
    %v1188 = vsub.f32 1.0, %v1187
    %v1189 = vmul.f32 %v1186, %v1188
    %v1190 = vadd.f32 %v1186, %v1189
    %vm1191 = vweird.f32 %v1080
    %vm1192 = vweird.f32 %v1186
    %vm1193 = vmor %vm1191, %vm1192
    %v1194 = vsel %vm1193, %v1186, %v1190
    %v1195 = vand.u32 2147483647, %v1080
    %vm1196 = vcmp.eq.f32.partialorder %v1195, 8.507059e+37
    %v1197 = vand.u32 %v1080, 2147483648
    %v1198 = vor.u32 1.1754944e-38, %v1197
    %v1199 = vsel %vm1196, %v1198, %v1194
    %v1200 = vmul.f32 %v1056, %v1199
    %v1201 = vpack.c.bf16 %v1110, %v1095
    %v1202 = vpack.c.bf16 %v1140, %v1125
    %v1203 = vpack.c.bf16 %v1170, %v1155
    %v1204 = vpack.c.bf16 %v1200, %v1185
    %v1206 = vsel %vm360, %v1201, 0
    %v1209 = vsel %vm360, %v1202, 0
    %v1212 = vsel %vm360, %v1203, 0
    %v1215 = vsel %vm360, %v1204, 0
    %1217 = vmatpush.bf16.msra.mxu0 0
    %1218 = vmatpush.bf16.msra.mxu0 0
    %1219 = vmatpush.bf16.msra.mxu0 0
    %1220 = vmatpush.bf16.msra.mxu0 0
    %1221 = vmatpush.bf16.msra.mxu0 0
    %1222 = vmatpush.bf16.msra.mxu0 0
    %1223 = vmatpush.bf16.msra.mxu0 0
    %1224 = vmatpush.bf16.msra.mxu0 %v949
    %1225 = vmatmul.bf16.gmra.mxu0 %v1206
    %v1226 = vpop.f32.mrf.mxu0
    %v1227 = vadd.f32 0.0, %v1226
    %v1228 = vpop.f32.mrf.mxu0
    %v1229 = vadd.f32 0.0, %v1228
    %1230 = vmatmul.bf16.gmra.mxu0 %v1209
    %v1231 = vpop.f32.mrf.mxu0
    %v1232 = vadd.f32 0.0, %v1231
    %v1233 = vpop.f32.mrf.mxu0
    %v1234 = vadd.f32 0.0, %v1233
    %1235 = vmatmul.bf16.gmra.mxu0 %v1212
    %v1236 = vpop.f32.mrf.mxu0
    %v1237 = vadd.f32 0.0, %v1236
    %v1238 = vpop.f32.mrf.mxu0
    %v1239 = vadd.f32 0.0, %v1238
    %1240 = vmatmul.bf16.gmra.mxu0 %v1215
    %v1241 = vpop.f32.mrf.mxu0
    %v1242 = vadd.f32 0.0, %v1241
    %v1243 = vpop.f32.mrf.mxu0
    %v1244 = vadd.f32 0.0, %v1243
    %1245 = vdwg.mxu0
    %v1246 = vmul.f32 %v1227, %v297
    %v1247 = vmul.f32 %v1229, %v297
    %v1248 = vmul.f32 %v1232, %v300
    %v1249 = vmul.f32 %v1234, %v300
    %v1250 = vadd.f32 %v1246, %v1248
    %v1251 = vadd.f32 %v1247, %v1249
    %v1252 = vmul.f32 %v1237, %v303
    %v1253 = vmul.f32 %v1239, %v303
    %v1254 = vadd.f32 %v1250, %v1252
    %v1255 = vadd.f32 %v1251, %v1253
    %v1256 = vmul.f32 %v1242, %v306
    %v1257 = vmul.f32 %v1244, %v306
    %v1258 = vadd.f32 %v1254, %v1256
    %v1259 = vadd.f32 %v1255, %v1257
    %v1260 = vpack.c.bf16 %v1259, %v1258
    %s1261 = scalar_lea.vmem %s8, 16
    %v1262 = vld [vmem:[%s1261] sm:$0xf]
    %v1263 = vld [vmem:[%s1261 + $0x4] sm:$0xf]
    %v1264 = vld [vmem:[%s1261 + $0x8] sm:$0xf]
    %v1265 = vld [vmem:[%s1261 + $0xc] sm:$0xf]
    %v1270 = vunpack.c.l.b16 %v1262
    %v1271 = vunpack.c.l.b16 %v1263
    %v1272 = vunpack.c.l.b16 %v1264
    %v1273 = vunpack.c.l.b16 %v1265
    %v1274 = vpack.c.b16 %v1271, %v1270
    %v1275 = vpack.c.b16 %v1273, %v1272
    %v1279 = vsel %vm145, %v1260, 0
    %1281 = vmatpush.bf16.msra.mxu0 0
    %1282 = vmatpush.bf16.msra.mxu0 0
    %1283 = vmatpush.bf16.msra.mxu0 0
    %1284 = vmatpush.bf16.msra.mxu0 0
    %1285 = vmatpush.bf16.msra.mxu0 0
    %1286 = vmatpush.bf16.msra.mxu0 0
    %1287 = vmatpush.bf16.msra.mxu0 %v1275
    %1288 = vmatpush.bf16.msra.mxu0 %v1274
    %1289 = vmatmul.bf16.gmra.mxu0 %v1279
    %v1290 = vpop.f32.mrf.mxu0
    %v1291 = vadd.f32 0.0, %v1290
    %v1292 = vpop.f32.mrf.mxu0
    %v1293 = vadd.f32 0.0, %v1292
    %1294 = vdwg.mxu0
    %v1295 = vadd.f32 %v821, %v1291
    %v1296 = vadd.f32 %v822, %v1293
    %s1297 = scalar_lea.vmem %s9, 1
    %v1298 = vld [vmem:[%s1297] sm:$0x1]
    %v1299 = vmul.f32 %v1295, %v1295
    %v1300 = vmul.f32 %v1296, %v1296
    %v1301 = vsel %vm145, %v1299, 0.0
    %1302 = vadd.xlane.f32.xlu0 %v1301
    %v1303 = vpop.xlane.xlu0 %1302
    %v1304 = vsel %vm145, %v1300, 0.0
    %1305 = vadd.xlane.f32.xlu0 %v1304
    %v1306 = vpop.xlane.xlu0 %1305
    %v1307 = vmul.f32 %v1303, %v158
    %v1308 = vmul.f32 %v1306, %v158
    %v1309 = vadd.f32 %v1307, 1e-06
    %v1310 = vadd.f32 %v1308, 1e-06
    %v1311 = vrsqrt.pop %v1309
    %v1312 = vmul.f32 %v1311, %v1309
    %v1313 = vmul.f32 %v1312, %v1311
    %v1314 = vmul.f32 0.5, %v1313
    %v1315 = vsub.f32 1.5, %v1314
    %v1316 = vmul.f32 %v1311, %v1315
    %vm1317 = vweird.f32 %v1309
    %vm1318 = vweird.f32 %v1311
    %vm1319 = vmor %vm1317, %vm1318
    %v1320 = vsel %vm1319, %v1311, %v1316
    %v1321 = vrsqrt.pop %v1310
    %v1322 = vmul.f32 %v1321, %v1310
    %v1323 = vmul.f32 %v1322, %v1321
    %v1324 = vmul.f32 0.5, %v1323
    %v1325 = vsub.f32 1.5, %v1324
    %v1326 = vmul.f32 %v1321, %v1325
    %vm1327 = vweird.f32 %v1310
    %vm1328 = vweird.f32 %v1321
    %vm1329 = vmor %vm1327, %vm1328
    %v1330 = vsel %vm1329, %v1321, %v1326
    %v1331 = vmul.f32 %v1295, %v1320
    %v1332 = vmul.f32 %v1296, %v1330
    %v1333 = vunpack.c.l.bf16 %v1298
    %v1334 = vperm.slane %v1333, 0
    %v1335 = vmul.f32 %v1331, %v1334
    %v1336 = vmul.f32 %v1332, %v1334
    %v1337 = vpack.c.bf16 %v1336, %v1335
    %s1338 = scalar_lea.vmem [#allocation2], 16
    %v1339 = vld [vmem:[%s1338] sm:$0xf]
    %v1340 = vld [vmem:[%s1338 + $0x4] sm:$0xf]
    %v1341 = vld [vmem:[%s1338 + $0x8] sm:$0xf]
    %v1342 = vld [vmem:[%s1338 + $0xc] sm:$0xf]
    %v1347 = vunpack.c.l.b16 %v1339
    %v1348 = vunpack.c.l.b16 %v1340
    %v1349 = vunpack.c.l.b16 %v1341
    %v1350 = vunpack.c.l.b16 %v1342
    %v1351 = vpack.c.b16 %v1348, %v1347
    %v1352 = vpack.c.b16 %v1350, %v1349
    %v1356 = vsel %vm145, %v1337, 0
    %1358 = vmatpush.bf16.msra.mxu0 0
    %1359 = vmatpush.bf16.msra.mxu0 0
    %1360 = vmatpush.bf16.msra.mxu0 0
    %1361 = vmatpush.bf16.msra.mxu0 0
    %1362 = vmatpush.bf16.msra.mxu0 0
    %1363 = vmatpush.bf16.msra.mxu0 0
    %1364 = vmatpush.bf16.msra.mxu0 %v1352
    %1365 = vmatpush.bf16.msra.mxu0 %v1351
    %1366 = vmatmul.bf16.gmra.mxu0 %v1356
    %v1367 = vpop.f32.mrf.mxu0
    %v1368 = vadd.f32 0.0, %v1367
    %v1369 = vpop.f32.mrf.mxu0
    %v1370 = vadd.f32 0.0, %v1369
    %1371 = vdwg.mxu0
    %v1372 = vxor.u32 %v1368, 2147483648
    %v1373 = vxor.u32 %v1370, 2147483648
    %v1374 = vmul.f32 %v1372, 1.442695
    %v1375 = vpow.pop %v1374
    %v1376 = vmul.f32 %v1373, 1.442695
    %v1377 = vpow.pop %v1376
    %v1378 = vadd.f32 %v1375, 1.0
    %v1379 = vadd.f32 %v1377, 1.0
    %v1380 = vrcp.pop %v1378
    %v1381 = vmul.f32 %v1378, %v1380
    %v1382 = vsub.f32 1.0, %v1381
    %v1383 = vmul.f32 %v1380, %v1382
    %v1384 = vadd.f32 %v1380, %v1383
    %vm1385 = vweird.f32 %v1378
    %vm1386 = vweird.f32 %v1380
    %vm1387 = vmor %vm1385, %vm1386
    %v1388 = vsel %vm1387, %v1380, %v1384
    %v1389 = vand.u32 2147483647, %v1378
    %vm1390 = vcmp.eq.f32.partialorder %v1389, 8.507059e+37
    %v1391 = vand.u32 %v1378, 2147483648
    %v1392 = vor.u32 1.1754944e-38, %v1391
    %v1393 = vsel %vm1390, %v1392, %v1388
    %v1394 = vmul.f32 1.0, %v1393
    %v1395 = vrcp.pop %v1379
    %v1396 = vmul.f32 %v1379, %v1395
    %v1397 = vsub.f32 1.0, %v1396
    %v1398 = vmul.f32 %v1395, %v1397
    %v1399 = vadd.f32 %v1395, %v1398
    %vm1400 = vweird.f32 %v1379
    %vm1401 = vweird.f32 %v1395
    %vm1402 = vmor %vm1400, %vm1401
    %v1403 = vsel %vm1402, %v1395, %v1399
    %v1404 = vand.u32 2147483647, %v1379
    %vm1405 = vcmp.eq.f32.partialorder %v1404, 8.507059e+37
    %v1406 = vand.u32 %v1379, 2147483648
    %v1407 = vor.u32 1.1754944e-38, %v1406
    %v1408 = vsel %vm1405, %v1407, %v1403
    %v1409 = vmul.f32 1.0, %v1408
    %v1410 = vmul.f32 %v1368, %v1394
    %v1411 = vmul.f32 %v1370, %v1409
    %1414 = vrot.lane.b32.xlu0 %v1368, 64
    %v1415 = vpop.permute.xlu0 %1414
    %1416 = vrot.lane.b32.xlu0 %v1370, 64
    %v1417 = vpop.permute.xlu0 %1416
    %v1420 = vmul.f32 %v1410, %v1415
    %v1421 = vmul.f32 %v1411, %v1417
    %v1422 = vpack.c.bf16 %v1421, %v1420
    %s1423 = scalar_lea.vmem %s11, 32
    %v1424 = vld [vmem:[%s1423] sm:$0xf]
    %v1425 = vld [vmem:[%s1423 + $0x4] sm:$0xf]
    %v1426 = vld [vmem:[%s1423 + $0x8] sm:$0xf]
    %v1427 = vld [vmem:[%s1423 + $0xc] sm:$0xf]
    %v1428 = vld [vmem:[%s1423 + $0x10] sm:$0xf]
    %v1429 = vld [vmem:[%s1423 + $0x14] sm:$0xf]
    %v1430 = vld [vmem:[%s1423 + $0x18] sm:$0xf]
    %v1431 = vld [vmem:[%s1423 + $0x1c] sm:$0xf]
    %v1440 = vunpack.c.l.b16 %v1424
    %v1441 = vunpack.c.l.b16 %v1425
    %v1442 = vunpack.c.l.b16 %v1426
    %v1443 = vunpack.c.l.b16 %v1427
    %v1444 = vunpack.c.l.b16 %v1428
    %v1445 = vunpack.c.l.b16 %v1429
    %v1446 = vunpack.c.l.b16 %v1430
    %v1447 = vunpack.c.l.b16 %v1431
    %v1448 = vpack.c.b16 %v1441, %v1440
    %v1449 = vpack.c.b16 %v1443, %v1442
    %v1450 = vpack.c.b16 %v1445, %v1444
    %v1451 = vpack.c.b16 %v1447, %v1446
    %v1457 = vsel %vm111, %v1422, 0
    %1459 = vmatpush.bf16.msra.mxu0 0
    %1460 = vmatpush.bf16.msra.mxu0 0
    %1461 = vmatpush.bf16.msra.mxu0 0
    %1462 = vmatpush.bf16.msra.mxu0 0
    %1463 = vmatpush.bf16.msra.mxu0 %v1451
    %1464 = vmatpush.bf16.msra.mxu0 %v1450
    %1465 = vmatpush.bf16.msra.mxu0 %v1449
    %1466 = vmatpush.bf16.msra.mxu0 %v1448
    %1467 = vmatmul.bf16.gmra.mxu0 %v1457
    %v1468 = vpop.f32.mrf.mxu0
    %v1469 = vadd.f32 0.0, %v1468
    %v1470 = vpop.f32.mrf.mxu0
    %v1471 = vadd.f32 0.0, %v1470
    %1472 = vdwg.mxu0
    %v1473 = vadd.f32 %v1295, %v1469
    %v1474 = vadd.f32 %v1296, %v1471
    %s1475 = scalar_lea.vmem %s6, 2
    %v1476 = vld [vmem:[%s1475] sm:$0x1]
    %v1477 = vmul.f32 %v1473, %v1473
    %v1478 = vmul.f32 %v1474, %v1474
    %v1479 = vsel %vm145, %v1477, 0.0
    %1480 = vadd.xlane.f32.xlu0 %v1479
    %v1481 = vpop.xlane.xlu0 %1480
    %v1482 = vsel %vm145, %v1478, 0.0
    %1483 = vadd.xlane.f32.xlu0 %v1482
    %v1484 = vpop.xlane.xlu0 %1483
    %v1485 = vmul.f32 %v1481, %v158
    %v1486 = vmul.f32 %v1484, %v158
    %v1487 = vadd.f32 %v1485, 1e-06
    %v1488 = vadd.f32 %v1486, 1e-06
    %v1489 = vrsqrt.pop %v1487
    %v1490 = vmul.f32 %v1489, %v1487
    %v1491 = vmul.f32 %v1490, %v1489
    %v1492 = vmul.f32 0.5, %v1491
    %v1493 = vsub.f32 1.5, %v1492
    %v1494 = vmul.f32 %v1489, %v1493
    %vm1495 = vweird.f32 %v1487
    %vm1496 = vweird.f32 %v1489
    %vm1497 = vmor %vm1495, %vm1496
    %v1498 = vsel %vm1497, %v1489, %v1494
    %v1499 = vrsqrt.pop %v1488
    %v1500 = vmul.f32 %v1499, %v1488
    %v1501 = vmul.f32 %v1500, %v1499
    %v1502 = vmul.f32 0.5, %v1501
    %v1503 = vsub.f32 1.5, %v1502
    %v1504 = vmul.f32 %v1499, %v1503
    %vm1505 = vweird.f32 %v1488
    %vm1506 = vweird.f32 %v1499
    %vm1507 = vmor %vm1505, %vm1506
    %v1508 = vsel %vm1507, %v1499, %v1504
    %v1509 = vmul.f32 %v1473, %v1498
    %v1510 = vmul.f32 %v1474, %v1508
    %v1511 = vunpack.c.l.bf16 %v1476
    %v1512 = vperm.slane %v1511, 0
    %v1513 = vmul.f32 %v1509, %v1512
    %v1514 = vmul.f32 %v1510, %v1512
    %v1515 = vpack.c.bf16 %v1514, %v1513
    %s1516 = scalar_lea.vmem %s7, 64
    %v1517 = vld [vmem:[%s1516] sm:$0xff]
    %v1518 = vld [vmem:[%s1516 + $0x8] sm:$0xff]
    %v1519 = vld [vmem:[%s1516 + $0x10] sm:$0xff]
    %v1520 = vld [vmem:[%s1516 + $0x18] sm:$0xff]
    %v1525 = vunpack.c.l.b16 %v1517
    %v1526 = vunpack.c.h.b16 %v1517
    %v1527 = vunpack.c.l.b16 %v1518
    %v1528 = vunpack.c.h.b16 %v1518
    %v1529 = vunpack.c.l.b16 %v1519
    %v1530 = vunpack.c.h.b16 %v1519
    %v1531 = vunpack.c.l.b16 %v1520
    %v1532 = vunpack.c.h.b16 %v1520
    %v1533 = vpack.c.b16 %v1527, %v1525
    %v1534 = vpack.c.b16 %v1528, %v1526
    %v1535 = vpack.c.b16 %v1531, %v1529
    %v1536 = vpack.c.b16 %v1532, %v1530
    %v1542 = vsel %vm145, %v1515, 0
    %1544 = vmatpush.bf16.msra.mxu0 0
    %1545 = vmatpush.bf16.msra.mxu0 0
    %1546 = vmatpush.bf16.msra.mxu0 0
    %1547 = vmatpush.bf16.msra.mxu0 0
    %1548 = vmatpush.bf16.msra.mxu0 0
    %1549 = vmatpush.bf16.msra.mxu0 0
    %1550 = vmatpush.bf16.msra.mxu0 %v1535
    %1551 = vmatpush.bf16.msra.mxu0 %v1533
    %1552 = vmatmul.bf16.gmra.mxu0 %v1542
    %v1553 = vpop.f32.mrf.mxu0
    %v1554 = vadd.f32 0.0, %v1553
    %v1555 = vpop.f32.mrf.mxu0
    %v1556 = vadd.f32 0.0, %v1555
    %1557 = vdwg.mxu0
    %1558 = vmatpush.bf16.msra.mxu0 0
    %1559 = vmatpush.bf16.msra.mxu0 0
    %1560 = vmatpush.bf16.msra.mxu0 0
    %1561 = vmatpush.bf16.msra.mxu0 0
    %1562 = vmatpush.bf16.msra.mxu0 0
    %1563 = vmatpush.bf16.msra.mxu0 0
    %1564 = vmatpush.bf16.msra.mxu0 %v1536
    %1565 = vmatpush.bf16.msra.mxu0 %v1534
    %1566 = vmatmul.bf16.gmra.mxu0 %v1542
    %v1567 = vpop.f32.mrf.mxu0
    %v1568 = vadd.f32 0.0, %v1567
    %v1569 = vpop.f32.mrf.mxu0
    %v1570 = vadd.f32 0.0, %v1569
    %1571 = vdwg.mxu0
    %v1572 = vmul.f32 %v1554, %v129
    %v1573 = vmul.f32 %v1556, %v130
    %v1574 = vmul.f32 %v1554, %v250
    %v1575 = vmul.f32 %v1556, %v252
    %1578 = vrot.lane.b32.xlu0 %v1574, 96
    %v1579 = vpop.permute.xlu0 %1578
    %1580 = vrot.lane.b32.xlu0 %v1575, 96
    %v1581 = vpop.permute.xlu0 %1580
    %v1584 = vadd.f32 %v1572, %v1579
    %v1585 = vadd.f32 %v1573, %v1581
    %v1586 = vmul.f32 %v1554, %v270
    %v1587 = vmul.f32 %v1556, %v272
    %v1588 = vmul.f32 %v1554, %v278
    %v1589 = vmul.f32 %v1556, %v280
    %1592 = vrot.lane.b32.xlu0 %v1588, 96
    %v1593 = vpop.permute.xlu0 %1592
    %1594 = vrot.lane.b32.xlu0 %v1589, 96
    %v1595 = vpop.permute.xlu0 %1594
    %v1598 = vadd.f32 %v1586, %v1593
    %v1599 = vadd.f32 %v1587, %v1595
    %v1600 = vpack.c.bf16 %v1599, %v1598
    %v1601 = vpack.c.bf16 %v1570, %v1568
    %v1602 = vmul.f32 %v1584, %v297
    %v1603 = vmul.f32 %v1585, %v297
    %v1604 = vmul.f32 %v1584, %v300
    %v1605 = vmul.f32 %v1585, %v300
    %v1606 = vmul.f32 %v1584, %v303
    %v1607 = vmul.f32 %v1585, %v303
    %v1608 = vmul.f32 %v1584, %v306
    %v1609 = vmul.f32 %v1585, %v306
    %v1610 = vpack.c.bf16 %v1603, %v1602
    %v1611 = vpack.c.bf16 %v1605, %v1604
    %v1612 = vpack.c.bf16 %v1607, %v1606
    %v1613 = vpack.c.bf16 %v1609, %v1608
    %1615 = vrot.lane.b32.xlu0 %v1600, 64
    %v1616 = vpop.permute.xlu0 %1615
    %v1618 = vsel %vm145, %v1610, 0
    %v1621 = vsel %vm145, %v1611, 0
    %v1624 = vsel %vm145, %v1612, 0
    %v1627 = vsel %vm145, %v1613, 0
    %v1630 = vsel %vm145, %v1616, 0
    %1632 = vmatpush.bf16.xpose.msra.mxu0 0
    %1633 = vmatpush.bf16.xpose.msra.mxu0 0
    %1634 = vmatpush.bf16.xpose.msra.mxu0 0
    %1635 = vmatpush.bf16.xpose.msra.mxu0 0
    %1636 = vmatpush.bf16.xpose.msra.mxu0 0
    %1637 = vmatpush.bf16.xpose.msra.mxu0 0
    %1638 = vmatpush.bf16.xpose.msra.mxu0 0
    %1639 = vmatpush.bf16.xpose.msra.mxu0 %v1630
    %1640 = vmatmul.bf16.gmra.mxu0 %v1618
    %v1641 = vpop.f32.mrf.mxu0
    %v1642 = vadd.f32 %v134, %v1641
    %v1643 = vpop.f32.mrf.mxu0
    %v1644 = vadd.f32 %v135, %v1643
    %1645 = vmatmul.bf16.gmra.mxu0 %v1621
    %v1646 = vpop.f32.mrf.mxu0
    %v1647 = vadd.f32 %v136, %v1646
    %v1648 = vpop.f32.mrf.mxu0
    %v1649 = vadd.f32 %v137, %v1648
    %1650 = vmatmul.bf16.gmra.mxu0 %v1624
    %v1651 = vpop.f32.mrf.mxu0
    %v1652 = vadd.f32 %v138, %v1651
    %v1653 = vpop.f32.mrf.mxu0
    %v1654 = vadd.f32 %v139, %v1653
    %1655 = vmatmul.bf16.gmra.mxu0 %v1627
    %v1656 = vpop.f32.mrf.mxu0
    %v1657 = vadd.f32 %v140, %v1656
    %v1658 = vpop.f32.mrf.mxu0
    %v1659 = vadd.f32 %v141, %v1658
    %1660 = vdwg.mxu0
    %v1661 = vsel %vm360, %v1642, -inf
    %1662 = vmax.xlane.f32.xlu0 %v1661
    %v1663 = vpop.xlane.xlu0 %1662
    %v1664 = vsel %vm360, %v1644, -inf
    %1665 = vmax.xlane.f32.xlu0 %v1664
    %v1666 = vpop.xlane.xlu0 %1665
    %v1667 = vsel %vm360, %v1647, -inf
    %1668 = vmax.xlane.f32.xlu0 %v1667
    %v1669 = vpop.xlane.xlu0 %1668
    %v1670 = vsel %vm360, %v1649, -inf
    %1671 = vmax.xlane.f32.xlu0 %v1670
    %v1672 = vpop.xlane.xlu0 %1671
    %v1673 = vsel %vm360, %v1652, -inf
    %1674 = vmax.xlane.f32.xlu0 %v1673
    %v1675 = vpop.xlane.xlu0 %1674
    %v1676 = vsel %vm360, %v1654, -inf
    %1677 = vmax.xlane.f32.xlu0 %v1676
    %v1678 = vpop.xlane.xlu0 %1677
    %v1679 = vsel %vm360, %v1657, -inf
    %1680 = vmax.xlane.f32.xlu0 %v1679
    %v1681 = vpop.xlane.xlu0 %1680
    %v1682 = vsel %vm360, %v1659, -inf
    %1683 = vmax.xlane.f32.xlu0 %v1682
    %v1684 = vpop.xlane.xlu0 %1683
    %v1685 = vsub.f32 %v1642, %v1663
    %v1686 = vsub.f32 %v1644, %v1666
    %v1687 = vsub.f32 %v1647, %v1669
    %v1688 = vsub.f32 %v1649, %v1672
    %v1689 = vsub.f32 %v1652, %v1675
    %v1690 = vsub.f32 %v1654, %v1678
    %v1691 = vsub.f32 %v1657, %v1681
    %v1692 = vsub.f32 %v1659, %v1684
    %v1693 = vmul.f32 %v1685, 1.442695
    %v1694 = vpow.pop %v1693
    %v1695 = vmul.f32 %v1686, 1.442695
    %v1696 = vpow.pop %v1695
    %v1697 = vmul.f32 %v1687, 1.442695
    %v1698 = vpow.pop %v1697
    %v1699 = vmul.f32 %v1688, 1.442695
    %v1700 = vpow.pop %v1699
    %v1701 = vmul.f32 %v1689, 1.442695
    %v1702 = vpow.pop %v1701
    %v1703 = vmul.f32 %v1690, 1.442695
    %v1704 = vpow.pop %v1703
    %v1705 = vmul.f32 %v1691, 1.442695
    %v1706 = vpow.pop %v1705
    %v1707 = vmul.f32 %v1692, 1.442695
    %v1708 = vpow.pop %v1707
    %v1709 = vsel %vm360, %v1694, 0.0
    %1710 = vadd.xlane.f32.xlu0 %v1709
    %v1711 = vpop.xlane.xlu0 %1710
    %v1712 = vsel %vm360, %v1696, 0.0
    %1713 = vadd.xlane.f32.xlu0 %v1712
    %v1714 = vpop.xlane.xlu0 %1713
    %v1715 = vsel %vm360, %v1698, 0.0
    %1716 = vadd.xlane.f32.xlu0 %v1715
    %v1717 = vpop.xlane.xlu0 %1716
    %v1718 = vsel %vm360, %v1700, 0.0
    %1719 = vadd.xlane.f32.xlu0 %v1718
    %v1720 = vpop.xlane.xlu0 %1719
    %v1721 = vsel %vm360, %v1702, 0.0
    %1722 = vadd.xlane.f32.xlu0 %v1721
    %v1723 = vpop.xlane.xlu0 %1722
    %v1724 = vsel %vm360, %v1704, 0.0
    %1725 = vadd.xlane.f32.xlu0 %v1724
    %v1726 = vpop.xlane.xlu0 %1725
    %v1727 = vsel %vm360, %v1706, 0.0
    %1728 = vadd.xlane.f32.xlu0 %v1727
    %v1729 = vpop.xlane.xlu0 %1728
    %v1730 = vsel %vm360, %v1708, 0.0
    %1731 = vadd.xlane.f32.xlu0 %v1730
    %v1732 = vpop.xlane.xlu0 %1731
    %v1733 = vrcp.pop %v1711
    %v1734 = vmul.f32 %v1711, %v1733
    %v1735 = vsub.f32 1.0, %v1734
    %v1736 = vmul.f32 %v1733, %v1735
    %v1737 = vadd.f32 %v1733, %v1736
    %vm1738 = vweird.f32 %v1711
    %vm1739 = vweird.f32 %v1733
    %vm1740 = vmor %vm1738, %vm1739
    %v1741 = vsel %vm1740, %v1733, %v1737
    %v1742 = vand.u32 2147483647, %v1711
    %vm1743 = vcmp.eq.f32.partialorder %v1742, 8.507059e+37
    %v1744 = vand.u32 %v1711, 2147483648
    %v1745 = vor.u32 1.1754944e-38, %v1744
    %v1746 = vsel %vm1743, %v1745, %v1741
    %v1747 = vmul.f32 %v1694, %v1746
    %v1748 = vrcp.pop %v1714
    %v1749 = vmul.f32 %v1714, %v1748
    %v1750 = vsub.f32 1.0, %v1749
    %v1751 = vmul.f32 %v1748, %v1750
    %v1752 = vadd.f32 %v1748, %v1751
    %vm1753 = vweird.f32 %v1714
    %vm1754 = vweird.f32 %v1748
    %vm1755 = vmor %vm1753, %vm1754
    %v1756 = vsel %vm1755, %v1748, %v1752
    %v1757 = vand.u32 2147483647, %v1714
    %vm1758 = vcmp.eq.f32.partialorder %v1757, 8.507059e+37
    %v1759 = vand.u32 %v1714, 2147483648
    %v1760 = vor.u32 1.1754944e-38, %v1759
    %v1761 = vsel %vm1758, %v1760, %v1756
    %v1762 = vmul.f32 %v1696, %v1761
    %v1763 = vrcp.pop %v1717
    %v1764 = vmul.f32 %v1717, %v1763
    %v1765 = vsub.f32 1.0, %v1764
    %v1766 = vmul.f32 %v1763, %v1765
    %v1767 = vadd.f32 %v1763, %v1766
    %vm1768 = vweird.f32 %v1717
    %vm1769 = vweird.f32 %v1763
    %vm1770 = vmor %vm1768, %vm1769
    %v1771 = vsel %vm1770, %v1763, %v1767
    %v1772 = vand.u32 2147483647, %v1717
    %vm1773 = vcmp.eq.f32.partialorder %v1772, 8.507059e+37
    %v1774 = vand.u32 %v1717, 2147483648
    %v1775 = vor.u32 1.1754944e-38, %v1774
    %v1776 = vsel %vm1773, %v1775, %v1771
    %v1777 = vmul.f32 %v1698, %v1776
    %v1778 = vrcp.pop %v1720
    %v1779 = vmul.f32 %v1720, %v1778
    %v1780 = vsub.f32 1.0, %v1779
    %v1781 = vmul.f32 %v1778, %v1780
    %v1782 = vadd.f32 %v1778, %v1781
    %vm1783 = vweird.f32 %v1720
    %vm1784 = vweird.f32 %v1778
    %vm1785 = vmor %vm1783, %vm1784
    %v1786 = vsel %vm1785, %v1778, %v1782
    %v1787 = vand.u32 2147483647, %v1720
    %vm1788 = vcmp.eq.f32.partialorder %v1787, 8.507059e+37
    %v1789 = vand.u32 %v1720, 2147483648
    %v1790 = vor.u32 1.1754944e-38, %v1789
    %v1791 = vsel %vm1788, %v1790, %v1786
    %v1792 = vmul.f32 %v1700, %v1791
    %v1793 = vrcp.pop %v1723
    %v1794 = vmul.f32 %v1723, %v1793
    %v1795 = vsub.f32 1.0, %v1794
    %v1796 = vmul.f32 %v1793, %v1795
    %v1797 = vadd.f32 %v1793, %v1796
    %vm1798 = vweird.f32 %v1723
    %vm1799 = vweird.f32 %v1793
    %vm1800 = vmor %vm1798, %vm1799
    %v1801 = vsel %vm1800, %v1793, %v1797
    %v1802 = vand.u32 2147483647, %v1723
    %vm1803 = vcmp.eq.f32.partialorder %v1802, 8.507059e+37
    %v1804 = vand.u32 %v1723, 2147483648
    %v1805 = vor.u32 1.1754944e-38, %v1804
    %v1806 = vsel %vm1803, %v1805, %v1801
    %v1807 = vmul.f32 %v1702, %v1806
    %v1808 = vrcp.pop %v1726
    %v1809 = vmul.f32 %v1726, %v1808
    %v1810 = vsub.f32 1.0, %v1809
    %v1811 = vmul.f32 %v1808, %v1810
    %v1812 = vadd.f32 %v1808, %v1811
    %vm1813 = vweird.f32 %v1726
    %vm1814 = vweird.f32 %v1808
    %vm1815 = vmor %vm1813, %vm1814
    %v1816 = vsel %vm1815, %v1808, %v1812
    %v1817 = vand.u32 2147483647, %v1726
    %vm1818 = vcmp.eq.f32.partialorder %v1817, 8.507059e+37
    %v1819 = vand.u32 %v1726, 2147483648
    %v1820 = vor.u32 1.1754944e-38, %v1819
    %v1821 = vsel %vm1818, %v1820, %v1816
    %v1822 = vmul.f32 %v1704, %v1821
    %v1823 = vrcp.pop %v1729
    %v1824 = vmul.f32 %v1729, %v1823
    %v1825 = vsub.f32 1.0, %v1824
    %v1826 = vmul.f32 %v1823, %v1825
    %v1827 = vadd.f32 %v1823, %v1826
    %vm1828 = vweird.f32 %v1729
    %vm1829 = vweird.f32 %v1823
    %vm1830 = vmor %vm1828, %vm1829
    %v1831 = vsel %vm1830, %v1823, %v1827
    %v1832 = vand.u32 2147483647, %v1729
    %vm1833 = vcmp.eq.f32.partialorder %v1832, 8.507059e+37
    %v1834 = vand.u32 %v1729, 2147483648
    %v1835 = vor.u32 1.1754944e-38, %v1834
    %v1836 = vsel %vm1833, %v1835, %v1831
    %v1837 = vmul.f32 %v1706, %v1836
    %v1838 = vrcp.pop %v1732
    %v1839 = vmul.f32 %v1732, %v1838
    %v1840 = vsub.f32 1.0, %v1839
    %v1841 = vmul.f32 %v1838, %v1840
    %v1842 = vadd.f32 %v1838, %v1841
    %vm1843 = vweird.f32 %v1732
    %vm1844 = vweird.f32 %v1838
    %vm1845 = vmor %vm1843, %vm1844
    %v1846 = vsel %vm1845, %v1838, %v1842
    %v1847 = vand.u32 2147483647, %v1732
    %vm1848 = vcmp.eq.f32.partialorder %v1847, 8.507059e+37
    %v1849 = vand.u32 %v1732, 2147483648
    %v1850 = vor.u32 1.1754944e-38, %v1849
    %v1851 = vsel %vm1848, %v1850, %v1846
    %v1852 = vmul.f32 %v1708, %v1851
    %v1853 = vpack.c.bf16 %v1762, %v1747
    %v1854 = vpack.c.bf16 %v1792, %v1777
    %v1855 = vpack.c.bf16 %v1822, %v1807
    %v1856 = vpack.c.bf16 %v1852, %v1837
    %v1858 = vsel %vm360, %v1853, 0
    %v1861 = vsel %vm360, %v1854, 0
    %v1864 = vsel %vm360, %v1855, 0
    %v1867 = vsel %vm360, %v1856, 0
    %1869 = vmatpush.bf16.msra.mxu0 0
    %1870 = vmatpush.bf16.msra.mxu0 0
    %1871 = vmatpush.bf16.msra.mxu0 0
    %1872 = vmatpush.bf16.msra.mxu0 0
    %1873 = vmatpush.bf16.msra.mxu0 0
    %1874 = vmatpush.bf16.msra.mxu0 0
    %1875 = vmatpush.bf16.msra.mxu0 0
    %1876 = vmatpush.bf16.msra.mxu0 %v1601
    %1877 = vmatmul.bf16.gmra.mxu0 %v1858
    %v1878 = vpop.f32.mrf.mxu0
    %v1879 = vadd.f32 0.0, %v1878
    %v1880 = vpop.f32.mrf.mxu0
    %v1881 = vadd.f32 0.0, %v1880
    %1882 = vmatmul.bf16.gmra.mxu0 %v1861
    %v1883 = vpop.f32.mrf.mxu0
    %v1884 = vadd.f32 0.0, %v1883
    %v1885 = vpop.f32.mrf.mxu0
    %v1886 = vadd.f32 0.0, %v1885
    %1887 = vmatmul.bf16.gmra.mxu0 %v1864
    %v1888 = vpop.f32.mrf.mxu0
    %v1889 = vadd.f32 0.0, %v1888
    %v1890 = vpop.f32.mrf.mxu0
    %v1891 = vadd.f32 0.0, %v1890
    %1892 = vmatmul.bf16.gmra.mxu0 %v1867
    %v1893 = vpop.f32.mrf.mxu0
    %v1894 = vadd.f32 0.0, %v1893
    %v1895 = vpop.f32.mrf.mxu0
    %v1896 = vadd.f32 0.0, %v1895
    %1897 = vdwg.mxu0
    %v1898 = vmul.f32 %v1879, %v297
    %v1899 = vmul.f32 %v1881, %v297
    %v1900 = vmul.f32 %v1884, %v300
    %v1901 = vmul.f32 %v1886, %v300
    %v1902 = vadd.f32 %v1898, %v1900
    %v1903 = vadd.f32 %v1899, %v1901
    %v1904 = vmul.f32 %v1889, %v303
    %v1905 = vmul.f32 %v1891, %v303
    %v1906 = vadd.f32 %v1902, %v1904
    %v1907 = vadd.f32 %v1903, %v1905
    %v1908 = vmul.f32 %v1894, %v306
    %v1909 = vmul.f32 %v1896, %v306
    %v1910 = vadd.f32 %v1906, %v1908
    %v1911 = vadd.f32 %v1907, %v1909
    %v1912 = vpack.c.bf16 %v1911, %v1910
    %s1913 = scalar_lea.vmem %s8, 32
    %v1914 = vld [vmem:[%s1913] sm:$0xf]
    %v1915 = vld [vmem:[%s1913 + $0x4] sm:$0xf]
    %v1916 = vld [vmem:[%s1913 + $0x8] sm:$0xf]
    %v1917 = vld [vmem:[%s1913 + $0xc] sm:$0xf]
    %v1922 = vunpack.c.l.b16 %v1914
    %v1923 = vunpack.c.l.b16 %v1915
    %v1924 = vunpack.c.l.b16 %v1916
    %v1925 = vunpack.c.l.b16 %v1917
    %v1926 = vpack.c.b16 %v1923, %v1922
    %v1927 = vpack.c.b16 %v1925, %v1924
    %v1931 = vsel %vm145, %v1912, 0
    %1933 = vmatpush.bf16.msra.mxu0 0
    %1934 = vmatpush.bf16.msra.mxu0 0
    %1935 = vmatpush.bf16.msra.mxu0 0
    %1936 = vmatpush.bf16.msra.mxu0 0
    %1937 = vmatpush.bf16.msra.mxu0 0
    %1938 = vmatpush.bf16.msra.mxu0 0
    %1939 = vmatpush.bf16.msra.mxu0 %v1927
    %1940 = vmatpush.bf16.msra.mxu0 %v1926
    %1941 = vmatmul.bf16.gmra.mxu0 %v1931
    %v1942 = vpop.f32.mrf.mxu0
    %v1943 = vadd.f32 0.0, %v1942
    %v1944 = vpop.f32.mrf.mxu0
    %v1945 = vadd.f32 0.0, %v1944
    %1946 = vdwg.mxu0
    %v1947 = vadd.f32 %v1473, %v1943
    %v1948 = vadd.f32 %v1474, %v1945
    %s1949 = scalar_lea.vmem %s9, 2
    %v1950 = vld [vmem:[%s1949] sm:$0x1]
    %v1951 = vmul.f32 %v1947, %v1947
    %v1952 = vmul.f32 %v1948, %v1948
    %v1953 = vsel %vm145, %v1951, 0.0
    %1954 = vadd.xlane.f32.xlu0 %v1953
    %v1955 = vpop.xlane.xlu0 %1954
    %v1956 = vsel %vm145, %v1952, 0.0
    %1957 = vadd.xlane.f32.xlu0 %v1956
    %v1958 = vpop.xlane.xlu0 %1957
    %v1959 = vmul.f32 %v1955, %v158
    %v1960 = vmul.f32 %v1958, %v158
    %v1961 = vadd.f32 %v1959, 1e-06
    %v1962 = vadd.f32 %v1960, 1e-06
    %v1963 = vrsqrt.pop %v1961
    %v1964 = vmul.f32 %v1963, %v1961
    %v1965 = vmul.f32 %v1964, %v1963
    %v1966 = vmul.f32 0.5, %v1965
    %v1967 = vsub.f32 1.5, %v1966
    %v1968 = vmul.f32 %v1963, %v1967
    %vm1969 = vweird.f32 %v1961
    %vm1970 = vweird.f32 %v1963
    %vm1971 = vmor %vm1969, %vm1970
    %v1972 = vsel %vm1971, %v1963, %v1968
    %v1973 = vrsqrt.pop %v1962
    %v1974 = vmul.f32 %v1973, %v1962
    %v1975 = vmul.f32 %v1974, %v1973
    %v1976 = vmul.f32 0.5, %v1975
    %v1977 = vsub.f32 1.5, %v1976
    %v1978 = vmul.f32 %v1973, %v1977
    %vm1979 = vweird.f32 %v1962
    %vm1980 = vweird.f32 %v1973
    %vm1981 = vmor %vm1979, %vm1980
    %v1982 = vsel %vm1981, %v1973, %v1978
    %v1983 = vmul.f32 %v1947, %v1972
    %v1984 = vmul.f32 %v1948, %v1982
    %v1985 = vunpack.c.l.bf16 %v1950
    %v1986 = vperm.slane %v1985, 0
    %v1987 = vmul.f32 %v1983, %v1986
    %v1988 = vmul.f32 %v1984, %v1986
    %v1989 = vpack.c.bf16 %v1988, %v1987
    %s1990 = scalar_lea.vmem [#allocation2], 32
    %v1991 = vld [vmem:[%s1990] sm:$0xf]
    %v1992 = vld [vmem:[%s1990 + $0x4] sm:$0xf]
    %v1993 = vld [vmem:[%s1990 + $0x8] sm:$0xf]
    %v1994 = vld [vmem:[%s1990 + $0xc] sm:$0xf]
    %v1999 = vunpack.c.l.b16 %v1991
    %v2000 = vunpack.c.l.b16 %v1992
    %v2001 = vunpack.c.l.b16 %v1993
    %v2002 = vunpack.c.l.b16 %v1994
    %v2003 = vpack.c.b16 %v2000, %v1999
    %v2004 = vpack.c.b16 %v2002, %v2001
    %v2008 = vsel %vm145, %v1989, 0
    %2010 = vmatpush.bf16.msra.mxu0 0
    %2011 = vmatpush.bf16.msra.mxu0 0
    %2012 = vmatpush.bf16.msra.mxu0 0
    %2013 = vmatpush.bf16.msra.mxu0 0
    %2014 = vmatpush.bf16.msra.mxu0 0
    %2015 = vmatpush.bf16.msra.mxu0 0
    %2016 = vmatpush.bf16.msra.mxu0 %v2004
    %2017 = vmatpush.bf16.msra.mxu0 %v2003
    %2018 = vmatmul.bf16.gmra.mxu0 %v2008
    %v2019 = vpop.f32.mrf.mxu0
    %v2020 = vadd.f32 0.0, %v2019
    %v2021 = vpop.f32.mrf.mxu0
    %v2022 = vadd.f32 0.0, %v2021
    %2023 = vdwg.mxu0
    %v2024 = vxor.u32 %v2020, 2147483648
    %v2025 = vxor.u32 %v2022, 2147483648
    %v2026 = vmul.f32 %v2024, 1.442695
    %v2027 = vpow.pop %v2026
    %v2028 = vmul.f32 %v2025, 1.442695
    %v2029 = vpow.pop %v2028
    %v2030 = vadd.f32 %v2027, 1.0
    %v2031 = vadd.f32 %v2029, 1.0
    %v2032 = vrcp.pop %v2030
    %v2033 = vmul.f32 %v2030, %v2032
    %v2034 = vsub.f32 1.0, %v2033
    %v2035 = vmul.f32 %v2032, %v2034
    %v2036 = vadd.f32 %v2032, %v2035
    %vm2037 = vweird.f32 %v2030
    %vm2038 = vweird.f32 %v2032
    %vm2039 = vmor %vm2037, %vm2038
    %v2040 = vsel %vm2039, %v2032, %v2036
    %v2041 = vand.u32 2147483647, %v2030
    %vm2042 = vcmp.eq.f32.partialorder %v2041, 8.507059e+37
    %v2043 = vand.u32 %v2030, 2147483648
    %v2044 = vor.u32 1.1754944e-38, %v2043
    %v2045 = vsel %vm2042, %v2044, %v2040
    %v2046 = vmul.f32 1.0, %v2045
    %v2047 = vrcp.pop %v2031
    %v2048 = vmul.f32 %v2031, %v2047
    %v2049 = vsub.f32 1.0, %v2048
    %v2050 = vmul.f32 %v2047, %v2049
    %v2051 = vadd.f32 %v2047, %v2050
    %vm2052 = vweird.f32 %v2031
    %vm2053 = vweird.f32 %v2047
    %vm2054 = vmor %vm2052, %vm2053
    %v2055 = vsel %vm2054, %v2047, %v2051
    %v2056 = vand.u32 2147483647, %v2031
    %vm2057 = vcmp.eq.f32.partialorder %v2056, 8.507059e+37
    %v2058 = vand.u32 %v2031, 2147483648
    %v2059 = vor.u32 1.1754944e-38, %v2058
    %v2060 = vsel %vm2057, %v2059, %v2055
    %v2061 = vmul.f32 1.0, %v2060
    %v2062 = vmul.f32 %v2020, %v2046
    %v2063 = vmul.f32 %v2022, %v2061
    %2066 = vrot.lane.b32.xlu0 %v2020, 64
    %v2067 = vpop.permute.xlu0 %2066
    %2068 = vrot.lane.b32.xlu0 %v2022, 64
    %v2069 = vpop.permute.xlu0 %2068
    %v2072 = vmul.f32 %v2062, %v2067
    %v2073 = vmul.f32 %v2063, %v2069
    %v2074 = vpack.c.bf16 %v2073, %v2072
    %s2075 = scalar_lea.vmem %s11, 64
    %v2076 = vld [vmem:[%s2075] sm:$0xf]
    %v2077 = vld [vmem:[%s2075 + $0x4] sm:$0xf]
    %v2078 = vld [vmem:[%s2075 + $0x8] sm:$0xf]
    %v2079 = vld [vmem:[%s2075 + $0xc] sm:$0xf]
    %v2080 = vld [vmem:[%s2075 + $0x10] sm:$0xf]
    %v2081 = vld [vmem:[%s2075 + $0x14] sm:$0xf]
    %v2082 = vld [vmem:[%s2075 + $0x18] sm:$0xf]
    %v2083 = vld [vmem:[%s2075 + $0x1c] sm:$0xf]
    %v2092 = vunpack.c.l.b16 %v2076
    %v2093 = vunpack.c.l.b16 %v2077
    %v2094 = vunpack.c.l.b16 %v2078
    %v2095 = vunpack.c.l.b16 %v2079
    %v2096 = vunpack.c.l.b16 %v2080
    %v2097 = vunpack.c.l.b16 %v2081
    %v2098 = vunpack.c.l.b16 %v2082
    %v2099 = vunpack.c.l.b16 %v2083
    %v2100 = vpack.c.b16 %v2093, %v2092
    %v2101 = vpack.c.b16 %v2095, %v2094
    %v2102 = vpack.c.b16 %v2097, %v2096
    %v2103 = vpack.c.b16 %v2099, %v2098
    %v2109 = vsel %vm111, %v2074, 0
    %2111 = vmatpush.bf16.msra.mxu0 0
    %2112 = vmatpush.bf16.msra.mxu0 0
    %2113 = vmatpush.bf16.msra.mxu0 0
    %2114 = vmatpush.bf16.msra.mxu0 0
    %2115 = vmatpush.bf16.msra.mxu0 %v2103
    %2116 = vmatpush.bf16.msra.mxu0 %v2102
    %2117 = vmatpush.bf16.msra.mxu0 %v2101
    %2118 = vmatpush.bf16.msra.mxu0 %v2100
    %2119 = vmatmul.bf16.gmra.mxu0 %v2109
    %v2120 = vpop.f32.mrf.mxu0
    %v2121 = vadd.f32 0.0, %v2120
    %v2122 = vpop.f32.mrf.mxu0
    %v2123 = vadd.f32 0.0, %v2122
    %2124 = vdwg.mxu0
    %v2125 = vadd.f32 %v1947, %v2121
    %v2126 = vadd.f32 %v1948, %v2123
    %v2127 = vadd.f32 %v2125, %v1473
    %v2128 = vadd.f32 %v2126, %v1474
    %s2129 = scalar_lea.vmem %s6, 3
    %v2130 = vld [vmem:[%s2129] sm:$0x1]
    %v2131 = vmul.f32 %v2127, %v2127
    %v2132 = vmul.f32 %v2128, %v2128
    %v2133 = vsel %vm145, %v2131, 0.0
    %2134 = vadd.xlane.f32.xlu0 %v2133
    %v2135 = vpop.xlane.xlu0 %2134
    %v2136 = vsel %vm145, %v2132, 0.0
    %2137 = vadd.xlane.f32.xlu0 %v2136
    %v2138 = vpop.xlane.xlu0 %2137
    %v2139 = vmul.f32 %v2135, %v158
    %v2140 = vmul.f32 %v2138, %v158
    %v2141 = vadd.f32 %v2139, 1e-06
    %v2142 = vadd.f32 %v2140, 1e-06
    %v2143 = vrsqrt.pop %v2141
    %v2144 = vmul.f32 %v2143, %v2141
    %v2145 = vmul.f32 %v2144, %v2143
    %v2146 = vmul.f32 0.5, %v2145
    %v2147 = vsub.f32 1.5, %v2146
    %v2148 = vmul.f32 %v2143, %v2147
    %vm2149 = vweird.f32 %v2141
    %vm2150 = vweird.f32 %v2143
    %vm2151 = vmor %vm2149, %vm2150
    %v2152 = vsel %vm2151, %v2143, %v2148
    %v2153 = vrsqrt.pop %v2142
    %v2154 = vmul.f32 %v2153, %v2142
    %v2155 = vmul.f32 %v2154, %v2153
    %v2156 = vmul.f32 0.5, %v2155
    %v2157 = vsub.f32 1.5, %v2156
    %v2158 = vmul.f32 %v2153, %v2157
    %vm2159 = vweird.f32 %v2142
    %vm2160 = vweird.f32 %v2153
    %vm2161 = vmor %vm2159, %vm2160
    %v2162 = vsel %vm2161, %v2153, %v2158
    %v2163 = vmul.f32 %v2127, %v2152
    %v2164 = vmul.f32 %v2128, %v2162
    %v2165 = vunpack.c.l.bf16 %v2130
    %v2166 = vperm.slane %v2165, 0
    %v2167 = vmul.f32 %v2163, %v2166
    %v2168 = vmul.f32 %v2164, %v2166
    %v2169 = vpack.c.bf16 %v2168, %v2167
    %s2170 = scalar_lea.vmem %s7, 96
    %v2171 = vld [vmem:[%s2170] sm:$0xff]
    %v2172 = vld [vmem:[%s2170 + $0x8] sm:$0xff]
    %v2173 = vld [vmem:[%s2170 + $0x10] sm:$0xff]
    %v2174 = vld [vmem:[%s2170 + $0x18] sm:$0xff]
    %v2179 = vunpack.c.l.b16 %v2171
    %v2180 = vunpack.c.h.b16 %v2171
    %v2181 = vunpack.c.l.b16 %v2172
    %v2182 = vunpack.c.h.b16 %v2172
    %v2183 = vunpack.c.l.b16 %v2173
    %v2184 = vunpack.c.h.b16 %v2173
    %v2185 = vunpack.c.l.b16 %v2174
    %v2186 = vunpack.c.h.b16 %v2174
    %v2187 = vpack.c.b16 %v2181, %v2179
    %v2188 = vpack.c.b16 %v2182, %v2180
    %v2189 = vpack.c.b16 %v2185, %v2183
    %v2190 = vpack.c.b16 %v2186, %v2184
    %v2196 = vsel %vm145, %v2169, 0
    %2198 = vmatpush.bf16.msra.mxu0 0
    %2199 = vmatpush.bf16.msra.mxu0 0
    %2200 = vmatpush.bf16.msra.mxu0 0
    %2201 = vmatpush.bf16.msra.mxu0 0
    %2202 = vmatpush.bf16.msra.mxu0 0
    %2203 = vmatpush.bf16.msra.mxu0 0
    %2204 = vmatpush.bf16.msra.mxu0 %v2189
    %2205 = vmatpush.bf16.msra.mxu0 %v2187
    %2206 = vmatmul.bf16.gmra.mxu0 %v2196
    %v2207 = vpop.f32.mrf.mxu0
    %v2208 = vadd.f32 0.0, %v2207
    %v2209 = vpop.f32.mrf.mxu0
    %v2210 = vadd.f32 0.0, %v2209
    %2211 = vdwg.mxu0
    %2212 = vmatpush.bf16.msra.mxu0 0
    %2213 = vmatpush.bf16.msra.mxu0 0
    %2214 = vmatpush.bf16.msra.mxu0 0
    %2215 = vmatpush.bf16.msra.mxu0 0
    %2216 = vmatpush.bf16.msra.mxu0 0
    %2217 = vmatpush.bf16.msra.mxu0 0
    %2218 = vmatpush.bf16.msra.mxu0 %v2190
    %2219 = vmatpush.bf16.msra.mxu0 %v2188
    %2220 = vmatmul.bf16.gmra.mxu0 %v2196
    %v2221 = vpop.f32.mrf.mxu0
    %v2222 = vadd.f32 0.0, %v2221
    %v2223 = vpop.f32.mrf.mxu0
    %v2224 = vadd.f32 0.0, %v2223
    %2225 = vdwg.mxu0
    %v2226 = vmul.f32 %v2208, %v129
    %v2227 = vmul.f32 %v2210, %v130
    %v2228 = vmul.f32 %v2208, %v250
    %v2229 = vmul.f32 %v2210, %v252
    %2232 = vrot.lane.b32.xlu0 %v2228, 96
    %v2233 = vpop.permute.xlu0 %2232
    %2234 = vrot.lane.b32.xlu0 %v2229, 96
    %v2235 = vpop.permute.xlu0 %2234
    %v2238 = vadd.f32 %v2226, %v2233
    %v2239 = vadd.f32 %v2227, %v2235
    %v2240 = vmul.f32 %v2208, %v270
    %v2241 = vmul.f32 %v2210, %v272
    %v2242 = vmul.f32 %v2208, %v278
    %v2243 = vmul.f32 %v2210, %v280
    %2246 = vrot.lane.b32.xlu0 %v2242, 96
    %v2247 = vpop.permute.xlu0 %2246
    %2248 = vrot.lane.b32.xlu0 %v2243, 96
    %v2249 = vpop.permute.xlu0 %2248
    %v2252 = vadd.f32 %v2240, %v2247
    %v2253 = vadd.f32 %v2241, %v2249
    %v2254 = vpack.c.bf16 %v2253, %v2252
    %v2255 = vpack.c.bf16 %v2224, %v2222
    %v2256 = vmul.f32 %v2238, %v297
    %v2257 = vmul.f32 %v2239, %v297
    %v2258 = vmul.f32 %v2238, %v300
    %v2259 = vmul.f32 %v2239, %v300
    %v2260 = vmul.f32 %v2238, %v303
    %v2261 = vmul.f32 %v2239, %v303
    %v2262 = vmul.f32 %v2238, %v306
    %v2263 = vmul.f32 %v2239, %v306
    %v2264 = vpack.c.bf16 %v2257, %v2256
    %v2265 = vpack.c.bf16 %v2259, %v2258
    %v2266 = vpack.c.bf16 %v2261, %v2260
    %v2267 = vpack.c.bf16 %v2263, %v2262
    %2269 = vrot.lane.b32.xlu0 %v2254, 64
    %v2270 = vpop.permute.xlu0 %2269
    %v2272 = vsel %vm145, %v2264, 0
    %v2275 = vsel %vm145, %v2265, 0
    %v2278 = vsel %vm145, %v2266, 0
    %v2281 = vsel %vm145, %v2267, 0
    %v2284 = vsel %vm145, %v2270, 0
    %2286 = vmatpush.bf16.xpose.msra.mxu0 0
    %2287 = vmatpush.bf16.xpose.msra.mxu0 0
    %2288 = vmatpush.bf16.xpose.msra.mxu0 0
    %2289 = vmatpush.bf16.xpose.msra.mxu0 0
    %2290 = vmatpush.bf16.xpose.msra.mxu0 0
    %2291 = vmatpush.bf16.xpose.msra.mxu0 0
    %2292 = vmatpush.bf16.xpose.msra.mxu0 0
    %2293 = vmatpush.bf16.xpose.msra.mxu0 %v2284
    %2294 = vmatmul.bf16.gmra.mxu0 %v2272
    %v2295 = vpop.f32.mrf.mxu0
    %v2296 = vadd.f32 %v134, %v2295
    %v2297 = vpop.f32.mrf.mxu0
    %v2298 = vadd.f32 %v135, %v2297
    %2299 = vmatmul.bf16.gmra.mxu0 %v2275
    %v2300 = vpop.f32.mrf.mxu0
    %v2301 = vadd.f32 %v136, %v2300
    %v2302 = vpop.f32.mrf.mxu0
    %v2303 = vadd.f32 %v137, %v2302
    %2304 = vmatmul.bf16.gmra.mxu0 %v2278
    %v2305 = vpop.f32.mrf.mxu0
    %v2306 = vadd.f32 %v138, %v2305
    %v2307 = vpop.f32.mrf.mxu0
    %v2308 = vadd.f32 %v139, %v2307
    %2309 = vmatmul.bf16.gmra.mxu0 %v2281
    %v2310 = vpop.f32.mrf.mxu0
    %v2311 = vadd.f32 %v140, %v2310
    %v2312 = vpop.f32.mrf.mxu0
    %v2313 = vadd.f32 %v141, %v2312
    %2314 = vdwg.mxu0
    %v2315 = vsel %vm360, %v2296, -inf
    %2316 = vmax.xlane.f32.xlu0 %v2315
    %v2317 = vpop.xlane.xlu0 %2316
    %v2318 = vsel %vm360, %v2298, -inf
    %2319 = vmax.xlane.f32.xlu0 %v2318
    %v2320 = vpop.xlane.xlu0 %2319
    %v2321 = vsel %vm360, %v2301, -inf
    %2322 = vmax.xlane.f32.xlu0 %v2321
    %v2323 = vpop.xlane.xlu0 %2322
    %v2324 = vsel %vm360, %v2303, -inf
    %2325 = vmax.xlane.f32.xlu0 %v2324
    %v2326 = vpop.xlane.xlu0 %2325
    %v2327 = vsel %vm360, %v2306, -inf
    %2328 = vmax.xlane.f32.xlu0 %v2327
    %v2329 = vpop.xlane.xlu0 %2328
    %v2330 = vsel %vm360, %v2308, -inf
    %2331 = vmax.xlane.f32.xlu0 %v2330
    %v2332 = vpop.xlane.xlu0 %2331
    %v2333 = vsel %vm360, %v2311, -inf
    %2334 = vmax.xlane.f32.xlu0 %v2333
    %v2335 = vpop.xlane.xlu0 %2334
    %v2336 = vsel %vm360, %v2313, -inf
    %2337 = vmax.xlane.f32.xlu0 %v2336
    %v2338 = vpop.xlane.xlu0 %2337
    %v2339 = vsub.f32 %v2296, %v2317
    %v2340 = vsub.f32 %v2298, %v2320
    %v2341 = vsub.f32 %v2301, %v2323
    %v2342 = vsub.f32 %v2303, %v2326
    %v2343 = vsub.f32 %v2306, %v2329
    %v2344 = vsub.f32 %v2308, %v2332
    %v2345 = vsub.f32 %v2311, %v2335
    %v2346 = vsub.f32 %v2313, %v2338
    %v2347 = vmul.f32 %v2339, 1.442695
    %v2348 = vpow.pop %v2347
    %v2349 = vmul.f32 %v2340, 1.442695
    %v2350 = vpow.pop %v2349
    %v2351 = vmul.f32 %v2341, 1.442695
    %v2352 = vpow.pop %v2351
    %v2353 = vmul.f32 %v2342, 1.442695
    %v2354 = vpow.pop %v2353
    %v2355 = vmul.f32 %v2343, 1.442695
    %v2356 = vpow.pop %v2355
    %v2357 = vmul.f32 %v2344, 1.442695
    %v2358 = vpow.pop %v2357
    %v2359 = vmul.f32 %v2345, 1.442695
    %v2360 = vpow.pop %v2359
    %v2361 = vmul.f32 %v2346, 1.442695
    %v2362 = vpow.pop %v2361
    %v2363 = vsel %vm360, %v2348, 0.0
    %2364 = vadd.xlane.f32.xlu0 %v2363
    %v2365 = vpop.xlane.xlu0 %2364
    %v2366 = vsel %vm360, %v2350, 0.0
    %2367 = vadd.xlane.f32.xlu0 %v2366
    %v2368 = vpop.xlane.xlu0 %2367
    %v2369 = vsel %vm360, %v2352, 0.0
    %2370 = vadd.xlane.f32.xlu0 %v2369
    %v2371 = vpop.xlane.xlu0 %2370
    %v2372 = vsel %vm360, %v2354, 0.0
    %2373 = vadd.xlane.f32.xlu0 %v2372
    %v2374 = vpop.xlane.xlu0 %2373
    %v2375 = vsel %vm360, %v2356, 0.0
    %2376 = vadd.xlane.f32.xlu0 %v2375
    %v2377 = vpop.xlane.xlu0 %2376
    %v2378 = vsel %vm360, %v2358, 0.0
    %2379 = vadd.xlane.f32.xlu0 %v2378
    %v2380 = vpop.xlane.xlu0 %2379
    %v2381 = vsel %vm360, %v2360, 0.0
    %2382 = vadd.xlane.f32.xlu0 %v2381
    %v2383 = vpop.xlane.xlu0 %2382
    %v2384 = vsel %vm360, %v2362, 0.0
    %2385 = vadd.xlane.f32.xlu0 %v2384
    %v2386 = vpop.xlane.xlu0 %2385
    %v2387 = vrcp.pop %v2365
    %v2388 = vmul.f32 %v2365, %v2387
    %v2389 = vsub.f32 1.0, %v2388
    %v2390 = vmul.f32 %v2387, %v2389
    %v2391 = vadd.f32 %v2387, %v2390
    %vm2392 = vweird.f32 %v2365
    %vm2393 = vweird.f32 %v2387
    %vm2394 = vmor %vm2392, %vm2393
    %v2395 = vsel %vm2394, %v2387, %v2391
    %v2396 = vand.u32 2147483647, %v2365
    %vm2397 = vcmp.eq.f32.partialorder %v2396, 8.507059e+37
    %v2398 = vand.u32 %v2365, 2147483648
    %v2399 = vor.u32 1.1754944e-38, %v2398
    %v2400 = vsel %vm2397, %v2399, %v2395
    %v2401 = vmul.f32 %v2348, %v2400
    %v2402 = vrcp.pop %v2368
    %v2403 = vmul.f32 %v2368, %v2402
    %v2404 = vsub.f32 1.0, %v2403
    %v2405 = vmul.f32 %v2402, %v2404
    %v2406 = vadd.f32 %v2402, %v2405
    %vm2407 = vweird.f32 %v2368
    %vm2408 = vweird.f32 %v2402
    %vm2409 = vmor %vm2407, %vm2408
    %v2410 = vsel %vm2409, %v2402, %v2406
    %v2411 = vand.u32 2147483647, %v2368
    %vm2412 = vcmp.eq.f32.partialorder %v2411, 8.507059e+37
    %v2413 = vand.u32 %v2368, 2147483648
    %v2414 = vor.u32 1.1754944e-38, %v2413
    %v2415 = vsel %vm2412, %v2414, %v2410
    %v2416 = vmul.f32 %v2350, %v2415
    %v2417 = vrcp.pop %v2371
    %v2418 = vmul.f32 %v2371, %v2417
    %v2419 = vsub.f32 1.0, %v2418
    %v2420 = vmul.f32 %v2417, %v2419
    %v2421 = vadd.f32 %v2417, %v2420
    %vm2422 = vweird.f32 %v2371
    %vm2423 = vweird.f32 %v2417
    %vm2424 = vmor %vm2422, %vm2423
    %v2425 = vsel %vm2424, %v2417, %v2421
    %v2426 = vand.u32 2147483647, %v2371
    %vm2427 = vcmp.eq.f32.partialorder %v2426, 8.507059e+37
    %v2428 = vand.u32 %v2371, 2147483648
    %v2429 = vor.u32 1.1754944e-38, %v2428
    %v2430 = vsel %vm2427, %v2429, %v2425
    %v2431 = vmul.f32 %v2352, %v2430
    %v2432 = vrcp.pop %v2374
    %v2433 = vmul.f32 %v2374, %v2432
    %v2434 = vsub.f32 1.0, %v2433
    %v2435 = vmul.f32 %v2432, %v2434
    %v2436 = vadd.f32 %v2432, %v2435
    %vm2437 = vweird.f32 %v2374
    %vm2438 = vweird.f32 %v2432
    %vm2439 = vmor %vm2437, %vm2438
    %v2440 = vsel %vm2439, %v2432, %v2436
    %v2441 = vand.u32 2147483647, %v2374
    %vm2442 = vcmp.eq.f32.partialorder %v2441, 8.507059e+37
    %v2443 = vand.u32 %v2374, 2147483648
    %v2444 = vor.u32 1.1754944e-38, %v2443
    %v2445 = vsel %vm2442, %v2444, %v2440
    %v2446 = vmul.f32 %v2354, %v2445
    %v2447 = vrcp.pop %v2377
    %v2448 = vmul.f32 %v2377, %v2447
    %v2449 = vsub.f32 1.0, %v2448
    %v2450 = vmul.f32 %v2447, %v2449
    %v2451 = vadd.f32 %v2447, %v2450
    %vm2452 = vweird.f32 %v2377
    %vm2453 = vweird.f32 %v2447
    %vm2454 = vmor %vm2452, %vm2453
    %v2455 = vsel %vm2454, %v2447, %v2451
    %v2456 = vand.u32 2147483647, %v2377
    %vm2457 = vcmp.eq.f32.partialorder %v2456, 8.507059e+37
    %v2458 = vand.u32 %v2377, 2147483648
    %v2459 = vor.u32 1.1754944e-38, %v2458
    %v2460 = vsel %vm2457, %v2459, %v2455
    %v2461 = vmul.f32 %v2356, %v2460
    %v2462 = vrcp.pop %v2380
    %v2463 = vmul.f32 %v2380, %v2462
    %v2464 = vsub.f32 1.0, %v2463
    %v2465 = vmul.f32 %v2462, %v2464
    %v2466 = vadd.f32 %v2462, %v2465
    %vm2467 = vweird.f32 %v2380
    %vm2468 = vweird.f32 %v2462
    %vm2469 = vmor %vm2467, %vm2468
    %v2470 = vsel %vm2469, %v2462, %v2466
    %v2471 = vand.u32 2147483647, %v2380
    %vm2472 = vcmp.eq.f32.partialorder %v2471, 8.507059e+37
    %v2473 = vand.u32 %v2380, 2147483648
    %v2474 = vor.u32 1.1754944e-38, %v2473
    %v2475 = vsel %vm2472, %v2474, %v2470
    %v2476 = vmul.f32 %v2358, %v2475
    %v2477 = vrcp.pop %v2383
    %v2478 = vmul.f32 %v2383, %v2477
    %v2479 = vsub.f32 1.0, %v2478
    %v2480 = vmul.f32 %v2477, %v2479
    %v2481 = vadd.f32 %v2477, %v2480
    %vm2482 = vweird.f32 %v2383
    %vm2483 = vweird.f32 %v2477
    %vm2484 = vmor %vm2482, %vm2483
    %v2485 = vsel %vm2484, %v2477, %v2481
    %v2486 = vand.u32 2147483647, %v2383
    %vm2487 = vcmp.eq.f32.partialorder %v2486, 8.507059e+37
    %v2488 = vand.u32 %v2383, 2147483648
    %v2489 = vor.u32 1.1754944e-38, %v2488
    %v2490 = vsel %vm2487, %v2489, %v2485
    %v2491 = vmul.f32 %v2360, %v2490
    %v2492 = vrcp.pop %v2386
    %v2493 = vmul.f32 %v2386, %v2492
    %v2494 = vsub.f32 1.0, %v2493
    %v2495 = vmul.f32 %v2492, %v2494
    %v2496 = vadd.f32 %v2492, %v2495
    %vm2497 = vweird.f32 %v2386
    %vm2498 = vweird.f32 %v2492
    %vm2499 = vmor %vm2497, %vm2498
    %v2500 = vsel %vm2499, %v2492, %v2496
    %v2501 = vand.u32 2147483647, %v2386
    %vm2502 = vcmp.eq.f32.partialorder %v2501, 8.507059e+37
    %v2503 = vand.u32 %v2386, 2147483648
    %v2504 = vor.u32 1.1754944e-38, %v2503
    %v2505 = vsel %vm2502, %v2504, %v2500
    %v2506 = vmul.f32 %v2362, %v2505
    %v2507 = vpack.c.bf16 %v2416, %v2401
    %v2508 = vpack.c.bf16 %v2446, %v2431
    %v2509 = vpack.c.bf16 %v2476, %v2461
    %v2510 = vpack.c.bf16 %v2506, %v2491
    %v2512 = vsel %vm360, %v2507, 0
    %v2515 = vsel %vm360, %v2508, 0
    %v2518 = vsel %vm360, %v2509, 0
    %v2521 = vsel %vm360, %v2510, 0
    %2523 = vmatpush.bf16.msra.mxu0 0
    %2524 = vmatpush.bf16.msra.mxu0 0
    %2525 = vmatpush.bf16.msra.mxu0 0
    %2526 = vmatpush.bf16.msra.mxu0 0
    %2527 = vmatpush.bf16.msra.mxu0 0
    %2528 = vmatpush.bf16.msra.mxu0 0
    %2529 = vmatpush.bf16.msra.mxu0 0
    %2530 = vmatpush.bf16.msra.mxu0 %v2255
    %2531 = vmatmul.bf16.gmra.mxu0 %v2512
    %v2532 = vpop.f32.mrf.mxu0
    %v2533 = vadd.f32 0.0, %v2532
    %v2534 = vpop.f32.mrf.mxu0
    %v2535 = vadd.f32 0.0, %v2534
    %2536 = vmatmul.bf16.gmra.mxu0 %v2515
    %v2537 = vpop.f32.mrf.mxu0
    %v2538 = vadd.f32 0.0, %v2537
    %v2539 = vpop.f32.mrf.mxu0
    %v2540 = vadd.f32 0.0, %v2539
    %2541 = vmatmul.bf16.gmra.mxu0 %v2518
    %v2542 = vpop.f32.mrf.mxu0
    %v2543 = vadd.f32 0.0, %v2542
    %v2544 = vpop.f32.mrf.mxu0
    %v2545 = vadd.f32 0.0, %v2544
    %2546 = vmatmul.bf16.gmra.mxu0 %v2521
    %v2547 = vpop.f32.mrf.mxu0
    %v2548 = vadd.f32 0.0, %v2547
    %v2549 = vpop.f32.mrf.mxu0
    %v2550 = vadd.f32 0.0, %v2549
    %2551 = vdwg.mxu0
    %v2552 = vmul.f32 %v2533, %v297
    %v2553 = vmul.f32 %v2535, %v297
    %v2554 = vmul.f32 %v2538, %v300
    %v2555 = vmul.f32 %v2540, %v300
    %v2556 = vadd.f32 %v2552, %v2554
    %v2557 = vadd.f32 %v2553, %v2555
    %v2558 = vmul.f32 %v2543, %v303
    %v2559 = vmul.f32 %v2545, %v303
    %v2560 = vadd.f32 %v2556, %v2558
    %v2561 = vadd.f32 %v2557, %v2559
    %v2562 = vmul.f32 %v2548, %v306
    %v2563 = vmul.f32 %v2550, %v306
    %v2564 = vadd.f32 %v2560, %v2562
    %v2565 = vadd.f32 %v2561, %v2563
    %v2566 = vpack.c.bf16 %v2565, %v2564
    %s2567 = scalar_lea.vmem %s8, 48
    %v2568 = vld [vmem:[%s2567] sm:$0xf]
    %v2569 = vld [vmem:[%s2567 + $0x4] sm:$0xf]
    %v2570 = vld [vmem:[%s2567 + $0x8] sm:$0xf]
    %v2571 = vld [vmem:[%s2567 + $0xc] sm:$0xf]
    %v2576 = vunpack.c.l.b16 %v2568
    %v2577 = vunpack.c.l.b16 %v2569
    %v2578 = vunpack.c.l.b16 %v2570
    %v2579 = vunpack.c.l.b16 %v2571
    %v2580 = vpack.c.b16 %v2577, %v2576
    %v2581 = vpack.c.b16 %v2579, %v2578
    %v2585 = vsel %vm145, %v2566, 0
    %2587 = vmatpush.bf16.msra.mxu0 0
    %2588 = vmatpush.bf16.msra.mxu0 0
    %2589 = vmatpush.bf16.msra.mxu0 0
    %2590 = vmatpush.bf16.msra.mxu0 0
    %2591 = vmatpush.bf16.msra.mxu0 0
    %2592 = vmatpush.bf16.msra.mxu0 0
    %2593 = vmatpush.bf16.msra.mxu0 %v2581
    %2594 = vmatpush.bf16.msra.mxu0 %v2580
    %2595 = vmatmul.bf16.gmra.mxu0 %v2585
    %v2596 = vpop.f32.mrf.mxu0
    %v2597 = vadd.f32 0.0, %v2596
    %v2598 = vpop.f32.mrf.mxu0
    %v2599 = vadd.f32 0.0, %v2598
    %2600 = vdwg.mxu0
    %v2601 = vadd.f32 %v2127, %v2597
    %v2602 = vadd.f32 %v2128, %v2599
    %s2603 = scalar_lea.vmem %s9, 3
    %v2604 = vld [vmem:[%s2603] sm:$0x1]
    %v2605 = vmul.f32 %v2601, %v2601
    %v2606 = vmul.f32 %v2602, %v2602
    %v2607 = vsel %vm145, %v2605, 0.0
    %2608 = vadd.xlane.f32.xlu0 %v2607
    %v2609 = vpop.xlane.xlu0 %2608
    %v2610 = vsel %vm145, %v2606, 0.0
    %2611 = vadd.xlane.f32.xlu0 %v2610
    %v2612 = vpop.xlane.xlu0 %2611
    %v2613 = vmul.f32 %v2609, %v158
    %v2614 = vmul.f32 %v2612, %v158
    %v2615 = vadd.f32 %v2613, 1e-06
    %v2616 = vadd.f32 %v2614, 1e-06
    %v2617 = vrsqrt.pop %v2615
    %v2618 = vmul.f32 %v2617, %v2615
    %v2619 = vmul.f32 %v2618, %v2617
    %v2620 = vmul.f32 0.5, %v2619
    %v2621 = vsub.f32 1.5, %v2620
    %v2622 = vmul.f32 %v2617, %v2621
    %vm2623 = vweird.f32 %v2615
    %vm2624 = vweird.f32 %v2617
    %vm2625 = vmor %vm2623, %vm2624
    %v2626 = vsel %vm2625, %v2617, %v2622
    %v2627 = vrsqrt.pop %v2616
    %v2628 = vmul.f32 %v2627, %v2616
    %v2629 = vmul.f32 %v2628, %v2627
    %v2630 = vmul.f32 0.5, %v2629
    %v2631 = vsub.f32 1.5, %v2630
    %v2632 = vmul.f32 %v2627, %v2631
    %vm2633 = vweird.f32 %v2616
    %vm2634 = vweird.f32 %v2627
    %vm2635 = vmor %vm2633, %vm2634
    %v2636 = vsel %vm2635, %v2627, %v2632
    %v2637 = vmul.f32 %v2601, %v2626
    %v2638 = vmul.f32 %v2602, %v2636
    %v2639 = vunpack.c.l.bf16 %v2604
    %v2640 = vperm.slane %v2639, 0
    %v2641 = vmul.f32 %v2637, %v2640
    %v2642 = vmul.f32 %v2638, %v2640
    %v2643 = vpack.c.bf16 %v2642, %v2641
    %s2644 = scalar_lea.vmem [#allocation2], 48
    %v2645 = vld [vmem:[%s2644] sm:$0xf]
    %v2646 = vld [vmem:[%s2644 + $0x4] sm:$0xf]
    %v2647 = vld [vmem:[%s2644 + $0x8] sm:$0xf]
    %v2648 = vld [vmem:[%s2644 + $0xc] sm:$0xf]
    %v2653 = vunpack.c.l.b16 %v2645
    %v2654 = vunpack.c.l.b16 %v2646
    %v2655 = vunpack.c.l.b16 %v2647
    %v2656 = vunpack.c.l.b16 %v2648
    %v2657 = vpack.c.b16 %v2654, %v2653
    %v2658 = vpack.c.b16 %v2656, %v2655
    %v2662 = vsel %vm145, %v2643, 0
    %2664 = vmatpush.bf16.msra.mxu0 0
    %2665 = vmatpush.bf16.msra.mxu0 0
    %2666 = vmatpush.bf16.msra.mxu0 0
    %2667 = vmatpush.bf16.msra.mxu0 0
    %2668 = vmatpush.bf16.msra.mxu0 0
    %2669 = vmatpush.bf16.msra.mxu0 0
    %2670 = vmatpush.bf16.msra.mxu0 %v2658
    %2671 = vmatpush.bf16.msra.mxu0 %v2657
    %2672 = vmatmul.bf16.gmra.mxu0 %v2662
    %v2673 = vpop.f32.mrf.mxu0
    %v2674 = vadd.f32 0.0, %v2673
    %v2675 = vpop.f32.mrf.mxu0
    %v2676 = vadd.f32 0.0, %v2675
    %2677 = vdwg.mxu0
    %v2678 = vxor.u32 %v2674, 2147483648
    %v2679 = vxor.u32 %v2676, 2147483648
    %v2680 = vmul.f32 %v2678, 1.442695
    %v2681 = vpow.pop %v2680
    %v2682 = vmul.f32 %v2679, 1.442695
    %v2683 = vpow.pop %v2682
    %v2684 = vadd.f32 %v2681, 1.0
    %v2685 = vadd.f32 %v2683, 1.0
    %v2686 = vrcp.pop %v2684
    %v2687 = vmul.f32 %v2684, %v2686
    %v2688 = vsub.f32 1.0, %v2687
    %v2689 = vmul.f32 %v2686, %v2688
    %v2690 = vadd.f32 %v2686, %v2689
    %vm2691 = vweird.f32 %v2684
    %vm2692 = vweird.f32 %v2686
    %vm2693 = vmor %vm2691, %vm2692
    %v2694 = vsel %vm2693, %v2686, %v2690
    %v2695 = vand.u32 2147483647, %v2684
    %vm2696 = vcmp.eq.f32.partialorder %v2695, 8.507059e+37
    %v2697 = vand.u32 %v2684, 2147483648
    %v2698 = vor.u32 1.1754944e-38, %v2697
    %v2699 = vsel %vm2696, %v2698, %v2694
    %v2700 = vmul.f32 1.0, %v2699
    %v2701 = vrcp.pop %v2685
    %v2702 = vmul.f32 %v2685, %v2701
    %v2703 = vsub.f32 1.0, %v2702
    %v2704 = vmul.f32 %v2701, %v2703
    %v2705 = vadd.f32 %v2701, %v2704
    %vm2706 = vweird.f32 %v2685
    %vm2707 = vweird.f32 %v2701
    %vm2708 = vmor %vm2706, %vm2707
    %v2709 = vsel %vm2708, %v2701, %v2705
    %v2710 = vand.u32 2147483647, %v2685
    %vm2711 = vcmp.eq.f32.partialorder %v2710, 8.507059e+37
    %v2712 = vand.u32 %v2685, 2147483648
    %v2713 = vor.u32 1.1754944e-38, %v2712
    %v2714 = vsel %vm2711, %v2713, %v2709
    %v2715 = vmul.f32 1.0, %v2714
    %v2716 = vmul.f32 %v2674, %v2700
    %v2717 = vmul.f32 %v2676, %v2715
    %2720 = vrot.lane.b32.xlu0 %v2674, 64
    %v2721 = vpop.permute.xlu0 %2720
    %2722 = vrot.lane.b32.xlu0 %v2676, 64
    %v2723 = vpop.permute.xlu0 %2722
    %v2726 = vmul.f32 %v2716, %v2721
    %v2727 = vmul.f32 %v2717, %v2723
    %v2728 = vpack.c.bf16 %v2727, %v2726
    %s2729 = scalar_lea.vmem %s11, 96
    %v2730 = vld [vmem:[%s2729] sm:$0xf]
    %v2731 = vld [vmem:[%s2729 + $0x4] sm:$0xf]
    %v2732 = vld [vmem:[%s2729 + $0x8] sm:$0xf]
    %v2733 = vld [vmem:[%s2729 + $0xc] sm:$0xf]
    %v2734 = vld [vmem:[%s2729 + $0x10] sm:$0xf]
    %v2735 = vld [vmem:[%s2729 + $0x14] sm:$0xf]
    %v2736 = vld [vmem:[%s2729 + $0x18] sm:$0xf]
    %v2737 = vld [vmem:[%s2729 + $0x1c] sm:$0xf]
    %v2746 = vunpack.c.l.b16 %v2730
    %v2747 = vunpack.c.l.b16 %v2731
    %v2748 = vunpack.c.l.b16 %v2732
    %v2749 = vunpack.c.l.b16 %v2733
    %v2750 = vunpack.c.l.b16 %v2734
    %v2751 = vunpack.c.l.b16 %v2735
    %v2752 = vunpack.c.l.b16 %v2736
    %v2753 = vunpack.c.l.b16 %v2737
    %v2754 = vpack.c.b16 %v2747, %v2746
    %v2755 = vpack.c.b16 %v2749, %v2748
    %v2756 = vpack.c.b16 %v2751, %v2750
    %v2757 = vpack.c.b16 %v2753, %v2752
    %v2763 = vsel %vm111, %v2728, 0
    %2765 = vmatpush.bf16.msra.mxu0 0
    %2766 = vmatpush.bf16.msra.mxu0 0
    %2767 = vmatpush.bf16.msra.mxu0 0
    %2768 = vmatpush.bf16.msra.mxu0 0
    %2769 = vmatpush.bf16.msra.mxu0 %v2757
    %2770 = vmatpush.bf16.msra.mxu0 %v2756
    %2771 = vmatpush.bf16.msra.mxu0 %v2755
    %2772 = vmatpush.bf16.msra.mxu0 %v2754
    %2773 = vmatmul.bf16.gmra.mxu0 %v2763
    %v2774 = vpop.f32.mrf.mxu0
    %v2775 = vadd.f32 0.0, %v2774
    %v2776 = vpop.f32.mrf.mxu0
    %v2777 = vadd.f32 0.0, %v2776
    %2778 = vdwg.mxu0
    %v2779 = vadd.f32 %v2601, %v2775
    %v2780 = vadd.f32 %v2602, %v2777
    %v2781 = vadd.f32 %v2779, %v1473
    %v2782 = vadd.f32 %v2780, %v1474
    %s2783 = scalar_lea.vmem %s6, 4
    %v2784 = vld [vmem:[%s2783] sm:$0x1]
    %v2785 = vmul.f32 %v2781, %v2781
    %v2786 = vmul.f32 %v2782, %v2782
    %v2787 = vsel %vm145, %v2785, 0.0
    %2788 = vadd.xlane.f32.xlu0 %v2787
    %v2789 = vpop.xlane.xlu0 %2788
    %v2790 = vsel %vm145, %v2786, 0.0
    %2791 = vadd.xlane.f32.xlu0 %v2790
    %v2792 = vpop.xlane.xlu0 %2791
    %v2793 = vmul.f32 %v2789, %v158
    %v2794 = vmul.f32 %v2792, %v158
    %v2795 = vadd.f32 %v2793, 1e-06
    %v2796 = vadd.f32 %v2794, 1e-06
    %v2797 = vrsqrt.pop %v2795
    %v2798 = vmul.f32 %v2797, %v2795
    %v2799 = vmul.f32 %v2798, %v2797
    %v2800 = vmul.f32 0.5, %v2799
    %v2801 = vsub.f32 1.5, %v2800
    %v2802 = vmul.f32 %v2797, %v2801
    %vm2803 = vweird.f32 %v2795
    %vm2804 = vweird.f32 %v2797
    %vm2805 = vmor %vm2803, %vm2804
    %v2806 = vsel %vm2805, %v2797, %v2802
    %v2807 = vrsqrt.pop %v2796
    %v2808 = vmul.f32 %v2807, %v2796
    %v2809 = vmul.f32 %v2808, %v2807
    %v2810 = vmul.f32 0.5, %v2809
    %v2811 = vsub.f32 1.5, %v2810
    %v2812 = vmul.f32 %v2807, %v2811
    %vm2813 = vweird.f32 %v2796
    %vm2814 = vweird.f32 %v2807
    %vm2815 = vmor %vm2813, %vm2814
    %v2816 = vsel %vm2815, %v2807, %v2812
    %v2817 = vmul.f32 %v2781, %v2806
    %v2818 = vmul.f32 %v2782, %v2816
    %v2819 = vunpack.c.l.bf16 %v2784
    %v2820 = vperm.slane %v2819, 0
    %v2821 = vmul.f32 %v2817, %v2820
    %v2822 = vmul.f32 %v2818, %v2820
    %v2823 = vpack.c.bf16 %v2822, %v2821
    %s2824 = scalar_lea.vmem %s7, 128
    %v2825 = vld [vmem:[%s2824] sm:$0xff]
    %v2826 = vld [vmem:[%s2824 + $0x8] sm:$0xff]
    %v2827 = vld [vmem:[%s2824 + $0x10] sm:$0xff]
    %v2828 = vld [vmem:[%s2824 + $0x18] sm:$0xff]
    %v2833 = vunpack.c.l.b16 %v2825
    %v2834 = vunpack.c.h.b16 %v2825
    %v2835 = vunpack.c.l.b16 %v2826
    %v2836 = vunpack.c.h.b16 %v2826
    %v2837 = vunpack.c.l.b16 %v2827
    %v2838 = vunpack.c.h.b16 %v2827
    %v2839 = vunpack.c.l.b16 %v2828
    %v2840 = vunpack.c.h.b16 %v2828
    %v2841 = vpack.c.b16 %v2835, %v2833
    %v2842 = vpack.c.b16 %v2836, %v2834
    %v2843 = vpack.c.b16 %v2839, %v2837
    %v2844 = vpack.c.b16 %v2840, %v2838
    %v2850 = vsel %vm145, %v2823, 0
    %2852 = vmatpush.bf16.msra.mxu0 0
    %2853 = vmatpush.bf16.msra.mxu0 0
    %2854 = vmatpush.bf16.msra.mxu0 0
    %2855 = vmatpush.bf16.msra.mxu0 0
    %2856 = vmatpush.bf16.msra.mxu0 0
    %2857 = vmatpush.bf16.msra.mxu0 0
    %2858 = vmatpush.bf16.msra.mxu0 %v2843
    %2859 = vmatpush.bf16.msra.mxu0 %v2841
    %2860 = vmatmul.bf16.gmra.mxu0 %v2850
    %v2861 = vpop.f32.mrf.mxu0
    %v2862 = vadd.f32 0.0, %v2861
    %v2863 = vpop.f32.mrf.mxu0
    %v2864 = vadd.f32 0.0, %v2863
    %2865 = vdwg.mxu0
    %2866 = vmatpush.bf16.msra.mxu0 0
    %2867 = vmatpush.bf16.msra.mxu0 0
    %2868 = vmatpush.bf16.msra.mxu0 0
    %2869 = vmatpush.bf16.msra.mxu0 0
    %2870 = vmatpush.bf16.msra.mxu0 0
    %2871 = vmatpush.bf16.msra.mxu0 0
    %2872 = vmatpush.bf16.msra.mxu0 %v2844
    %2873 = vmatpush.bf16.msra.mxu0 %v2842
    %2874 = vmatmul.bf16.gmra.mxu0 %v2850
    %v2875 = vpop.f32.mrf.mxu0
    %v2876 = vadd.f32 0.0, %v2875
    %v2877 = vpop.f32.mrf.mxu0
    %v2878 = vadd.f32 0.0, %v2877
    %2879 = vdwg.mxu0
    %v2880 = vmul.f32 %v2862, %v129
    %v2881 = vmul.f32 %v2864, %v130
    %v2882 = vmul.f32 %v2862, %v250
    %v2883 = vmul.f32 %v2864, %v252
    %2886 = vrot.lane.b32.xlu0 %v2882, 96
    %v2887 = vpop.permute.xlu0 %2886
    %2888 = vrot.lane.b32.xlu0 %v2883, 96
    %v2889 = vpop.permute.xlu0 %2888
    %v2892 = vadd.f32 %v2880, %v2887
    %v2893 = vadd.f32 %v2881, %v2889
    %v2894 = vmul.f32 %v2862, %v270
    %v2895 = vmul.f32 %v2864, %v272
    %v2896 = vmul.f32 %v2862, %v278
    %v2897 = vmul.f32 %v2864, %v280
    %2900 = vrot.lane.b32.xlu0 %v2896, 96
    %v2901 = vpop.permute.xlu0 %2900
    %2902 = vrot.lane.b32.xlu0 %v2897, 96
    %v2903 = vpop.permute.xlu0 %2902
    %v2906 = vadd.f32 %v2894, %v2901
    %v2907 = vadd.f32 %v2895, %v2903
    %v2908 = vpack.c.bf16 %v2907, %v2906
    %v2909 = vpack.c.bf16 %v2878, %v2876
    %v2910 = vmul.f32 %v2892, %v297
    %v2911 = vmul.f32 %v2893, %v297
    %v2912 = vmul.f32 %v2892, %v300
    %v2913 = vmul.f32 %v2893, %v300
    %v2914 = vmul.f32 %v2892, %v303
    %v2915 = vmul.f32 %v2893, %v303
    %v2916 = vmul.f32 %v2892, %v306
    %v2917 = vmul.f32 %v2893, %v306
    %v2918 = vpack.c.bf16 %v2911, %v2910
    %v2919 = vpack.c.bf16 %v2913, %v2912
    %v2920 = vpack.c.bf16 %v2915, %v2914
    %v2921 = vpack.c.bf16 %v2917, %v2916
    %2923 = vrot.lane.b32.xlu0 %v2908, 64
    %v2924 = vpop.permute.xlu0 %2923
    %v2926 = vsel %vm145, %v2918, 0
    %v2929 = vsel %vm145, %v2919, 0
    %v2932 = vsel %vm145, %v2920, 0
    %v2935 = vsel %vm145, %v2921, 0
    %v2938 = vsel %vm145, %v2924, 0
    %2940 = vmatpush.bf16.xpose.msra.mxu0 0
    %2941 = vmatpush.bf16.xpose.msra.mxu0 0
    %2942 = vmatpush.bf16.xpose.msra.mxu0 0
    %2943 = vmatpush.bf16.xpose.msra.mxu0 0
    %2944 = vmatpush.bf16.xpose.msra.mxu0 0
    %2945 = vmatpush.bf16.xpose.msra.mxu0 0
    %2946 = vmatpush.bf16.xpose.msra.mxu0 0
    %2947 = vmatpush.bf16.xpose.msra.mxu0 %v2938
    %2948 = vmatmul.bf16.gmra.mxu0 %v2926
    %v2949 = vpop.f32.mrf.mxu0
    %v2950 = vadd.f32 %v134, %v2949
    %v2951 = vpop.f32.mrf.mxu0
    %v2952 = vadd.f32 %v135, %v2951
    %2953 = vmatmul.bf16.gmra.mxu0 %v2929
    %v2954 = vpop.f32.mrf.mxu0
    %v2955 = vadd.f32 %v136, %v2954
    %v2956 = vpop.f32.mrf.mxu0
    %v2957 = vadd.f32 %v137, %v2956
    %2958 = vmatmul.bf16.gmra.mxu0 %v2932
    %v2959 = vpop.f32.mrf.mxu0
    %v2960 = vadd.f32 %v138, %v2959
    %v2961 = vpop.f32.mrf.mxu0
    %v2962 = vadd.f32 %v139, %v2961
    %2963 = vmatmul.bf16.gmra.mxu0 %v2935
    %v2964 = vpop.f32.mrf.mxu0
    %v2965 = vadd.f32 %v140, %v2964
    %v2966 = vpop.f32.mrf.mxu0
    %v2967 = vadd.f32 %v141, %v2966
    %2968 = vdwg.mxu0
    %v2969 = vsel %vm360, %v2950, -inf
    %2970 = vmax.xlane.f32.xlu0 %v2969
    %v2971 = vpop.xlane.xlu0 %2970
    %v2972 = vsel %vm360, %v2952, -inf
    %2973 = vmax.xlane.f32.xlu0 %v2972
    %v2974 = vpop.xlane.xlu0 %2973
    %v2975 = vsel %vm360, %v2955, -inf
    %2976 = vmax.xlane.f32.xlu0 %v2975
    %v2977 = vpop.xlane.xlu0 %2976
    %v2978 = vsel %vm360, %v2957, -inf
    %2979 = vmax.xlane.f32.xlu0 %v2978
    %v2980 = vpop.xlane.xlu0 %2979
    %v2981 = vsel %vm360, %v2960, -inf
    %2982 = vmax.xlane.f32.xlu0 %v2981
    %v2983 = vpop.xlane.xlu0 %2982
    %v2984 = vsel %vm360, %v2962, -inf
    %2985 = vmax.xlane.f32.xlu0 %v2984
    %v2986 = vpop.xlane.xlu0 %2985
    %v2987 = vsel %vm360, %v2965, -inf
    %2988 = vmax.xlane.f32.xlu0 %v2987
    %v2989 = vpop.xlane.xlu0 %2988
    %v2990 = vsel %vm360, %v2967, -inf
    %2991 = vmax.xlane.f32.xlu0 %v2990
    %v2992 = vpop.xlane.xlu0 %2991
    %v2993 = vsub.f32 %v2950, %v2971
    %v2994 = vsub.f32 %v2952, %v2974
    %v2995 = vsub.f32 %v2955, %v2977
    %v2996 = vsub.f32 %v2957, %v2980
    %v2997 = vsub.f32 %v2960, %v2983
    %v2998 = vsub.f32 %v2962, %v2986
    %v2999 = vsub.f32 %v2965, %v2989
    %v3000 = vsub.f32 %v2967, %v2992
    %v3001 = vmul.f32 %v2993, 1.442695
    %v3002 = vpow.pop %v3001
    %v3003 = vmul.f32 %v2994, 1.442695
    %v3004 = vpow.pop %v3003
    %v3005 = vmul.f32 %v2995, 1.442695
    %v3006 = vpow.pop %v3005
    %v3007 = vmul.f32 %v2996, 1.442695
    %v3008 = vpow.pop %v3007
    %v3009 = vmul.f32 %v2997, 1.442695
    %v3010 = vpow.pop %v3009
    %v3011 = vmul.f32 %v2998, 1.442695
    %v3012 = vpow.pop %v3011
    %v3013 = vmul.f32 %v2999, 1.442695
    %v3014 = vpow.pop %v3013
    %v3015 = vmul.f32 %v3000, 1.442695
    %v3016 = vpow.pop %v3015
    %v3017 = vsel %vm360, %v3002, 0.0
    %3018 = vadd.xlane.f32.xlu0 %v3017
    %v3019 = vpop.xlane.xlu0 %3018
    %v3020 = vsel %vm360, %v3004, 0.0
    %3021 = vadd.xlane.f32.xlu0 %v3020
    %v3022 = vpop.xlane.xlu0 %3021
    %v3023 = vsel %vm360, %v3006, 0.0
    %3024 = vadd.xlane.f32.xlu0 %v3023
    %v3025 = vpop.xlane.xlu0 %3024
    %v3026 = vsel %vm360, %v3008, 0.0
    %3027 = vadd.xlane.f32.xlu0 %v3026
    %v3028 = vpop.xlane.xlu0 %3027
    %v3029 = vsel %vm360, %v3010, 0.0
    %3030 = vadd.xlane.f32.xlu0 %v3029
    %v3031 = vpop.xlane.xlu0 %3030
    %v3032 = vsel %vm360, %v3012, 0.0
    %3033 = vadd.xlane.f32.xlu0 %v3032
    %v3034 = vpop.xlane.xlu0 %3033
    %v3035 = vsel %vm360, %v3014, 0.0
    %3036 = vadd.xlane.f32.xlu0 %v3035
    %v3037 = vpop.xlane.xlu0 %3036
    %v3038 = vsel %vm360, %v3016, 0.0
    %3039 = vadd.xlane.f32.xlu0 %v3038
    %v3040 = vpop.xlane.xlu0 %3039
    %v3041 = vrcp.pop %v3019
    %v3042 = vmul.f32 %v3019, %v3041
    %v3043 = vsub.f32 1.0, %v3042
    %v3044 = vmul.f32 %v3041, %v3043
    %v3045 = vadd.f32 %v3041, %v3044
    %vm3046 = vweird.f32 %v3019
    %vm3047 = vweird.f32 %v3041
    %vm3048 = vmor %vm3046, %vm3047
    %v3049 = vsel %vm3048, %v3041, %v3045
    %v3050 = vand.u32 2147483647, %v3019
    %vm3051 = vcmp.eq.f32.partialorder %v3050, 8.507059e+37
    %v3052 = vand.u32 %v3019, 2147483648
    %v3053 = vor.u32 1.1754944e-38, %v3052
    %v3054 = vsel %vm3051, %v3053, %v3049
    %v3055 = vmul.f32 %v3002, %v3054
    %v3056 = vrcp.pop %v3022
    %v3057 = vmul.f32 %v3022, %v3056
    %v3058 = vsub.f32 1.0, %v3057
    %v3059 = vmul.f32 %v3056, %v3058
    %v3060 = vadd.f32 %v3056, %v3059
    %vm3061 = vweird.f32 %v3022
    %vm3062 = vweird.f32 %v3056
    %vm3063 = vmor %vm3061, %vm3062
    %v3064 = vsel %vm3063, %v3056, %v3060
    %v3065 = vand.u32 2147483647, %v3022
    %vm3066 = vcmp.eq.f32.partialorder %v3065, 8.507059e+37
    %v3067 = vand.u32 %v3022, 2147483648
    %v3068 = vor.u32 1.1754944e-38, %v3067
    %v3069 = vsel %vm3066, %v3068, %v3064
    %v3070 = vmul.f32 %v3004, %v3069
    %v3071 = vrcp.pop %v3025
    %v3072 = vmul.f32 %v3025, %v3071
    %v3073 = vsub.f32 1.0, %v3072
    %v3074 = vmul.f32 %v3071, %v3073
    %v3075 = vadd.f32 %v3071, %v3074
    %vm3076 = vweird.f32 %v3025
    %vm3077 = vweird.f32 %v3071
    %vm3078 = vmor %vm3076, %vm3077
    %v3079 = vsel %vm3078, %v3071, %v3075
    %v3080 = vand.u32 2147483647, %v3025
    %vm3081 = vcmp.eq.f32.partialorder %v3080, 8.507059e+37
    %v3082 = vand.u32 %v3025, 2147483648
    %v3083 = vor.u32 1.1754944e-38, %v3082
    %v3084 = vsel %vm3081, %v3083, %v3079
    %v3085 = vmul.f32 %v3006, %v3084
    %v3086 = vrcp.pop %v3028
    %v3087 = vmul.f32 %v3028, %v3086
    %v3088 = vsub.f32 1.0, %v3087
    %v3089 = vmul.f32 %v3086, %v3088
    %v3090 = vadd.f32 %v3086, %v3089
    %vm3091 = vweird.f32 %v3028
    %vm3092 = vweird.f32 %v3086
    %vm3093 = vmor %vm3091, %vm3092
    %v3094 = vsel %vm3093, %v3086, %v3090
    %v3095 = vand.u32 2147483647, %v3028
    %vm3096 = vcmp.eq.f32.partialorder %v3095, 8.507059e+37
    %v3097 = vand.u32 %v3028, 2147483648
    %v3098 = vor.u32 1.1754944e-38, %v3097
    %v3099 = vsel %vm3096, %v3098, %v3094
    %v3100 = vmul.f32 %v3008, %v3099
    %v3101 = vrcp.pop %v3031
    %v3102 = vmul.f32 %v3031, %v3101
    %v3103 = vsub.f32 1.0, %v3102
    %v3104 = vmul.f32 %v3101, %v3103
    %v3105 = vadd.f32 %v3101, %v3104
    %vm3106 = vweird.f32 %v3031
    %vm3107 = vweird.f32 %v3101
    %vm3108 = vmor %vm3106, %vm3107
    %v3109 = vsel %vm3108, %v3101, %v3105
    %v3110 = vand.u32 2147483647, %v3031
    %vm3111 = vcmp.eq.f32.partialorder %v3110, 8.507059e+37
    %v3112 = vand.u32 %v3031, 2147483648
    %v3113 = vor.u32 1.1754944e-38, %v3112
    %v3114 = vsel %vm3111, %v3113, %v3109
    %v3115 = vmul.f32 %v3010, %v3114
    %v3116 = vrcp.pop %v3034
    %v3117 = vmul.f32 %v3034, %v3116
    %v3118 = vsub.f32 1.0, %v3117
    %v3119 = vmul.f32 %v3116, %v3118
    %v3120 = vadd.f32 %v3116, %v3119
    %vm3121 = vweird.f32 %v3034
    %vm3122 = vweird.f32 %v3116
    %vm3123 = vmor %vm3121, %vm3122
    %v3124 = vsel %vm3123, %v3116, %v3120
    %v3125 = vand.u32 2147483647, %v3034
    %vm3126 = vcmp.eq.f32.partialorder %v3125, 8.507059e+37
    %v3127 = vand.u32 %v3034, 2147483648
    %v3128 = vor.u32 1.1754944e-38, %v3127
    %v3129 = vsel %vm3126, %v3128, %v3124
    %v3130 = vmul.f32 %v3012, %v3129
    %v3131 = vrcp.pop %v3037
    %v3132 = vmul.f32 %v3037, %v3131
    %v3133 = vsub.f32 1.0, %v3132
    %v3134 = vmul.f32 %v3131, %v3133
    %v3135 = vadd.f32 %v3131, %v3134
    %vm3136 = vweird.f32 %v3037
    %vm3137 = vweird.f32 %v3131
    %vm3138 = vmor %vm3136, %vm3137
    %v3139 = vsel %vm3138, %v3131, %v3135
    %v3140 = vand.u32 2147483647, %v3037
    %vm3141 = vcmp.eq.f32.partialorder %v3140, 8.507059e+37
    %v3142 = vand.u32 %v3037, 2147483648
    %v3143 = vor.u32 1.1754944e-38, %v3142
    %v3144 = vsel %vm3141, %v3143, %v3139
    %v3145 = vmul.f32 %v3014, %v3144
    %v3146 = vrcp.pop %v3040
    %v3147 = vmul.f32 %v3040, %v3146
    %v3148 = vsub.f32 1.0, %v3147
    %v3149 = vmul.f32 %v3146, %v3148
    %v3150 = vadd.f32 %v3146, %v3149
    %vm3151 = vweird.f32 %v3040
    %vm3152 = vweird.f32 %v3146
    %vm3153 = vmor %vm3151, %vm3152
    %v3154 = vsel %vm3153, %v3146, %v3150
    %v3155 = vand.u32 2147483647, %v3040
    %vm3156 = vcmp.eq.f32.partialorder %v3155, 8.507059e+37
    %v3157 = vand.u32 %v3040, 2147483648
    %v3158 = vor.u32 1.1754944e-38, %v3157
    %v3159 = vsel %vm3156, %v3158, %v3154
    %v3160 = vmul.f32 %v3016, %v3159
    %v3161 = vpack.c.bf16 %v3070, %v3055
    %v3162 = vpack.c.bf16 %v3100, %v3085
    %v3163 = vpack.c.bf16 %v3130, %v3115
    %v3164 = vpack.c.bf16 %v3160, %v3145
    %v3166 = vsel %vm360, %v3161, 0
    %v3169 = vsel %vm360, %v3162, 0
    %v3172 = vsel %vm360, %v3163, 0
    %v3175 = vsel %vm360, %v3164, 0
    %3177 = vmatpush.bf16.msra.mxu0 0
    %3178 = vmatpush.bf16.msra.mxu0 0
    %3179 = vmatpush.bf16.msra.mxu0 0
    %3180 = vmatpush.bf16.msra.mxu0 0
    %3181 = vmatpush.bf16.msra.mxu0 0
    %3182 = vmatpush.bf16.msra.mxu0 0
    %3183 = vmatpush.bf16.msra.mxu0 0
    %3184 = vmatpush.bf16.msra.mxu0 %v2909
    %3185 = vmatmul.bf16.gmra.mxu0 %v3166
    %v3186 = vpop.f32.mrf.mxu0
    %v3187 = vadd.f32 0.0, %v3186
    %v3188 = vpop.f32.mrf.mxu0
    %v3189 = vadd.f32 0.0, %v3188
    %3190 = vmatmul.bf16.gmra.mxu0 %v3169
    %v3191 = vpop.f32.mrf.mxu0
    %v3192 = vadd.f32 0.0, %v3191
    %v3193 = vpop.f32.mrf.mxu0
    %v3194 = vadd.f32 0.0, %v3193
    %3195 = vmatmul.bf16.gmra.mxu0 %v3172
    %v3196 = vpop.f32.mrf.mxu0
    %v3197 = vadd.f32 0.0, %v3196
    %v3198 = vpop.f32.mrf.mxu0
    %v3199 = vadd.f32 0.0, %v3198
    %3200 = vmatmul.bf16.gmra.mxu0 %v3175
    %v3201 = vpop.f32.mrf.mxu0
    %v3202 = vadd.f32 0.0, %v3201
    %v3203 = vpop.f32.mrf.mxu0
    %v3204 = vadd.f32 0.0, %v3203
    %3205 = vdwg.mxu0
    %v3206 = vmul.f32 %v3187, %v297
    %v3207 = vmul.f32 %v3189, %v297
    %v3208 = vmul.f32 %v3192, %v300
    %v3209 = vmul.f32 %v3194, %v300
    %v3210 = vadd.f32 %v3206, %v3208
    %v3211 = vadd.f32 %v3207, %v3209
    %v3212 = vmul.f32 %v3197, %v303
    %v3213 = vmul.f32 %v3199, %v303
    %v3214 = vadd.f32 %v3210, %v3212
    %v3215 = vadd.f32 %v3211, %v3213
    %v3216 = vmul.f32 %v3202, %v306
    %v3217 = vmul.f32 %v3204, %v306
    %v3218 = vadd.f32 %v3214, %v3216
    %v3219 = vadd.f32 %v3215, %v3217
    %v3220 = vpack.c.bf16 %v3219, %v3218
    %s3221 = scalar_lea.vmem %s8, 64
    %v3222 = vld [vmem:[%s3221] sm:$0xf]
    %v3223 = vld [vmem:[%s3221 + $0x4] sm:$0xf]
    %v3224 = vld [vmem:[%s3221 + $0x8] sm:$0xf]
    %v3225 = vld [vmem:[%s3221 + $0xc] sm:$0xf]
    %v3230 = vunpack.c.l.b16 %v3222
    %v3231 = vunpack.c.l.b16 %v3223
    %v3232 = vunpack.c.l.b16 %v3224
    %v3233 = vunpack.c.l.b16 %v3225
    %v3234 = vpack.c.b16 %v3231, %v3230
    %v3235 = vpack.c.b16 %v3233, %v3232
    %v3239 = vsel %vm145, %v3220, 0
    %3241 = vmatpush.bf16.msra.mxu0 0
    %3242 = vmatpush.bf16.msra.mxu0 0
    %3243 = vmatpush.bf16.msra.mxu0 0
    %3244 = vmatpush.bf16.msra.mxu0 0
    %3245 = vmatpush.bf16.msra.mxu0 0
    %3246 = vmatpush.bf16.msra.mxu0 0
    %3247 = vmatpush.bf16.msra.mxu0 %v3235
    %3248 = vmatpush.bf16.msra.mxu0 %v3234
    %3249 = vmatmul.bf16.gmra.mxu0 %v3239
    %v3250 = vpop.f32.mrf.mxu0
    %v3251 = vadd.f32 0.0, %v3250
    %v3252 = vpop.f32.mrf.mxu0
    %v3253 = vadd.f32 0.0, %v3252
    %3254 = vdwg.mxu0
    %v3255 = vadd.f32 %v2781, %v3251
    %v3256 = vadd.f32 %v2782, %v3253
    %s3257 = scalar_lea.vmem %s9, 4
    %v3258 = vld [vmem:[%s3257] sm:$0x1]
    %v3259 = vmul.f32 %v3255, %v3255
    %v3260 = vmul.f32 %v3256, %v3256
    %v3261 = vsel %vm145, %v3259, 0.0
    %3262 = vadd.xlane.f32.xlu0 %v3261
    %v3263 = vpop.xlane.xlu0 %3262
    %v3264 = vsel %vm145, %v3260, 0.0
    %3265 = vadd.xlane.f32.xlu0 %v3264
    %v3266 = vpop.xlane.xlu0 %3265
    %v3267 = vmul.f32 %v3263, %v158
    %v3268 = vmul.f32 %v3266, %v158
    %v3269 = vadd.f32 %v3267, 1e-06
    %v3270 = vadd.f32 %v3268, 1e-06
    %v3271 = vrsqrt.pop %v3269
    %v3272 = vmul.f32 %v3271, %v3269
    %v3273 = vmul.f32 %v3272, %v3271
    %v3274 = vmul.f32 0.5, %v3273
    %v3275 = vsub.f32 1.5, %v3274
    %v3276 = vmul.f32 %v3271, %v3275
    %vm3277 = vweird.f32 %v3269
    %vm3278 = vweird.f32 %v3271
    %vm3279 = vmor %vm3277, %vm3278
    %v3280 = vsel %vm3279, %v3271, %v3276
    %v3281 = vrsqrt.pop %v3270
    %v3282 = vmul.f32 %v3281, %v3270
    %v3283 = vmul.f32 %v3282, %v3281
    %v3284 = vmul.f32 0.5, %v3283
    %v3285 = vsub.f32 1.5, %v3284
    %v3286 = vmul.f32 %v3281, %v3285
    %vm3287 = vweird.f32 %v3270
    %vm3288 = vweird.f32 %v3281
    %vm3289 = vmor %vm3287, %vm3288
    %v3290 = vsel %vm3289, %v3281, %v3286
    %v3291 = vmul.f32 %v3255, %v3280
    %v3292 = vmul.f32 %v3256, %v3290
    %v3293 = vunpack.c.l.bf16 %v3258
    %v3294 = vperm.slane %v3293, 0
    %v3295 = vmul.f32 %v3291, %v3294
    %v3296 = vmul.f32 %v3292, %v3294
    %v3297 = vpack.c.bf16 %v3296, %v3295
    %s3298 = scalar_lea.vmem [#allocation2], 64
    %v3299 = vld [vmem:[%s3298] sm:$0xf]
    %v3300 = vld [vmem:[%s3298 + $0x4] sm:$0xf]
    %v3301 = vld [vmem:[%s3298 + $0x8] sm:$0xf]
    %v3302 = vld [vmem:[%s3298 + $0xc] sm:$0xf]
    %v3307 = vunpack.c.l.b16 %v3299
    %v3308 = vunpack.c.l.b16 %v3300
    %v3309 = vunpack.c.l.b16 %v3301
    %v3310 = vunpack.c.l.b16 %v3302
    %v3311 = vpack.c.b16 %v3308, %v3307
    %v3312 = vpack.c.b16 %v3310, %v3309
    %v3316 = vsel %vm145, %v3297, 0
    %3318 = vmatpush.bf16.msra.mxu0 0
    %3319 = vmatpush.bf16.msra.mxu0 0
    %3320 = vmatpush.bf16.msra.mxu0 0
    %3321 = vmatpush.bf16.msra.mxu0 0
    %3322 = vmatpush.bf16.msra.mxu0 0
    %3323 = vmatpush.bf16.msra.mxu0 0
    %3324 = vmatpush.bf16.msra.mxu0 %v3312
    %3325 = vmatpush.bf16.msra.mxu0 %v3311
    %3326 = vmatmul.bf16.gmra.mxu0 %v3316
    %v3327 = vpop.f32.mrf.mxu0
    %v3328 = vadd.f32 0.0, %v3327
    %v3329 = vpop.f32.mrf.mxu0
    %v3330 = vadd.f32 0.0, %v3329
    %3331 = vdwg.mxu0
    %v3332 = vxor.u32 %v3328, 2147483648
    %v3333 = vxor.u32 %v3330, 2147483648
    %v3334 = vmul.f32 %v3332, 1.442695
    %v3335 = vpow.pop %v3334
    %v3336 = vmul.f32 %v3333, 1.442695
    %v3337 = vpow.pop %v3336
    %v3338 = vadd.f32 %v3335, 1.0
    %v3339 = vadd.f32 %v3337, 1.0
    %v3340 = vrcp.pop %v3338
    %v3341 = vmul.f32 %v3338, %v3340
    %v3342 = vsub.f32 1.0, %v3341
    %v3343 = vmul.f32 %v3340, %v3342
    %v3344 = vadd.f32 %v3340, %v3343
    %vm3345 = vweird.f32 %v3338
    %vm3346 = vweird.f32 %v3340
    %vm3347 = vmor %vm3345, %vm3346
    %v3348 = vsel %vm3347, %v3340, %v3344
    %v3349 = vand.u32 2147483647, %v3338
    %vm3350 = vcmp.eq.f32.partialorder %v3349, 8.507059e+37
    %v3351 = vand.u32 %v3338, 2147483648
    %v3352 = vor.u32 1.1754944e-38, %v3351
    %v3353 = vsel %vm3350, %v3352, %v3348
    %v3354 = vmul.f32 1.0, %v3353
    %v3355 = vrcp.pop %v3339
    %v3356 = vmul.f32 %v3339, %v3355
    %v3357 = vsub.f32 1.0, %v3356
    %v3358 = vmul.f32 %v3355, %v3357
    %v3359 = vadd.f32 %v3355, %v3358
    %vm3360 = vweird.f32 %v3339
    %vm3361 = vweird.f32 %v3355
    %vm3362 = vmor %vm3360, %vm3361
    %v3363 = vsel %vm3362, %v3355, %v3359
    %v3364 = vand.u32 2147483647, %v3339
    %vm3365 = vcmp.eq.f32.partialorder %v3364, 8.507059e+37
    %v3366 = vand.u32 %v3339, 2147483648
    %v3367 = vor.u32 1.1754944e-38, %v3366
    %v3368 = vsel %vm3365, %v3367, %v3363
    %v3369 = vmul.f32 1.0, %v3368
    %v3370 = vmul.f32 %v3328, %v3354
    %v3371 = vmul.f32 %v3330, %v3369
    %3374 = vrot.lane.b32.xlu0 %v3328, 64
    %v3375 = vpop.permute.xlu0 %3374
    %3376 = vrot.lane.b32.xlu0 %v3330, 64
    %v3377 = vpop.permute.xlu0 %3376
    %v3380 = vmul.f32 %v3370, %v3375
    %v3381 = vmul.f32 %v3371, %v3377
    %v3382 = vpack.c.bf16 %v3381, %v3380
    %s3383 = scalar_lea.vmem %s11, 128
    %v3384 = vld [vmem:[%s3383] sm:$0xf]
    %v3385 = vld [vmem:[%s3383 + $0x4] sm:$0xf]
    %v3386 = vld [vmem:[%s3383 + $0x8] sm:$0xf]
    %v3387 = vld [vmem:[%s3383 + $0xc] sm:$0xf]
    %v3388 = vld [vmem:[%s3383 + $0x10] sm:$0xf]
    %v3389 = vld [vmem:[%s3383 + $0x14] sm:$0xf]
    %v3390 = vld [vmem:[%s3383 + $0x18] sm:$0xf]
    %v3391 = vld [vmem:[%s3383 + $0x1c] sm:$0xf]
    %v3400 = vunpack.c.l.b16 %v3384
    %v3401 = vunpack.c.l.b16 %v3385
    %v3402 = vunpack.c.l.b16 %v3386
    %v3403 = vunpack.c.l.b16 %v3387
    %v3404 = vunpack.c.l.b16 %v3388
    %v3405 = vunpack.c.l.b16 %v3389
    %v3406 = vunpack.c.l.b16 %v3390
    %v3407 = vunpack.c.l.b16 %v3391
    %v3408 = vpack.c.b16 %v3401, %v3400
    %v3409 = vpack.c.b16 %v3403, %v3402
    %v3410 = vpack.c.b16 %v3405, %v3404
    %v3411 = vpack.c.b16 %v3407, %v3406
    %v3417 = vsel %vm111, %v3382, 0
    %3419 = vmatpush.bf16.msra.mxu0 0
    %3420 = vmatpush.bf16.msra.mxu0 0
    %3421 = vmatpush.bf16.msra.mxu0 0
    %3422 = vmatpush.bf16.msra.mxu0 0
    %3423 = vmatpush.bf16.msra.mxu0 %v3411
    %3424 = vmatpush.bf16.msra.mxu0 %v3410
    %3425 = vmatpush.bf16.msra.mxu0 %v3409
    %3426 = vmatpush.bf16.msra.mxu0 %v3408
    %3427 = vmatmul.bf16.gmra.mxu0 %v3417
    %v3428 = vpop.f32.mrf.mxu0
    %v3429 = vadd.f32 0.0, %v3428
    %v3430 = vpop.f32.mrf.mxu0
    %v3431 = vadd.f32 0.0, %v3430
    %3432 = vdwg.mxu0
    %v3433 = vadd.f32 %v3255, %v3429
    %v3434 = vadd.f32 %v3256, %v3431
    %v3435 = vadd.f32 %v3433, %v1473
    %v3436 = vadd.f32 %v3434, %v1474
    %v3437 = vld [vmem:[%s1475] sm:$0x1]
    %v3438 = vmul.f32 %v3435, %v3435
    %v3439 = vmul.f32 %v3436, %v3436
    %v3440 = vsel %vm145, %v3438, 0.0
    %3441 = vadd.xlane.f32.xlu0 %v3440
    %v3442 = vpop.xlane.xlu0 %3441
    %v3443 = vsel %vm145, %v3439, 0.0
    %3444 = vadd.xlane.f32.xlu0 %v3443
    %v3445 = vpop.xlane.xlu0 %3444
    %v3446 = vmul.f32 %v3442, %v158
    %v3447 = vmul.f32 %v3445, %v158
    %v3448 = vadd.f32 %v3446, 1e-06
    %v3449 = vadd.f32 %v3447, 1e-06
    %v3450 = vrsqrt.pop %v3448
    %v3451 = vmul.f32 %v3450, %v3448
    %v3452 = vmul.f32 %v3451, %v3450
    %v3453 = vmul.f32 0.5, %v3452
    %v3454 = vsub.f32 1.5, %v3453
    %v3455 = vmul.f32 %v3450, %v3454
    %vm3456 = vweird.f32 %v3448
    %vm3457 = vweird.f32 %v3450
    %vm3458 = vmor %vm3456, %vm3457
    %v3459 = vsel %vm3458, %v3450, %v3455
    %v3460 = vrsqrt.pop %v3449
    %v3461 = vmul.f32 %v3460, %v3449
    %v3462 = vmul.f32 %v3461, %v3460
    %v3463 = vmul.f32 0.5, %v3462
    %v3464 = vsub.f32 1.5, %v3463
    %v3465 = vmul.f32 %v3460, %v3464
    %vm3466 = vweird.f32 %v3449
    %vm3467 = vweird.f32 %v3460
    %vm3468 = vmor %vm3466, %vm3467
    %v3469 = vsel %vm3468, %v3460, %v3465
    %v3470 = vmul.f32 %v3435, %v3459
    %v3471 = vmul.f32 %v3436, %v3469
    %v3472 = vunpack.c.l.bf16 %v3437
    %v3473 = vperm.slane %v3472, 0
    %v3474 = vmul.f32 %v3470, %v3473
    %v3475 = vmul.f32 %v3471, %v3473
    %v3476 = vpack.c.bf16 %v3475, %v3474
    %v3477 = vld [vmem:[%s1516] sm:$0xff]
    %v3478 = vld [vmem:[%s1516 + $0x8] sm:$0xff]
    %v3479 = vld [vmem:[%s1516 + $0x10] sm:$0xff]
    %v3480 = vld [vmem:[%s1516 + $0x18] sm:$0xff]
    %v3485 = vunpack.c.l.b16 %v3477
    %v3486 = vunpack.c.h.b16 %v3477
    %v3487 = vunpack.c.l.b16 %v3478
    %v3488 = vunpack.c.h.b16 %v3478
    %v3489 = vunpack.c.l.b16 %v3479
    %v3490 = vunpack.c.h.b16 %v3479
    %v3491 = vunpack.c.l.b16 %v3480
    %v3492 = vunpack.c.h.b16 %v3480
    %v3493 = vpack.c.b16 %v3487, %v3485
    %v3494 = vpack.c.b16 %v3488, %v3486
    %v3495 = vpack.c.b16 %v3491, %v3489
    %v3496 = vpack.c.b16 %v3492, %v3490
    %v3502 = vsel %vm145, %v3476, 0
    %3504 = vmatpush.bf16.msra.mxu0 0
    %3505 = vmatpush.bf16.msra.mxu0 0
    %3506 = vmatpush.bf16.msra.mxu0 0
    %3507 = vmatpush.bf16.msra.mxu0 0
    %3508 = vmatpush.bf16.msra.mxu0 0
    %3509 = vmatpush.bf16.msra.mxu0 0
    %3510 = vmatpush.bf16.msra.mxu0 %v3495
    %3511 = vmatpush.bf16.msra.mxu0 %v3493
    %3512 = vmatmul.bf16.gmra.mxu0 %v3502
    %v3513 = vpop.f32.mrf.mxu0
    %v3514 = vadd.f32 0.0, %v3513
    %v3515 = vpop.f32.mrf.mxu0
    %v3516 = vadd.f32 0.0, %v3515
    %3517 = vdwg.mxu0
    %3518 = vmatpush.bf16.msra.mxu0 0
    %3519 = vmatpush.bf16.msra.mxu0 0
    %3520 = vmatpush.bf16.msra.mxu0 0
    %3521 = vmatpush.bf16.msra.mxu0 0
    %3522 = vmatpush.bf16.msra.mxu0 0
    %3523 = vmatpush.bf16.msra.mxu0 0
    %3524 = vmatpush.bf16.msra.mxu0 %v3496
    %3525 = vmatpush.bf16.msra.mxu0 %v3494
    %3526 = vmatmul.bf16.gmra.mxu0 %v3502
    %v3527 = vpop.f32.mrf.mxu0
    %v3528 = vadd.f32 0.0, %v3527
    %v3529 = vpop.f32.mrf.mxu0
    %v3530 = vadd.f32 0.0, %v3529
    %3531 = vdwg.mxu0
    %v3532 = vmul.f32 %v3514, %v129
    %v3533 = vmul.f32 %v3516, %v130
    %v3534 = vmul.f32 %v3514, %v250
    %v3535 = vmul.f32 %v3516, %v252
    %3538 = vrot.lane.b32.xlu0 %v3534, 96
    %v3539 = vpop.permute.xlu0 %3538
    %3540 = vrot.lane.b32.xlu0 %v3535, 96
    %v3541 = vpop.permute.xlu0 %3540
    %v3544 = vadd.f32 %v3532, %v3539
    %v3545 = vadd.f32 %v3533, %v3541
    %v3546 = vmul.f32 %v3514, %v270
    %v3547 = vmul.f32 %v3516, %v272
    %v3548 = vmul.f32 %v3514, %v278
    %v3549 = vmul.f32 %v3516, %v280
    %3552 = vrot.lane.b32.xlu0 %v3548, 96
    %v3553 = vpop.permute.xlu0 %3552
    %3554 = vrot.lane.b32.xlu0 %v3549, 96
    %v3555 = vpop.permute.xlu0 %3554
    %v3558 = vadd.f32 %v3546, %v3553
    %v3559 = vadd.f32 %v3547, %v3555
    %v3560 = vpack.c.bf16 %v3559, %v3558
    %v3561 = vpack.c.bf16 %v3530, %v3528
    %v3562 = vmul.f32 %v3544, %v297
    %v3563 = vmul.f32 %v3545, %v297
    %v3564 = vmul.f32 %v3544, %v300
    %v3565 = vmul.f32 %v3545, %v300
    %v3566 = vmul.f32 %v3544, %v303
    %v3567 = vmul.f32 %v3545, %v303
    %v3568 = vmul.f32 %v3544, %v306
    %v3569 = vmul.f32 %v3545, %v306
    %v3570 = vpack.c.bf16 %v3563, %v3562
    %v3571 = vpack.c.bf16 %v3565, %v3564
    %v3572 = vpack.c.bf16 %v3567, %v3566
    %v3573 = vpack.c.bf16 %v3569, %v3568
    %3575 = vrot.lane.b32.xlu0 %v3560, 64
    %v3576 = vpop.permute.xlu0 %3575
    %v3578 = vsel %vm145, %v3570, 0
    %v3581 = vsel %vm145, %v3571, 0
    %v3584 = vsel %vm145, %v3572, 0
    %v3587 = vsel %vm145, %v3573, 0
    %v3590 = vsel %vm145, %v3576, 0
    %3592 = vmatpush.bf16.xpose.msra.mxu0 0
    %3593 = vmatpush.bf16.xpose.msra.mxu0 0
    %3594 = vmatpush.bf16.xpose.msra.mxu0 0
    %3595 = vmatpush.bf16.xpose.msra.mxu0 0
    %3596 = vmatpush.bf16.xpose.msra.mxu0 0
    %3597 = vmatpush.bf16.xpose.msra.mxu0 0
    %3598 = vmatpush.bf16.xpose.msra.mxu0 0
    %3599 = vmatpush.bf16.xpose.msra.mxu0 %v3590
    %3600 = vmatmul.bf16.gmra.mxu0 %v3578
    %v3601 = vpop.f32.mrf.mxu0
    %v3602 = vadd.f32 %v134, %v3601
    %v3603 = vpop.f32.mrf.mxu0
    %v3604 = vadd.f32 %v135, %v3603
    %3605 = vmatmul.bf16.gmra.mxu0 %v3581
    %v3606 = vpop.f32.mrf.mxu0
    %v3607 = vadd.f32 %v136, %v3606
    %v3608 = vpop.f32.mrf.mxu0
    %v3609 = vadd.f32 %v137, %v3608
    %3610 = vmatmul.bf16.gmra.mxu0 %v3584
    %v3611 = vpop.f32.mrf.mxu0
    %v3612 = vadd.f32 %v138, %v3611
    %v3613 = vpop.f32.mrf.mxu0
    %v3614 = vadd.f32 %v139, %v3613
    %3615 = vmatmul.bf16.gmra.mxu0 %v3587
    %v3616 = vpop.f32.mrf.mxu0
    %v3617 = vadd.f32 %v140, %v3616
    %v3618 = vpop.f32.mrf.mxu0
    %v3619 = vadd.f32 %v141, %v3618
    %3620 = vdwg.mxu0
    %v3621 = vsel %vm360, %v3602, -inf
    %3622 = vmax.xlane.f32.xlu0 %v3621
    %v3623 = vpop.xlane.xlu0 %3622
    %v3624 = vsel %vm360, %v3604, -inf
    %3625 = vmax.xlane.f32.xlu0 %v3624
    %v3626 = vpop.xlane.xlu0 %3625
    %v3627 = vsel %vm360, %v3607, -inf
    %3628 = vmax.xlane.f32.xlu0 %v3627
    %v3629 = vpop.xlane.xlu0 %3628
    %v3630 = vsel %vm360, %v3609, -inf
    %3631 = vmax.xlane.f32.xlu0 %v3630
    %v3632 = vpop.xlane.xlu0 %3631
    %v3633 = vsel %vm360, %v3612, -inf
    %3634 = vmax.xlane.f32.xlu0 %v3633
    %v3635 = vpop.xlane.xlu0 %3634
    %v3636 = vsel %vm360, %v3614, -inf
    %3637 = vmax.xlane.f32.xlu0 %v3636
    %v3638 = vpop.xlane.xlu0 %3637
    %v3639 = vsel %vm360, %v3617, -inf
    %3640 = vmax.xlane.f32.xlu0 %v3639
    %v3641 = vpop.xlane.xlu0 %3640
    %v3642 = vsel %vm360, %v3619, -inf
    %3643 = vmax.xlane.f32.xlu0 %v3642
    %v3644 = vpop.xlane.xlu0 %3643
    %v3645 = vsub.f32 %v3602, %v3623
    %v3646 = vsub.f32 %v3604, %v3626
    %v3647 = vsub.f32 %v3607, %v3629
    %v3648 = vsub.f32 %v3609, %v3632
    %v3649 = vsub.f32 %v3612, %v3635
    %v3650 = vsub.f32 %v3614, %v3638
    %v3651 = vsub.f32 %v3617, %v3641
    %v3652 = vsub.f32 %v3619, %v3644
    %v3653 = vmul.f32 %v3645, 1.442695
    %v3654 = vpow.pop %v3653
    %v3655 = vmul.f32 %v3646, 1.442695
    %v3656 = vpow.pop %v3655
    %v3657 = vmul.f32 %v3647, 1.442695
    %v3658 = vpow.pop %v3657
    %v3659 = vmul.f32 %v3648, 1.442695
    %v3660 = vpow.pop %v3659
    %v3661 = vmul.f32 %v3649, 1.442695
    %v3662 = vpow.pop %v3661
    %v3663 = vmul.f32 %v3650, 1.442695
    %v3664 = vpow.pop %v3663
    %v3665 = vmul.f32 %v3651, 1.442695
    %v3666 = vpow.pop %v3665
    %v3667 = vmul.f32 %v3652, 1.442695
    %v3668 = vpow.pop %v3667
    %v3669 = vsel %vm360, %v3654, 0.0
    %3670 = vadd.xlane.f32.xlu0 %v3669
    %v3671 = vpop.xlane.xlu0 %3670
    %v3672 = vsel %vm360, %v3656, 0.0
    %3673 = vadd.xlane.f32.xlu0 %v3672
    %v3674 = vpop.xlane.xlu0 %3673
    %v3675 = vsel %vm360, %v3658, 0.0
    %3676 = vadd.xlane.f32.xlu0 %v3675
    %v3677 = vpop.xlane.xlu0 %3676
    %v3678 = vsel %vm360, %v3660, 0.0
    %3679 = vadd.xlane.f32.xlu0 %v3678
    %v3680 = vpop.xlane.xlu0 %3679
    %v3681 = vsel %vm360, %v3662, 0.0
    %3682 = vadd.xlane.f32.xlu0 %v3681
    %v3683 = vpop.xlane.xlu0 %3682
    %v3684 = vsel %vm360, %v3664, 0.0
    %3685 = vadd.xlane.f32.xlu0 %v3684
    %v3686 = vpop.xlane.xlu0 %3685
    %v3687 = vsel %vm360, %v3666, 0.0
    %3688 = vadd.xlane.f32.xlu0 %v3687
    %v3689 = vpop.xlane.xlu0 %3688
    %v3690 = vsel %vm360, %v3668, 0.0
    %3691 = vadd.xlane.f32.xlu0 %v3690
    %v3692 = vpop.xlane.xlu0 %3691
    %v3693 = vrcp.pop %v3671
    %v3694 = vmul.f32 %v3671, %v3693
    %v3695 = vsub.f32 1.0, %v3694
    %v3696 = vmul.f32 %v3693, %v3695
    %v3697 = vadd.f32 %v3693, %v3696
    %vm3698 = vweird.f32 %v3671
    %vm3699 = vweird.f32 %v3693
    %vm3700 = vmor %vm3698, %vm3699
    %v3701 = vsel %vm3700, %v3693, %v3697
    %v3702 = vand.u32 2147483647, %v3671
    %vm3703 = vcmp.eq.f32.partialorder %v3702, 8.507059e+37
    %v3704 = vand.u32 %v3671, 2147483648
    %v3705 = vor.u32 1.1754944e-38, %v3704
    %v3706 = vsel %vm3703, %v3705, %v3701
    %v3707 = vmul.f32 %v3654, %v3706
    %v3708 = vrcp.pop %v3674
    %v3709 = vmul.f32 %v3674, %v3708
    %v3710 = vsub.f32 1.0, %v3709
    %v3711 = vmul.f32 %v3708, %v3710
    %v3712 = vadd.f32 %v3708, %v3711
    %vm3713 = vweird.f32 %v3674
    %vm3714 = vweird.f32 %v3708
    %vm3715 = vmor %vm3713, %vm3714
    %v3716 = vsel %vm3715, %v3708, %v3712
    %v3717 = vand.u32 2147483647, %v3674
    %vm3718 = vcmp.eq.f32.partialorder %v3717, 8.507059e+37
    %v3719 = vand.u32 %v3674, 2147483648
    %v3720 = vor.u32 1.1754944e-38, %v3719
    %v3721 = vsel %vm3718, %v3720, %v3716
    %v3722 = vmul.f32 %v3656, %v3721
    %v3723 = vrcp.pop %v3677
    %v3724 = vmul.f32 %v3677, %v3723
    %v3725 = vsub.f32 1.0, %v3724
    %v3726 = vmul.f32 %v3723, %v3725
    %v3727 = vadd.f32 %v3723, %v3726
    %vm3728 = vweird.f32 %v3677
    %vm3729 = vweird.f32 %v3723
    %vm3730 = vmor %vm3728, %vm3729
    %v3731 = vsel %vm3730, %v3723, %v3727
    %v3732 = vand.u32 2147483647, %v3677
    %vm3733 = vcmp.eq.f32.partialorder %v3732, 8.507059e+37
    %v3734 = vand.u32 %v3677, 2147483648
    %v3735 = vor.u32 1.1754944e-38, %v3734
    %v3736 = vsel %vm3733, %v3735, %v3731
    %v3737 = vmul.f32 %v3658, %v3736
    %v3738 = vrcp.pop %v3680
    %v3739 = vmul.f32 %v3680, %v3738
    %v3740 = vsub.f32 1.0, %v3739
    %v3741 = vmul.f32 %v3738, %v3740
    %v3742 = vadd.f32 %v3738, %v3741
    %vm3743 = vweird.f32 %v3680
    %vm3744 = vweird.f32 %v3738
    %vm3745 = vmor %vm3743, %vm3744
    %v3746 = vsel %vm3745, %v3738, %v3742
    %v3747 = vand.u32 2147483647, %v3680
    %vm3748 = vcmp.eq.f32.partialorder %v3747, 8.507059e+37
    %v3749 = vand.u32 %v3680, 2147483648
    %v3750 = vor.u32 1.1754944e-38, %v3749
    %v3751 = vsel %vm3748, %v3750, %v3746
    %v3752 = vmul.f32 %v3660, %v3751
    %v3753 = vrcp.pop %v3683
    %v3754 = vmul.f32 %v3683, %v3753
    %v3755 = vsub.f32 1.0, %v3754
    %v3756 = vmul.f32 %v3753, %v3755
    %v3757 = vadd.f32 %v3753, %v3756
    %vm3758 = vweird.f32 %v3683
    %vm3759 = vweird.f32 %v3753
    %vm3760 = vmor %vm3758, %vm3759
    %v3761 = vsel %vm3760, %v3753, %v3757
    %v3762 = vand.u32 2147483647, %v3683
    %vm3763 = vcmp.eq.f32.partialorder %v3762, 8.507059e+37
    %v3764 = vand.u32 %v3683, 2147483648
    %v3765 = vor.u32 1.1754944e-38, %v3764
    %v3766 = vsel %vm3763, %v3765, %v3761
    %v3767 = vmul.f32 %v3662, %v3766
    %v3768 = vrcp.pop %v3686
    %v3769 = vmul.f32 %v3686, %v3768
    %v3770 = vsub.f32 1.0, %v3769
    %v3771 = vmul.f32 %v3768, %v3770
    %v3772 = vadd.f32 %v3768, %v3771
    %vm3773 = vweird.f32 %v3686
    %vm3774 = vweird.f32 %v3768
    %vm3775 = vmor %vm3773, %vm3774
    %v3776 = vsel %vm3775, %v3768, %v3772
    %v3777 = vand.u32 2147483647, %v3686
    %vm3778 = vcmp.eq.f32.partialorder %v3777, 8.507059e+37
    %v3779 = vand.u32 %v3686, 2147483648
    %v3780 = vor.u32 1.1754944e-38, %v3779
    %v3781 = vsel %vm3778, %v3780, %v3776
    %v3782 = vmul.f32 %v3664, %v3781
    %v3783 = vrcp.pop %v3689
    %v3784 = vmul.f32 %v3689, %v3783
    %v3785 = vsub.f32 1.0, %v3784
    %v3786 = vmul.f32 %v3783, %v3785
    %v3787 = vadd.f32 %v3783, %v3786
    %vm3788 = vweird.f32 %v3689
    %vm3789 = vweird.f32 %v3783
    %vm3790 = vmor %vm3788, %vm3789
    %v3791 = vsel %vm3790, %v3783, %v3787
    %v3792 = vand.u32 2147483647, %v3689
    %vm3793 = vcmp.eq.f32.partialorder %v3792, 8.507059e+37
    %v3794 = vand.u32 %v3689, 2147483648
    %v3795 = vor.u32 1.1754944e-38, %v3794
    %v3796 = vsel %vm3793, %v3795, %v3791
    %v3797 = vmul.f32 %v3666, %v3796
    %v3798 = vrcp.pop %v3692
    %v3799 = vmul.f32 %v3692, %v3798
    %v3800 = vsub.f32 1.0, %v3799
    %v3801 = vmul.f32 %v3798, %v3800
    %v3802 = vadd.f32 %v3798, %v3801
    %vm3803 = vweird.f32 %v3692
    %vm3804 = vweird.f32 %v3798
    %vm3805 = vmor %vm3803, %vm3804
    %v3806 = vsel %vm3805, %v3798, %v3802
    %v3807 = vand.u32 2147483647, %v3692
    %vm3808 = vcmp.eq.f32.partialorder %v3807, 8.507059e+37
    %v3809 = vand.u32 %v3692, 2147483648
    %v3810 = vor.u32 1.1754944e-38, %v3809
    %v3811 = vsel %vm3808, %v3810, %v3806
    %v3812 = vmul.f32 %v3668, %v3811
    %v3813 = vpack.c.bf16 %v3722, %v3707
    %v3814 = vpack.c.bf16 %v3752, %v3737
    %v3815 = vpack.c.bf16 %v3782, %v3767
    %v3816 = vpack.c.bf16 %v3812, %v3797
    %v3818 = vsel %vm360, %v3813, 0
    %v3821 = vsel %vm360, %v3814, 0
    %v3824 = vsel %vm360, %v3815, 0
    %v3827 = vsel %vm360, %v3816, 0
    %3829 = vmatpush.bf16.msra.mxu0 0
    %3830 = vmatpush.bf16.msra.mxu0 0
    %3831 = vmatpush.bf16.msra.mxu0 0
    %3832 = vmatpush.bf16.msra.mxu0 0
    %3833 = vmatpush.bf16.msra.mxu0 0
    %3834 = vmatpush.bf16.msra.mxu0 0
    %3835 = vmatpush.bf16.msra.mxu0 0
    %3836 = vmatpush.bf16.msra.mxu0 %v3561
    %3837 = vmatmul.bf16.gmra.mxu0 %v3818
    %v3838 = vpop.f32.mrf.mxu0
    %v3839 = vadd.f32 0.0, %v3838
    %v3840 = vpop.f32.mrf.mxu0
    %v3841 = vadd.f32 0.0, %v3840
    %3842 = vmatmul.bf16.gmra.mxu0 %v3821
    %v3843 = vpop.f32.mrf.mxu0
    %v3844 = vadd.f32 0.0, %v3843
    %v3845 = vpop.f32.mrf.mxu0
    %v3846 = vadd.f32 0.0, %v3845
    %3847 = vmatmul.bf16.gmra.mxu0 %v3824
    %v3848 = vpop.f32.mrf.mxu0
    %v3849 = vadd.f32 0.0, %v3848
    %v3850 = vpop.f32.mrf.mxu0
    %v3851 = vadd.f32 0.0, %v3850
    %3852 = vmatmul.bf16.gmra.mxu0 %v3827
    %v3853 = vpop.f32.mrf.mxu0
    %v3854 = vadd.f32 0.0, %v3853
    %v3855 = vpop.f32.mrf.mxu0
    %v3856 = vadd.f32 0.0, %v3855
    %3857 = vdwg.mxu0
    %v3858 = vmul.f32 %v3839, %v297
    %v3859 = vmul.f32 %v3841, %v297
    %v3860 = vmul.f32 %v3844, %v300
    %v3861 = vmul.f32 %v3846, %v300
    %v3862 = vadd.f32 %v3858, %v3860
    %v3863 = vadd.f32 %v3859, %v3861
    %v3864 = vmul.f32 %v3849, %v303
    %v3865 = vmul.f32 %v3851, %v303
    %v3866 = vadd.f32 %v3862, %v3864
    %v3867 = vadd.f32 %v3863, %v3865
    %v3868 = vmul.f32 %v3854, %v306
    %v3869 = vmul.f32 %v3856, %v306
    %v3870 = vadd.f32 %v3866, %v3868
    %v3871 = vadd.f32 %v3867, %v3869
    %v3872 = vpack.c.bf16 %v3871, %v3870
    %v3873 = vld [vmem:[%s1913] sm:$0xf]
    %v3874 = vld [vmem:[%s1913 + $0x4] sm:$0xf]
    %v3875 = vld [vmem:[%s1913 + $0x8] sm:$0xf]
    %v3876 = vld [vmem:[%s1913 + $0xc] sm:$0xf]
    %v3881 = vunpack.c.l.b16 %v3873
    %v3882 = vunpack.c.l.b16 %v3874
    %v3883 = vunpack.c.l.b16 %v3875
    %v3884 = vunpack.c.l.b16 %v3876
    %v3885 = vpack.c.b16 %v3882, %v3881
    %v3886 = vpack.c.b16 %v3884, %v3883
    %v3890 = vsel %vm145, %v3872, 0
    %3892 = vmatpush.bf16.msra.mxu0 0
    %3893 = vmatpush.bf16.msra.mxu0 0
    %3894 = vmatpush.bf16.msra.mxu0 0
    %3895 = vmatpush.bf16.msra.mxu0 0
    %3896 = vmatpush.bf16.msra.mxu0 0
    %3897 = vmatpush.bf16.msra.mxu0 0
    %3898 = vmatpush.bf16.msra.mxu0 %v3886
    %3899 = vmatpush.bf16.msra.mxu0 %v3885
    %3900 = vmatmul.bf16.gmra.mxu0 %v3890
    %v3901 = vpop.f32.mrf.mxu0
    %v3902 = vadd.f32 0.0, %v3901
    %v3903 = vpop.f32.mrf.mxu0
    %v3904 = vadd.f32 0.0, %v3903
    %3905 = vdwg.mxu0
    %v3906 = vadd.f32 %v3435, %v3902
    %v3907 = vadd.f32 %v3436, %v3904
    %v3908 = vld [vmem:[%s1949] sm:$0x1]
    %v3909 = vmul.f32 %v3906, %v3906
    %v3910 = vmul.f32 %v3907, %v3907
    %v3911 = vsel %vm145, %v3909, 0.0
    %3912 = vadd.xlane.f32.xlu0 %v3911
    %v3913 = vpop.xlane.xlu0 %3912
    %v3914 = vsel %vm145, %v3910, 0.0
    %3915 = vadd.xlane.f32.xlu0 %v3914
    %v3916 = vpop.xlane.xlu0 %3915
    %v3917 = vmul.f32 %v3913, %v158
    %v3918 = vmul.f32 %v3916, %v158
    %v3919 = vadd.f32 %v3917, 1e-06
    %v3920 = vadd.f32 %v3918, 1e-06
    %v3921 = vrsqrt.pop %v3919
    %v3922 = vmul.f32 %v3921, %v3919
    %v3923 = vmul.f32 %v3922, %v3921
    %v3924 = vmul.f32 0.5, %v3923
    %v3925 = vsub.f32 1.5, %v3924
    %v3926 = vmul.f32 %v3921, %v3925
    %vm3927 = vweird.f32 %v3919
    %vm3928 = vweird.f32 %v3921
    %vm3929 = vmor %vm3927, %vm3928
    %v3930 = vsel %vm3929, %v3921, %v3926
    %v3931 = vrsqrt.pop %v3920
    %v3932 = vmul.f32 %v3931, %v3920
    %v3933 = vmul.f32 %v3932, %v3931
    %v3934 = vmul.f32 0.5, %v3933
    %v3935 = vsub.f32 1.5, %v3934
    %v3936 = vmul.f32 %v3931, %v3935
    %vm3937 = vweird.f32 %v3920
    %vm3938 = vweird.f32 %v3931
    %vm3939 = vmor %vm3937, %vm3938
    %v3940 = vsel %vm3939, %v3931, %v3936
    %v3941 = vmul.f32 %v3906, %v3930
    %v3942 = vmul.f32 %v3907, %v3940
    %v3943 = vunpack.c.l.bf16 %v3908
    %v3944 = vperm.slane %v3943, 0
    %v3945 = vmul.f32 %v3941, %v3944
    %v3946 = vmul.f32 %v3942, %v3944
    %v3947 = vpack.c.bf16 %v3946, %v3945
    %v3948 = vld [vmem:[%s1990] sm:$0xf]
    %v3949 = vld [vmem:[%s1990 + $0x4] sm:$0xf]
    %v3950 = vld [vmem:[%s1990 + $0x8] sm:$0xf]
    %v3951 = vld [vmem:[%s1990 + $0xc] sm:$0xf]
    %v3956 = vunpack.c.l.b16 %v3948
    %v3957 = vunpack.c.l.b16 %v3949
    %v3958 = vunpack.c.l.b16 %v3950
    %v3959 = vunpack.c.l.b16 %v3951
    %v3960 = vpack.c.b16 %v3957, %v3956
    %v3961 = vpack.c.b16 %v3959, %v3958
    %v3965 = vsel %vm145, %v3947, 0
    %3967 = vmatpush.bf16.msra.mxu0 0
    %3968 = vmatpush.bf16.msra.mxu0 0
    %3969 = vmatpush.bf16.msra.mxu0 0
    %3970 = vmatpush.bf16.msra.mxu0 0
    %3971 = vmatpush.bf16.msra.mxu0 0
    %3972 = vmatpush.bf16.msra.mxu0 0
    %3973 = vmatpush.bf16.msra.mxu0 %v3961
    %3974 = vmatpush.bf16.msra.mxu0 %v3960
    %3975 = vmatmul.bf16.gmra.mxu0 %v3965
    %v3976 = vpop.f32.mrf.mxu0
    %v3977 = vadd.f32 0.0, %v3976
    %v3978 = vpop.f32.mrf.mxu0
    %v3979 = vadd.f32 0.0, %v3978
    %3980 = vdwg.mxu0
    %v3981 = vxor.u32 %v3977, 2147483648
    %v3982 = vxor.u32 %v3979, 2147483648
    %v3983 = vmul.f32 %v3981, 1.442695
    %v3984 = vpow.pop %v3983
    %v3985 = vmul.f32 %v3982, 1.442695
    %v3986 = vpow.pop %v3985
    %v3987 = vadd.f32 %v3984, 1.0
    %v3988 = vadd.f32 %v3986, 1.0
    %v3989 = vrcp.pop %v3987
    %v3990 = vmul.f32 %v3987, %v3989
    %v3991 = vsub.f32 1.0, %v3990
    %v3992 = vmul.f32 %v3989, %v3991
    %v3993 = vadd.f32 %v3989, %v3992
    %vm3994 = vweird.f32 %v3987
    %vm3995 = vweird.f32 %v3989
    %vm3996 = vmor %vm3994, %vm3995
    %v3997 = vsel %vm3996, %v3989, %v3993
    %v3998 = vand.u32 2147483647, %v3987
    %vm3999 = vcmp.eq.f32.partialorder %v3998, 8.507059e+37
    %v4000 = vand.u32 %v3987, 2147483648
    %v4001 = vor.u32 1.1754944e-38, %v4000
    %v4002 = vsel %vm3999, %v4001, %v3997
    %v4003 = vmul.f32 1.0, %v4002
    %v4004 = vrcp.pop %v3988
    %v4005 = vmul.f32 %v3988, %v4004
    %v4006 = vsub.f32 1.0, %v4005
    %v4007 = vmul.f32 %v4004, %v4006
    %v4008 = vadd.f32 %v4004, %v4007
    %vm4009 = vweird.f32 %v3988
    %vm4010 = vweird.f32 %v4004
    %vm4011 = vmor %vm4009, %vm4010
    %v4012 = vsel %vm4011, %v4004, %v4008
    %v4013 = vand.u32 2147483647, %v3988
    %vm4014 = vcmp.eq.f32.partialorder %v4013, 8.507059e+37
    %v4015 = vand.u32 %v3988, 2147483648
    %v4016 = vor.u32 1.1754944e-38, %v4015
    %v4017 = vsel %vm4014, %v4016, %v4012
    %v4018 = vmul.f32 1.0, %v4017
    %v4019 = vmul.f32 %v3977, %v4003
    %v4020 = vmul.f32 %v3979, %v4018
    %4023 = vrot.lane.b32.xlu0 %v3977, 64
    %v4024 = vpop.permute.xlu0 %4023
    %4025 = vrot.lane.b32.xlu0 %v3979, 64
    %v4026 = vpop.permute.xlu0 %4025
    %v4029 = vmul.f32 %v4019, %v4024
    %v4030 = vmul.f32 %v4020, %v4026
    %v4031 = vpack.c.bf16 %v4030, %v4029
    %v4032 = vld [vmem:[%s2075] sm:$0xf]
    %v4033 = vld [vmem:[%s2075 + $0x4] sm:$0xf]
    %v4034 = vld [vmem:[%s2075 + $0x8] sm:$0xf]
    %v4035 = vld [vmem:[%s2075 + $0xc] sm:$0xf]
    %v4036 = vld [vmem:[%s2075 + $0x10] sm:$0xf]
    %v4037 = vld [vmem:[%s2075 + $0x14] sm:$0xf]
    %v4038 = vld [vmem:[%s2075 + $0x18] sm:$0xf]
    %v4039 = vld [vmem:[%s2075 + $0x1c] sm:$0xf]
    %v4048 = vunpack.c.l.b16 %v4032
    %v4049 = vunpack.c.l.b16 %v4033
    %v4050 = vunpack.c.l.b16 %v4034
    %v4051 = vunpack.c.l.b16 %v4035
    %v4052 = vunpack.c.l.b16 %v4036
    %v4053 = vunpack.c.l.b16 %v4037
    %v4054 = vunpack.c.l.b16 %v4038
    %v4055 = vunpack.c.l.b16 %v4039
    %v4056 = vpack.c.b16 %v4049, %v4048
    %v4057 = vpack.c.b16 %v4051, %v4050
    %v4058 = vpack.c.b16 %v4053, %v4052
    %v4059 = vpack.c.b16 %v4055, %v4054
    %v4065 = vsel %vm111, %v4031, 0
    %4067 = vmatpush.bf16.msra.mxu0 0
    %4068 = vmatpush.bf16.msra.mxu0 0
    %4069 = vmatpush.bf16.msra.mxu0 0
    %4070 = vmatpush.bf16.msra.mxu0 0
    %4071 = vmatpush.bf16.msra.mxu0 %v4059
    %4072 = vmatpush.bf16.msra.mxu0 %v4058
    %4073 = vmatpush.bf16.msra.mxu0 %v4057
    %4074 = vmatpush.bf16.msra.mxu0 %v4056
    %4075 = vmatmul.bf16.gmra.mxu0 %v4065
    %v4076 = vpop.f32.mrf.mxu0
    %v4077 = vadd.f32 0.0, %v4076
    %v4078 = vpop.f32.mrf.mxu0
    %v4079 = vadd.f32 0.0, %v4078
    %4080 = vdwg.mxu0
    %v4081 = vadd.f32 %v3906, %v4077
    %v4082 = vadd.f32 %v3907, %v4079
    %v4083 = vadd.f32 %v4081, %v1473
    %v4084 = vadd.f32 %v4082, %v1474
    %v4085 = vld [vmem:[%s2129] sm:$0x1]
    %v4086 = vmul.f32 %v4083, %v4083
    %v4087 = vmul.f32 %v4084, %v4084
    %v4088 = vsel %vm145, %v4086, 0.0
    %4089 = vadd.xlane.f32.xlu0 %v4088
    %v4090 = vpop.xlane.xlu0 %4089
    %v4091 = vsel %vm145, %v4087, 0.0
    %4092 = vadd.xlane.f32.xlu0 %v4091
    %v4093 = vpop.xlane.xlu0 %4092
    %v4094 = vmul.f32 %v4090, %v158
    %v4095 = vmul.f32 %v4093, %v158
    %v4096 = vadd.f32 %v4094, 1e-06
    %v4097 = vadd.f32 %v4095, 1e-06
    %v4098 = vrsqrt.pop %v4096
    %v4099 = vmul.f32 %v4098, %v4096
    %v4100 = vmul.f32 %v4099, %v4098
    %v4101 = vmul.f32 0.5, %v4100
    %v4102 = vsub.f32 1.5, %v4101
    %v4103 = vmul.f32 %v4098, %v4102
    %vm4104 = vweird.f32 %v4096
    %vm4105 = vweird.f32 %v4098
    %vm4106 = vmor %vm4104, %vm4105
    %v4107 = vsel %vm4106, %v4098, %v4103
    %v4108 = vrsqrt.pop %v4097
    %v4109 = vmul.f32 %v4108, %v4097
    %v4110 = vmul.f32 %v4109, %v4108
    %v4111 = vmul.f32 0.5, %v4110
    %v4112 = vsub.f32 1.5, %v4111
    %v4113 = vmul.f32 %v4108, %v4112
    %vm4114 = vweird.f32 %v4097
    %vm4115 = vweird.f32 %v4108
    %vm4116 = vmor %vm4114, %vm4115
    %v4117 = vsel %vm4116, %v4108, %v4113
    %v4118 = vmul.f32 %v4083, %v4107
    %v4119 = vmul.f32 %v4084, %v4117
    %v4120 = vunpack.c.l.bf16 %v4085
    %v4121 = vperm.slane %v4120, 0
    %v4122 = vmul.f32 %v4118, %v4121
    %v4123 = vmul.f32 %v4119, %v4121
    %v4124 = vpack.c.bf16 %v4123, %v4122
    %v4125 = vld [vmem:[%s2170] sm:$0xff]
    %v4126 = vld [vmem:[%s2170 + $0x8] sm:$0xff]
    %v4127 = vld [vmem:[%s2170 + $0x10] sm:$0xff]
    %v4128 = vld [vmem:[%s2170 + $0x18] sm:$0xff]
    %v4133 = vunpack.c.l.b16 %v4125
    %v4134 = vunpack.c.h.b16 %v4125
    %v4135 = vunpack.c.l.b16 %v4126
    %v4136 = vunpack.c.h.b16 %v4126
    %v4137 = vunpack.c.l.b16 %v4127
    %v4138 = vunpack.c.h.b16 %v4127
    %v4139 = vunpack.c.l.b16 %v4128
    %v4140 = vunpack.c.h.b16 %v4128
    %v4141 = vpack.c.b16 %v4135, %v4133
    %v4142 = vpack.c.b16 %v4136, %v4134
    %v4143 = vpack.c.b16 %v4139, %v4137
    %v4144 = vpack.c.b16 %v4140, %v4138
    %v4150 = vsel %vm145, %v4124, 0
    %4152 = vmatpush.bf16.msra.mxu0 0
    %4153 = vmatpush.bf16.msra.mxu0 0
    %4154 = vmatpush.bf16.msra.mxu0 0
    %4155 = vmatpush.bf16.msra.mxu0 0
    %4156 = vmatpush.bf16.msra.mxu0 0
    %4157 = vmatpush.bf16.msra.mxu0 0
    %4158 = vmatpush.bf16.msra.mxu0 %v4143
    %4159 = vmatpush.bf16.msra.mxu0 %v4141
    %4160 = vmatmul.bf16.gmra.mxu0 %v4150
    %v4161 = vpop.f32.mrf.mxu0
    %v4162 = vadd.f32 0.0, %v4161
    %v4163 = vpop.f32.mrf.mxu0
    %v4164 = vadd.f32 0.0, %v4163
    %4165 = vdwg.mxu0
    %4166 = vmatpush.bf16.msra.mxu0 0
    %4167 = vmatpush.bf16.msra.mxu0 0
    %4168 = vmatpush.bf16.msra.mxu0 0
    %4169 = vmatpush.bf16.msra.mxu0 0
    %4170 = vmatpush.bf16.msra.mxu0 0
    %4171 = vmatpush.bf16.msra.mxu0 0
    %4172 = vmatpush.bf16.msra.mxu0 %v4144
    %4173 = vmatpush.bf16.msra.mxu0 %v4142
    %4174 = vmatmul.bf16.gmra.mxu0 %v4150
    %v4175 = vpop.f32.mrf.mxu0
    %v4176 = vadd.f32 0.0, %v4175
    %v4177 = vpop.f32.mrf.mxu0
    %v4178 = vadd.f32 0.0, %v4177
    %4179 = vdwg.mxu0
    %v4180 = vmul.f32 %v4162, %v129
    %v4181 = vmul.f32 %v4164, %v130
    %v4182 = vmul.f32 %v4162, %v250
    %v4183 = vmul.f32 %v4164, %v252
    %4186 = vrot.lane.b32.xlu0 %v4182, 96
    %v4187 = vpop.permute.xlu0 %4186
    %4188 = vrot.lane.b32.xlu0 %v4183, 96
    %v4189 = vpop.permute.xlu0 %4188
    %v4192 = vadd.f32 %v4180, %v4187
    %v4193 = vadd.f32 %v4181, %v4189
    %v4194 = vmul.f32 %v4162, %v270
    %v4195 = vmul.f32 %v4164, %v272
    %v4196 = vmul.f32 %v4162, %v278
    %v4197 = vmul.f32 %v4164, %v280
    %4200 = vrot.lane.b32.xlu0 %v4196, 96
    %v4201 = vpop.permute.xlu0 %4200
    %4202 = vrot.lane.b32.xlu0 %v4197, 96
    %v4203 = vpop.permute.xlu0 %4202
    %v4206 = vadd.f32 %v4194, %v4201
    %v4207 = vadd.f32 %v4195, %v4203
    %v4208 = vpack.c.bf16 %v4207, %v4206
    %v4209 = vpack.c.bf16 %v4178, %v4176
    %v4210 = vmul.f32 %v4192, %v297
    %v4211 = vmul.f32 %v4193, %v297
    %v4212 = vmul.f32 %v4192, %v300
    %v4213 = vmul.f32 %v4193, %v300
    %v4214 = vmul.f32 %v4192, %v303
    %v4215 = vmul.f32 %v4193, %v303
    %v4216 = vmul.f32 %v4192, %v306
    %v4217 = vmul.f32 %v4193, %v306
    %v4218 = vpack.c.bf16 %v4211, %v4210
    %v4219 = vpack.c.bf16 %v4213, %v4212
    %v4220 = vpack.c.bf16 %v4215, %v4214
    %v4221 = vpack.c.bf16 %v4217, %v4216
    %4223 = vrot.lane.b32.xlu0 %v4208, 64
    %v4224 = vpop.permute.xlu0 %4223
    %v4226 = vsel %vm145, %v4218, 0
    %v4229 = vsel %vm145, %v4219, 0
    %v4232 = vsel %vm145, %v4220, 0
    %v4235 = vsel %vm145, %v4221, 0
    %v4238 = vsel %vm145, %v4224, 0
    %4240 = vmatpush.bf16.xpose.msra.mxu0 0
    %4241 = vmatpush.bf16.xpose.msra.mxu0 0
    %4242 = vmatpush.bf16.xpose.msra.mxu0 0
    %4243 = vmatpush.bf16.xpose.msra.mxu0 0
    %4244 = vmatpush.bf16.xpose.msra.mxu0 0
    %4245 = vmatpush.bf16.xpose.msra.mxu0 0
    %4246 = vmatpush.bf16.xpose.msra.mxu0 0
    %4247 = vmatpush.bf16.xpose.msra.mxu0 %v4238
    %4248 = vmatmul.bf16.gmra.mxu0 %v4226
    %v4249 = vpop.f32.mrf.mxu0
    %v4250 = vadd.f32 %v134, %v4249
    %v4251 = vpop.f32.mrf.mxu0
    %v4252 = vadd.f32 %v135, %v4251
    %4253 = vmatmul.bf16.gmra.mxu0 %v4229
    %v4254 = vpop.f32.mrf.mxu0
    %v4255 = vadd.f32 %v136, %v4254
    %v4256 = vpop.f32.mrf.mxu0
    %v4257 = vadd.f32 %v137, %v4256
    %4258 = vmatmul.bf16.gmra.mxu0 %v4232
    %v4259 = vpop.f32.mrf.mxu0
    %v4260 = vadd.f32 %v138, %v4259
    %v4261 = vpop.f32.mrf.mxu0
    %v4262 = vadd.f32 %v139, %v4261
    %4263 = vmatmul.bf16.gmra.mxu0 %v4235
    %v4264 = vpop.f32.mrf.mxu0
    %v4265 = vadd.f32 %v140, %v4264
    %v4266 = vpop.f32.mrf.mxu0
    %v4267 = vadd.f32 %v141, %v4266
    %4268 = vdwg.mxu0
    %v4269 = vsel %vm360, %v4250, -inf
    %4270 = vmax.xlane.f32.xlu0 %v4269
    %v4271 = vpop.xlane.xlu0 %4270
    %v4272 = vsel %vm360, %v4252, -inf
    %4273 = vmax.xlane.f32.xlu0 %v4272
    %v4274 = vpop.xlane.xlu0 %4273
    %v4275 = vsel %vm360, %v4255, -inf
    %4276 = vmax.xlane.f32.xlu0 %v4275
    %v4277 = vpop.xlane.xlu0 %4276
    %v4278 = vsel %vm360, %v4257, -inf
    %4279 = vmax.xlane.f32.xlu0 %v4278
    %v4280 = vpop.xlane.xlu0 %4279
    %v4281 = vsel %vm360, %v4260, -inf
    %4282 = vmax.xlane.f32.xlu0 %v4281
    %v4283 = vpop.xlane.xlu0 %4282
    %v4284 = vsel %vm360, %v4262, -inf
    %4285 = vmax.xlane.f32.xlu0 %v4284
    %v4286 = vpop.xlane.xlu0 %4285
    %v4287 = vsel %vm360, %v4265, -inf
    %4288 = vmax.xlane.f32.xlu0 %v4287
    %v4289 = vpop.xlane.xlu0 %4288
    %v4290 = vsel %vm360, %v4267, -inf
    %4291 = vmax.xlane.f32.xlu0 %v4290
    %v4292 = vpop.xlane.xlu0 %4291
    %v4293 = vsub.f32 %v4250, %v4271
    %v4294 = vsub.f32 %v4252, %v4274
    %v4295 = vsub.f32 %v4255, %v4277
    %v4296 = vsub.f32 %v4257, %v4280
    %v4297 = vsub.f32 %v4260, %v4283
    %v4298 = vsub.f32 %v4262, %v4286
    %v4299 = vsub.f32 %v4265, %v4289
    %v4300 = vsub.f32 %v4267, %v4292
    %v4301 = vmul.f32 %v4293, 1.442695
    %v4302 = vpow.pop %v4301
    %v4303 = vmul.f32 %v4294, 1.442695
    %v4304 = vpow.pop %v4303
    %v4305 = vmul.f32 %v4295, 1.442695
    %v4306 = vpow.pop %v4305
    %v4307 = vmul.f32 %v4296, 1.442695
    %v4308 = vpow.pop %v4307
    %v4309 = vmul.f32 %v4297, 1.442695
    %v4310 = vpow.pop %v4309
    %v4311 = vmul.f32 %v4298, 1.442695
    %v4312 = vpow.pop %v4311
    %v4313 = vmul.f32 %v4299, 1.442695
    %v4314 = vpow.pop %v4313
    %v4315 = vmul.f32 %v4300, 1.442695
    %v4316 = vpow.pop %v4315
    %v4317 = vsel %vm360, %v4302, 0.0
    %4318 = vadd.xlane.f32.xlu0 %v4317
    %v4319 = vpop.xlane.xlu0 %4318
    %v4320 = vsel %vm360, %v4304, 0.0
    %4321 = vadd.xlane.f32.xlu0 %v4320
    %v4322 = vpop.xlane.xlu0 %4321
    %v4323 = vsel %vm360, %v4306, 0.0
    %4324 = vadd.xlane.f32.xlu0 %v4323
    %v4325 = vpop.xlane.xlu0 %4324
    %v4326 = vsel %vm360, %v4308, 0.0
    %4327 = vadd.xlane.f32.xlu0 %v4326
    %v4328 = vpop.xlane.xlu0 %4327
    %v4329 = vsel %vm360, %v4310, 0.0
    %4330 = vadd.xlane.f32.xlu0 %v4329
    %v4331 = vpop.xlane.xlu0 %4330
    %v4332 = vsel %vm360, %v4312, 0.0
    %4333 = vadd.xlane.f32.xlu0 %v4332
    %v4334 = vpop.xlane.xlu0 %4333
    %v4335 = vsel %vm360, %v4314, 0.0
    %4336 = vadd.xlane.f32.xlu0 %v4335
    %v4337 = vpop.xlane.xlu0 %4336
    %v4338 = vsel %vm360, %v4316, 0.0
    %4339 = vadd.xlane.f32.xlu0 %v4338
    %v4340 = vpop.xlane.xlu0 %4339
    %v4341 = vrcp.pop %v4319
    %v4342 = vmul.f32 %v4319, %v4341
    %v4343 = vsub.f32 1.0, %v4342
    %v4344 = vmul.f32 %v4341, %v4343
    %v4345 = vadd.f32 %v4341, %v4344
    %vm4346 = vweird.f32 %v4319
    %vm4347 = vweird.f32 %v4341
    %vm4348 = vmor %vm4346, %vm4347
    %v4349 = vsel %vm4348, %v4341, %v4345
    %v4350 = vand.u32 2147483647, %v4319
    %vm4351 = vcmp.eq.f32.partialorder %v4350, 8.507059e+37
    %v4352 = vand.u32 %v4319, 2147483648
    %v4353 = vor.u32 1.1754944e-38, %v4352
    %v4354 = vsel %vm4351, %v4353, %v4349
    %v4355 = vmul.f32 %v4302, %v4354
    %v4356 = vrcp.pop %v4322
    %v4357 = vmul.f32 %v4322, %v4356
    %v4358 = vsub.f32 1.0, %v4357
    %v4359 = vmul.f32 %v4356, %v4358
    %v4360 = vadd.f32 %v4356, %v4359
    %vm4361 = vweird.f32 %v4322
    %vm4362 = vweird.f32 %v4356
    %vm4363 = vmor %vm4361, %vm4362
    %v4364 = vsel %vm4363, %v4356, %v4360
    %v4365 = vand.u32 2147483647, %v4322
    %vm4366 = vcmp.eq.f32.partialorder %v4365, 8.507059e+37
    %v4367 = vand.u32 %v4322, 2147483648
    %v4368 = vor.u32 1.1754944e-38, %v4367
    %v4369 = vsel %vm4366, %v4368, %v4364
    %v4370 = vmul.f32 %v4304, %v4369
    %v4371 = vrcp.pop %v4325
    %v4372 = vmul.f32 %v4325, %v4371
    %v4373 = vsub.f32 1.0, %v4372
    %v4374 = vmul.f32 %v4371, %v4373
    %v4375 = vadd.f32 %v4371, %v4374
    %vm4376 = vweird.f32 %v4325
    %vm4377 = vweird.f32 %v4371
    %vm4378 = vmor %vm4376, %vm4377
    %v4379 = vsel %vm4378, %v4371, %v4375
    %v4380 = vand.u32 2147483647, %v4325
    %vm4381 = vcmp.eq.f32.partialorder %v4380, 8.507059e+37
    %v4382 = vand.u32 %v4325, 2147483648
    %v4383 = vor.u32 1.1754944e-38, %v4382
    %v4384 = vsel %vm4381, %v4383, %v4379
    %v4385 = vmul.f32 %v4306, %v4384
    %v4386 = vrcp.pop %v4328
    %v4387 = vmul.f32 %v4328, %v4386
    %v4388 = vsub.f32 1.0, %v4387
    %v4389 = vmul.f32 %v4386, %v4388
    %v4390 = vadd.f32 %v4386, %v4389
    %vm4391 = vweird.f32 %v4328
    %vm4392 = vweird.f32 %v4386
    %vm4393 = vmor %vm4391, %vm4392
    %v4394 = vsel %vm4393, %v4386, %v4390
    %v4395 = vand.u32 2147483647, %v4328
    %vm4396 = vcmp.eq.f32.partialorder %v4395, 8.507059e+37
    %v4397 = vand.u32 %v4328, 2147483648
    %v4398 = vor.u32 1.1754944e-38, %v4397
    %v4399 = vsel %vm4396, %v4398, %v4394
    %v4400 = vmul.f32 %v4308, %v4399
    %v4401 = vrcp.pop %v4331
    %v4402 = vmul.f32 %v4331, %v4401
    %v4403 = vsub.f32 1.0, %v4402
    %v4404 = vmul.f32 %v4401, %v4403
    %v4405 = vadd.f32 %v4401, %v4404
    %vm4406 = vweird.f32 %v4331
    %vm4407 = vweird.f32 %v4401
    %vm4408 = vmor %vm4406, %vm4407
    %v4409 = vsel %vm4408, %v4401, %v4405
    %v4410 = vand.u32 2147483647, %v4331
    %vm4411 = vcmp.eq.f32.partialorder %v4410, 8.507059e+37
    %v4412 = vand.u32 %v4331, 2147483648
    %v4413 = vor.u32 1.1754944e-38, %v4412
    %v4414 = vsel %vm4411, %v4413, %v4409
    %v4415 = vmul.f32 %v4310, %v4414
    %v4416 = vrcp.pop %v4334
    %v4417 = vmul.f32 %v4334, %v4416
    %v4418 = vsub.f32 1.0, %v4417
    %v4419 = vmul.f32 %v4416, %v4418
    %v4420 = vadd.f32 %v4416, %v4419
    %vm4421 = vweird.f32 %v4334
    %vm4422 = vweird.f32 %v4416
    %vm4423 = vmor %vm4421, %vm4422
    %v4424 = vsel %vm4423, %v4416, %v4420
    %v4425 = vand.u32 2147483647, %v4334
    %vm4426 = vcmp.eq.f32.partialorder %v4425, 8.507059e+37
    %v4427 = vand.u32 %v4334, 2147483648
    %v4428 = vor.u32 1.1754944e-38, %v4427
    %v4429 = vsel %vm4426, %v4428, %v4424
    %v4430 = vmul.f32 %v4312, %v4429
    %v4431 = vrcp.pop %v4337
    %v4432 = vmul.f32 %v4337, %v4431
    %v4433 = vsub.f32 1.0, %v4432
    %v4434 = vmul.f32 %v4431, %v4433
    %v4435 = vadd.f32 %v4431, %v4434
    %vm4436 = vweird.f32 %v4337
    %vm4437 = vweird.f32 %v4431
    %vm4438 = vmor %vm4436, %vm4437
    %v4439 = vsel %vm4438, %v4431, %v4435
    %v4440 = vand.u32 2147483647, %v4337
    %vm4441 = vcmp.eq.f32.partialorder %v4440, 8.507059e+37
    %v4442 = vand.u32 %v4337, 2147483648
    %v4443 = vor.u32 1.1754944e-38, %v4442
    %v4444 = vsel %vm4441, %v4443, %v4439
    %v4445 = vmul.f32 %v4314, %v4444
    %v4446 = vrcp.pop %v4340
    %v4447 = vmul.f32 %v4340, %v4446
    %v4448 = vsub.f32 1.0, %v4447
    %v4449 = vmul.f32 %v4446, %v4448
    %v4450 = vadd.f32 %v4446, %v4449
    %vm4451 = vweird.f32 %v4340
    %vm4452 = vweird.f32 %v4446
    %vm4453 = vmor %vm4451, %vm4452
    %v4454 = vsel %vm4453, %v4446, %v4450
    %v4455 = vand.u32 2147483647, %v4340
    %vm4456 = vcmp.eq.f32.partialorder %v4455, 8.507059e+37
    %v4457 = vand.u32 %v4340, 2147483648
    %v4458 = vor.u32 1.1754944e-38, %v4457
    %v4459 = vsel %vm4456, %v4458, %v4454
    %v4460 = vmul.f32 %v4316, %v4459
    %v4461 = vpack.c.bf16 %v4370, %v4355
    %v4462 = vpack.c.bf16 %v4400, %v4385
    %v4463 = vpack.c.bf16 %v4430, %v4415
    %v4464 = vpack.c.bf16 %v4460, %v4445
    %v4466 = vsel %vm360, %v4461, 0
    %v4469 = vsel %vm360, %v4462, 0
    %v4472 = vsel %vm360, %v4463, 0
    %v4475 = vsel %vm360, %v4464, 0
    %4477 = vmatpush.bf16.msra.mxu0 0
    %4478 = vmatpush.bf16.msra.mxu0 0
    %4479 = vmatpush.bf16.msra.mxu0 0
    %4480 = vmatpush.bf16.msra.mxu0 0
    %4481 = vmatpush.bf16.msra.mxu0 0
    %4482 = vmatpush.bf16.msra.mxu0 0
    %4483 = vmatpush.bf16.msra.mxu0 0
    %4484 = vmatpush.bf16.msra.mxu0 %v4209
    %4485 = vmatmul.bf16.gmra.mxu0 %v4466
    %v4486 = vpop.f32.mrf.mxu0
    %v4487 = vadd.f32 0.0, %v4486
    %v4488 = vpop.f32.mrf.mxu0
    %v4489 = vadd.f32 0.0, %v4488
    %4490 = vmatmul.bf16.gmra.mxu0 %v4469
    %v4491 = vpop.f32.mrf.mxu0
    %v4492 = vadd.f32 0.0, %v4491
    %v4493 = vpop.f32.mrf.mxu0
    %v4494 = vadd.f32 0.0, %v4493
    %4495 = vmatmul.bf16.gmra.mxu0 %v4472
    %v4496 = vpop.f32.mrf.mxu0
    %v4497 = vadd.f32 0.0, %v4496
    %v4498 = vpop.f32.mrf.mxu0
    %v4499 = vadd.f32 0.0, %v4498
    %4500 = vmatmul.bf16.gmra.mxu0 %v4475
    %v4501 = vpop.f32.mrf.mxu0
    %v4502 = vadd.f32 0.0, %v4501
    %v4503 = vpop.f32.mrf.mxu0
    %v4504 = vadd.f32 0.0, %v4503
    %4505 = vdwg.mxu0
    %v4506 = vmul.f32 %v4487, %v297
    %v4507 = vmul.f32 %v4489, %v297
    %v4508 = vmul.f32 %v4492, %v300
    %v4509 = vmul.f32 %v4494, %v300
    %v4510 = vadd.f32 %v4506, %v4508
    %v4511 = vadd.f32 %v4507, %v4509
    %v4512 = vmul.f32 %v4497, %v303
    %v4513 = vmul.f32 %v4499, %v303
    %v4514 = vadd.f32 %v4510, %v4512
    %v4515 = vadd.f32 %v4511, %v4513
    %v4516 = vmul.f32 %v4502, %v306
    %v4517 = vmul.f32 %v4504, %v306
    %v4518 = vadd.f32 %v4514, %v4516
    %v4519 = vadd.f32 %v4515, %v4517
    %v4520 = vpack.c.bf16 %v4519, %v4518
    %v4521 = vld [vmem:[%s2567] sm:$0xf]
    %v4522 = vld [vmem:[%s2567 + $0x4] sm:$0xf]
    %v4523 = vld [vmem:[%s2567 + $0x8] sm:$0xf]
    %v4524 = vld [vmem:[%s2567 + $0xc] sm:$0xf]
    %v4529 = vunpack.c.l.b16 %v4521
    %v4530 = vunpack.c.l.b16 %v4522
    %v4531 = vunpack.c.l.b16 %v4523
    %v4532 = vunpack.c.l.b16 %v4524
    %v4533 = vpack.c.b16 %v4530, %v4529
    %v4534 = vpack.c.b16 %v4532, %v4531
    %v4538 = vsel %vm145, %v4520, 0
    %4540 = vmatpush.bf16.msra.mxu0 0
    %4541 = vmatpush.bf16.msra.mxu0 0
    %4542 = vmatpush.bf16.msra.mxu0 0
    %4543 = vmatpush.bf16.msra.mxu0 0
    %4544 = vmatpush.bf16.msra.mxu0 0
    %4545 = vmatpush.bf16.msra.mxu0 0
    %4546 = vmatpush.bf16.msra.mxu0 %v4534
    %4547 = vmatpush.bf16.msra.mxu0 %v4533
    %4548 = vmatmul.bf16.gmra.mxu0 %v4538
    %v4549 = vpop.f32.mrf.mxu0
    %v4550 = vadd.f32 0.0, %v4549
    %v4551 = vpop.f32.mrf.mxu0
    %v4552 = vadd.f32 0.0, %v4551
    %4553 = vdwg.mxu0
    %v4554 = vadd.f32 %v4083, %v4550
    %v4555 = vadd.f32 %v4084, %v4552
    %v4556 = vld [vmem:[%s2603] sm:$0x1]
    %v4557 = vmul.f32 %v4554, %v4554
    %v4558 = vmul.f32 %v4555, %v4555
    %v4559 = vsel %vm145, %v4557, 0.0
    %4560 = vadd.xlane.f32.xlu0 %v4559
    %v4561 = vpop.xlane.xlu0 %4560
    %v4562 = vsel %vm145, %v4558, 0.0
    %4563 = vadd.xlane.f32.xlu0 %v4562
    %v4564 = vpop.xlane.xlu0 %4563
    %v4565 = vmul.f32 %v4561, %v158
    %v4566 = vmul.f32 %v4564, %v158
    %v4567 = vadd.f32 %v4565, 1e-06
    %v4568 = vadd.f32 %v4566, 1e-06
    %v4569 = vrsqrt.pop %v4567
    %v4570 = vmul.f32 %v4569, %v4567
    %v4571 = vmul.f32 %v4570, %v4569
    %v4572 = vmul.f32 0.5, %v4571
    %v4573 = vsub.f32 1.5, %v4572
    %v4574 = vmul.f32 %v4569, %v4573
    %vm4575 = vweird.f32 %v4567
    %vm4576 = vweird.f32 %v4569
    %vm4577 = vmor %vm4575, %vm4576
    %v4578 = vsel %vm4577, %v4569, %v4574
    %v4579 = vrsqrt.pop %v4568
    %v4580 = vmul.f32 %v4579, %v4568
    %v4581 = vmul.f32 %v4580, %v4579
    %v4582 = vmul.f32 0.5, %v4581
    %v4583 = vsub.f32 1.5, %v4582
    %v4584 = vmul.f32 %v4579, %v4583
    %vm4585 = vweird.f32 %v4568
    %vm4586 = vweird.f32 %v4579
    %vm4587 = vmor %vm4585, %vm4586
    %v4588 = vsel %vm4587, %v4579, %v4584
    %v4589 = vmul.f32 %v4554, %v4578
    %v4590 = vmul.f32 %v4555, %v4588
    %v4591 = vunpack.c.l.bf16 %v4556
    %v4592 = vperm.slane %v4591, 0
    %v4593 = vmul.f32 %v4589, %v4592
    %v4594 = vmul.f32 %v4590, %v4592
    %v4595 = vpack.c.bf16 %v4594, %v4593
    %v4596 = vld [vmem:[%s2644] sm:$0xf]
    %v4597 = vld [vmem:[%s2644 + $0x4] sm:$0xf]
    %v4598 = vld [vmem:[%s2644 + $0x8] sm:$0xf]
    %v4599 = vld [vmem:[%s2644 + $0xc] sm:$0xf]
    %v4604 = vunpack.c.l.b16 %v4596
    %v4605 = vunpack.c.l.b16 %v4597
    %v4606 = vunpack.c.l.b16 %v4598
    %v4607 = vunpack.c.l.b16 %v4599
    %v4608 = vpack.c.b16 %v4605, %v4604
    %v4609 = vpack.c.b16 %v4607, %v4606
    %v4613 = vsel %vm145, %v4595, 0
    %4615 = vmatpush.bf16.msra.mxu0 0
    %4616 = vmatpush.bf16.msra.mxu0 0
    %4617 = vmatpush.bf16.msra.mxu0 0
    %4618 = vmatpush.bf16.msra.mxu0 0
    %4619 = vmatpush.bf16.msra.mxu0 0
    %4620 = vmatpush.bf16.msra.mxu0 0
    %4621 = vmatpush.bf16.msra.mxu0 %v4609
    %4622 = vmatpush.bf16.msra.mxu0 %v4608
    %4623 = vmatmul.bf16.gmra.mxu0 %v4613
    %v4624 = vpop.f32.mrf.mxu0
    %v4625 = vadd.f32 0.0, %v4624
    %v4626 = vpop.f32.mrf.mxu0
    %v4627 = vadd.f32 0.0, %v4626
    %4628 = vdwg.mxu0
    %v4629 = vxor.u32 %v4625, 2147483648
    %v4630 = vxor.u32 %v4627, 2147483648
    %v4631 = vmul.f32 %v4629, 1.442695
    %v4632 = vpow.pop %v4631
    %v4633 = vmul.f32 %v4630, 1.442695
    %v4634 = vpow.pop %v4633
    %v4635 = vadd.f32 %v4632, 1.0
    %v4636 = vadd.f32 %v4634, 1.0
    %v4637 = vrcp.pop %v4635
    %v4638 = vmul.f32 %v4635, %v4637
    %v4639 = vsub.f32 1.0, %v4638
    %v4640 = vmul.f32 %v4637, %v4639
    %v4641 = vadd.f32 %v4637, %v4640
    %vm4642 = vweird.f32 %v4635
    %vm4643 = vweird.f32 %v4637
    %vm4644 = vmor %vm4642, %vm4643
    %v4645 = vsel %vm4644, %v4637, %v4641
    %v4646 = vand.u32 2147483647, %v4635
    %vm4647 = vcmp.eq.f32.partialorder %v4646, 8.507059e+37
    %v4648 = vand.u32 %v4635, 2147483648
    %v4649 = vor.u32 1.1754944e-38, %v4648
    %v4650 = vsel %vm4647, %v4649, %v4645
    %v4651 = vmul.f32 1.0, %v4650
    %v4652 = vrcp.pop %v4636
    %v4653 = vmul.f32 %v4636, %v4652
    %v4654 = vsub.f32 1.0, %v4653
    %v4655 = vmul.f32 %v4652, %v4654
    %v4656 = vadd.f32 %v4652, %v4655
    %vm4657 = vweird.f32 %v4636
    %vm4658 = vweird.f32 %v4652
    %vm4659 = vmor %vm4657, %vm4658
    %v4660 = vsel %vm4659, %v4652, %v4656
    %v4661 = vand.u32 2147483647, %v4636
    %vm4662 = vcmp.eq.f32.partialorder %v4661, 8.507059e+37
    %v4663 = vand.u32 %v4636, 2147483648
    %v4664 = vor.u32 1.1754944e-38, %v4663
    %v4665 = vsel %vm4662, %v4664, %v4660
    %v4666 = vmul.f32 1.0, %v4665
    %v4667 = vmul.f32 %v4625, %v4651
    %v4668 = vmul.f32 %v4627, %v4666
    %4671 = vrot.lane.b32.xlu0 %v4625, 64
    %v4672 = vpop.permute.xlu0 %4671
    %4673 = vrot.lane.b32.xlu0 %v4627, 64
    %v4674 = vpop.permute.xlu0 %4673
    %v4677 = vmul.f32 %v4667, %v4672
    %v4678 = vmul.f32 %v4668, %v4674
    %v4679 = vpack.c.bf16 %v4678, %v4677
    %v4680 = vld [vmem:[%s2729] sm:$0xf]
    %v4681 = vld [vmem:[%s2729 + $0x4] sm:$0xf]
    %v4682 = vld [vmem:[%s2729 + $0x8] sm:$0xf]
    %v4683 = vld [vmem:[%s2729 + $0xc] sm:$0xf]
    %v4684 = vld [vmem:[%s2729 + $0x10] sm:$0xf]
    %v4685 = vld [vmem:[%s2729 + $0x14] sm:$0xf]
    %v4686 = vld [vmem:[%s2729 + $0x18] sm:$0xf]
    %v4687 = vld [vmem:[%s2729 + $0x1c] sm:$0xf]
    %v4696 = vunpack.c.l.b16 %v4680
    %v4697 = vunpack.c.l.b16 %v4681
    %v4698 = vunpack.c.l.b16 %v4682
    %v4699 = vunpack.c.l.b16 %v4683
    %v4700 = vunpack.c.l.b16 %v4684
    %v4701 = vunpack.c.l.b16 %v4685
    %v4702 = vunpack.c.l.b16 %v4686
    %v4703 = vunpack.c.l.b16 %v4687
    %v4704 = vpack.c.b16 %v4697, %v4696
    %v4705 = vpack.c.b16 %v4699, %v4698
    %v4706 = vpack.c.b16 %v4701, %v4700
    %v4707 = vpack.c.b16 %v4703, %v4702
    %v4713 = vsel %vm111, %v4679, 0
    %4715 = vmatpush.bf16.msra.mxu0 0
    %4716 = vmatpush.bf16.msra.mxu0 0
    %4717 = vmatpush.bf16.msra.mxu0 0
    %4718 = vmatpush.bf16.msra.mxu0 0
    %4719 = vmatpush.bf16.msra.mxu0 %v4707
    %4720 = vmatpush.bf16.msra.mxu0 %v4706
    %4721 = vmatpush.bf16.msra.mxu0 %v4705
    %4722 = vmatpush.bf16.msra.mxu0 %v4704
    %4723 = vmatmul.bf16.gmra.mxu0 %v4713
    %v4724 = vpop.f32.mrf.mxu0
    %v4725 = vadd.f32 0.0, %v4724
    %v4726 = vpop.f32.mrf.mxu0
    %v4727 = vadd.f32 0.0, %v4726
    %4728 = vdwg.mxu0
    %v4729 = vadd.f32 %v4554, %v4725
    %v4730 = vadd.f32 %v4555, %v4727
    %v4731 = vadd.f32 %v4729, %v1473
    %v4732 = vadd.f32 %v4730, %v1474
    %v4733 = vld [vmem:[%s2783] sm:$0x1]
    %v4734 = vmul.f32 %v4731, %v4731
    %v4735 = vmul.f32 %v4732, %v4732
    %v4736 = vsel %vm145, %v4734, 0.0
    %4737 = vadd.xlane.f32.xlu0 %v4736
    %v4738 = vpop.xlane.xlu0 %4737
    %v4739 = vsel %vm145, %v4735, 0.0
    %4740 = vadd.xlane.f32.xlu0 %v4739
    %v4741 = vpop.xlane.xlu0 %4740
    %v4742 = vmul.f32 %v4738, %v158
    %v4743 = vmul.f32 %v4741, %v158
    %v4744 = vadd.f32 %v4742, 1e-06
    %v4745 = vadd.f32 %v4743, 1e-06
    %v4746 = vrsqrt.pop %v4744
    %v4747 = vmul.f32 %v4746, %v4744
    %v4748 = vmul.f32 %v4747, %v4746
    %v4749 = vmul.f32 0.5, %v4748
    %v4750 = vsub.f32 1.5, %v4749
    %v4751 = vmul.f32 %v4746, %v4750
    %vm4752 = vweird.f32 %v4744
    %vm4753 = vweird.f32 %v4746
    %vm4754 = vmor %vm4752, %vm4753
    %v4755 = vsel %vm4754, %v4746, %v4751
    %v4756 = vrsqrt.pop %v4745
    %v4757 = vmul.f32 %v4756, %v4745
    %v4758 = vmul.f32 %v4757, %v4756
    %v4759 = vmul.f32 0.5, %v4758
    %v4760 = vsub.f32 1.5, %v4759
    %v4761 = vmul.f32 %v4756, %v4760
    %vm4762 = vweird.f32 %v4745
    %vm4763 = vweird.f32 %v4756
    %vm4764 = vmor %vm4762, %vm4763
    %v4765 = vsel %vm4764, %v4756, %v4761
    %v4766 = vmul.f32 %v4731, %v4755
    %v4767 = vmul.f32 %v4732, %v4765
    %v4768 = vunpack.c.l.bf16 %v4733
    %v4769 = vperm.slane %v4768, 0
    %v4770 = vmul.f32 %v4766, %v4769
    %v4771 = vmul.f32 %v4767, %v4769
    %v4772 = vpack.c.bf16 %v4771, %v4770
    %v4773 = vld [vmem:[%s2824] sm:$0xff]
    %v4774 = vld [vmem:[%s2824 + $0x8] sm:$0xff]
    %v4775 = vld [vmem:[%s2824 + $0x10] sm:$0xff]
    %v4776 = vld [vmem:[%s2824 + $0x18] sm:$0xff]
    %v4781 = vunpack.c.l.b16 %v4773
    %v4782 = vunpack.c.h.b16 %v4773
    %v4783 = vunpack.c.l.b16 %v4774
    %v4784 = vunpack.c.h.b16 %v4774
    %v4785 = vunpack.c.l.b16 %v4775
    %v4786 = vunpack.c.h.b16 %v4775
    %v4787 = vunpack.c.l.b16 %v4776
    %v4788 = vunpack.c.h.b16 %v4776
    %v4789 = vpack.c.b16 %v4783, %v4781
    %v4790 = vpack.c.b16 %v4784, %v4782
    %v4791 = vpack.c.b16 %v4787, %v4785
    %v4792 = vpack.c.b16 %v4788, %v4786
    %v4798 = vsel %vm145, %v4772, 0
    %4800 = vmatpush.bf16.msra.mxu0 0
    %4801 = vmatpush.bf16.msra.mxu0 0
    %4802 = vmatpush.bf16.msra.mxu0 0
    %4803 = vmatpush.bf16.msra.mxu0 0
    %4804 = vmatpush.bf16.msra.mxu0 0
    %4805 = vmatpush.bf16.msra.mxu0 0
    %4806 = vmatpush.bf16.msra.mxu0 %v4791
    %4807 = vmatpush.bf16.msra.mxu0 %v4789
    %4808 = vmatmul.bf16.gmra.mxu0 %v4798
    %v4809 = vpop.f32.mrf.mxu0
    %v4810 = vadd.f32 0.0, %v4809
    %v4811 = vpop.f32.mrf.mxu0
    %v4812 = vadd.f32 0.0, %v4811
    %4813 = vdwg.mxu0
    %4814 = vmatpush.bf16.msra.mxu0 0
    %4815 = vmatpush.bf16.msra.mxu0 0
    %4816 = vmatpush.bf16.msra.mxu0 0
    %4817 = vmatpush.bf16.msra.mxu0 0
    %4818 = vmatpush.bf16.msra.mxu0 0
    %4819 = vmatpush.bf16.msra.mxu0 0
    %4820 = vmatpush.bf16.msra.mxu0 %v4792
    %4821 = vmatpush.bf16.msra.mxu0 %v4790
    %4822 = vmatmul.bf16.gmra.mxu0 %v4798
    %v4823 = vpop.f32.mrf.mxu0
    %v4824 = vadd.f32 0.0, %v4823
    %v4825 = vpop.f32.mrf.mxu0
    %v4826 = vadd.f32 0.0, %v4825
    %4827 = vdwg.mxu0
    %v4828 = vmul.f32 %v4810, %v129
    %v4829 = vmul.f32 %v4812, %v130
    %v4830 = vmul.f32 %v4810, %v250
    %v4831 = vmul.f32 %v4812, %v252
    %4834 = vrot.lane.b32.xlu0 %v4830, 96
    %v4835 = vpop.permute.xlu0 %4834
    %4836 = vrot.lane.b32.xlu0 %v4831, 96
    %v4837 = vpop.permute.xlu0 %4836
    %v4840 = vadd.f32 %v4828, %v4835
    %v4841 = vadd.f32 %v4829, %v4837
    %v4842 = vmul.f32 %v4810, %v270
    %v4843 = vmul.f32 %v4812, %v272
    %v4844 = vmul.f32 %v4810, %v278
    %v4845 = vmul.f32 %v4812, %v280
    %4848 = vrot.lane.b32.xlu0 %v4844, 96
    %v4849 = vpop.permute.xlu0 %4848
    %4850 = vrot.lane.b32.xlu0 %v4845, 96
    %v4851 = vpop.permute.xlu0 %4850
    %v4854 = vadd.f32 %v4842, %v4849
    %v4855 = vadd.f32 %v4843, %v4851
    %v4856 = vpack.c.bf16 %v4855, %v4854
    %v4857 = vpack.c.bf16 %v4826, %v4824
    %v4858 = vmul.f32 %v4840, %v297
    %v4859 = vmul.f32 %v4841, %v297
    %v4860 = vmul.f32 %v4840, %v300
    %v4861 = vmul.f32 %v4841, %v300
    %v4862 = vmul.f32 %v4840, %v303
    %v4863 = vmul.f32 %v4841, %v303
    %v4864 = vmul.f32 %v4840, %v306
    %v4865 = vmul.f32 %v4841, %v306
    %v4866 = vpack.c.bf16 %v4859, %v4858
    %v4867 = vpack.c.bf16 %v4861, %v4860
    %v4868 = vpack.c.bf16 %v4863, %v4862
    %v4869 = vpack.c.bf16 %v4865, %v4864
    %4871 = vrot.lane.b32.xlu0 %v4856, 64
    %v4872 = vpop.permute.xlu0 %4871
    %v4874 = vsel %vm145, %v4866, 0
    %v4877 = vsel %vm145, %v4867, 0
    %v4880 = vsel %vm145, %v4868, 0
    %v4883 = vsel %vm145, %v4869, 0
    %v4886 = vsel %vm145, %v4872, 0
    %4888 = vmatpush.bf16.xpose.msra.mxu0 0
    %4889 = vmatpush.bf16.xpose.msra.mxu0 0
    %4890 = vmatpush.bf16.xpose.msra.mxu0 0
    %4891 = vmatpush.bf16.xpose.msra.mxu0 0
    %4892 = vmatpush.bf16.xpose.msra.mxu0 0
    %4893 = vmatpush.bf16.xpose.msra.mxu0 0
    %4894 = vmatpush.bf16.xpose.msra.mxu0 0
    %4895 = vmatpush.bf16.xpose.msra.mxu0 %v4886
    %4896 = vmatmul.bf16.gmra.mxu0 %v4874
    %v4897 = vpop.f32.mrf.mxu0
    %v4898 = vadd.f32 %v134, %v4897
    %v4899 = vpop.f32.mrf.mxu0
    %v4900 = vadd.f32 %v135, %v4899
    %4901 = vmatmul.bf16.gmra.mxu0 %v4877
    %v4902 = vpop.f32.mrf.mxu0
    %v4903 = vadd.f32 %v136, %v4902
    %v4904 = vpop.f32.mrf.mxu0
    %v4905 = vadd.f32 %v137, %v4904
    %4906 = vmatmul.bf16.gmra.mxu0 %v4880
    %v4907 = vpop.f32.mrf.mxu0
    %v4908 = vadd.f32 %v138, %v4907
    %v4909 = vpop.f32.mrf.mxu0
    %v4910 = vadd.f32 %v139, %v4909
    %4911 = vmatmul.bf16.gmra.mxu0 %v4883
    %v4912 = vpop.f32.mrf.mxu0
    %v4913 = vadd.f32 %v140, %v4912
    %v4914 = vpop.f32.mrf.mxu0
    %v4915 = vadd.f32 %v141, %v4914
    %4916 = vdwg.mxu0
    %v4917 = vsel %vm360, %v4898, -inf
    %4918 = vmax.xlane.f32.xlu0 %v4917
    %v4919 = vpop.xlane.xlu0 %4918
    %v4920 = vsel %vm360, %v4900, -inf
    %4921 = vmax.xlane.f32.xlu0 %v4920
    %v4922 = vpop.xlane.xlu0 %4921
    %v4923 = vsel %vm360, %v4903, -inf
    %4924 = vmax.xlane.f32.xlu0 %v4923
    %v4925 = vpop.xlane.xlu0 %4924
    %v4926 = vsel %vm360, %v4905, -inf
    %4927 = vmax.xlane.f32.xlu0 %v4926
    %v4928 = vpop.xlane.xlu0 %4927
    %v4929 = vsel %vm360, %v4908, -inf
    %4930 = vmax.xlane.f32.xlu0 %v4929
    %v4931 = vpop.xlane.xlu0 %4930
    %v4932 = vsel %vm360, %v4910, -inf
    %4933 = vmax.xlane.f32.xlu0 %v4932
    %v4934 = vpop.xlane.xlu0 %4933
    %v4935 = vsel %vm360, %v4913, -inf
    %4936 = vmax.xlane.f32.xlu0 %v4935
    %v4937 = vpop.xlane.xlu0 %4936
    %v4938 = vsel %vm360, %v4915, -inf
    %4939 = vmax.xlane.f32.xlu0 %v4938
    %v4940 = vpop.xlane.xlu0 %4939
    %v4941 = vsub.f32 %v4898, %v4919
    %v4942 = vsub.f32 %v4900, %v4922
    %v4943 = vsub.f32 %v4903, %v4925
    %v4944 = vsub.f32 %v4905, %v4928
    %v4945 = vsub.f32 %v4908, %v4931
    %v4946 = vsub.f32 %v4910, %v4934
    %v4947 = vsub.f32 %v4913, %v4937
    %v4948 = vsub.f32 %v4915, %v4940
    %v4949 = vmul.f32 %v4941, 1.442695
    %v4950 = vpow.pop %v4949
    %v4951 = vmul.f32 %v4942, 1.442695
    %v4952 = vpow.pop %v4951
    %v4953 = vmul.f32 %v4943, 1.442695
    %v4954 = vpow.pop %v4953
    %v4955 = vmul.f32 %v4944, 1.442695
    %v4956 = vpow.pop %v4955
    %v4957 = vmul.f32 %v4945, 1.442695
    %v4958 = vpow.pop %v4957
    %v4959 = vmul.f32 %v4946, 1.442695
    %v4960 = vpow.pop %v4959
    %v4961 = vmul.f32 %v4947, 1.442695
    %v4962 = vpow.pop %v4961
    %v4963 = vmul.f32 %v4948, 1.442695
    %v4964 = vpow.pop %v4963
    %v4965 = vsel %vm360, %v4950, 0.0
    %4966 = vadd.xlane.f32.xlu0 %v4965
    %v4967 = vpop.xlane.xlu0 %4966
    %v4968 = vsel %vm360, %v4952, 0.0
    %4969 = vadd.xlane.f32.xlu0 %v4968
    %v4970 = vpop.xlane.xlu0 %4969
    %v4971 = vsel %vm360, %v4954, 0.0
    %4972 = vadd.xlane.f32.xlu0 %v4971
    %v4973 = vpop.xlane.xlu0 %4972
    %v4974 = vsel %vm360, %v4956, 0.0
    %4975 = vadd.xlane.f32.xlu0 %v4974
    %v4976 = vpop.xlane.xlu0 %4975
    %v4977 = vsel %vm360, %v4958, 0.0
    %4978 = vadd.xlane.f32.xlu0 %v4977
    %v4979 = vpop.xlane.xlu0 %4978
    %v4980 = vsel %vm360, %v4960, 0.0
    %4981 = vadd.xlane.f32.xlu0 %v4980
    %v4982 = vpop.xlane.xlu0 %4981
    %v4983 = vsel %vm360, %v4962, 0.0
    %4984 = vadd.xlane.f32.xlu0 %v4983
    %v4985 = vpop.xlane.xlu0 %4984
    %v4986 = vsel %vm360, %v4964, 0.0
    %4987 = vadd.xlane.f32.xlu0 %v4986
    %v4988 = vpop.xlane.xlu0 %4987
    %v4989 = vrcp.pop %v4967
    %v4990 = vmul.f32 %v4967, %v4989
    %v4991 = vsub.f32 1.0, %v4990
    %v4992 = vmul.f32 %v4989, %v4991
    %v4993 = vadd.f32 %v4989, %v4992
    %vm4994 = vweird.f32 %v4967
    %vm4995 = vweird.f32 %v4989
    %vm4996 = vmor %vm4994, %vm4995
    %v4997 = vsel %vm4996, %v4989, %v4993
    %v4998 = vand.u32 2147483647, %v4967
    %vm4999 = vcmp.eq.f32.partialorder %v4998, 8.507059e+37
    %v5000 = vand.u32 %v4967, 2147483648
    %v5001 = vor.u32 1.1754944e-38, %v5000
    %v5002 = vsel %vm4999, %v5001, %v4997
    %v5003 = vmul.f32 %v4950, %v5002
    %v5004 = vrcp.pop %v4970
    %v5005 = vmul.f32 %v4970, %v5004
    %v5006 = vsub.f32 1.0, %v5005
    %v5007 = vmul.f32 %v5004, %v5006
    %v5008 = vadd.f32 %v5004, %v5007
    %vm5009 = vweird.f32 %v4970
    %vm5010 = vweird.f32 %v5004
    %vm5011 = vmor %vm5009, %vm5010
    %v5012 = vsel %vm5011, %v5004, %v5008
    %v5013 = vand.u32 2147483647, %v4970
    %vm5014 = vcmp.eq.f32.partialorder %v5013, 8.507059e+37
    %v5015 = vand.u32 %v4970, 2147483648
    %v5016 = vor.u32 1.1754944e-38, %v5015
    %v5017 = vsel %vm5014, %v5016, %v5012
    %v5018 = vmul.f32 %v4952, %v5017
    %v5019 = vrcp.pop %v4973
    %v5020 = vmul.f32 %v4973, %v5019
    %v5021 = vsub.f32 1.0, %v5020
    %v5022 = vmul.f32 %v5019, %v5021
    %v5023 = vadd.f32 %v5019, %v5022
    %vm5024 = vweird.f32 %v4973
    %vm5025 = vweird.f32 %v5019
    %vm5026 = vmor %vm5024, %vm5025
    %v5027 = vsel %vm5026, %v5019, %v5023
    %v5028 = vand.u32 2147483647, %v4973
    %vm5029 = vcmp.eq.f32.partialorder %v5028, 8.507059e+37
    %v5030 = vand.u32 %v4973, 2147483648
    %v5031 = vor.u32 1.1754944e-38, %v5030
    %v5032 = vsel %vm5029, %v5031, %v5027
    %v5033 = vmul.f32 %v4954, %v5032
    %v5034 = vrcp.pop %v4976
    %v5035 = vmul.f32 %v4976, %v5034
    %v5036 = vsub.f32 1.0, %v5035
    %v5037 = vmul.f32 %v5034, %v5036
    %v5038 = vadd.f32 %v5034, %v5037
    %vm5039 = vweird.f32 %v4976
    %vm5040 = vweird.f32 %v5034
    %vm5041 = vmor %vm5039, %vm5040
    %v5042 = vsel %vm5041, %v5034, %v5038
    %v5043 = vand.u32 2147483647, %v4976
    %vm5044 = vcmp.eq.f32.partialorder %v5043, 8.507059e+37
    %v5045 = vand.u32 %v4976, 2147483648
    %v5046 = vor.u32 1.1754944e-38, %v5045
    %v5047 = vsel %vm5044, %v5046, %v5042
    %v5048 = vmul.f32 %v4956, %v5047
    %v5049 = vrcp.pop %v4979
    %v5050 = vmul.f32 %v4979, %v5049
    %v5051 = vsub.f32 1.0, %v5050
    %v5052 = vmul.f32 %v5049, %v5051
    %v5053 = vadd.f32 %v5049, %v5052
    %vm5054 = vweird.f32 %v4979
    %vm5055 = vweird.f32 %v5049
    %vm5056 = vmor %vm5054, %vm5055
    %v5057 = vsel %vm5056, %v5049, %v5053
    %v5058 = vand.u32 2147483647, %v4979
    %vm5059 = vcmp.eq.f32.partialorder %v5058, 8.507059e+37
    %v5060 = vand.u32 %v4979, 2147483648
    %v5061 = vor.u32 1.1754944e-38, %v5060
    %v5062 = vsel %vm5059, %v5061, %v5057
    %v5063 = vmul.f32 %v4958, %v5062
    %v5064 = vrcp.pop %v4982
    %v5065 = vmul.f32 %v4982, %v5064
    %v5066 = vsub.f32 1.0, %v5065
    %v5067 = vmul.f32 %v5064, %v5066
    %v5068 = vadd.f32 %v5064, %v5067
    %vm5069 = vweird.f32 %v4982
    %vm5070 = vweird.f32 %v5064
    %vm5071 = vmor %vm5069, %vm5070
    %v5072 = vsel %vm5071, %v5064, %v5068
    %v5073 = vand.u32 2147483647, %v4982
    %vm5074 = vcmp.eq.f32.partialorder %v5073, 8.507059e+37
    %v5075 = vand.u32 %v4982, 2147483648
    %v5076 = vor.u32 1.1754944e-38, %v5075
    %v5077 = vsel %vm5074, %v5076, %v5072
    %v5078 = vmul.f32 %v4960, %v5077
    %v5079 = vrcp.pop %v4985
    %v5080 = vmul.f32 %v4985, %v5079
    %v5081 = vsub.f32 1.0, %v5080
    %v5082 = vmul.f32 %v5079, %v5081
    %v5083 = vadd.f32 %v5079, %v5082
    %vm5084 = vweird.f32 %v4985
    %vm5085 = vweird.f32 %v5079
    %vm5086 = vmor %vm5084, %vm5085
    %v5087 = vsel %vm5086, %v5079, %v5083
    %v5088 = vand.u32 2147483647, %v4985
    %vm5089 = vcmp.eq.f32.partialorder %v5088, 8.507059e+37
    %v5090 = vand.u32 %v4985, 2147483648
    %v5091 = vor.u32 1.1754944e-38, %v5090
    %v5092 = vsel %vm5089, %v5091, %v5087
    %v5093 = vmul.f32 %v4962, %v5092
    %v5094 = vrcp.pop %v4988
    %v5095 = vmul.f32 %v4988, %v5094
    %v5096 = vsub.f32 1.0, %v5095
    %v5097 = vmul.f32 %v5094, %v5096
    %v5098 = vadd.f32 %v5094, %v5097
    %vm5099 = vweird.f32 %v4988
    %vm5100 = vweird.f32 %v5094
    %vm5101 = vmor %vm5099, %vm5100
    %v5102 = vsel %vm5101, %v5094, %v5098
    %v5103 = vand.u32 2147483647, %v4988
    %vm5104 = vcmp.eq.f32.partialorder %v5103, 8.507059e+37
    %v5105 = vand.u32 %v4988, 2147483648
    %v5106 = vor.u32 1.1754944e-38, %v5105
    %v5107 = vsel %vm5104, %v5106, %v5102
    %v5108 = vmul.f32 %v4964, %v5107
    %v5109 = vpack.c.bf16 %v5018, %v5003
    %v5110 = vpack.c.bf16 %v5048, %v5033
    %v5111 = vpack.c.bf16 %v5078, %v5063
    %v5112 = vpack.c.bf16 %v5108, %v5093
    %v5114 = vsel %vm360, %v5109, 0
    %v5117 = vsel %vm360, %v5110, 0
    %v5120 = vsel %vm360, %v5111, 0
    %v5123 = vsel %vm360, %v5112, 0
    %5125 = vmatpush.bf16.msra.mxu0 0
    %5126 = vmatpush.bf16.msra.mxu0 0
    %5127 = vmatpush.bf16.msra.mxu0 0
    %5128 = vmatpush.bf16.msra.mxu0 0
    %5129 = vmatpush.bf16.msra.mxu0 0
    %5130 = vmatpush.bf16.msra.mxu0 0
    %5131 = vmatpush.bf16.msra.mxu0 0
    %5132 = vmatpush.bf16.msra.mxu0 %v4857
    %5133 = vmatmul.bf16.gmra.mxu0 %v5114
    %v5134 = vpop.f32.mrf.mxu0
    %v5135 = vadd.f32 0.0, %v5134
    %v5136 = vpop.f32.mrf.mxu0
    %v5137 = vadd.f32 0.0, %v5136
    %5138 = vmatmul.bf16.gmra.mxu0 %v5117
    %v5139 = vpop.f32.mrf.mxu0
    %v5140 = vadd.f32 0.0, %v5139
    %v5141 = vpop.f32.mrf.mxu0
    %v5142 = vadd.f32 0.0, %v5141
    %5143 = vmatmul.bf16.gmra.mxu0 %v5120
    %v5144 = vpop.f32.mrf.mxu0
    %v5145 = vadd.f32 0.0, %v5144
    %v5146 = vpop.f32.mrf.mxu0
    %v5147 = vadd.f32 0.0, %v5146
    %5148 = vmatmul.bf16.gmra.mxu0 %v5123
    %v5149 = vpop.f32.mrf.mxu0
    %v5150 = vadd.f32 0.0, %v5149
    %v5151 = vpop.f32.mrf.mxu0
    %v5152 = vadd.f32 0.0, %v5151
    %5153 = vdwg.mxu0
    %v5154 = vmul.f32 %v5135, %v297
    %v5155 = vmul.f32 %v5137, %v297
    %v5156 = vmul.f32 %v5140, %v300
    %v5157 = vmul.f32 %v5142, %v300
    %v5158 = vadd.f32 %v5154, %v5156
    %v5159 = vadd.f32 %v5155, %v5157
    %v5160 = vmul.f32 %v5145, %v303
    %v5161 = vmul.f32 %v5147, %v303
    %v5162 = vadd.f32 %v5158, %v5160
    %v5163 = vadd.f32 %v5159, %v5161
    %v5164 = vmul.f32 %v5150, %v306
    %v5165 = vmul.f32 %v5152, %v306
    %v5166 = vadd.f32 %v5162, %v5164
    %v5167 = vadd.f32 %v5163, %v5165
    %v5168 = vpack.c.bf16 %v5167, %v5166
    %v5169 = vld [vmem:[%s3221] sm:$0xf]
    %v5170 = vld [vmem:[%s3221 + $0x4] sm:$0xf]
    %v5171 = vld [vmem:[%s3221 + $0x8] sm:$0xf]
    %v5172 = vld [vmem:[%s3221 + $0xc] sm:$0xf]
    %v5177 = vunpack.c.l.b16 %v5169
    %v5178 = vunpack.c.l.b16 %v5170
    %v5179 = vunpack.c.l.b16 %v5171
    %v5180 = vunpack.c.l.b16 %v5172
    %v5181 = vpack.c.b16 %v5178, %v5177
    %v5182 = vpack.c.b16 %v5180, %v5179
    %v5186 = vsel %vm145, %v5168, 0
    %5188 = vmatpush.bf16.msra.mxu0 0
    %5189 = vmatpush.bf16.msra.mxu0 0
    %5190 = vmatpush.bf16.msra.mxu0 0
    %5191 = vmatpush.bf16.msra.mxu0 0
    %5192 = vmatpush.bf16.msra.mxu0 0
    %5193 = vmatpush.bf16.msra.mxu0 0
    %5194 = vmatpush.bf16.msra.mxu0 %v5182
    %5195 = vmatpush.bf16.msra.mxu0 %v5181
    %5196 = vmatmul.bf16.gmra.mxu0 %v5186
    %v5197 = vpop.f32.mrf.mxu0
    %v5198 = vadd.f32 0.0, %v5197
    %v5199 = vpop.f32.mrf.mxu0
    %v5200 = vadd.f32 0.0, %v5199
    %5201 = vdwg.mxu0
    %v5202 = vadd.f32 %v4731, %v5198
    %v5203 = vadd.f32 %v4732, %v5200
    %v5204 = vld [vmem:[%s3257] sm:$0x1]
    %v5205 = vmul.f32 %v5202, %v5202
    %v5206 = vmul.f32 %v5203, %v5203
    %v5207 = vsel %vm145, %v5205, 0.0
    %5208 = vadd.xlane.f32.xlu0 %v5207
    %v5209 = vpop.xlane.xlu0 %5208
    %v5210 = vsel %vm145, %v5206, 0.0
    %5211 = vadd.xlane.f32.xlu0 %v5210
    %v5212 = vpop.xlane.xlu0 %5211
    %v5213 = vmul.f32 %v5209, %v158
    %v5214 = vmul.f32 %v5212, %v158
    %v5215 = vadd.f32 %v5213, 1e-06
    %v5216 = vadd.f32 %v5214, 1e-06
    %v5217 = vrsqrt.pop %v5215
    %v5218 = vmul.f32 %v5217, %v5215
    %v5219 = vmul.f32 %v5218, %v5217
    %v5220 = vmul.f32 0.5, %v5219
    %v5221 = vsub.f32 1.5, %v5220
    %v5222 = vmul.f32 %v5217, %v5221
    %vm5223 = vweird.f32 %v5215
    %vm5224 = vweird.f32 %v5217
    %vm5225 = vmor %vm5223, %vm5224
    %v5226 = vsel %vm5225, %v5217, %v5222
    %v5227 = vrsqrt.pop %v5216
    %v5228 = vmul.f32 %v5227, %v5216
    %v5229 = vmul.f32 %v5228, %v5227
    %v5230 = vmul.f32 0.5, %v5229
    %v5231 = vsub.f32 1.5, %v5230
    %v5232 = vmul.f32 %v5227, %v5231
    %vm5233 = vweird.f32 %v5216
    %vm5234 = vweird.f32 %v5227
    %vm5235 = vmor %vm5233, %vm5234
    %v5236 = vsel %vm5235, %v5227, %v5232
    %v5237 = vmul.f32 %v5202, %v5226
    %v5238 = vmul.f32 %v5203, %v5236
    %v5239 = vunpack.c.l.bf16 %v5204
    %v5240 = vperm.slane %v5239, 0
    %v5241 = vmul.f32 %v5237, %v5240
    %v5242 = vmul.f32 %v5238, %v5240
    %v5243 = vpack.c.bf16 %v5242, %v5241
    %v5244 = vld [vmem:[%s3298] sm:$0xf]
    %v5245 = vld [vmem:[%s3298 + $0x4] sm:$0xf]
    %v5246 = vld [vmem:[%s3298 + $0x8] sm:$0xf]
    %v5247 = vld [vmem:[%s3298 + $0xc] sm:$0xf]
    %v5252 = vunpack.c.l.b16 %v5244
    %v5253 = vunpack.c.l.b16 %v5245
    %v5254 = vunpack.c.l.b16 %v5246
    %v5255 = vunpack.c.l.b16 %v5247
    %v5256 = vpack.c.b16 %v5253, %v5252
    %v5257 = vpack.c.b16 %v5255, %v5254
    %v5261 = vsel %vm145, %v5243, 0
    %5263 = vmatpush.bf16.msra.mxu0 0
    %5264 = vmatpush.bf16.msra.mxu0 0
    %5265 = vmatpush.bf16.msra.mxu0 0
    %5266 = vmatpush.bf16.msra.mxu0 0
    %5267 = vmatpush.bf16.msra.mxu0 0
    %5268 = vmatpush.bf16.msra.mxu0 0
    %5269 = vmatpush.bf16.msra.mxu0 %v5257
    %5270 = vmatpush.bf16.msra.mxu0 %v5256
    %5271 = vmatmul.bf16.gmra.mxu0 %v5261
    %v5272 = vpop.f32.mrf.mxu0
    %v5273 = vadd.f32 0.0, %v5272
    %v5274 = vpop.f32.mrf.mxu0
    %v5275 = vadd.f32 0.0, %v5274
    %5276 = vdwg.mxu0
    %v5277 = vxor.u32 %v5273, 2147483648
    %v5278 = vxor.u32 %v5275, 2147483648
    %v5279 = vmul.f32 %v5277, 1.442695
    %v5280 = vpow.pop %v5279
    %v5281 = vmul.f32 %v5278, 1.442695
    %v5282 = vpow.pop %v5281
    %v5283 = vadd.f32 %v5280, 1.0
    %v5284 = vadd.f32 %v5282, 1.0
    %v5285 = vrcp.pop %v5283
    %v5286 = vmul.f32 %v5283, %v5285
    %v5287 = vsub.f32 1.0, %v5286
    %v5288 = vmul.f32 %v5285, %v5287
    %v5289 = vadd.f32 %v5285, %v5288
    %vm5290 = vweird.f32 %v5283
    %vm5291 = vweird.f32 %v5285
    %vm5292 = vmor %vm5290, %vm5291
    %v5293 = vsel %vm5292, %v5285, %v5289
    %v5294 = vand.u32 2147483647, %v5283
    %vm5295 = vcmp.eq.f32.partialorder %v5294, 8.507059e+37
    %v5296 = vand.u32 %v5283, 2147483648
    %v5297 = vor.u32 1.1754944e-38, %v5296
    %v5298 = vsel %vm5295, %v5297, %v5293
    %v5299 = vmul.f32 1.0, %v5298
    %v5300 = vrcp.pop %v5284
    %v5301 = vmul.f32 %v5284, %v5300
    %v5302 = vsub.f32 1.0, %v5301
    %v5303 = vmul.f32 %v5300, %v5302
    %v5304 = vadd.f32 %v5300, %v5303
    %vm5305 = vweird.f32 %v5284
    %vm5306 = vweird.f32 %v5300
    %vm5307 = vmor %vm5305, %vm5306
    %v5308 = vsel %vm5307, %v5300, %v5304
    %v5309 = vand.u32 2147483647, %v5284
    %vm5310 = vcmp.eq.f32.partialorder %v5309, 8.507059e+37
    %v5311 = vand.u32 %v5284, 2147483648
    %v5312 = vor.u32 1.1754944e-38, %v5311
    %v5313 = vsel %vm5310, %v5312, %v5308
    %v5314 = vmul.f32 1.0, %v5313
    %v5315 = vmul.f32 %v5273, %v5299
    %v5316 = vmul.f32 %v5275, %v5314
    %5319 = vrot.lane.b32.xlu0 %v5273, 64
    %v5320 = vpop.permute.xlu0 %5319
    %5321 = vrot.lane.b32.xlu0 %v5275, 64
    %v5322 = vpop.permute.xlu0 %5321
    %v5325 = vmul.f32 %v5315, %v5320
    %v5326 = vmul.f32 %v5316, %v5322
    %v5327 = vpack.c.bf16 %v5326, %v5325
    %v5328 = vld [vmem:[%s3383] sm:$0xf]
    %v5329 = vld [vmem:[%s3383 + $0x4] sm:$0xf]
    %v5330 = vld [vmem:[%s3383 + $0x8] sm:$0xf]
    %v5331 = vld [vmem:[%s3383 + $0xc] sm:$0xf]
    %v5332 = vld [vmem:[%s3383 + $0x10] sm:$0xf]
    %v5333 = vld [vmem:[%s3383 + $0x14] sm:$0xf]
    %v5334 = vld [vmem:[%s3383 + $0x18] sm:$0xf]
    %v5335 = vld [vmem:[%s3383 + $0x1c] sm:$0xf]
    %v5344 = vunpack.c.l.b16 %v5328
    %v5345 = vunpack.c.l.b16 %v5329
    %v5346 = vunpack.c.l.b16 %v5330
    %v5347 = vunpack.c.l.b16 %v5331
    %v5348 = vunpack.c.l.b16 %v5332
    %v5349 = vunpack.c.l.b16 %v5333
    %v5350 = vunpack.c.l.b16 %v5334
    %v5351 = vunpack.c.l.b16 %v5335
    %v5352 = vpack.c.b16 %v5345, %v5344
    %v5353 = vpack.c.b16 %v5347, %v5346
    %v5354 = vpack.c.b16 %v5349, %v5348
    %v5355 = vpack.c.b16 %v5351, %v5350
    %v5361 = vsel %vm111, %v5327, 0
    %5363 = vmatpush.bf16.msra.mxu0 0
    %5364 = vmatpush.bf16.msra.mxu0 0
    %5365 = vmatpush.bf16.msra.mxu0 0
    %5366 = vmatpush.bf16.msra.mxu0 0
    %5367 = vmatpush.bf16.msra.mxu0 %v5355
    %5368 = vmatpush.bf16.msra.mxu0 %v5354
    %5369 = vmatpush.bf16.msra.mxu0 %v5353
    %5370 = vmatpush.bf16.msra.mxu0 %v5352
    %5371 = vmatmul.bf16.gmra.mxu0 %v5361
    %v5372 = vpop.f32.mrf.mxu0
    %v5373 = vadd.f32 0.0, %v5372
    %v5374 = vpop.f32.mrf.mxu0
    %v5375 = vadd.f32 0.0, %v5374
    %5376 = vdwg.mxu0
    %v5377 = vadd.f32 %v5202, %v5373
    %v5378 = vadd.f32 %v5203, %v5375
    %v5379 = vadd.f32 %v5377, %v1473
    %v5380 = vadd.f32 %v5378, %v1474
    %s5381 = scalar_lea.vmem %s6, 5
    %v5382 = vld [vmem:[%s5381] sm:$0x1]
    %v5383 = vmul.f32 %v5379, %v5379
    %v5384 = vmul.f32 %v5380, %v5380
    %v5385 = vsel %vm145, %v5383, 0.0
    %5386 = vadd.xlane.f32.xlu0 %v5385
    %v5387 = vpop.xlane.xlu0 %5386
    %v5388 = vsel %vm145, %v5384, 0.0
    %5389 = vadd.xlane.f32.xlu0 %v5388
    %v5390 = vpop.xlane.xlu0 %5389
    %v5391 = vmul.f32 %v5387, %v158
    %v5392 = vmul.f32 %v5390, %v158
    %v5393 = vadd.f32 %v5391, 1e-06
    %v5394 = vadd.f32 %v5392, 1e-06
    %v5395 = vrsqrt.pop %v5393
    %v5396 = vmul.f32 %v5395, %v5393
    %v5397 = vmul.f32 %v5396, %v5395
    %v5398 = vmul.f32 0.5, %v5397
    %v5399 = vsub.f32 1.5, %v5398
    %v5400 = vmul.f32 %v5395, %v5399
    %vm5401 = vweird.f32 %v5393
    %vm5402 = vweird.f32 %v5395
    %vm5403 = vmor %vm5401, %vm5402
    %v5404 = vsel %vm5403, %v5395, %v5400
    %v5405 = vrsqrt.pop %v5394
    %v5406 = vmul.f32 %v5405, %v5394
    %v5407 = vmul.f32 %v5406, %v5405
    %v5408 = vmul.f32 0.5, %v5407
    %v5409 = vsub.f32 1.5, %v5408
    %v5410 = vmul.f32 %v5405, %v5409
    %vm5411 = vweird.f32 %v5394
    %vm5412 = vweird.f32 %v5405
    %vm5413 = vmor %vm5411, %vm5412
    %v5414 = vsel %vm5413, %v5405, %v5410
    %v5415 = vmul.f32 %v5379, %v5404
    %v5416 = vmul.f32 %v5380, %v5414
    %v5417 = vunpack.c.l.bf16 %v5382
    %v5418 = vperm.slane %v5417, 0
    %v5419 = vmul.f32 %v5415, %v5418
    %v5420 = vmul.f32 %v5416, %v5418
    %v5421 = vpack.c.bf16 %v5420, %v5419
    %s5422 = scalar_lea.vmem %s7, 160
    %v5423 = vld [vmem:[%s5422] sm:$0xff]
    %v5424 = vld [vmem:[%s5422 + $0x8] sm:$0xff]
    %v5425 = vld [vmem:[%s5422 + $0x10] sm:$0xff]
    %v5426 = vld [vmem:[%s5422 + $0x18] sm:$0xff]
    %v5431 = vunpack.c.l.b16 %v5423
    %v5432 = vunpack.c.h.b16 %v5423
    %v5433 = vunpack.c.l.b16 %v5424
    %v5434 = vunpack.c.h.b16 %v5424
    %v5435 = vunpack.c.l.b16 %v5425
    %v5436 = vunpack.c.h.b16 %v5425
    %v5437 = vunpack.c.l.b16 %v5426
    %v5438 = vunpack.c.h.b16 %v5426
    %v5439 = vpack.c.b16 %v5433, %v5431
    %v5440 = vpack.c.b16 %v5434, %v5432
    %v5441 = vpack.c.b16 %v5437, %v5435
    %v5442 = vpack.c.b16 %v5438, %v5436
    %v5448 = vsel %vm145, %v5421, 0
    %5450 = vmatpush.bf16.msra.mxu0 0
    %5451 = vmatpush.bf16.msra.mxu0 0
    %5452 = vmatpush.bf16.msra.mxu0 0
    %5453 = vmatpush.bf16.msra.mxu0 0
    %5454 = vmatpush.bf16.msra.mxu0 0
    %5455 = vmatpush.bf16.msra.mxu0 0
    %5456 = vmatpush.bf16.msra.mxu0 %v5441
    %5457 = vmatpush.bf16.msra.mxu0 %v5439
    %5458 = vmatmul.bf16.gmra.mxu0 %v5448
    %v5459 = vpop.f32.mrf.mxu0
    %v5460 = vadd.f32 0.0, %v5459
    %v5461 = vpop.f32.mrf.mxu0
    %v5462 = vadd.f32 0.0, %v5461
    %5463 = vdwg.mxu0
    %5464 = vmatpush.bf16.msra.mxu0 0
    %5465 = vmatpush.bf16.msra.mxu0 0
    %5466 = vmatpush.bf16.msra.mxu0 0
    %5467 = vmatpush.bf16.msra.mxu0 0
    %5468 = vmatpush.bf16.msra.mxu0 0
    %5469 = vmatpush.bf16.msra.mxu0 0
    %5470 = vmatpush.bf16.msra.mxu0 %v5442
    %5471 = vmatpush.bf16.msra.mxu0 %v5440
    %5472 = vmatmul.bf16.gmra.mxu0 %v5448
    %v5473 = vpop.f32.mrf.mxu0
    %v5474 = vadd.f32 0.0, %v5473
    %v5475 = vpop.f32.mrf.mxu0
    %v5476 = vadd.f32 0.0, %v5475
    %5477 = vdwg.mxu0
    %v5478 = vmul.f32 %v5460, %v129
    %v5479 = vmul.f32 %v5462, %v130
    %v5480 = vmul.f32 %v5460, %v250
    %v5481 = vmul.f32 %v5462, %v252
    %5484 = vrot.lane.b32.xlu0 %v5480, 96
    %v5485 = vpop.permute.xlu0 %5484
    %5486 = vrot.lane.b32.xlu0 %v5481, 96
    %v5487 = vpop.permute.xlu0 %5486
    %v5490 = vadd.f32 %v5478, %v5485
    %v5491 = vadd.f32 %v5479, %v5487
    %v5492 = vmul.f32 %v5460, %v270
    %v5493 = vmul.f32 %v5462, %v272
    %v5494 = vmul.f32 %v5460, %v278
    %v5495 = vmul.f32 %v5462, %v280
    %5498 = vrot.lane.b32.xlu0 %v5494, 96
    %v5499 = vpop.permute.xlu0 %5498
    %5500 = vrot.lane.b32.xlu0 %v5495, 96
    %v5501 = vpop.permute.xlu0 %5500
    %v5504 = vadd.f32 %v5492, %v5499
    %v5505 = vadd.f32 %v5493, %v5501
    %v5506 = vpack.c.bf16 %v5505, %v5504
    %v5507 = vpack.c.bf16 %v5476, %v5474
    %v5508 = vmul.f32 %v5490, %v297
    %v5509 = vmul.f32 %v5491, %v297
    %v5510 = vmul.f32 %v5490, %v300
    %v5511 = vmul.f32 %v5491, %v300
    %v5512 = vmul.f32 %v5490, %v303
    %v5513 = vmul.f32 %v5491, %v303
    %v5514 = vmul.f32 %v5490, %v306
    %v5515 = vmul.f32 %v5491, %v306
    %v5516 = vpack.c.bf16 %v5509, %v5508
    %v5517 = vpack.c.bf16 %v5511, %v5510
    %v5518 = vpack.c.bf16 %v5513, %v5512
    %v5519 = vpack.c.bf16 %v5515, %v5514
    %5521 = vrot.lane.b32.xlu0 %v5506, 64
    %v5522 = vpop.permute.xlu0 %5521
    %v5524 = vsel %vm145, %v5516, 0
    %v5527 = vsel %vm145, %v5517, 0
    %v5530 = vsel %vm145, %v5518, 0
    %v5533 = vsel %vm145, %v5519, 0
    %v5536 = vsel %vm145, %v5522, 0
    %5538 = vmatpush.bf16.xpose.msra.mxu0 0
    %5539 = vmatpush.bf16.xpose.msra.mxu0 0
    %5540 = vmatpush.bf16.xpose.msra.mxu0 0
    %5541 = vmatpush.bf16.xpose.msra.mxu0 0
    %5542 = vmatpush.bf16.xpose.msra.mxu0 0
    %5543 = vmatpush.bf16.xpose.msra.mxu0 0
    %5544 = vmatpush.bf16.xpose.msra.mxu0 0
    %5545 = vmatpush.bf16.xpose.msra.mxu0 %v5536
    %5546 = vmatmul.bf16.gmra.mxu0 %v5524
    %v5547 = vpop.f32.mrf.mxu0
    %v5548 = vadd.f32 %v134, %v5547
    %v5549 = vpop.f32.mrf.mxu0
    %v5550 = vadd.f32 %v135, %v5549
    %5551 = vmatmul.bf16.gmra.mxu0 %v5527
    %v5552 = vpop.f32.mrf.mxu0
    %v5553 = vadd.f32 %v136, %v5552
    %v5554 = vpop.f32.mrf.mxu0
    %v5555 = vadd.f32 %v137, %v5554
    %5556 = vmatmul.bf16.gmra.mxu0 %v5530
    %v5557 = vpop.f32.mrf.mxu0
    %v5558 = vadd.f32 %v138, %v5557
    %v5559 = vpop.f32.mrf.mxu0
    %v5560 = vadd.f32 %v139, %v5559
    %5561 = vmatmul.bf16.gmra.mxu0 %v5533
    %v5562 = vpop.f32.mrf.mxu0
    %v5563 = vadd.f32 %v140, %v5562
    %v5564 = vpop.f32.mrf.mxu0
    %v5565 = vadd.f32 %v141, %v5564
    %5566 = vdwg.mxu0
    %v5567 = vsel %vm360, %v5548, -inf
    %5568 = vmax.xlane.f32.xlu0 %v5567
    %v5569 = vpop.xlane.xlu0 %5568
    %v5570 = vsel %vm360, %v5550, -inf
    %5571 = vmax.xlane.f32.xlu0 %v5570
    %v5572 = vpop.xlane.xlu0 %5571
    %v5573 = vsel %vm360, %v5553, -inf
    %5574 = vmax.xlane.f32.xlu0 %v5573
    %v5575 = vpop.xlane.xlu0 %5574
    %v5576 = vsel %vm360, %v5555, -inf
    %5577 = vmax.xlane.f32.xlu0 %v5576
    %v5578 = vpop.xlane.xlu0 %5577
    %v5579 = vsel %vm360, %v5558, -inf
    %5580 = vmax.xlane.f32.xlu0 %v5579
    %v5581 = vpop.xlane.xlu0 %5580
    %v5582 = vsel %vm360, %v5560, -inf
    %5583 = vmax.xlane.f32.xlu0 %v5582
    %v5584 = vpop.xlane.xlu0 %5583
    %v5585 = vsel %vm360, %v5563, -inf
    %5586 = vmax.xlane.f32.xlu0 %v5585
    %v5587 = vpop.xlane.xlu0 %5586
    %v5588 = vsel %vm360, %v5565, -inf
    %5589 = vmax.xlane.f32.xlu0 %v5588
    %v5590 = vpop.xlane.xlu0 %5589
    %v5591 = vsub.f32 %v5548, %v5569
    %v5592 = vsub.f32 %v5550, %v5572
    %v5593 = vsub.f32 %v5553, %v5575
    %v5594 = vsub.f32 %v5555, %v5578
    %v5595 = vsub.f32 %v5558, %v5581
    %v5596 = vsub.f32 %v5560, %v5584
    %v5597 = vsub.f32 %v5563, %v5587
    %v5598 = vsub.f32 %v5565, %v5590
    %v5599 = vmul.f32 %v5591, 1.442695
    %v5600 = vpow.pop %v5599
    %v5601 = vmul.f32 %v5592, 1.442695
    %v5602 = vpow.pop %v5601
    %v5603 = vmul.f32 %v5593, 1.442695
    %v5604 = vpow.pop %v5603
    %v5605 = vmul.f32 %v5594, 1.442695
    %v5606 = vpow.pop %v5605
    %v5607 = vmul.f32 %v5595, 1.442695
    %v5608 = vpow.pop %v5607
    %v5609 = vmul.f32 %v5596, 1.442695
    %v5610 = vpow.pop %v5609
    %v5611 = vmul.f32 %v5597, 1.442695
    %v5612 = vpow.pop %v5611
    %v5613 = vmul.f32 %v5598, 1.442695
    %v5614 = vpow.pop %v5613
    %v5615 = vsel %vm360, %v5600, 0.0
    %5616 = vadd.xlane.f32.xlu0 %v5615
    %v5617 = vpop.xlane.xlu0 %5616
    %v5618 = vsel %vm360, %v5602, 0.0
    %5619 = vadd.xlane.f32.xlu0 %v5618
    %v5620 = vpop.xlane.xlu0 %5619
    %v5621 = vsel %vm360, %v5604, 0.0
    %5622 = vadd.xlane.f32.xlu0 %v5621
    %v5623 = vpop.xlane.xlu0 %5622
    %v5624 = vsel %vm360, %v5606, 0.0
    %5625 = vadd.xlane.f32.xlu0 %v5624
    %v5626 = vpop.xlane.xlu0 %5625
    %v5627 = vsel %vm360, %v5608, 0.0
    %5628 = vadd.xlane.f32.xlu0 %v5627
    %v5629 = vpop.xlane.xlu0 %5628
    %v5630 = vsel %vm360, %v5610, 0.0
    %5631 = vadd.xlane.f32.xlu0 %v5630
    %v5632 = vpop.xlane.xlu0 %5631
    %v5633 = vsel %vm360, %v5612, 0.0
    %5634 = vadd.xlane.f32.xlu0 %v5633
    %v5635 = vpop.xlane.xlu0 %5634
    %v5636 = vsel %vm360, %v5614, 0.0
    %5637 = vadd.xlane.f32.xlu0 %v5636
    %v5638 = vpop.xlane.xlu0 %5637
    %v5639 = vrcp.pop %v5617
    %v5640 = vmul.f32 %v5617, %v5639
    %v5641 = vsub.f32 1.0, %v5640
    %v5642 = vmul.f32 %v5639, %v5641
    %v5643 = vadd.f32 %v5639, %v5642
    %vm5644 = vweird.f32 %v5617
    %vm5645 = vweird.f32 %v5639
    %vm5646 = vmor %vm5644, %vm5645
    %v5647 = vsel %vm5646, %v5639, %v5643
    %v5648 = vand.u32 2147483647, %v5617
    %vm5649 = vcmp.eq.f32.partialorder %v5648, 8.507059e+37
    %v5650 = vand.u32 %v5617, 2147483648
    %v5651 = vor.u32 1.1754944e-38, %v5650
    %v5652 = vsel %vm5649, %v5651, %v5647
    %v5653 = vmul.f32 %v5600, %v5652
    %v5654 = vrcp.pop %v5620
    %v5655 = vmul.f32 %v5620, %v5654
    %v5656 = vsub.f32 1.0, %v5655
    %v5657 = vmul.f32 %v5654, %v5656
    %v5658 = vadd.f32 %v5654, %v5657
    %vm5659 = vweird.f32 %v5620
    %vm5660 = vweird.f32 %v5654
    %vm5661 = vmor %vm5659, %vm5660
    %v5662 = vsel %vm5661, %v5654, %v5658
    %v5663 = vand.u32 2147483647, %v5620
    %vm5664 = vcmp.eq.f32.partialorder %v5663, 8.507059e+37
    %v5665 = vand.u32 %v5620, 2147483648
    %v5666 = vor.u32 1.1754944e-38, %v5665
    %v5667 = vsel %vm5664, %v5666, %v5662
    %v5668 = vmul.f32 %v5602, %v5667
    %v5669 = vrcp.pop %v5623
    %v5670 = vmul.f32 %v5623, %v5669
    %v5671 = vsub.f32 1.0, %v5670
    %v5672 = vmul.f32 %v5669, %v5671
    %v5673 = vadd.f32 %v5669, %v5672
    %vm5674 = vweird.f32 %v5623
    %vm5675 = vweird.f32 %v5669
    %vm5676 = vmor %vm5674, %vm5675
    %v5677 = vsel %vm5676, %v5669, %v5673
    %v5678 = vand.u32 2147483647, %v5623
    %vm5679 = vcmp.eq.f32.partialorder %v5678, 8.507059e+37
    %v5680 = vand.u32 %v5623, 2147483648
    %v5681 = vor.u32 1.1754944e-38, %v5680
    %v5682 = vsel %vm5679, %v5681, %v5677
    %v5683 = vmul.f32 %v5604, %v5682
    %v5684 = vrcp.pop %v5626
    %v5685 = vmul.f32 %v5626, %v5684
    %v5686 = vsub.f32 1.0, %v5685
    %v5687 = vmul.f32 %v5684, %v5686
    %v5688 = vadd.f32 %v5684, %v5687
    %vm5689 = vweird.f32 %v5626
    %vm5690 = vweird.f32 %v5684
    %vm5691 = vmor %vm5689, %vm5690
    %v5692 = vsel %vm5691, %v5684, %v5688
    %v5693 = vand.u32 2147483647, %v5626
    %vm5694 = vcmp.eq.f32.partialorder %v5693, 8.507059e+37
    %v5695 = vand.u32 %v5626, 2147483648
    %v5696 = vor.u32 1.1754944e-38, %v5695
    %v5697 = vsel %vm5694, %v5696, %v5692
    %v5698 = vmul.f32 %v5606, %v5697
    %v5699 = vrcp.pop %v5629
    %v5700 = vmul.f32 %v5629, %v5699
    %v5701 = vsub.f32 1.0, %v5700
    %v5702 = vmul.f32 %v5699, %v5701
    %v5703 = vadd.f32 %v5699, %v5702
    %vm5704 = vweird.f32 %v5629
    %vm5705 = vweird.f32 %v5699
    %vm5706 = vmor %vm5704, %vm5705
    %v5707 = vsel %vm5706, %v5699, %v5703
    %v5708 = vand.u32 2147483647, %v5629
    %vm5709 = vcmp.eq.f32.partialorder %v5708, 8.507059e+37
    %v5710 = vand.u32 %v5629, 2147483648
    %v5711 = vor.u32 1.1754944e-38, %v5710
    %v5712 = vsel %vm5709, %v5711, %v5707
    %v5713 = vmul.f32 %v5608, %v5712
    %v5714 = vrcp.pop %v5632
    %v5715 = vmul.f32 %v5632, %v5714
    %v5716 = vsub.f32 1.0, %v5715
    %v5717 = vmul.f32 %v5714, %v5716
    %v5718 = vadd.f32 %v5714, %v5717
    %vm5719 = vweird.f32 %v5632
    %vm5720 = vweird.f32 %v5714
    %vm5721 = vmor %vm5719, %vm5720
    %v5722 = vsel %vm5721, %v5714, %v5718
    %v5723 = vand.u32 2147483647, %v5632
    %vm5724 = vcmp.eq.f32.partialorder %v5723, 8.507059e+37
    %v5725 = vand.u32 %v5632, 2147483648
    %v5726 = vor.u32 1.1754944e-38, %v5725
    %v5727 = vsel %vm5724, %v5726, %v5722
    %v5728 = vmul.f32 %v5610, %v5727
    %v5729 = vrcp.pop %v5635
    %v5730 = vmul.f32 %v5635, %v5729
    %v5731 = vsub.f32 1.0, %v5730
    %v5732 = vmul.f32 %v5729, %v5731
    %v5733 = vadd.f32 %v5729, %v5732
    %vm5734 = vweird.f32 %v5635
    %vm5735 = vweird.f32 %v5729
    %vm5736 = vmor %vm5734, %vm5735
    %v5737 = vsel %vm5736, %v5729, %v5733
    %v5738 = vand.u32 2147483647, %v5635
    %vm5739 = vcmp.eq.f32.partialorder %v5738, 8.507059e+37
    %v5740 = vand.u32 %v5635, 2147483648
    %v5741 = vor.u32 1.1754944e-38, %v5740
    %v5742 = vsel %vm5739, %v5741, %v5737
    %v5743 = vmul.f32 %v5612, %v5742
    %v5744 = vrcp.pop %v5638
    %v5745 = vmul.f32 %v5638, %v5744
    %v5746 = vsub.f32 1.0, %v5745
    %v5747 = vmul.f32 %v5744, %v5746
    %v5748 = vadd.f32 %v5744, %v5747
    %vm5749 = vweird.f32 %v5638
    %vm5750 = vweird.f32 %v5744
    %vm5751 = vmor %vm5749, %vm5750
    %v5752 = vsel %vm5751, %v5744, %v5748
    %v5753 = vand.u32 2147483647, %v5638
    %vm5754 = vcmp.eq.f32.partialorder %v5753, 8.507059e+37
    %v5755 = vand.u32 %v5638, 2147483648
    %v5756 = vor.u32 1.1754944e-38, %v5755
    %v5757 = vsel %vm5754, %v5756, %v5752
    %v5758 = vmul.f32 %v5614, %v5757
    %v5759 = vpack.c.bf16 %v5668, %v5653
    %v5760 = vpack.c.bf16 %v5698, %v5683
    %v5761 = vpack.c.bf16 %v5728, %v5713
    %v5762 = vpack.c.bf16 %v5758, %v5743
    %v5764 = vsel %vm360, %v5759, 0
    %v5767 = vsel %vm360, %v5760, 0
    %v5770 = vsel %vm360, %v5761, 0
    %v5773 = vsel %vm360, %v5762, 0
    %5775 = vmatpush.bf16.msra.mxu0 0
    %5776 = vmatpush.bf16.msra.mxu0 0
    %5777 = vmatpush.bf16.msra.mxu0 0
    %5778 = vmatpush.bf16.msra.mxu0 0
    %5779 = vmatpush.bf16.msra.mxu0 0
    %5780 = vmatpush.bf16.msra.mxu0 0
    %5781 = vmatpush.bf16.msra.mxu0 0
    %5782 = vmatpush.bf16.msra.mxu0 %v5507
    %5783 = vmatmul.bf16.gmra.mxu0 %v5764
    %v5784 = vpop.f32.mrf.mxu0
    %v5785 = vadd.f32 0.0, %v5784
    %v5786 = vpop.f32.mrf.mxu0
    %v5787 = vadd.f32 0.0, %v5786
    %5788 = vmatmul.bf16.gmra.mxu0 %v5767
    %v5789 = vpop.f32.mrf.mxu0
    %v5790 = vadd.f32 0.0, %v5789
    %v5791 = vpop.f32.mrf.mxu0
    %v5792 = vadd.f32 0.0, %v5791
    %5793 = vmatmul.bf16.gmra.mxu0 %v5770
    %v5794 = vpop.f32.mrf.mxu0
    %v5795 = vadd.f32 0.0, %v5794
    %v5796 = vpop.f32.mrf.mxu0
    %v5797 = vadd.f32 0.0, %v5796
    %5798 = vmatmul.bf16.gmra.mxu0 %v5773
    %v5799 = vpop.f32.mrf.mxu0
    %v5800 = vadd.f32 0.0, %v5799
    %v5801 = vpop.f32.mrf.mxu0
    %v5802 = vadd.f32 0.0, %v5801
    %5803 = vdwg.mxu0
    %v5804 = vmul.f32 %v5785, %v297
    %v5805 = vmul.f32 %v5787, %v297
    %v5806 = vmul.f32 %v5790, %v300
    %v5807 = vmul.f32 %v5792, %v300
    %v5808 = vadd.f32 %v5804, %v5806
    %v5809 = vadd.f32 %v5805, %v5807
    %v5810 = vmul.f32 %v5795, %v303
    %v5811 = vmul.f32 %v5797, %v303
    %v5812 = vadd.f32 %v5808, %v5810
    %v5813 = vadd.f32 %v5809, %v5811
    %v5814 = vmul.f32 %v5800, %v306
    %v5815 = vmul.f32 %v5802, %v306
    %v5816 = vadd.f32 %v5812, %v5814
    %v5817 = vadd.f32 %v5813, %v5815
    %v5818 = vpack.c.bf16 %v5817, %v5816
    %s5819 = scalar_lea.vmem %s8, 80
    %v5820 = vld [vmem:[%s5819] sm:$0xf]
    %v5821 = vld [vmem:[%s5819 + $0x4] sm:$0xf]
    %v5822 = vld [vmem:[%s5819 + $0x8] sm:$0xf]
    %v5823 = vld [vmem:[%s5819 + $0xc] sm:$0xf]
    %v5828 = vunpack.c.l.b16 %v5820
    %v5829 = vunpack.c.l.b16 %v5821
    %v5830 = vunpack.c.l.b16 %v5822
    %v5831 = vunpack.c.l.b16 %v5823
    %v5832 = vpack.c.b16 %v5829, %v5828
    %v5833 = vpack.c.b16 %v5831, %v5830
    %v5837 = vsel %vm145, %v5818, 0
    %5839 = vmatpush.bf16.msra.mxu0 0
    %5840 = vmatpush.bf16.msra.mxu0 0
    %5841 = vmatpush.bf16.msra.mxu0 0
    %5842 = vmatpush.bf16.msra.mxu0 0
    %5843 = vmatpush.bf16.msra.mxu0 0
    %5844 = vmatpush.bf16.msra.mxu0 0
    %5845 = vmatpush.bf16.msra.mxu0 %v5833
    %5846 = vmatpush.bf16.msra.mxu0 %v5832
    %5847 = vmatmul.bf16.gmra.mxu0 %v5837
    %v5848 = vpop.f32.mrf.mxu0
    %v5849 = vadd.f32 0.0, %v5848
    %v5850 = vpop.f32.mrf.mxu0
    %v5851 = vadd.f32 0.0, %v5850
    %5852 = vdwg.mxu0
    %v5853 = vadd.f32 %v5379, %v5849
    %v5854 = vadd.f32 %v5380, %v5851
    %s5855 = scalar_lea.vmem %s9, 5
    %v5856 = vld [vmem:[%s5855] sm:$0x1]
    %v5857 = vmul.f32 %v5853, %v5853
    %v5858 = vmul.f32 %v5854, %v5854
    %v5859 = vsel %vm145, %v5857, 0.0
    %5860 = vadd.xlane.f32.xlu0 %v5859
    %v5861 = vpop.xlane.xlu0 %5860
    %v5862 = vsel %vm145, %v5858, 0.0
    %5863 = vadd.xlane.f32.xlu0 %v5862
    %v5864 = vpop.xlane.xlu0 %5863
    %v5865 = vmul.f32 %v5861, %v158
    %v5866 = vmul.f32 %v5864, %v158
    %v5867 = vadd.f32 %v5865, 1e-06
    %v5868 = vadd.f32 %v5866, 1e-06
    %v5869 = vrsqrt.pop %v5867
    %v5870 = vmul.f32 %v5869, %v5867
    %v5871 = vmul.f32 %v5870, %v5869
    %v5872 = vmul.f32 0.5, %v5871
    %v5873 = vsub.f32 1.5, %v5872
    %v5874 = vmul.f32 %v5869, %v5873
    %vm5875 = vweird.f32 %v5867
    %vm5876 = vweird.f32 %v5869
    %vm5877 = vmor %vm5875, %vm5876
    %v5878 = vsel %vm5877, %v5869, %v5874
    %v5879 = vrsqrt.pop %v5868
    %v5880 = vmul.f32 %v5879, %v5868
    %v5881 = vmul.f32 %v5880, %v5879
    %v5882 = vmul.f32 0.5, %v5881
    %v5883 = vsub.f32 1.5, %v5882
    %v5884 = vmul.f32 %v5879, %v5883
    %vm5885 = vweird.f32 %v5868
    %vm5886 = vweird.f32 %v5879
    %vm5887 = vmor %vm5885, %vm5886
    %v5888 = vsel %vm5887, %v5879, %v5884
    %v5889 = vmul.f32 %v5853, %v5878
    %v5890 = vmul.f32 %v5854, %v5888
    %v5891 = vunpack.c.l.bf16 %v5856
    %v5892 = vperm.slane %v5891, 0
    %v5893 = vmul.f32 %v5889, %v5892
    %v5894 = vmul.f32 %v5890, %v5892
    %v5895 = vpack.c.bf16 %v5894, %v5893
    %s5896 = scalar_lea.vmem [#allocation2], 80
    %v5897 = vld [vmem:[%s5896] sm:$0xf]
    %v5898 = vld [vmem:[%s5896 + $0x4] sm:$0xf]
    %v5899 = vld [vmem:[%s5896 + $0x8] sm:$0xf]
    %v5900 = vld [vmem:[%s5896 + $0xc] sm:$0xf]
    %v5905 = vunpack.c.l.b16 %v5897
    %v5906 = vunpack.c.l.b16 %v5898
    %v5907 = vunpack.c.l.b16 %v5899
    %v5908 = vunpack.c.l.b16 %v5900
    %v5909 = vpack.c.b16 %v5906, %v5905
    %v5910 = vpack.c.b16 %v5908, %v5907
    %v5914 = vsel %vm145, %v5895, 0
    %5916 = vmatpush.bf16.msra.mxu0 0
    %5917 = vmatpush.bf16.msra.mxu0 0
    %5918 = vmatpush.bf16.msra.mxu0 0
    %5919 = vmatpush.bf16.msra.mxu0 0
    %5920 = vmatpush.bf16.msra.mxu0 0
    %5921 = vmatpush.bf16.msra.mxu0 0
    %5922 = vmatpush.bf16.msra.mxu0 %v5910
    %5923 = vmatpush.bf16.msra.mxu0 %v5909
    %5924 = vmatmul.bf16.gmra.mxu0 %v5914
    %v5925 = vpop.f32.mrf.mxu0
    %v5926 = vadd.f32 0.0, %v5925
    %v5927 = vpop.f32.mrf.mxu0
    %v5928 = vadd.f32 0.0, %v5927
    %5929 = vdwg.mxu0
    %v5930 = vxor.u32 %v5926, 2147483648
    %v5931 = vxor.u32 %v5928, 2147483648
    %v5932 = vmul.f32 %v5930, 1.442695
    %v5933 = vpow.pop %v5932
    %v5934 = vmul.f32 %v5931, 1.442695
    %v5935 = vpow.pop %v5934
    %v5936 = vadd.f32 %v5933, 1.0
    %v5937 = vadd.f32 %v5935, 1.0
    %v5938 = vrcp.pop %v5936
    %v5939 = vmul.f32 %v5936, %v5938
    %v5940 = vsub.f32 1.0, %v5939
    %v5941 = vmul.f32 %v5938, %v5940
    %v5942 = vadd.f32 %v5938, %v5941
    %vm5943 = vweird.f32 %v5936
    %vm5944 = vweird.f32 %v5938
    %vm5945 = vmor %vm5943, %vm5944
    %v5946 = vsel %vm5945, %v5938, %v5942
    %v5947 = vand.u32 2147483647, %v5936
    %vm5948 = vcmp.eq.f32.partialorder %v5947, 8.507059e+37
    %v5949 = vand.u32 %v5936, 2147483648
    %v5950 = vor.u32 1.1754944e-38, %v5949
    %v5951 = vsel %vm5948, %v5950, %v5946
    %v5952 = vmul.f32 1.0, %v5951
    %v5953 = vrcp.pop %v5937
    %v5954 = vmul.f32 %v5937, %v5953
    %v5955 = vsub.f32 1.0, %v5954
    %v5956 = vmul.f32 %v5953, %v5955
    %v5957 = vadd.f32 %v5953, %v5956
    %vm5958 = vweird.f32 %v5937
    %vm5959 = vweird.f32 %v5953
    %vm5960 = vmor %vm5958, %vm5959
    %v5961 = vsel %vm5960, %v5953, %v5957
    %v5962 = vand.u32 2147483647, %v5937
    %vm5963 = vcmp.eq.f32.partialorder %v5962, 8.507059e+37
    %v5964 = vand.u32 %v5937, 2147483648
    %v5965 = vor.u32 1.1754944e-38, %v5964
    %v5966 = vsel %vm5963, %v5965, %v5961
    %v5967 = vmul.f32 1.0, %v5966
    %v5968 = vmul.f32 %v5926, %v5952
    %v5969 = vmul.f32 %v5928, %v5967
    %5972 = vrot.lane.b32.xlu0 %v5926, 64
    %v5973 = vpop.permute.xlu0 %5972
    %5974 = vrot.lane.b32.xlu0 %v5928, 64
    %v5975 = vpop.permute.xlu0 %5974
    %v5978 = vmul.f32 %v5968, %v5973
    %v5979 = vmul.f32 %v5969, %v5975
    %v5980 = vpack.c.bf16 %v5979, %v5978
    %s5981 = scalar_lea.vmem %s11, 160
    %v5982 = vld [vmem:[%s5981] sm:$0xf]
    %v5983 = vld [vmem:[%s5981 + $0x4] sm:$0xf]
    %v5984 = vld [vmem:[%s5981 + $0x8] sm:$0xf]
    %v5985 = vld [vmem:[%s5981 + $0xc] sm:$0xf]
    %v5986 = vld [vmem:[%s5981 + $0x10] sm:$0xf]
    %v5987 = vld [vmem:[%s5981 + $0x14] sm:$0xf]
    %v5988 = vld [vmem:[%s5981 + $0x18] sm:$0xf]
    %v5989 = vld [vmem:[%s5981 + $0x1c] sm:$0xf]
    %v5998 = vunpack.c.l.b16 %v5982
    %v5999 = vunpack.c.l.b16 %v5983
    %v6000 = vunpack.c.l.b16 %v5984
    %v6001 = vunpack.c.l.b16 %v5985
    %v6002 = vunpack.c.l.b16 %v5986
    %v6003 = vunpack.c.l.b16 %v5987
    %v6004 = vunpack.c.l.b16 %v5988
    %v6005 = vunpack.c.l.b16 %v5989
    %v6006 = vpack.c.b16 %v5999, %v5998
    %v6007 = vpack.c.b16 %v6001, %v6000
    %v6008 = vpack.c.b16 %v6003, %v6002
    %v6009 = vpack.c.b16 %v6005, %v6004
    %v6015 = vsel %vm111, %v5980, 0
    %6017 = vmatpush.bf16.msra.mxu0 0
    %6018 = vmatpush.bf16.msra.mxu0 0
    %6019 = vmatpush.bf16.msra.mxu0 0
    %6020 = vmatpush.bf16.msra.mxu0 0
    %6021 = vmatpush.bf16.msra.mxu0 %v6009
    %6022 = vmatpush.bf16.msra.mxu0 %v6008
    %6023 = vmatpush.bf16.msra.mxu0 %v6007
    %6024 = vmatpush.bf16.msra.mxu0 %v6006
    %6025 = vmatmul.bf16.gmra.mxu0 %v6015
    %v6026 = vpop.f32.mrf.mxu0
    %v6027 = vadd.f32 0.0, %v6026
    %v6028 = vpop.f32.mrf.mxu0
    %v6029 = vadd.f32 0.0, %v6028
    %6030 = vdwg.mxu0
    %v6031 = vadd.f32 %v5853, %v6027
    %v6032 = vadd.f32 %v5854, %v6029
    %s6033 = scalar_lea.vmem %s6, 6
    %v6034 = vld [vmem:[%s6033] sm:$0x1]
    %v6035 = vmul.f32 %v6031, %v6031
    %v6036 = vmul.f32 %v6032, %v6032
    %v6037 = vsel %vm145, %v6035, 0.0
    %6038 = vadd.xlane.f32.xlu0 %v6037
    %v6039 = vpop.xlane.xlu0 %6038
    %v6040 = vsel %vm145, %v6036, 0.0
    %6041 = vadd.xlane.f32.xlu0 %v6040
    %v6042 = vpop.xlane.xlu0 %6041
    %v6043 = vmul.f32 %v6039, %v158
    %v6044 = vmul.f32 %v6042, %v158
    %v6045 = vadd.f32 %v6043, 1e-06
    %v6046 = vadd.f32 %v6044, 1e-06
    %v6047 = vrsqrt.pop %v6045
    %v6048 = vmul.f32 %v6047, %v6045
    %v6049 = vmul.f32 %v6048, %v6047
    %v6050 = vmul.f32 0.5, %v6049
    %v6051 = vsub.f32 1.5, %v6050
    %v6052 = vmul.f32 %v6047, %v6051
    %vm6053 = vweird.f32 %v6045
    %vm6054 = vweird.f32 %v6047
    %vm6055 = vmor %vm6053, %vm6054
    %v6056 = vsel %vm6055, %v6047, %v6052
    %v6057 = vrsqrt.pop %v6046
    %v6058 = vmul.f32 %v6057, %v6046
    %v6059 = vmul.f32 %v6058, %v6057
    %v6060 = vmul.f32 0.5, %v6059
    %v6061 = vsub.f32 1.5, %v6060
    %v6062 = vmul.f32 %v6057, %v6061
    %vm6063 = vweird.f32 %v6046
    %vm6064 = vweird.f32 %v6057
    %vm6065 = vmor %vm6063, %vm6064
    %v6066 = vsel %vm6065, %v6057, %v6062
    %v6067 = vmul.f32 %v6031, %v6056
    %v6068 = vmul.f32 %v6032, %v6066
    %v6069 = vunpack.c.l.bf16 %v6034
    %v6070 = vperm.slane %v6069, 0
    %v6071 = vmul.f32 %v6067, %v6070
    %v6072 = vmul.f32 %v6068, %v6070
    %v6073 = vpack.c.bf16 %v6072, %v6071
    %s6074 = scalar_lea.vmem %s7, 192
    %v6075 = vld [vmem:[%s6074] sm:$0xff]
    %v6076 = vld [vmem:[%s6074 + $0x8] sm:$0xff]
    %v6077 = vld [vmem:[%s6074 + $0x10] sm:$0xff]
    %v6078 = vld [vmem:[%s6074 + $0x18] sm:$0xff]
    %v6083 = vunpack.c.l.b16 %v6075
    %v6084 = vunpack.c.h.b16 %v6075
    %v6085 = vunpack.c.l.b16 %v6076
    %v6086 = vunpack.c.h.b16 %v6076
    %v6087 = vunpack.c.l.b16 %v6077
    %v6088 = vunpack.c.h.b16 %v6077
    %v6089 = vunpack.c.l.b16 %v6078
    %v6090 = vunpack.c.h.b16 %v6078
    %v6091 = vpack.c.b16 %v6085, %v6083
    %v6092 = vpack.c.b16 %v6086, %v6084
    %v6093 = vpack.c.b16 %v6089, %v6087
    %v6094 = vpack.c.b16 %v6090, %v6088
    %v6100 = vsel %vm145, %v6073, 0
    %6102 = vmatpush.bf16.msra.mxu0 0
    %6103 = vmatpush.bf16.msra.mxu0 0
    %6104 = vmatpush.bf16.msra.mxu0 0
    %6105 = vmatpush.bf16.msra.mxu0 0
    %6106 = vmatpush.bf16.msra.mxu0 0
    %6107 = vmatpush.bf16.msra.mxu0 0
    %6108 = vmatpush.bf16.msra.mxu0 %v6093
    %6109 = vmatpush.bf16.msra.mxu0 %v6091
    %6110 = vmatmul.bf16.gmra.mxu0 %v6100
    %v6111 = vpop.f32.mrf.mxu0
    %v6112 = vadd.f32 0.0, %v6111
    %v6113 = vpop.f32.mrf.mxu0
    %v6114 = vadd.f32 0.0, %v6113
    %6115 = vdwg.mxu0
    %6116 = vmatpush.bf16.msra.mxu0 0
    %6117 = vmatpush.bf16.msra.mxu0 0
    %6118 = vmatpush.bf16.msra.mxu0 0
    %6119 = vmatpush.bf16.msra.mxu0 0
    %6120 = vmatpush.bf16.msra.mxu0 0
    %6121 = vmatpush.bf16.msra.mxu0 0
    %6122 = vmatpush.bf16.msra.mxu0 %v6094
    %6123 = vmatpush.bf16.msra.mxu0 %v6092
    %6124 = vmatmul.bf16.gmra.mxu0 %v6100
    %v6125 = vpop.f32.mrf.mxu0
    %v6126 = vadd.f32 0.0, %v6125
    %v6127 = vpop.f32.mrf.mxu0
    %v6128 = vadd.f32 0.0, %v6127
    %6129 = vdwg.mxu0
    %v6130 = vmul.f32 %v6112, %v129
    %v6131 = vmul.f32 %v6114, %v130
    %v6132 = vmul.f32 %v6112, %v250
    %v6133 = vmul.f32 %v6114, %v252
    %6136 = vrot.lane.b32.xlu0 %v6132, 96
    %v6137 = vpop.permute.xlu0 %6136
    %6138 = vrot.lane.b32.xlu0 %v6133, 96
    %v6139 = vpop.permute.xlu0 %6138
    %v6142 = vadd.f32 %v6130, %v6137
    %v6143 = vadd.f32 %v6131, %v6139
    %v6144 = vmul.f32 %v6112, %v270
    %v6145 = vmul.f32 %v6114, %v272
    %v6146 = vmul.f32 %v6112, %v278
    %v6147 = vmul.f32 %v6114, %v280
    %6150 = vrot.lane.b32.xlu0 %v6146, 96
    %v6151 = vpop.permute.xlu0 %6150
    %6152 = vrot.lane.b32.xlu0 %v6147, 96
    %v6153 = vpop.permute.xlu0 %6152
    %v6156 = vadd.f32 %v6144, %v6151
    %v6157 = vadd.f32 %v6145, %v6153
    %v6158 = vpack.c.bf16 %v6157, %v6156
    %v6159 = vpack.c.bf16 %v6128, %v6126
    %v6160 = vmul.f32 %v6142, %v297
    %v6161 = vmul.f32 %v6143, %v297
    %v6162 = vmul.f32 %v6142, %v300
    %v6163 = vmul.f32 %v6143, %v300
    %v6164 = vmul.f32 %v6142, %v303
    %v6165 = vmul.f32 %v6143, %v303
    %v6166 = vmul.f32 %v6142, %v306
    %v6167 = vmul.f32 %v6143, %v306
    %v6168 = vpack.c.bf16 %v6161, %v6160
    %v6169 = vpack.c.bf16 %v6163, %v6162
    %v6170 = vpack.c.bf16 %v6165, %v6164
    %v6171 = vpack.c.bf16 %v6167, %v6166
    %6173 = vrot.lane.b32.xlu0 %v6158, 64
    %v6174 = vpop.permute.xlu0 %6173
    %v6176 = vsel %vm145, %v6168, 0
    %v6179 = vsel %vm145, %v6169, 0
    %v6182 = vsel %vm145, %v6170, 0
    %v6185 = vsel %vm145, %v6171, 0
    %v6188 = vsel %vm145, %v6174, 0
    %6190 = vmatpush.bf16.xpose.msra.mxu0 0
    %6191 = vmatpush.bf16.xpose.msra.mxu0 0
    %6192 = vmatpush.bf16.xpose.msra.mxu0 0
    %6193 = vmatpush.bf16.xpose.msra.mxu0 0
    %6194 = vmatpush.bf16.xpose.msra.mxu0 0
    %6195 = vmatpush.bf16.xpose.msra.mxu0 0
    %6196 = vmatpush.bf16.xpose.msra.mxu0 0
    %6197 = vmatpush.bf16.xpose.msra.mxu0 %v6188
    %6198 = vmatmul.bf16.gmra.mxu0 %v6176
    %v6199 = vpop.f32.mrf.mxu0
    %v6200 = vadd.f32 %v134, %v6199
    %v6201 = vpop.f32.mrf.mxu0
    %v6202 = vadd.f32 %v135, %v6201
    %6203 = vmatmul.bf16.gmra.mxu0 %v6179
    %v6204 = vpop.f32.mrf.mxu0
    %v6205 = vadd.f32 %v136, %v6204
    %v6206 = vpop.f32.mrf.mxu0
    %v6207 = vadd.f32 %v137, %v6206
    %6208 = vmatmul.bf16.gmra.mxu0 %v6182
    %v6209 = vpop.f32.mrf.mxu0
    %v6210 = vadd.f32 %v138, %v6209
    %v6211 = vpop.f32.mrf.mxu0
    %v6212 = vadd.f32 %v139, %v6211
    %6213 = vmatmul.bf16.gmra.mxu0 %v6185
    %v6214 = vpop.f32.mrf.mxu0
    %v6215 = vadd.f32 %v140, %v6214
    %v6216 = vpop.f32.mrf.mxu0
    %v6217 = vadd.f32 %v141, %v6216
    %6218 = vdwg.mxu0
    %v6219 = vsel %vm360, %v6200, -inf
    %6220 = vmax.xlane.f32.xlu0 %v6219
    %v6221 = vpop.xlane.xlu0 %6220
    %v6222 = vsel %vm360, %v6202, -inf
    %6223 = vmax.xlane.f32.xlu0 %v6222
    %v6224 = vpop.xlane.xlu0 %6223
    %v6225 = vsel %vm360, %v6205, -inf
    %6226 = vmax.xlane.f32.xlu0 %v6225
    %v6227 = vpop.xlane.xlu0 %6226
    %v6228 = vsel %vm360, %v6207, -inf
    %6229 = vmax.xlane.f32.xlu0 %v6228
    %v6230 = vpop.xlane.xlu0 %6229
    %v6231 = vsel %vm360, %v6210, -inf
    %6232 = vmax.xlane.f32.xlu0 %v6231
    %v6233 = vpop.xlane.xlu0 %6232
    %v6234 = vsel %vm360, %v6212, -inf
    %6235 = vmax.xlane.f32.xlu0 %v6234
    %v6236 = vpop.xlane.xlu0 %6235
    %v6237 = vsel %vm360, %v6215, -inf
    %6238 = vmax.xlane.f32.xlu0 %v6237
    %v6239 = vpop.xlane.xlu0 %6238
    %v6240 = vsel %vm360, %v6217, -inf
    %6241 = vmax.xlane.f32.xlu0 %v6240
    %v6242 = vpop.xlane.xlu0 %6241
    %v6243 = vsub.f32 %v6200, %v6221
    %v6244 = vsub.f32 %v6202, %v6224
    %v6245 = vsub.f32 %v6205, %v6227
    %v6246 = vsub.f32 %v6207, %v6230
    %v6247 = vsub.f32 %v6210, %v6233
    %v6248 = vsub.f32 %v6212, %v6236
    %v6249 = vsub.f32 %v6215, %v6239
    %v6250 = vsub.f32 %v6217, %v6242
    %v6251 = vmul.f32 %v6243, 1.442695
    %v6252 = vpow.pop %v6251
    %v6253 = vmul.f32 %v6244, 1.442695
    %v6254 = vpow.pop %v6253
    %v6255 = vmul.f32 %v6245, 1.442695
    %v6256 = vpow.pop %v6255
    %v6257 = vmul.f32 %v6246, 1.442695
    %v6258 = vpow.pop %v6257
    %v6259 = vmul.f32 %v6247, 1.442695
    %v6260 = vpow.pop %v6259
    %v6261 = vmul.f32 %v6248, 1.442695
    %v6262 = vpow.pop %v6261
    %v6263 = vmul.f32 %v6249, 1.442695
    %v6264 = vpow.pop %v6263
    %v6265 = vmul.f32 %v6250, 1.442695
    %v6266 = vpow.pop %v6265
    %v6267 = vsel %vm360, %v6252, 0.0
    %6268 = vadd.xlane.f32.xlu0 %v6267
    %v6269 = vpop.xlane.xlu0 %6268
    %v6270 = vsel %vm360, %v6254, 0.0
    %6271 = vadd.xlane.f32.xlu0 %v6270
    %v6272 = vpop.xlane.xlu0 %6271
    %v6273 = vsel %vm360, %v6256, 0.0
    %6274 = vadd.xlane.f32.xlu0 %v6273
    %v6275 = vpop.xlane.xlu0 %6274
    %v6276 = vsel %vm360, %v6258, 0.0
    %6277 = vadd.xlane.f32.xlu0 %v6276
    %v6278 = vpop.xlane.xlu0 %6277
    %v6279 = vsel %vm360, %v6260, 0.0
    %6280 = vadd.xlane.f32.xlu0 %v6279
    %v6281 = vpop.xlane.xlu0 %6280
    %v6282 = vsel %vm360, %v6262, 0.0
    %6283 = vadd.xlane.f32.xlu0 %v6282
    %v6284 = vpop.xlane.xlu0 %6283
    %v6285 = vsel %vm360, %v6264, 0.0
    %6286 = vadd.xlane.f32.xlu0 %v6285
    %v6287 = vpop.xlane.xlu0 %6286
    %v6288 = vsel %vm360, %v6266, 0.0
    %6289 = vadd.xlane.f32.xlu0 %v6288
    %v6290 = vpop.xlane.xlu0 %6289
    %v6291 = vrcp.pop %v6269
    %v6292 = vmul.f32 %v6269, %v6291
    %v6293 = vsub.f32 1.0, %v6292
    %v6294 = vmul.f32 %v6291, %v6293
    %v6295 = vadd.f32 %v6291, %v6294
    %vm6296 = vweird.f32 %v6269
    %vm6297 = vweird.f32 %v6291
    %vm6298 = vmor %vm6296, %vm6297
    %v6299 = vsel %vm6298, %v6291, %v6295
    %v6300 = vand.u32 2147483647, %v6269
    %vm6301 = vcmp.eq.f32.partialorder %v6300, 8.507059e+37
    %v6302 = vand.u32 %v6269, 2147483648
    %v6303 = vor.u32 1.1754944e-38, %v6302
    %v6304 = vsel %vm6301, %v6303, %v6299
    %v6305 = vmul.f32 %v6252, %v6304
    %v6306 = vrcp.pop %v6272
    %v6307 = vmul.f32 %v6272, %v6306
    %v6308 = vsub.f32 1.0, %v6307
    %v6309 = vmul.f32 %v6306, %v6308
    %v6310 = vadd.f32 %v6306, %v6309
    %vm6311 = vweird.f32 %v6272
    %vm6312 = vweird.f32 %v6306
    %vm6313 = vmor %vm6311, %vm6312
    %v6314 = vsel %vm6313, %v6306, %v6310
    %v6315 = vand.u32 2147483647, %v6272
    %vm6316 = vcmp.eq.f32.partialorder %v6315, 8.507059e+37
    %v6317 = vand.u32 %v6272, 2147483648
    %v6318 = vor.u32 1.1754944e-38, %v6317
    %v6319 = vsel %vm6316, %v6318, %v6314
    %v6320 = vmul.f32 %v6254, %v6319
    %v6321 = vrcp.pop %v6275
    %v6322 = vmul.f32 %v6275, %v6321
    %v6323 = vsub.f32 1.0, %v6322
    %v6324 = vmul.f32 %v6321, %v6323
    %v6325 = vadd.f32 %v6321, %v6324
    %vm6326 = vweird.f32 %v6275
    %vm6327 = vweird.f32 %v6321
    %vm6328 = vmor %vm6326, %vm6327
    %v6329 = vsel %vm6328, %v6321, %v6325
    %v6330 = vand.u32 2147483647, %v6275
    %vm6331 = vcmp.eq.f32.partialorder %v6330, 8.507059e+37
    %v6332 = vand.u32 %v6275, 2147483648
    %v6333 = vor.u32 1.1754944e-38, %v6332
    %v6334 = vsel %vm6331, %v6333, %v6329
    %v6335 = vmul.f32 %v6256, %v6334
    %v6336 = vrcp.pop %v6278
    %v6337 = vmul.f32 %v6278, %v6336
    %v6338 = vsub.f32 1.0, %v6337
    %v6339 = vmul.f32 %v6336, %v6338
    %v6340 = vadd.f32 %v6336, %v6339
    %vm6341 = vweird.f32 %v6278
    %vm6342 = vweird.f32 %v6336
    %vm6343 = vmor %vm6341, %vm6342
    %v6344 = vsel %vm6343, %v6336, %v6340
    %v6345 = vand.u32 2147483647, %v6278
    %vm6346 = vcmp.eq.f32.partialorder %v6345, 8.507059e+37
    %v6347 = vand.u32 %v6278, 2147483648
    %v6348 = vor.u32 1.1754944e-38, %v6347
    %v6349 = vsel %vm6346, %v6348, %v6344
    %v6350 = vmul.f32 %v6258, %v6349
    %v6351 = vrcp.pop %v6281
    %v6352 = vmul.f32 %v6281, %v6351
    %v6353 = vsub.f32 1.0, %v6352
    %v6354 = vmul.f32 %v6351, %v6353
    %v6355 = vadd.f32 %v6351, %v6354
    %vm6356 = vweird.f32 %v6281
    %vm6357 = vweird.f32 %v6351
    %vm6358 = vmor %vm6356, %vm6357
    %v6359 = vsel %vm6358, %v6351, %v6355
    %v6360 = vand.u32 2147483647, %v6281
    %vm6361 = vcmp.eq.f32.partialorder %v6360, 8.507059e+37
    %v6362 = vand.u32 %v6281, 2147483648
    %v6363 = vor.u32 1.1754944e-38, %v6362
    %v6364 = vsel %vm6361, %v6363, %v6359
    %v6365 = vmul.f32 %v6260, %v6364
    %v6366 = vrcp.pop %v6284
    %v6367 = vmul.f32 %v6284, %v6366
    %v6368 = vsub.f32 1.0, %v6367
    %v6369 = vmul.f32 %v6366, %v6368
    %v6370 = vadd.f32 %v6366, %v6369
    %vm6371 = vweird.f32 %v6284
    %vm6372 = vweird.f32 %v6366
    %vm6373 = vmor %vm6371, %vm6372
    %v6374 = vsel %vm6373, %v6366, %v6370
    %v6375 = vand.u32 2147483647, %v6284
    %vm6376 = vcmp.eq.f32.partialorder %v6375, 8.507059e+37
    %v6377 = vand.u32 %v6284, 2147483648
    %v6378 = vor.u32 1.1754944e-38, %v6377
    %v6379 = vsel %vm6376, %v6378, %v6374
    %v6380 = vmul.f32 %v6262, %v6379
    %v6381 = vrcp.pop %v6287
    %v6382 = vmul.f32 %v6287, %v6381
    %v6383 = vsub.f32 1.0, %v6382
    %v6384 = vmul.f32 %v6381, %v6383
    %v6385 = vadd.f32 %v6381, %v6384
    %vm6386 = vweird.f32 %v6287
    %vm6387 = vweird.f32 %v6381
    %vm6388 = vmor %vm6386, %vm6387
    %v6389 = vsel %vm6388, %v6381, %v6385
    %v6390 = vand.u32 2147483647, %v6287
    %vm6391 = vcmp.eq.f32.partialorder %v6390, 8.507059e+37
    %v6392 = vand.u32 %v6287, 2147483648
    %v6393 = vor.u32 1.1754944e-38, %v6392
    %v6394 = vsel %vm6391, %v6393, %v6389
    %v6395 = vmul.f32 %v6264, %v6394
    %v6396 = vrcp.pop %v6290
    %v6397 = vmul.f32 %v6290, %v6396
    %v6398 = vsub.f32 1.0, %v6397
    %v6399 = vmul.f32 %v6396, %v6398
    %v6400 = vadd.f32 %v6396, %v6399
    %vm6401 = vweird.f32 %v6290
    %vm6402 = vweird.f32 %v6396
    %vm6403 = vmor %vm6401, %vm6402
    %v6404 = vsel %vm6403, %v6396, %v6400
    %v6405 = vand.u32 2147483647, %v6290
    %vm6406 = vcmp.eq.f32.partialorder %v6405, 8.507059e+37
    %v6407 = vand.u32 %v6290, 2147483648
    %v6408 = vor.u32 1.1754944e-38, %v6407
    %v6409 = vsel %vm6406, %v6408, %v6404
    %v6410 = vmul.f32 %v6266, %v6409
    %v6411 = vpack.c.bf16 %v6320, %v6305
    %v6412 = vpack.c.bf16 %v6350, %v6335
    %v6413 = vpack.c.bf16 %v6380, %v6365
    %v6414 = vpack.c.bf16 %v6410, %v6395
    %v6416 = vsel %vm360, %v6411, 0
    %v6419 = vsel %vm360, %v6412, 0
    %v6422 = vsel %vm360, %v6413, 0
    %v6425 = vsel %vm360, %v6414, 0
    %6427 = vmatpush.bf16.msra.mxu0 0
    %6428 = vmatpush.bf16.msra.mxu0 0
    %6429 = vmatpush.bf16.msra.mxu0 0
    %6430 = vmatpush.bf16.msra.mxu0 0
    %6431 = vmatpush.bf16.msra.mxu0 0
    %6432 = vmatpush.bf16.msra.mxu0 0
    %6433 = vmatpush.bf16.msra.mxu0 0
    %6434 = vmatpush.bf16.msra.mxu0 %v6159
    %6435 = vmatmul.bf16.gmra.mxu0 %v6416
    %v6436 = vpop.f32.mrf.mxu0
    %v6437 = vadd.f32 0.0, %v6436
    %v6438 = vpop.f32.mrf.mxu0
    %v6439 = vadd.f32 0.0, %v6438
    %6440 = vmatmul.bf16.gmra.mxu0 %v6419
    %v6441 = vpop.f32.mrf.mxu0
    %v6442 = vadd.f32 0.0, %v6441
    %v6443 = vpop.f32.mrf.mxu0
    %v6444 = vadd.f32 0.0, %v6443
    %6445 = vmatmul.bf16.gmra.mxu0 %v6422
    %v6446 = vpop.f32.mrf.mxu0
    %v6447 = vadd.f32 0.0, %v6446
    %v6448 = vpop.f32.mrf.mxu0
    %v6449 = vadd.f32 0.0, %v6448
    %6450 = vmatmul.bf16.gmra.mxu0 %v6425
    %v6451 = vpop.f32.mrf.mxu0
    %v6452 = vadd.f32 0.0, %v6451
    %v6453 = vpop.f32.mrf.mxu0
    %v6454 = vadd.f32 0.0, %v6453
    %6455 = vdwg.mxu0
    %v6456 = vmul.f32 %v6437, %v297
    %v6457 = vmul.f32 %v6439, %v297
    %v6458 = vmul.f32 %v6442, %v300
    %v6459 = vmul.f32 %v6444, %v300
    %v6460 = vadd.f32 %v6456, %v6458
    %v6461 = vadd.f32 %v6457, %v6459
    %v6462 = vmul.f32 %v6447, %v303
    %v6463 = vmul.f32 %v6449, %v303
    %v6464 = vadd.f32 %v6460, %v6462
    %v6465 = vadd.f32 %v6461, %v6463
    %v6466 = vmul.f32 %v6452, %v306
    %v6467 = vmul.f32 %v6454, %v306
    %v6468 = vadd.f32 %v6464, %v6466
    %v6469 = vadd.f32 %v6465, %v6467
    %v6470 = vpack.c.bf16 %v6469, %v6468
    %s6471 = scalar_lea.vmem %s8, 96
    %v6472 = vld [vmem:[%s6471] sm:$0xf]
    %v6473 = vld [vmem:[%s6471 + $0x4] sm:$0xf]
    %v6474 = vld [vmem:[%s6471 + $0x8] sm:$0xf]
    %v6475 = vld [vmem:[%s6471 + $0xc] sm:$0xf]
    %v6480 = vunpack.c.l.b16 %v6472
    %v6481 = vunpack.c.l.b16 %v6473
    %v6482 = vunpack.c.l.b16 %v6474
    %v6483 = vunpack.c.l.b16 %v6475
    %v6484 = vpack.c.b16 %v6481, %v6480
    %v6485 = vpack.c.b16 %v6483, %v6482
    %v6489 = vsel %vm145, %v6470, 0
    %6491 = vmatpush.bf16.msra.mxu0 0
    %6492 = vmatpush.bf16.msra.mxu0 0
    %6493 = vmatpush.bf16.msra.mxu0 0
    %6494 = vmatpush.bf16.msra.mxu0 0
    %6495 = vmatpush.bf16.msra.mxu0 0
    %6496 = vmatpush.bf16.msra.mxu0 0
    %6497 = vmatpush.bf16.msra.mxu0 %v6485
    %6498 = vmatpush.bf16.msra.mxu0 %v6484
    %6499 = vmatmul.bf16.gmra.mxu0 %v6489
    %v6500 = vpop.f32.mrf.mxu0
    %v6501 = vadd.f32 0.0, %v6500
    %v6502 = vpop.f32.mrf.mxu0
    %v6503 = vadd.f32 0.0, %v6502
    %6504 = vdwg.mxu0
    %v6505 = vadd.f32 %v6031, %v6501
    %v6506 = vadd.f32 %v6032, %v6503
    %s6507 = scalar_lea.vmem %s9, 6
    %v6508 = vld [vmem:[%s6507] sm:$0x1]
    %v6509 = vmul.f32 %v6505, %v6505
    %v6510 = vmul.f32 %v6506, %v6506
    %v6511 = vsel %vm145, %v6509, 0.0
    %6512 = vadd.xlane.f32.xlu0 %v6511
    %v6513 = vpop.xlane.xlu0 %6512
    %v6514 = vsel %vm145, %v6510, 0.0
    %6515 = vadd.xlane.f32.xlu0 %v6514
    %v6516 = vpop.xlane.xlu0 %6515
    %v6517 = vmul.f32 %v6513, %v158
    %v6518 = vmul.f32 %v6516, %v158
    %v6519 = vadd.f32 %v6517, 1e-06
    %v6520 = vadd.f32 %v6518, 1e-06
    %v6521 = vrsqrt.pop %v6519
    %v6522 = vmul.f32 %v6521, %v6519
    %v6523 = vmul.f32 %v6522, %v6521
    %v6524 = vmul.f32 0.5, %v6523
    %v6525 = vsub.f32 1.5, %v6524
    %v6526 = vmul.f32 %v6521, %v6525
    %vm6527 = vweird.f32 %v6519
    %vm6528 = vweird.f32 %v6521
    %vm6529 = vmor %vm6527, %vm6528
    %v6530 = vsel %vm6529, %v6521, %v6526
    %v6531 = vrsqrt.pop %v6520
    %v6532 = vmul.f32 %v6531, %v6520
    %v6533 = vmul.f32 %v6532, %v6531
    %v6534 = vmul.f32 0.5, %v6533
    %v6535 = vsub.f32 1.5, %v6534
    %v6536 = vmul.f32 %v6531, %v6535
    %vm6537 = vweird.f32 %v6520
    %vm6538 = vweird.f32 %v6531
    %vm6539 = vmor %vm6537, %vm6538
    %v6540 = vsel %vm6539, %v6531, %v6536
    %v6541 = vmul.f32 %v6505, %v6530
    %v6542 = vmul.f32 %v6506, %v6540
    %v6543 = vunpack.c.l.bf16 %v6508
    %v6544 = vperm.slane %v6543, 0
    %v6545 = vmul.f32 %v6541, %v6544
    %v6546 = vmul.f32 %v6542, %v6544
    %v6547 = vpack.c.bf16 %v6546, %v6545
    %s6548 = scalar_lea.vmem [#allocation2], 96
    %v6549 = vld [vmem:[%s6548] sm:$0xf]
    %v6550 = vld [vmem:[%s6548 + $0x4] sm:$0xf]
    %v6551 = vld [vmem:[%s6548 + $0x8] sm:$0xf]
    %v6552 = vld [vmem:[%s6548 + $0xc] sm:$0xf]
    %v6557 = vunpack.c.l.b16 %v6549
    %v6558 = vunpack.c.l.b16 %v6550
    %v6559 = vunpack.c.l.b16 %v6551
    %v6560 = vunpack.c.l.b16 %v6552
    %v6561 = vpack.c.b16 %v6558, %v6557
    %v6562 = vpack.c.b16 %v6560, %v6559
    %v6566 = vsel %vm145, %v6547, 0
    %6568 = vmatpush.bf16.msra.mxu0 0
    %6569 = vmatpush.bf16.msra.mxu0 0
    %6570 = vmatpush.bf16.msra.mxu0 0
    %6571 = vmatpush.bf16.msra.mxu0 0
    %6572 = vmatpush.bf16.msra.mxu0 0
    %6573 = vmatpush.bf16.msra.mxu0 0
    %6574 = vmatpush.bf16.msra.mxu0 %v6562
    %6575 = vmatpush.bf16.msra.mxu0 %v6561
    %6576 = vmatmul.bf16.gmra.mxu0 %v6566
    %v6577 = vpop.f32.mrf.mxu0
    %v6578 = vadd.f32 0.0, %v6577
    %v6579 = vpop.f32.mrf.mxu0
    %v6580 = vadd.f32 0.0, %v6579
    %6581 = vdwg.mxu0
    %v6582 = vxor.u32 %v6578, 2147483648
    %v6583 = vxor.u32 %v6580, 2147483648
    %v6584 = vmul.f32 %v6582, 1.442695
    %v6585 = vpow.pop %v6584
    %v6586 = vmul.f32 %v6583, 1.442695
    %v6587 = vpow.pop %v6586
    %v6588 = vadd.f32 %v6585, 1.0
    %v6589 = vadd.f32 %v6587, 1.0
    %v6590 = vrcp.pop %v6588
    %v6591 = vmul.f32 %v6588, %v6590
    %v6592 = vsub.f32 1.0, %v6591
    %v6593 = vmul.f32 %v6590, %v6592
    %v6594 = vadd.f32 %v6590, %v6593
    %vm6595 = vweird.f32 %v6588
    %vm6596 = vweird.f32 %v6590
    %vm6597 = vmor %vm6595, %vm6596
    %v6598 = vsel %vm6597, %v6590, %v6594
    %v6599 = vand.u32 2147483647, %v6588
    %vm6600 = vcmp.eq.f32.partialorder %v6599, 8.507059e+37
    %v6601 = vand.u32 %v6588, 2147483648
    %v6602 = vor.u32 1.1754944e-38, %v6601
    %v6603 = vsel %vm6600, %v6602, %v6598
    %v6604 = vmul.f32 1.0, %v6603
    %v6605 = vrcp.pop %v6589
    %v6606 = vmul.f32 %v6589, %v6605
    %v6607 = vsub.f32 1.0, %v6606
    %v6608 = vmul.f32 %v6605, %v6607
    %v6609 = vadd.f32 %v6605, %v6608
    %vm6610 = vweird.f32 %v6589
    %vm6611 = vweird.f32 %v6605
    %vm6612 = vmor %vm6610, %vm6611
    %v6613 = vsel %vm6612, %v6605, %v6609
    %v6614 = vand.u32 2147483647, %v6589
    %vm6615 = vcmp.eq.f32.partialorder %v6614, 8.507059e+37
    %v6616 = vand.u32 %v6589, 2147483648
    %v6617 = vor.u32 1.1754944e-38, %v6616
    %v6618 = vsel %vm6615, %v6617, %v6613
    %v6619 = vmul.f32 1.0, %v6618
    %v6620 = vmul.f32 %v6578, %v6604
    %v6621 = vmul.f32 %v6580, %v6619
    %6624 = vrot.lane.b32.xlu0 %v6578, 64
    %v6625 = vpop.permute.xlu0 %6624
    %6626 = vrot.lane.b32.xlu0 %v6580, 64
    %v6627 = vpop.permute.xlu0 %6626
    %v6630 = vmul.f32 %v6620, %v6625
    %v6631 = vmul.f32 %v6621, %v6627
    %v6632 = vpack.c.bf16 %v6631, %v6630
    %s6633 = scalar_lea.vmem %s11, 192
    %v6634 = vld [vmem:[%s6633] sm:$0xf]
    %v6635 = vld [vmem:[%s6633 + $0x4] sm:$0xf]
    %v6636 = vld [vmem:[%s6633 + $0x8] sm:$0xf]
    %v6637 = vld [vmem:[%s6633 + $0xc] sm:$0xf]
    %v6638 = vld [vmem:[%s6633 + $0x10] sm:$0xf]
    %v6639 = vld [vmem:[%s6633 + $0x14] sm:$0xf]
    %v6640 = vld [vmem:[%s6633 + $0x18] sm:$0xf]
    %v6641 = vld [vmem:[%s6633 + $0x1c] sm:$0xf]
    %v6650 = vunpack.c.l.b16 %v6634
    %v6651 = vunpack.c.l.b16 %v6635
    %v6652 = vunpack.c.l.b16 %v6636
    %v6653 = vunpack.c.l.b16 %v6637
    %v6654 = vunpack.c.l.b16 %v6638
    %v6655 = vunpack.c.l.b16 %v6639
    %v6656 = vunpack.c.l.b16 %v6640
    %v6657 = vunpack.c.l.b16 %v6641
    %v6658 = vpack.c.b16 %v6651, %v6650
    %v6659 = vpack.c.b16 %v6653, %v6652
    %v6660 = vpack.c.b16 %v6655, %v6654
    %v6661 = vpack.c.b16 %v6657, %v6656
    %v6667 = vsel %vm111, %v6632, 0
    %6669 = vmatpush.bf16.msra.mxu0 0
    %6670 = vmatpush.bf16.msra.mxu0 0
    %6671 = vmatpush.bf16.msra.mxu0 0
    %6672 = vmatpush.bf16.msra.mxu0 0
    %6673 = vmatpush.bf16.msra.mxu0 %v6661
    %6674 = vmatpush.bf16.msra.mxu0 %v6660
    %6675 = vmatpush.bf16.msra.mxu0 %v6659
    %6676 = vmatpush.bf16.msra.mxu0 %v6658
    %6677 = vmatmul.bf16.gmra.mxu0 %v6667
    %v6678 = vpop.f32.mrf.mxu0
    %v6679 = vadd.f32 0.0, %v6678
    %v6680 = vpop.f32.mrf.mxu0
    %v6681 = vadd.f32 0.0, %v6680
    %6682 = vdwg.mxu0
    %v6683 = vadd.f32 %v6505, %v6679
    %v6684 = vadd.f32 %v6506, %v6681
    %s6685 = scalar_lea.vmem %s6, 7
    %v6686 = vld [vmem:[%s6685] sm:$0x1]
    %v6687 = vmul.f32 %v6683, %v6683
    %v6688 = vmul.f32 %v6684, %v6684
    %v6689 = vsel %vm145, %v6687, 0.0
    %6690 = vadd.xlane.f32.xlu0 %v6689
    %v6691 = vpop.xlane.xlu0 %6690
    %v6692 = vsel %vm145, %v6688, 0.0
    %6693 = vadd.xlane.f32.xlu0 %v6692
    %v6694 = vpop.xlane.xlu0 %6693
    %v6695 = vmul.f32 %v6691, %v158
    %v6696 = vmul.f32 %v6694, %v158
    %v6697 = vadd.f32 %v6695, 1e-06
    %v6698 = vadd.f32 %v6696, 1e-06
    %v6699 = vrsqrt.pop %v6697
    %v6700 = vmul.f32 %v6699, %v6697
    %v6701 = vmul.f32 %v6700, %v6699
    %v6702 = vmul.f32 0.5, %v6701
    %v6703 = vsub.f32 1.5, %v6702
    %v6704 = vmul.f32 %v6699, %v6703
    %vm6705 = vweird.f32 %v6697
    %vm6706 = vweird.f32 %v6699
    %vm6707 = vmor %vm6705, %vm6706
    %v6708 = vsel %vm6707, %v6699, %v6704
    %v6709 = vrsqrt.pop %v6698
    %v6710 = vmul.f32 %v6709, %v6698
    %v6711 = vmul.f32 %v6710, %v6709
    %v6712 = vmul.f32 0.5, %v6711
    %v6713 = vsub.f32 1.5, %v6712
    %v6714 = vmul.f32 %v6709, %v6713
    %vm6715 = vweird.f32 %v6698
    %vm6716 = vweird.f32 %v6709
    %vm6717 = vmor %vm6715, %vm6716
    %v6718 = vsel %vm6717, %v6709, %v6714
    %v6719 = vmul.f32 %v6683, %v6708
    %v6720 = vmul.f32 %v6684, %v6718
    %v6721 = vunpack.c.l.bf16 %v6686
    %v6722 = vperm.slane %v6721, 0
    %v6723 = vmul.f32 %v6719, %v6722
    %v6724 = vmul.f32 %v6720, %v6722
    %v6725 = vpack.c.bf16 %v6724, %v6723
    %s6726 = scalar_lea.vmem %s7, 224
    %v6727 = vld [vmem:[%s6726] sm:$0xff]
    %v6728 = vld [vmem:[%s6726 + $0x8] sm:$0xff]
    %v6729 = vld [vmem:[%s6726 + $0x10] sm:$0xff]
    %v6730 = vld [vmem:[%s6726 + $0x18] sm:$0xff]
    %v6735 = vunpack.c.l.b16 %v6727
    %v6736 = vunpack.c.h.b16 %v6727
    %v6737 = vunpack.c.l.b16 %v6728
    %v6738 = vunpack.c.h.b16 %v6728
    %v6739 = vunpack.c.l.b16 %v6729
    %v6740 = vunpack.c.h.b16 %v6729
    %v6741 = vunpack.c.l.b16 %v6730
    %v6742 = vunpack.c.h.b16 %v6730
    %v6743 = vpack.c.b16 %v6737, %v6735
    %v6744 = vpack.c.b16 %v6738, %v6736
    %v6745 = vpack.c.b16 %v6741, %v6739
    %v6746 = vpack.c.b16 %v6742, %v6740
    %v6752 = vsel %vm145, %v6725, 0
    %6754 = vmatpush.bf16.msra.mxu0 0
    %6755 = vmatpush.bf16.msra.mxu0 0
    %6756 = vmatpush.bf16.msra.mxu0 0
    %6757 = vmatpush.bf16.msra.mxu0 0
    %6758 = vmatpush.bf16.msra.mxu0 0
    %6759 = vmatpush.bf16.msra.mxu0 0
    %6760 = vmatpush.bf16.msra.mxu0 %v6745
    %6761 = vmatpush.bf16.msra.mxu0 %v6743
    %6762 = vmatmul.bf16.gmra.mxu0 %v6752
    %v6763 = vpop.f32.mrf.mxu0
    %v6764 = vadd.f32 0.0, %v6763
    %v6765 = vpop.f32.mrf.mxu0
    %v6766 = vadd.f32 0.0, %v6765
    %6767 = vdwg.mxu0
    %6768 = vmatpush.bf16.msra.mxu0 0
    %6769 = vmatpush.bf16.msra.mxu0 0
    %6770 = vmatpush.bf16.msra.mxu0 0
    %6771 = vmatpush.bf16.msra.mxu0 0
    %6772 = vmatpush.bf16.msra.mxu0 0
    %6773 = vmatpush.bf16.msra.mxu0 0
    %6774 = vmatpush.bf16.msra.mxu0 %v6746
    %6775 = vmatpush.bf16.msra.mxu0 %v6744
    %6776 = vmatmul.bf16.gmra.mxu0 %v6752
    %v6777 = vpop.f32.mrf.mxu0
    %v6778 = vadd.f32 0.0, %v6777
    %v6779 = vpop.f32.mrf.mxu0
    %v6780 = vadd.f32 0.0, %v6779
    %6781 = vdwg.mxu0
    %v6782 = vmul.f32 %v6764, %v129
    %v6783 = vmul.f32 %v6766, %v130
    %v6784 = vmul.f32 %v6764, %v250
    %v6785 = vmul.f32 %v6766, %v252
    %6788 = vrot.lane.b32.xlu0 %v6784, 96
    %v6789 = vpop.permute.xlu0 %6788
    %6790 = vrot.lane.b32.xlu0 %v6785, 96
    %v6791 = vpop.permute.xlu0 %6790
    %v6794 = vadd.f32 %v6782, %v6789
    %v6795 = vadd.f32 %v6783, %v6791
    %v6796 = vmul.f32 %v6764, %v270
    %v6797 = vmul.f32 %v6766, %v272
    %v6798 = vmul.f32 %v6764, %v278
    %v6799 = vmul.f32 %v6766, %v280
    %6802 = vrot.lane.b32.xlu0 %v6798, 96
    %v6803 = vpop.permute.xlu0 %6802
    %6804 = vrot.lane.b32.xlu0 %v6799, 96
    %v6805 = vpop.permute.xlu0 %6804
    %v6808 = vadd.f32 %v6796, %v6803
    %v6809 = vadd.f32 %v6797, %v6805
    %v6810 = vpack.c.bf16 %v6809, %v6808
    %v6811 = vpack.c.bf16 %v6780, %v6778
    %v6812 = vmul.f32 %v6794, %v297
    %v6813 = vmul.f32 %v6795, %v297
    %v6814 = vmul.f32 %v6794, %v300
    %v6815 = vmul.f32 %v6795, %v300
    %v6816 = vmul.f32 %v6794, %v303
    %v6817 = vmul.f32 %v6795, %v303
    %v6818 = vmul.f32 %v6794, %v306
    %v6819 = vmul.f32 %v6795, %v306
    %v6820 = vpack.c.bf16 %v6813, %v6812
    %v6821 = vpack.c.bf16 %v6815, %v6814
    %v6822 = vpack.c.bf16 %v6817, %v6816
    %v6823 = vpack.c.bf16 %v6819, %v6818
    %6825 = vrot.lane.b32.xlu0 %v6810, 64
    %v6826 = vpop.permute.xlu0 %6825
    %v6828 = vsel %vm145, %v6820, 0
    %v6831 = vsel %vm145, %v6821, 0
    %v6834 = vsel %vm145, %v6822, 0
    %v6837 = vsel %vm145, %v6823, 0
    %v6840 = vsel %vm145, %v6826, 0
    %6842 = vmatpush.bf16.xpose.msra.mxu0 0
    %6843 = vmatpush.bf16.xpose.msra.mxu0 0
    %6844 = vmatpush.bf16.xpose.msra.mxu0 0
    %6845 = vmatpush.bf16.xpose.msra.mxu0 0
    %6846 = vmatpush.bf16.xpose.msra.mxu0 0
    %6847 = vmatpush.bf16.xpose.msra.mxu0 0
    %6848 = vmatpush.bf16.xpose.msra.mxu0 0
    %6849 = vmatpush.bf16.xpose.msra.mxu0 %v6840
    %6850 = vmatmul.bf16.gmra.mxu0 %v6828
    %v6851 = vpop.f32.mrf.mxu0
    %v6852 = vadd.f32 %v134, %v6851
    %v6853 = vpop.f32.mrf.mxu0
    %v6854 = vadd.f32 %v135, %v6853
    %6855 = vmatmul.bf16.gmra.mxu0 %v6831
    %v6856 = vpop.f32.mrf.mxu0
    %v6857 = vadd.f32 %v136, %v6856
    %v6858 = vpop.f32.mrf.mxu0
    %v6859 = vadd.f32 %v137, %v6858
    %6860 = vmatmul.bf16.gmra.mxu0 %v6834
    %v6861 = vpop.f32.mrf.mxu0
    %v6862 = vadd.f32 %v138, %v6861
    %v6863 = vpop.f32.mrf.mxu0
    %v6864 = vadd.f32 %v139, %v6863
    %6865 = vmatmul.bf16.gmra.mxu0 %v6837
    %v6866 = vpop.f32.mrf.mxu0
    %v6867 = vadd.f32 %v140, %v6866
    %v6868 = vpop.f32.mrf.mxu0
    %v6869 = vadd.f32 %v141, %v6868
    %6870 = vdwg.mxu0
    %v6871 = vsel %vm360, %v6852, -inf
    %6872 = vmax.xlane.f32.xlu0 %v6871
    %v6873 = vpop.xlane.xlu0 %6872
    %v6874 = vsel %vm360, %v6854, -inf
    %6875 = vmax.xlane.f32.xlu0 %v6874
    %v6876 = vpop.xlane.xlu0 %6875
    %v6877 = vsel %vm360, %v6857, -inf
    %6878 = vmax.xlane.f32.xlu0 %v6877
    %v6879 = vpop.xlane.xlu0 %6878
    %v6880 = vsel %vm360, %v6859, -inf
    %6881 = vmax.xlane.f32.xlu0 %v6880
    %v6882 = vpop.xlane.xlu0 %6881
    %v6883 = vsel %vm360, %v6862, -inf
    %6884 = vmax.xlane.f32.xlu0 %v6883
    %v6885 = vpop.xlane.xlu0 %6884
    %v6886 = vsel %vm360, %v6864, -inf
    %6887 = vmax.xlane.f32.xlu0 %v6886
    %v6888 = vpop.xlane.xlu0 %6887
    %v6889 = vsel %vm360, %v6867, -inf
    %6890 = vmax.xlane.f32.xlu0 %v6889
    %v6891 = vpop.xlane.xlu0 %6890
    %v6892 = vsel %vm360, %v6869, -inf
    %6893 = vmax.xlane.f32.xlu0 %v6892
    %v6894 = vpop.xlane.xlu0 %6893
    %v6895 = vsub.f32 %v6852, %v6873
    %v6896 = vsub.f32 %v6854, %v6876
    %v6897 = vsub.f32 %v6857, %v6879
    %v6898 = vsub.f32 %v6859, %v6882
    %v6899 = vsub.f32 %v6862, %v6885
    %v6900 = vsub.f32 %v6864, %v6888
    %v6901 = vsub.f32 %v6867, %v6891
    %v6902 = vsub.f32 %v6869, %v6894
    %v6903 = vmul.f32 %v6895, 1.442695
    %v6904 = vpow.pop %v6903
    %v6905 = vmul.f32 %v6896, 1.442695
    %v6906 = vpow.pop %v6905
    %v6907 = vmul.f32 %v6897, 1.442695
    %v6908 = vpow.pop %v6907
    %v6909 = vmul.f32 %v6898, 1.442695
    %v6910 = vpow.pop %v6909
    %v6911 = vmul.f32 %v6899, 1.442695
    %v6912 = vpow.pop %v6911
    %v6913 = vmul.f32 %v6900, 1.442695
    %v6914 = vpow.pop %v6913
    %v6915 = vmul.f32 %v6901, 1.442695
    %v6916 = vpow.pop %v6915
    %v6917 = vmul.f32 %v6902, 1.442695
    %v6918 = vpow.pop %v6917
    %v6919 = vsel %vm360, %v6904, 0.0
    %6920 = vadd.xlane.f32.xlu0 %v6919
    %v6921 = vpop.xlane.xlu0 %6920
    %v6922 = vsel %vm360, %v6906, 0.0
    %6923 = vadd.xlane.f32.xlu0 %v6922
    %v6924 = vpop.xlane.xlu0 %6923
    %v6925 = vsel %vm360, %v6908, 0.0
    %6926 = vadd.xlane.f32.xlu0 %v6925
    %v6927 = vpop.xlane.xlu0 %6926
    %v6928 = vsel %vm360, %v6910, 0.0
    %6929 = vadd.xlane.f32.xlu0 %v6928
    %v6930 = vpop.xlane.xlu0 %6929
    %v6931 = vsel %vm360, %v6912, 0.0
    %6932 = vadd.xlane.f32.xlu0 %v6931
    %v6933 = vpop.xlane.xlu0 %6932
    %v6934 = vsel %vm360, %v6914, 0.0
    %6935 = vadd.xlane.f32.xlu0 %v6934
    %v6936 = vpop.xlane.xlu0 %6935
    %v6937 = vsel %vm360, %v6916, 0.0
    %6938 = vadd.xlane.f32.xlu0 %v6937
    %v6939 = vpop.xlane.xlu0 %6938
    %v6940 = vsel %vm360, %v6918, 0.0
    %6941 = vadd.xlane.f32.xlu0 %v6940
    %v6942 = vpop.xlane.xlu0 %6941
    %v6943 = vrcp.pop %v6921
    %v6944 = vmul.f32 %v6921, %v6943
    %v6945 = vsub.f32 1.0, %v6944
    %v6946 = vmul.f32 %v6943, %v6945
    %v6947 = vadd.f32 %v6943, %v6946
    %vm6948 = vweird.f32 %v6921
    %vm6949 = vweird.f32 %v6943
    %vm6950 = vmor %vm6948, %vm6949
    %v6951 = vsel %vm6950, %v6943, %v6947
    %v6952 = vand.u32 2147483647, %v6921
    %vm6953 = vcmp.eq.f32.partialorder %v6952, 8.507059e+37
    %v6954 = vand.u32 %v6921, 2147483648
    %v6955 = vor.u32 1.1754944e-38, %v6954
    %v6956 = vsel %vm6953, %v6955, %v6951
    %v6957 = vmul.f32 %v6904, %v6956
    %v6958 = vrcp.pop %v6924
    %v6959 = vmul.f32 %v6924, %v6958
    %v6960 = vsub.f32 1.0, %v6959
    %v6961 = vmul.f32 %v6958, %v6960
    %v6962 = vadd.f32 %v6958, %v6961
    %vm6963 = vweird.f32 %v6924
    %vm6964 = vweird.f32 %v6958
    %vm6965 = vmor %vm6963, %vm6964
    %v6966 = vsel %vm6965, %v6958, %v6962
    %v6967 = vand.u32 2147483647, %v6924
    %vm6968 = vcmp.eq.f32.partialorder %v6967, 8.507059e+37
    %v6969 = vand.u32 %v6924, 2147483648
    %v6970 = vor.u32 1.1754944e-38, %v6969
    %v6971 = vsel %vm6968, %v6970, %v6966
    %v6972 = vmul.f32 %v6906, %v6971
    %v6973 = vrcp.pop %v6927
    %v6974 = vmul.f32 %v6927, %v6973
    %v6975 = vsub.f32 1.0, %v6974
    %v6976 = vmul.f32 %v6973, %v6975
    %v6977 = vadd.f32 %v6973, %v6976
    %vm6978 = vweird.f32 %v6927
    %vm6979 = vweird.f32 %v6973
    %vm6980 = vmor %vm6978, %vm6979
    %v6981 = vsel %vm6980, %v6973, %v6977
    %v6982 = vand.u32 2147483647, %v6927
    %vm6983 = vcmp.eq.f32.partialorder %v6982, 8.507059e+37
    %v6984 = vand.u32 %v6927, 2147483648
    %v6985 = vor.u32 1.1754944e-38, %v6984
    %v6986 = vsel %vm6983, %v6985, %v6981
    %v6987 = vmul.f32 %v6908, %v6986
    %v6988 = vrcp.pop %v6930
    %v6989 = vmul.f32 %v6930, %v6988
    %v6990 = vsub.f32 1.0, %v6989
    %v6991 = vmul.f32 %v6988, %v6990
    %v6992 = vadd.f32 %v6988, %v6991
    %vm6993 = vweird.f32 %v6930
    %vm6994 = vweird.f32 %v6988
    %vm6995 = vmor %vm6993, %vm6994
    %v6996 = vsel %vm6995, %v6988, %v6992
    %v6997 = vand.u32 2147483647, %v6930
    %vm6998 = vcmp.eq.f32.partialorder %v6997, 8.507059e+37
    %v6999 = vand.u32 %v6930, 2147483648
    %v7000 = vor.u32 1.1754944e-38, %v6999
    %v7001 = vsel %vm6998, %v7000, %v6996
    %v7002 = vmul.f32 %v6910, %v7001
    %v7003 = vrcp.pop %v6933
    %v7004 = vmul.f32 %v6933, %v7003
    %v7005 = vsub.f32 1.0, %v7004
    %v7006 = vmul.f32 %v7003, %v7005
    %v7007 = vadd.f32 %v7003, %v7006
    %vm7008 = vweird.f32 %v6933
    %vm7009 = vweird.f32 %v7003
    %vm7010 = vmor %vm7008, %vm7009
    %v7011 = vsel %vm7010, %v7003, %v7007
    %v7012 = vand.u32 2147483647, %v6933
    %vm7013 = vcmp.eq.f32.partialorder %v7012, 8.507059e+37
    %v7014 = vand.u32 %v6933, 2147483648
    %v7015 = vor.u32 1.1754944e-38, %v7014
    %v7016 = vsel %vm7013, %v7015, %v7011
    %v7017 = vmul.f32 %v6912, %v7016
    %v7018 = vrcp.pop %v6936
    %v7019 = vmul.f32 %v6936, %v7018
    %v7020 = vsub.f32 1.0, %v7019
    %v7021 = vmul.f32 %v7018, %v7020
    %v7022 = vadd.f32 %v7018, %v7021
    %vm7023 = vweird.f32 %v6936
    %vm7024 = vweird.f32 %v7018
    %vm7025 = vmor %vm7023, %vm7024
    %v7026 = vsel %vm7025, %v7018, %v7022
    %v7027 = vand.u32 2147483647, %v6936
    %vm7028 = vcmp.eq.f32.partialorder %v7027, 8.507059e+37
    %v7029 = vand.u32 %v6936, 2147483648
    %v7030 = vor.u32 1.1754944e-38, %v7029
    %v7031 = vsel %vm7028, %v7030, %v7026
    %v7032 = vmul.f32 %v6914, %v7031
    %v7033 = vrcp.pop %v6939
    %v7034 = vmul.f32 %v6939, %v7033
    %v7035 = vsub.f32 1.0, %v7034
    %v7036 = vmul.f32 %v7033, %v7035
    %v7037 = vadd.f32 %v7033, %v7036
    %vm7038 = vweird.f32 %v6939
    %vm7039 = vweird.f32 %v7033
    %vm7040 = vmor %vm7038, %vm7039
    %v7041 = vsel %vm7040, %v7033, %v7037
    %v7042 = vand.u32 2147483647, %v6939
    %vm7043 = vcmp.eq.f32.partialorder %v7042, 8.507059e+37
    %v7044 = vand.u32 %v6939, 2147483648
    %v7045 = vor.u32 1.1754944e-38, %v7044
    %v7046 = vsel %vm7043, %v7045, %v7041
    %v7047 = vmul.f32 %v6916, %v7046
    %v7048 = vrcp.pop %v6942
    %v7049 = vmul.f32 %v6942, %v7048
    %v7050 = vsub.f32 1.0, %v7049
    %v7051 = vmul.f32 %v7048, %v7050
    %v7052 = vadd.f32 %v7048, %v7051
    %vm7053 = vweird.f32 %v6942
    %vm7054 = vweird.f32 %v7048
    %vm7055 = vmor %vm7053, %vm7054
    %v7056 = vsel %vm7055, %v7048, %v7052
    %v7057 = vand.u32 2147483647, %v6942
    %vm7058 = vcmp.eq.f32.partialorder %v7057, 8.507059e+37
    %v7059 = vand.u32 %v6942, 2147483648
    %v7060 = vor.u32 1.1754944e-38, %v7059
    %v7061 = vsel %vm7058, %v7060, %v7056
    %v7062 = vmul.f32 %v6918, %v7061
    %v7063 = vpack.c.bf16 %v6972, %v6957
    %v7064 = vpack.c.bf16 %v7002, %v6987
    %v7065 = vpack.c.bf16 %v7032, %v7017
    %v7066 = vpack.c.bf16 %v7062, %v7047
    %v7068 = vsel %vm360, %v7063, 0
    %v7071 = vsel %vm360, %v7064, 0
    %v7074 = vsel %vm360, %v7065, 0
    %v7077 = vsel %vm360, %v7066, 0
    %7079 = vmatpush.bf16.msra.mxu0 0
    %7080 = vmatpush.bf16.msra.mxu0 0
    %7081 = vmatpush.bf16.msra.mxu0 0
    %7082 = vmatpush.bf16.msra.mxu0 0
    %7083 = vmatpush.bf16.msra.mxu0 0
    %7084 = vmatpush.bf16.msra.mxu0 0
    %7085 = vmatpush.bf16.msra.mxu0 0
    %7086 = vmatpush.bf16.msra.mxu0 %v6811
    %7087 = vmatmul.bf16.gmra.mxu0 %v7068
    %v7088 = vpop.f32.mrf.mxu0
    %v7089 = vadd.f32 0.0, %v7088
    %v7090 = vpop.f32.mrf.mxu0
    %v7091 = vadd.f32 0.0, %v7090
    %7092 = vmatmul.bf16.gmra.mxu0 %v7071
    %v7093 = vpop.f32.mrf.mxu0
    %v7094 = vadd.f32 0.0, %v7093
    %v7095 = vpop.f32.mrf.mxu0
    %v7096 = vadd.f32 0.0, %v7095
    %7097 = vmatmul.bf16.gmra.mxu0 %v7074
    %v7098 = vpop.f32.mrf.mxu0
    %v7099 = vadd.f32 0.0, %v7098
    %v7100 = vpop.f32.mrf.mxu0
    %v7101 = vadd.f32 0.0, %v7100
    %7102 = vmatmul.bf16.gmra.mxu0 %v7077
    %v7103 = vpop.f32.mrf.mxu0
    %v7104 = vadd.f32 0.0, %v7103
    %v7105 = vpop.f32.mrf.mxu0
    %v7106 = vadd.f32 0.0, %v7105
    %7107 = vdwg.mxu0
    %v7108 = vmul.f32 %v7089, %v297
    %v7109 = vmul.f32 %v7091, %v297
    %v7110 = vmul.f32 %v7094, %v300
    %v7111 = vmul.f32 %v7096, %v300
    %v7112 = vadd.f32 %v7108, %v7110
    %v7113 = vadd.f32 %v7109, %v7111
    %v7114 = vmul.f32 %v7099, %v303
    %v7115 = vmul.f32 %v7101, %v303
    %v7116 = vadd.f32 %v7112, %v7114
    %v7117 = vadd.f32 %v7113, %v7115
    %v7118 = vmul.f32 %v7104, %v306
    %v7119 = vmul.f32 %v7106, %v306
    %v7120 = vadd.f32 %v7116, %v7118
    %v7121 = vadd.f32 %v7117, %v7119
    %v7122 = vpack.c.bf16 %v7121, %v7120
    %s7123 = scalar_lea.vmem %s8, 112
    %v7124 = vld [vmem:[%s7123] sm:$0xf]
    %v7125 = vld [vmem:[%s7123 + $0x4] sm:$0xf]
    %v7126 = vld [vmem:[%s7123 + $0x8] sm:$0xf]
    %v7127 = vld [vmem:[%s7123 + $0xc] sm:$0xf]
    %v7132 = vunpack.c.l.b16 %v7124
    %v7133 = vunpack.c.l.b16 %v7125
    %v7134 = vunpack.c.l.b16 %v7126
    %v7135 = vunpack.c.l.b16 %v7127
    %v7136 = vpack.c.b16 %v7133, %v7132
    %v7137 = vpack.c.b16 %v7135, %v7134
    %v7141 = vsel %vm145, %v7122, 0
    %7143 = vmatpush.bf16.msra.mxu0 0
    %7144 = vmatpush.bf16.msra.mxu0 0
    %7145 = vmatpush.bf16.msra.mxu0 0
    %7146 = vmatpush.bf16.msra.mxu0 0
    %7147 = vmatpush.bf16.msra.mxu0 0
    %7148 = vmatpush.bf16.msra.mxu0 0
    %7149 = vmatpush.bf16.msra.mxu0 %v7137
    %7150 = vmatpush.bf16.msra.mxu0 %v7136
    %7151 = vmatmul.bf16.gmra.mxu0 %v7141
    %v7152 = vpop.f32.mrf.mxu0
    %v7153 = vadd.f32 0.0, %v7152
    %v7154 = vpop.f32.mrf.mxu0
    %v7155 = vadd.f32 0.0, %v7154
    %7156 = vdwg.mxu0
    %v7157 = vadd.f32 %v6683, %v7153
    %v7158 = vadd.f32 %v6684, %v7155
    %s7159 = scalar_lea.vmem %s9, 7
    %v7160 = vld [vmem:[%s7159] sm:$0x1]
    %v7161 = vmul.f32 %v7157, %v7157
    %v7162 = vmul.f32 %v7158, %v7158
    %v7163 = vsel %vm145, %v7161, 0.0
    %7164 = vadd.xlane.f32.xlu0 %v7163
    %v7165 = vpop.xlane.xlu0 %7164
    %v7166 = vsel %vm145, %v7162, 0.0
    %7167 = vadd.xlane.f32.xlu0 %v7166
    %v7168 = vpop.xlane.xlu0 %7167
    %v7169 = vmul.f32 %v7165, %v158
    %v7170 = vmul.f32 %v7168, %v158
    %v7171 = vadd.f32 %v7169, 1e-06
    %v7172 = vadd.f32 %v7170, 1e-06
    %v7173 = vrsqrt.pop %v7171
    %v7174 = vmul.f32 %v7173, %v7171
    %v7175 = vmul.f32 %v7174, %v7173
    %v7176 = vmul.f32 0.5, %v7175
    %v7177 = vsub.f32 1.5, %v7176
    %v7178 = vmul.f32 %v7173, %v7177
    %vm7179 = vweird.f32 %v7171
    %vm7180 = vweird.f32 %v7173
    %vm7181 = vmor %vm7179, %vm7180
    %v7182 = vsel %vm7181, %v7173, %v7178
    %v7183 = vrsqrt.pop %v7172
    %v7184 = vmul.f32 %v7183, %v7172
    %v7185 = vmul.f32 %v7184, %v7183
    %v7186 = vmul.f32 0.5, %v7185
    %v7187 = vsub.f32 1.5, %v7186
    %v7188 = vmul.f32 %v7183, %v7187
    %vm7189 = vweird.f32 %v7172
    %vm7190 = vweird.f32 %v7183
    %vm7191 = vmor %vm7189, %vm7190
    %v7192 = vsel %vm7191, %v7183, %v7188
    %v7193 = vmul.f32 %v7157, %v7182
    %v7194 = vmul.f32 %v7158, %v7192
    %v7195 = vunpack.c.l.bf16 %v7160
    %v7196 = vperm.slane %v7195, 0
    %v7197 = vmul.f32 %v7193, %v7196
    %v7198 = vmul.f32 %v7194, %v7196
    %v7199 = vpack.c.bf16 %v7198, %v7197
    %s7200 = scalar_lea.vmem [#allocation2], 112
    %v7201 = vld [vmem:[%s7200] sm:$0xf]
    %v7202 = vld [vmem:[%s7200 + $0x4] sm:$0xf]
    %v7203 = vld [vmem:[%s7200 + $0x8] sm:$0xf]
    %v7204 = vld [vmem:[%s7200 + $0xc] sm:$0xf]
    %v7209 = vunpack.c.l.b16 %v7201
    %v7210 = vunpack.c.l.b16 %v7202
    %v7211 = vunpack.c.l.b16 %v7203
    %v7212 = vunpack.c.l.b16 %v7204
    %v7213 = vpack.c.b16 %v7210, %v7209
    %v7214 = vpack.c.b16 %v7212, %v7211
    %v7218 = vsel %vm145, %v7199, 0
    %7220 = vmatpush.bf16.msra.mxu0 0
    %7221 = vmatpush.bf16.msra.mxu0 0
    %7222 = vmatpush.bf16.msra.mxu0 0
    %7223 = vmatpush.bf16.msra.mxu0 0
    %7224 = vmatpush.bf16.msra.mxu0 0
    %7225 = vmatpush.bf16.msra.mxu0 0
    %7226 = vmatpush.bf16.msra.mxu0 %v7214
    %7227 = vmatpush.bf16.msra.mxu0 %v7213
    %7228 = vmatmul.bf16.gmra.mxu0 %v7218
    %v7229 = vpop.f32.mrf.mxu0
    %v7230 = vadd.f32 0.0, %v7229
    %v7231 = vpop.f32.mrf.mxu0
    %v7232 = vadd.f32 0.0, %v7231
    %7233 = vdwg.mxu0
    %v7234 = vxor.u32 %v7230, 2147483648
    %v7235 = vxor.u32 %v7232, 2147483648
    %v7236 = vmul.f32 %v7234, 1.442695
    %v7237 = vpow.pop %v7236
    %v7238 = vmul.f32 %v7235, 1.442695
    %v7239 = vpow.pop %v7238
    %v7240 = vadd.f32 %v7237, 1.0
    %v7241 = vadd.f32 %v7239, 1.0
    %v7242 = vrcp.pop %v7240
    %v7243 = vmul.f32 %v7240, %v7242
    %v7244 = vsub.f32 1.0, %v7243
    %v7245 = vmul.f32 %v7242, %v7244
    %v7246 = vadd.f32 %v7242, %v7245
    %vm7247 = vweird.f32 %v7240
    %vm7248 = vweird.f32 %v7242
    %vm7249 = vmor %vm7247, %vm7248
    %v7250 = vsel %vm7249, %v7242, %v7246
    %v7251 = vand.u32 2147483647, %v7240
    %vm7252 = vcmp.eq.f32.partialorder %v7251, 8.507059e+37
    %v7253 = vand.u32 %v7240, 2147483648
    %v7254 = vor.u32 1.1754944e-38, %v7253
    %v7255 = vsel %vm7252, %v7254, %v7250
    %v7256 = vmul.f32 1.0, %v7255
    %v7257 = vrcp.pop %v7241
    %v7258 = vmul.f32 %v7241, %v7257
    %v7259 = vsub.f32 1.0, %v7258
    %v7260 = vmul.f32 %v7257, %v7259
    %v7261 = vadd.f32 %v7257, %v7260
    %vm7262 = vweird.f32 %v7241
    %vm7263 = vweird.f32 %v7257
    %vm7264 = vmor %vm7262, %vm7263
    %v7265 = vsel %vm7264, %v7257, %v7261
    %v7266 = vand.u32 2147483647, %v7241
    %vm7267 = vcmp.eq.f32.partialorder %v7266, 8.507059e+37
    %v7268 = vand.u32 %v7241, 2147483648
    %v7269 = vor.u32 1.1754944e-38, %v7268
    %v7270 = vsel %vm7267, %v7269, %v7265
    %v7271 = vmul.f32 1.0, %v7270
    %v7272 = vmul.f32 %v7230, %v7256
    %v7273 = vmul.f32 %v7232, %v7271
    %7276 = vrot.lane.b32.xlu0 %v7230, 64
    %v7277 = vpop.permute.xlu0 %7276
    %7278 = vrot.lane.b32.xlu0 %v7232, 64
    %v7279 = vpop.permute.xlu0 %7278
    %v7282 = vmul.f32 %v7272, %v7277
    %v7283 = vmul.f32 %v7273, %v7279
    %v7284 = vpack.c.bf16 %v7283, %v7282
    %s7285 = scalar_lea.vmem %s11, 224
    %v7286 = vld [vmem:[%s7285] sm:$0xf]
    %v7287 = vld [vmem:[%s7285 + $0x4] sm:$0xf]
    %v7288 = vld [vmem:[%s7285 + $0x8] sm:$0xf]
    %v7289 = vld [vmem:[%s7285 + $0xc] sm:$0xf]
    %v7290 = vld [vmem:[%s7285 + $0x10] sm:$0xf]
    %v7291 = vld [vmem:[%s7285 + $0x14] sm:$0xf]
    %v7292 = vld [vmem:[%s7285 + $0x18] sm:$0xf]
    %v7293 = vld [vmem:[%s7285 + $0x1c] sm:$0xf]
    %v7302 = vunpack.c.l.b16 %v7286
    %v7303 = vunpack.c.l.b16 %v7287
    %v7304 = vunpack.c.l.b16 %v7288
    %v7305 = vunpack.c.l.b16 %v7289
    %v7306 = vunpack.c.l.b16 %v7290
    %v7307 = vunpack.c.l.b16 %v7291
    %v7308 = vunpack.c.l.b16 %v7292
    %v7309 = vunpack.c.l.b16 %v7293
    %v7310 = vpack.c.b16 %v7303, %v7302
    %v7311 = vpack.c.b16 %v7305, %v7304
    %v7312 = vpack.c.b16 %v7307, %v7306
    %v7313 = vpack.c.b16 %v7309, %v7308
    %v7319 = vsel %vm111, %v7284, 0
    %7321 = vmatpush.bf16.msra.mxu0 0
    %7322 = vmatpush.bf16.msra.mxu0 0
    %7323 = vmatpush.bf16.msra.mxu0 0
    %7324 = vmatpush.bf16.msra.mxu0 0
    %7325 = vmatpush.bf16.msra.mxu0 %v7313
    %7326 = vmatpush.bf16.msra.mxu0 %v7312
    %7327 = vmatpush.bf16.msra.mxu0 %v7311
    %7328 = vmatpush.bf16.msra.mxu0 %v7310
    %7329 = vmatmul.bf16.gmra.mxu0 %v7319
    %v7330 = vpop.f32.mrf.mxu0
    %v7331 = vadd.f32 0.0, %v7330
    %v7332 = vpop.f32.mrf.mxu0
    %v7333 = vadd.f32 0.0, %v7332
    %7334 = vdwg.mxu0
    %v7335 = vadd.f32 %v7157, %v7331
    %v7336 = vadd.f32 %v7158, %v7333
    %v7337 = vld [vmem:[%s12] sm:$0x1]
    %v7338 = vmul.f32 %v7335, %v7335
    %v7339 = vmul.f32 %v7336, %v7336
    %v7340 = vsel %vm145, %v7338, 0.0
    %7341 = vadd.xlane.f32.xlu0 %v7340
    %v7342 = vpop.xlane.xlu0 %7341
    %v7343 = vsel %vm145, %v7339, 0.0
    %7344 = vadd.xlane.f32.xlu0 %v7343
    %v7345 = vpop.xlane.xlu0 %7344
    %v7346 = vmul.f32 %v7342, %v158
    %v7347 = vmul.f32 %v7345, %v158
    %v7348 = vadd.f32 %v7346, 1e-06
    %v7349 = vadd.f32 %v7347, 1e-06
    %v7350 = vrsqrt.pop %v7348
    %v7351 = vmul.f32 %v7350, %v7348
    %v7352 = vmul.f32 %v7351, %v7350
    %v7353 = vmul.f32 0.5, %v7352
    %v7354 = vsub.f32 1.5, %v7353
    %v7355 = vmul.f32 %v7350, %v7354
    %vm7356 = vweird.f32 %v7348
    %vm7357 = vweird.f32 %v7350
    %vm7358 = vmor %vm7356, %vm7357
    %v7359 = vsel %vm7358, %v7350, %v7355
    %v7360 = vrsqrt.pop %v7349
    %v7361 = vmul.f32 %v7360, %v7349
    %v7362 = vmul.f32 %v7361, %v7360
    %v7363 = vmul.f32 0.5, %v7362
    %v7364 = vsub.f32 1.5, %v7363
    %v7365 = vmul.f32 %v7360, %v7364
    %vm7366 = vweird.f32 %v7349
    %vm7367 = vweird.f32 %v7360
    %vm7368 = vmor %vm7366, %vm7367
    %v7369 = vsel %vm7368, %v7360, %v7365
    %v7370 = vmul.f32 %v7335, %v7359
    %v7371 = vmul.f32 %v7336, %v7369
    %v7372 = vunpack.c.l.bf16 %v7337
    %v7373 = vperm.slane %v7372, 0
    %v7374 = vmul.f32 %v7370, %v7373
    %v7375 = vmul.f32 %v7371, %v7373
    %v7376 = vpack.c.bf16 %v7375, %v7374
    %v7377 = vld [vmem:[%s13] sm:$0xf]
    %v7378 = vld [vmem:[%s13 + $0x4] sm:$0xf]
    %v7379 = vld [vmem:[%s13 + $0x8] sm:$0xf]
    %v7380 = vld [vmem:[%s13 + $0xc] sm:$0xf]
    %v7385 = vunpack.c.l.b16 %v7377
    %v7386 = vunpack.c.l.b16 %v7378
    %v7387 = vunpack.c.l.b16 %v7379
    %v7388 = vunpack.c.l.b16 %v7380
    %v7389 = vpack.c.b16 %v7386, %v7385
    %v7390 = vpack.c.b16 %v7388, %v7387
    %v7394 = vsel %vm145, %v7376, 0
    %7396 = vmatpush.bf16.msra.mxu0 0
    %7397 = vmatpush.bf16.msra.mxu0 0
    %7398 = vmatpush.bf16.msra.mxu0 0
    %7399 = vmatpush.bf16.msra.mxu0 0
    %7400 = vmatpush.bf16.msra.mxu0 0
    %7401 = vmatpush.bf16.msra.mxu0 0
    %7402 = vmatpush.bf16.msra.mxu0 %v7390
    %7403 = vmatpush.bf16.msra.mxu0 %v7389
    %7404 = vmatmul.bf16.gmra.mxu0 %v7394
    %v7405 = vpop.f32.mrf.mxu0
    %v7406 = vadd.f32 0.0, %v7405
    %v7407 = vpop.f32.mrf.mxu0
    %v7408 = vadd.f32 0.0, %v7407
    %7409 = vdwg.mxu0
    %7410 = vst [vmem:[%s14] sm:$0xff] %v7406
    %7411 = vst [vmem:[%s14 + $0x8] sm:$0xff] %v7408
    // Predicated region
    $region62: #{layer_loop_forward.1} parent=1 // pred_check
      _
    $region63: #{layer_loop_forward.1} parent=1 // pred_check_branch
      %7413 = sbr.rel (0) target = $region65
    $region64: #{layer_loop_forward.1} parent=1 // pred_region
      _
    $region65: #{layer_loop_forward.1} parent=1 // pred_fallthru
      _
    // Predicated region
    $region66: #{layer_loop_forward.1} parent=1 // pred_check
      _
    $region67: #{layer_loop_forward.1} parent=1 // pred_check_branch
      %7415 = sbr.rel (0) target = $region69
    $region68: #{layer_loop_forward.1} parent=1 // pred_region
      _
    $region69: #{layer_loop_forward.1} parent=1 // pred_fallthru
      _
    %7416 = vsyncpa [#allocation3], 1

</llo_original>
